<compile_context>
chip_gen: v7x
topology: tpu7x:2x2x1
jax: 0.10.0
libtpu: 0.0.40
codegen_flags: <defaults>
</compile_context>

<pallas_src>
import functools

import jax
import jax.numpy as jnp
from jax.experimental import pallas as pl
from jax.experimental.pallas import tpu as pltpu


def _round_up(x, m):
    return (x + m - 1) // m * m


# -----------------------------------------------------------------------------
# Fused forward kernel: [Linear -> non_lin]*(L-1) -> Linear -> sigmoid -> MCM
# -----------------------------------------------------------------------------
def _fused_forward_kernel(x_ref, *refs, num_layers, non_lin, training,
                          batch_subtile, ancestor_tile):
    """x_ref      : (BB, Pin0)      zero-padded activations (bf16 or f32).
       refs[2i]   : (Pin_i, Pout_i) layer-i weight, zero-padded, (in, out) layout.
       refs[2i+1] : (1, Pout_i)     layer-i bias (f32), zero-padded.
       refs[-2]   : (Pc, Pc)        hierarchy matrix R, int8 0/1, zero-padded.
       refs[-1]   : (BB, Pc)        output block (f32)."""
    o_ref = refs[-1]
    r_ref = refs[-2]

    h = x_ref[...]
    for i in range(num_layers):                          # static -> fully unrolled
        w = refs[2 * i][...]
        b = refs[2 * i + 1][...]
        # bf16 (or f32) MXU inputs, f32 accumulation.
        y = jnp.dot(h.astype(w.dtype), w, preferred_element_type=jnp.float32) + b
        if i == num_layers - 1:
            h = jax.nn.sigmoid(y)                        # (BB, Pc), f32 in [0, 1]
        elif non_lin == "tanh":
            h = jnp.tanh(y)
        else:
            h = jnp.maximum(y, 0.0)
        # TODO(synk): nn.Dropout is training-mode only (identity at inference);
        # the stochastic mask is intentionally omitted here.

    if training:
        o_ref[...] = h.astype(o_ref.dtype)
        return

    # MCM constraint (Lukasiewicz t-norm), reassociated (relu is monotone):
    #   out[b, i] = max_j relu(R[i,j] + h[b,j] - 1)
    #             = relu(max_j (R[i,j] + h[b,j]) - 1)
    # Padded columns are harmless: R_pad = 0 and h_pad = sigmoid(0) = 0.5, so
    # their contribution (0.5) never survives the (-1, relu).
    # Tiled over (batch sub-tile x ancestor tile) so the (TB, TI, Pc) broadcast
    # intermediate stays a few hundred KiB.
    BB = h.shape[0]
    Pc = r_ref.shape[0]
    TB = min(batch_subtile, BB)
    TI = min(ancestor_tile, Pc)
    for b0 in range(0, BB, TB):
        hb = h[b0:b0 + TB][:, None, :]                   # (TB, 1, Pc) -- hoisted
        for i0 in range(0, Pc, TI):
            r_blk = r_ref[i0:i0 + TI, :].astype(jnp.float32)   # int8 -> f32 tile
            t = r_blk[None, :, :] + hb                          # (TB, TI, Pc)
            o_ref[b0:b0 + TB, i0:i0 + TI] = jnp.maximum(
                jnp.max(t, axis=2) - 1.0, 0.0).astype(o_ref.dtype)
    # TODO(synk): for very large class counts (Pc >= ~2k) move the ancestor
    # tile onto an "arbitrary" grid axis and stream R in (TI, Pc) BlockSpec
    # tiles so only one R tile is VMEM-resident (v7x 64 MiB budget).


# -----------------------------------------------------------------------------
# Parameter packing (done ONCE, outside the per-call path)
# -----------------------------------------------------------------------------
def pack_params(weights, biases, R, *, use_bf16_matmul=True):
    """weights[i]: (in_i, out_i) (PyTorch weight transposed); biases[i]: (out_i,).
       R: (C, C) binary ancestry matrix. Returns padded device arrays."""
    wdt = jnp.bfloat16 if use_bf16_matmul else jnp.float32
    pw, pb = [], []
    for w, b in zip(weights, biases):
        din, dout = w.shape
        pin, pout = _round_up(din, 128), _round_up(dout, 128)
        wp = (jnp.zeros((pin, pout), jnp.float32)
              .at[:din, :dout].set(w.astype(jnp.float32)).astype(wdt))
        bp = jnp.zeros((1, pout), jnp.float32).at[0, :dout].set(
            b.astype(jnp.float32))
        pw.append(wp)
        pb.append(bp)
    C = R.shape[0]
    Pc = _round_up(C, 128)
    Rp = jnp.zeros((Pc, Pc), jnp.int8).at[:C, :C].set(R.astype(jnp.int8))
    return dict(weights=pw, biases=pb, R=Rp,
                input_dim=weights[0].shape[0], output_dim=weights[-1].shape[1])


# -----------------------------------------------------------------------------
# Forward wrapper
# -----------------------------------------------------------------------------
def constrained_ffnn_forward(x, params, *, non_lin="relu", training=False,
                             batch_block=None, batch_subtile=8,
                             single_buffer_consts=True):
    weights, biases, Rp = params["weights"], params["biases"], params["R"]
    in_dim, out_dim = params["input_dim"], params["output_dim"]
    L = len(weights)
    pin0 = weights[0].shape[0]
    pout = weights[-1].shape[1]
    assert Rp.shape == (pout, pout)

    B = x.shape[0]
    if batch_block is None:
        # Multiple of 16 (bf16 packs 2 rows/sublane); capped at 128 so the
        # constraint intermediate stays small and large batches give >= 2
        # "parallel" grid steps (v7x megacore uses both TensorCores).
        batch_block = min(_round_up(B, 16), 128)
    Bp = _round_up(B, batch_block)

    xdt = weights[0].dtype
    xp = jnp.zeros((Bp, pin0), xdt).at[:B, :in_dim].set(x.astype(xdt))

    kernel = functools.partial(
        _fused_forward_kernel, num_layers=L, non_lin=non_lin, training=training,
        batch_subtile=batch_subtile, ancestor_tile=128)

    flat_params = []
    for w, b in zip(weights, biases):
        flat_params += [w, b]

    def _launch(single_buffer):
        # Weights/bias/R have constant index maps -> the second pipeline buffer
        # is pure VMEM waste; request single buffering when supported.
        const_kw = {"pipeline_mode": pl.Buffered(1)} if single_buffer else {}
        in_specs = [pl.BlockSpec((batch_block, pin0), lambda i: (i, 0))]
        for p in flat_params:
            in_specs.append(pl.BlockSpec(p.shape, lambda i: (0, 0), **const_kw))
        in_specs.append(pl.BlockSpec(Rp.shape, lambda i: (0, 0), **const_kw))
        return pl.pallas_call(
            kernel,
            out_shape=jax.ShapeDtypeStruct((Bp, pout), jnp.float32),
            grid=(Bp // batch_block,),
            in_specs=in_specs,
            out_specs=pl.BlockSpec((batch_block, pout), lambda i: (i, 0)),
            compiler_params=pltpu.CompilerParams(
                dimension_semantics=("parallel",),
                vmem_limit_bytes=64 * 1024 * 1024),
        )(xp, *flat_params, Rp)

    if single_buffer_consts:
        try:
            out = _launch(True)
        except Exception:           # pl.Buffered(1) unsupported -> default pipeline
            out = _launch(False)
    else:
        out = _launch(False)

    return out[:B, :out_dim]


# -----------------------------------------------------------------------------
# Pure-JAX reference (for correctness check) + parameter construction
# -----------------------------------------------------------------------------
def reference_forward(x, weights, biases, R, *, non_lin="relu"):
    h = x
    L = len(weights)
    for i in range(L):
        y = jnp.dot(h, weights[i], precision=jax.lax.Precision.HIGHEST) + biases[i]
        if i == L - 1:
            h = jax.nn.sigmoid(y)
        elif non_lin == "tanh":
            h = jnp.tanh(y)
        else:
            h = jnp.maximum(y, 0.0)
    t = jnp.maximum(R[None, :, :] + h[:, None, :] - 1.0, 0.0)
    return jnp.max(t, axis=2)


def make_params(key, input_dim, hidden_dim, output_dim, num_layers):
    dims = []
    for i in range(num_layers):
        if i == 0:
            dims.append((input_dim, hidden_dim))
        elif i == num_layers - 1:
            dims.append((hidden_dim, output_dim))
        else:
            dims.append((hidden_dim, hidden_dim))
    weights, biases = [], []
    for (fan_in, fan_out) in dims:
        key, kw, kb = jax.random.split(key, 3)
        bound = 1.0 / jnp.sqrt(fan_in)
        weights.append(jax.random.uniform(kw, (fan_in, fan_out), jnp.float32,
                                          -bound, bound))
        biases.append(jax.random.uniform(kb, (fan_out,), jnp.float32,
                                         -bound, bound))
    return weights, biases, key


if __name__ == "__main__":
    batch = 8
    input_dim = 32
    hidden_dim = 32
    output_dim = 16
    hyperparams = {"num_layers": 3, "dropout": 0.7, "non_lin": "relu"}

    key = jax.random.PRNGKey(0)
    weights, biases, key = make_params(
        key, input_dim, hidden_dim, output_dim, hyperparams["num_layers"])

    # Deterministic binary hierarchy matrix R (diagonal set: every class is its
    # own ancestor), shape (output_dim, output_dim).
    key, kr = jax.random.split(key)
    R = (jax.random.uniform(kr, (output_dim, output_dim)) > 0.7)
    R = jnp.triu(R.astype(jnp.float32))
    R = jnp.maximum(R, jnp.eye(output_dim, dtype=jnp.float32))

    key, kx = jax.random.split(key)
    x = jax.random.normal(kx, (batch, input_dim), jnp.float32)

    ref = reference_forward(x, weights, biases, R, non_lin=hyperparams["non_lin"])

    # f32 MXU path: tight correctness check.
    params_f32 = pack_params(weights, biases, R, use_bf16_matmul=False)
    out_f32 = constrained_ffnn_forward(
        x, params_f32, non_lin=hyperparams["non_lin"], training=False)
    out_f32 = jax.block_until_ready(out_f32)
    assert out_f32.shape == (batch, output_dim)
    assert bool(jnp.all(jnp.isfinite(out_f32)))
    assert bool(jnp.allclose(out_f32, ref, atol=2e-3, rtol=2e-3)), \
        f"f32 max abs err {float(jnp.max(jnp.abs(out_f32 - ref)))}"

    # bf16 MXU path (default perf config): looser tolerance (bf16 inputs).
    params_bf16 = pack_params(weights, biases, R, use_bf16_matmul=True)
    out_bf16 = constrained_ffnn_forward(
        x, params_bf16, non_lin=hyperparams["non_lin"], training=False)
    out_bf16 = jax.block_until_ready(out_bf16)
    assert out_bf16.shape == (batch, output_dim)
    assert bool(jnp.all(jnp.isfinite(out_bf16)))
    assert bool(jnp.allclose(out_bf16, ref, atol=5e-2, rtol=5e-2)), \
        f"bf16 max abs err {float(jnp.max(jnp.abs(out_bf16 - ref)))}"

    print("KERNEL_OK")
</pallas_src>

<mosaic_0001>
module attributes {stable_mosaic.version = 11 : i64} {
  func.func @_fused_forward_kernel(%arg0: i32, %arg1: memref<16x128xf32, #tpu.memory_space<vmem>>, %arg2: memref<128x128xf32, #tpu.memory_space<vmem>>, %arg3: memref<1x128xf32, #tpu.memory_space<vmem>>, %arg4: memref<128x128xf32, #tpu.memory_space<vmem>>, %arg5: memref<1x128xf32, #tpu.memory_space<vmem>>, %arg6: memref<128x128xf32, #tpu.memory_space<vmem>>, %arg7: memref<1x128xf32, #tpu.memory_space<vmem>>, %arg8: memref<128x128xi8, #tpu.memory_space<vmem>>, %arg9: memref<16x128xf32, #tpu.memory_space<vmem>>) attributes {dimension_semantics = [#tpu.dimension_semantics<parallel>], iteration_bounds = array<i64: 1>, scalar_prefetch = 0 : i64, scratch_operands = 0 : i64, tpu.core_type = #tpu.core_type<tc>, window_params = [{transform_indices = @transform_0, window_bounds = array<i64: 16, 128>}, {pipeline_mode = #tpu.pipeline_mode<synchronous>, transform_indices = @transform_1, window_bounds = array<i64: 128, 128>}, {pipeline_mode = #tpu.pipeline_mode<synchronous>, transform_indices = @transform_2, window_bounds = array<i64: 1, 128>}, {pipeline_mode = #tpu.pipeline_mode<synchronous>, transform_indices = @transform_3, window_bounds = array<i64: 128, 128>}, {pipeline_mode = #tpu.pipeline_mode<synchronous>, transform_indices = @transform_4, window_bounds = array<i64: 1, 128>}, {pipeline_mode = #tpu.pipeline_mode<synchronous>, transform_indices = @transform_5, window_bounds = array<i64: 128, 128>}, {pipeline_mode = #tpu.pipeline_mode<synchronous>, transform_indices = @transform_6, window_bounds = array<i64: 1, 128>}, {pipeline_mode = #tpu.pipeline_mode<synchronous>, transform_indices = @transform_7, window_bounds = array<i64: 128, 128>}, {transform_indices = @transform_8, window_bounds = array<i64: 16, 128>}]} {
    %c0 = arith.constant 0 : index
    %c0_0 = arith.constant 0 : index
    %0 = vector.load %arg1[%c0, %c0_0] : memref<16x128xf32, #tpu.memory_space<vmem>>, vector<16x128xf32>
    %c0_1 = arith.constant 0 : index
    %c0_2 = arith.constant 0 : index
    %1 = vector.load %arg2[%c0_1, %c0_2] : memref<128x128xf32, #tpu.memory_space<vmem>>, vector<128x128xf32>
    %c0_3 = arith.constant 0 : index
    %c0_4 = arith.constant 0 : index
    %2 = vector.load %arg3[%c0_3, %c0_4] : memref<1x128xf32, #tpu.memory_space<vmem>>, vector<1x128xf32>
    %cst = arith.constant dense<0.000000e+00> : vector<16x128xf32>
    %3 = tpu.matmul %0, %1, %cst {dimension_numbers = #tpu.dot_dimension_numbers<[1], [0], [0], [1], [0, 0, 1, 1], [], []>} : vector<16x128xf32>, vector<128x128xf32>, vector<16x128xf32> -> vector<16x128xf32>
    %4 = vector.broadcast %2 : vector<1x128xf32> to vector<16x128xf32>
    %5 = arith.addf %3, %4 : vector<16x128xf32>
    %cst_5 = arith.constant 0.000000e+00 : f32
    %6 = vector.broadcast %cst_5 : f32 to vector<16x128xf32>
    %7 = arith.maximumf %5, %6 : vector<16x128xf32>
    %c0_6 = arith.constant 0 : index
    %c0_7 = arith.constant 0 : index
    %8 = vector.load %arg4[%c0_6, %c0_7] : memref<128x128xf32, #tpu.memory_space<vmem>>, vector<128x128xf32>
    %c0_8 = arith.constant 0 : index
    %c0_9 = arith.constant 0 : index
    %9 = vector.load %arg5[%c0_8, %c0_9] : memref<1x128xf32, #tpu.memory_space<vmem>>, vector<1x128xf32>
    %cst_10 = arith.constant dense<0.000000e+00> : vector<16x128xf32>
    %10 = tpu.matmul %7, %8, %cst_10 {dimension_numbers = #tpu.dot_dimension_numbers<[1], [0], [0], [1], [0, 0, 1, 1], [], []>} : vector<16x128xf32>, vector<128x128xf32>, vector<16x128xf32> -> vector<16x128xf32>
    %11 = vector.broadcast %9 : vector<1x128xf32> to vector<16x128xf32>
    %12 = arith.addf %10, %11 : vector<16x128xf32>
    %cst_11 = arith.constant 0.000000e+00 : f32
    %13 = vector.broadcast %cst_11 : f32 to vector<16x128xf32>
    %14 = arith.maximumf %12, %13 : vector<16x128xf32>
    %c0_12 = arith.constant 0 : index
    %c0_13 = arith.constant 0 : index
    %15 = vector.load %arg6[%c0_12, %c0_13] : memref<128x128xf32, #tpu.memory_space<vmem>>, vector<128x128xf32>
    %c0_14 = arith.constant 0 : index
    %c0_15 = arith.constant 0 : index
    %16 = vector.load %arg7[%c0_14, %c0_15] : memref<1x128xf32, #tpu.memory_space<vmem>>, vector<1x128xf32>
    %cst_16 = arith.constant dense<0.000000e+00> : vector<16x128xf32>
    %17 = tpu.matmul %14, %15, %cst_16 {dimension_numbers = #tpu.dot_dimension_numbers<[1], [0], [0], [1], [0, 0, 1, 1], [], []>} : vector<16x128xf32>, vector<128x128xf32>, vector<16x128xf32> -> vector<16x128xf32>
    %18 = vector.broadcast %16 : vector<1x128xf32> to vector<16x128xf32>
    %19 = arith.addf %17, %18 : vector<16x128xf32>
    %20 = arith.negf %19 : vector<16x128xf32>
    %21 = math.exp %20 : vector<16x128xf32>
    %cst_17 = arith.constant 1.000000e+00 : f32
    %22 = vector.broadcast %cst_17 : f32 to vector<16x128xf32>
    %23 = arith.addf %22, %21 : vector<16x128xf32>
    %24 = arith.divf %22, %23 : vector<16x128xf32>
    %25 = vector.extract_strided_slice %24 {offsets = [0, 0], sizes = [8, 128], strides = [1, 1]} : vector<16x128xf32> to vector<8x128xf32>
    %26 = vector.shape_cast %25 : vector<8x128xf32> to vector<8x1x128xf32>
    %c0_18 = arith.constant 0 : index
    %c0_19 = arith.constant 0 : index
    %27 = vector.load %arg8[%c0_18, %c0_19] : memref<128x128xi8, #tpu.memory_space<vmem>>, vector<128x128xi8>
    %28 = arith.sitofp %27 : vector<128x128xi8> to vector<128x128xf32>
    %29 = vector.shape_cast %28 : vector<128x128xf32> to vector<1x128x128xf32>
    %30 = vector.broadcast %29 : vector<1x128x128xf32> to vector<8x128x128xf32>
    %31 = vector.broadcast %26 : vector<8x1x128xf32> to vector<8x128x128xf32>
    %32 = arith.addf %30, %31 : vector<8x128x128xf32>
    %cst_20 = arith.constant dense<0xFF800000> : vector<8x128xf32>
    %33 = vector.multi_reduction <maximumf>, %32, %cst_20 [2] : vector<8x128x128xf32> to vector<8x128xf32>
    %cst_21 = arith.constant 1.000000e+00 : f32
    %34 = vector.broadcast %cst_21 : f32 to vector<8x128xf32>
    %35 = arith.subf %33, %34 : vector<8x128xf32>
    %cst_22 = arith.constant 0.000000e+00 : f32
    %36 = vector.broadcast %cst_22 : f32 to vector<8x128xf32>
    %37 = arith.maximumf %35, %36 : vector<8x128xf32>
    %c0_23 = arith.constant 0 : index
    %c0_24 = arith.constant 0 : index
    %38 = vector.load %arg9[%c0_23, %c0_24] : memref<16x128xf32, #tpu.memory_space<vmem>>, vector<8x128xf32>
    tpu.vector_store %arg9[%c0_23, %c0_24], %37 {strides = array<i32>} : memref<16x128xf32, #tpu.memory_space<vmem>>, vector<8x128xf32>,
    %39 = vector.extract_strided_slice %24 {offsets = [8, 0], sizes = [8, 128], strides = [1, 1]} : vector<16x128xf32> to vector<8x128xf32>
    %40 = vector.shape_cast %39 : vector<8x128xf32> to vector<8x1x128xf32>
    %c0_25 = arith.constant 0 : index
    %c0_26 = arith.constant 0 : index
    %41 = vector.load %arg8[%c0_25, %c0_26] : memref<128x128xi8, #tpu.memory_space<vmem>>, vector<128x128xi8>
    %42 = arith.sitofp %41 : vector<128x128xi8> to vector<128x128xf32>
    %43 = vector.shape_cast %42 : vector<128x128xf32> to vector<1x128x128xf32>
    %44 = vector.broadcast %43 : vector<1x128x128xf32> to vector<8x128x128xf32>
    %45 = vector.broadcast %40 : vector<8x1x128xf32> to vector<8x128x128xf32>
    %46 = arith.addf %44, %45 : vector<8x128x128xf32>
    %cst_27 = arith.constant dense<0xFF800000> : vector<8x128xf32>
    %47 = vector.multi_reduction <maximumf>, %46, %cst_27 [2] : vector<8x128x128xf32> to vector<8x128xf32>
    %cst_28 = arith.constant 1.000000e+00 : f32
    %48 = vector.broadcast %cst_28 : f32 to vector<8x128xf32>
    %49 = arith.subf %47, %48 : vector<8x128xf32>
    %cst_29 = arith.constant 0.000000e+00 : f32
    %50 = vector.broadcast %cst_29 : f32 to vector<8x128xf32>
    %51 = arith.maximumf %49, %50 : vector<8x128xf32>
    %c8 = arith.constant 8 : index
    %c0_30 = arith.constant 0 : index
    %52 = vector.load %arg9[%c8, %c0_30] : memref<16x128xf32, #tpu.memory_space<vmem>>, vector<8x128xf32>
    tpu.vector_store %arg9[%c8, %c0_30], %51 {strides = array<i32>} : memref<16x128xf32, #tpu.memory_space<vmem>>, vector<8x128xf32>,
    return
  }
  func.func @transform_0(%arg0: i32) -> (i32, i32) {
    %c0_i32 = arith.constant 0 : i32
    %c0_i32_0 = arith.constant 0 : i32
    return %arg0, %c0_i32 : i32, i32
  }
  func.func @transform_1(%arg0: i32) -> (i32, i32) {
    %c0_i32 = arith.constant 0 : i32
    %c0_i32_0 = arith.constant 0 : i32
    %c0_i32_1 = arith.constant 0 : i32
    return %c0_i32, %c0_i32_0 : i32, i32
  }
  func.func @transform_2(%arg0: i32) -> (i32, i32) {
    %c0_i32 = arith.constant 0 : i32
    %c0_i32_0 = arith.constant 0 : i32
    %c0_i32_1 = arith.constant 0 : i32
    return %c0_i32, %c0_i32_0 : i32, i32
  }
  func.func @transform_3(%arg0: i32) -> (i32, i32) {
    %c0_i32 = arith.constant 0 : i32
    %c0_i32_0 = arith.constant 0 : i32
    %c0_i32_1 = arith.constant 0 : i32
    return %c0_i32, %c0_i32_0 : i32, i32
  }
  func.func @transform_4(%arg0: i32) -> (i32, i32) {
    %c0_i32 = arith.constant 0 : i32
    %c0_i32_0 = arith.constant 0 : i32
    %c0_i32_1 = arith.constant 0 : i32
    return %c0_i32, %c0_i32_0 : i32, i32
  }
  func.func @transform_5(%arg0: i32) -> (i32, i32) {
    %c0_i32 = arith.constant 0 : i32
    %c0_i32_0 = arith.constant 0 : i32
    %c0_i32_1 = arith.constant 0 : i32
    return %c0_i32, %c0_i32_0 : i32, i32
  }
  func.func @transform_6(%arg0: i32) -> (i32, i32) {
    %c0_i32 = arith.constant 0 : i32
    %c0_i32_0 = arith.constant 0 : i32
    %c0_i32_1 = arith.constant 0 : i32
    return %c0_i32, %c0_i32_0 : i32, i32
  }
  func.func @transform_7(%arg0: i32) -> (i32, i32) {
    %c0_i32 = arith.constant 0 : i32
    %c0_i32_0 = arith.constant 0 : i32
    %c0_i32_1 = arith.constant 0 : i32
    return %c0_i32, %c0_i32_0 : i32, i32
  }
  func.func @transform_8(%arg0: i32) -> (i32, i32) {
    %c0_i32 = arith.constant 0 : i32
    %c0_i32_0 = arith.constant 0 : i32
    return %arg0, %c0_i32 : i32, i32
  }
}

module attributes {stable_mosaic.version = 11 : i64} {
  func.func @_fused_forward_kernel(%arg0: i32, %arg1: memref<16x128xf32, #tpu.memory_space<vmem>>, %arg2: memref<128x128xf32, #tpu.memory_space<vmem>>, %arg3: memref<1x128xf32, #tpu.memory_space<vmem>>, %arg4: memref<128x128xf32, #tpu.memory_space<vmem>>, %arg5: memref<1x128xf32, #tpu.memory_space<vmem>>, %arg6: memref<128x128xf32, #tpu.memory_space<vmem>>, %arg7: memref<1x128xf32, #tpu.memory_space<vmem>>, %arg8: memref<128x128xi8, #tpu.memory_space<vmem>>, %arg9: memref<16x128xf32, #tpu.memory_space<vmem>>) attributes {dimension_semantics = [#tpu.dimension_semantics<parallel>], iteration_bounds = array<i64: 1>, scalar_prefetch = 0 : i64, scratch_operands = 0 : i64, tpu.core_type = #tpu.core_type<tc>, window_params = [{transform_indices = @transform_0, window_bounds = array<i64: 16, 128>}, {pipeline_mode = #tpu.pipeline_mode<synchronous>, transform_indices = @transform_1, window_bounds = array<i64: 128, 128>}, {pipeline_mode = #tpu.pipeline_mode<synchronous>, transform_indices = @transform_2, window_bounds = array<i64: 1, 128>}, {pipeline_mode = #tpu.pipeline_mode<synchronous>, transform_indices = @transform_3, window_bounds = array<i64: 128, 128>}, {pipeline_mode = #tpu.pipeline_mode<synchronous>, transform_indices = @transform_4, window_bounds = array<i64: 1, 128>}, {pipeline_mode = #tpu.pipeline_mode<synchronous>, transform_indices = @transform_5, window_bounds = array<i64: 128, 128>}, {pipeline_mode = #tpu.pipeline_mode<synchronous>, transform_indices = @transform_6, window_bounds = array<i64: 1, 128>}, {pipeline_mode = #tpu.pipeline_mode<synchronous>, transform_indices = @transform_7, window_bounds = array<i64: 128, 128>}, {transform_indices = @transform_8, window_bounds = array<i64: 16, 128>}]} {
    %c0 = arith.constant 0 : index
    %c0_0 = arith.constant 0 : index
    %0 = vector.load %arg1[%c0, %c0_0] : memref<16x128xf32, #tpu.memory_space<vmem>>, vector<16x128xf32>
    %c0_1 = arith.constant 0 : index
    %c0_2 = arith.constant 0 : index
    %1 = vector.load %arg2[%c0_1, %c0_2] : memref<128x128xf32, #tpu.memory_space<vmem>>, vector<128x128xf32>
    %c0_3 = arith.constant 0 : index
    %c0_4 = arith.constant 0 : index
    %2 = vector.load %arg3[%c0_3, %c0_4] : memref<1x128xf32, #tpu.memory_space<vmem>>, vector<1x128xf32>
    %cst = arith.constant dense<0.000000e+00> : vector<16x128xf32>
    %3 = tpu.matmul %0, %1, %cst {dimension_numbers = #tpu.dot_dimension_numbers<[1], [0], [0], [1], [0, 0, 1, 1], [], []>} : vector<16x128xf32>, vector<128x128xf32>, vector<16x128xf32> -> vector<16x128xf32>
    %4 = vector.broadcast %2 : vector<1x128xf32> to vector<16x128xf32>
    %5 = arith.addf %3, %4 : vector<16x128xf32>
    %cst_5 = arith.constant 0.000000e+00 : f32
    %6 = vector.broadcast %cst_5 : f32 to vector<16x128xf32>
    %7 = arith.maximumf %5, %6 : vector<16x128xf32>
    %c0_6 = arith.constant 0 : index
    %c0_7 = arith.constant 0 : index
    %8 = vector.load %arg4[%c0_6, %c0_7] : memref<128x128xf32, #tpu.memory_space<vmem>>, vector<128x128xf32>
    %c0_8 = arith.constant 0 : index
    %c0_9 = arith.constant 0 : index
    %9 = vector.load %arg5[%c0_8, %c0_9] : memref<1x128xf32, #tpu.memory_space<vmem>>, vector<1x128xf32>
    %cst_10 = arith.constant dense<0.000000e+00> : vector<16x128xf32>
    %10 = tpu.matmul %7, %8, %cst_10 {dimension_numbers = #tpu.dot_dimension_numbers<[1], [0], [0], [1], [0, 0, 1, 1], [], []>} : vector<16x128xf32>, vector<128x128xf32>, vector<16x128xf32> -> vector<16x128xf32>
    %11 = vector.broadcast %9 : vector<1x128xf32> to vector<16x128xf32>
    %12 = arith.addf %10, %11 : vector<16x128xf32>
    %cst_11 = arith.constant 0.000000e+00 : f32
    %13 = vector.broadcast %cst_11 : f32 to vector<16x128xf32>
    %14 = arith.maximumf %12, %13 : vector<16x128xf32>
    %c0_12 = arith.constant 0 : index
    %c0_13 = arith.constant 0 : index
    %15 = vector.load %arg6[%c0_12, %c0_13] : memref<128x128xf32, #tpu.memory_space<vmem>>, vector<128x128xf32>
    %c0_14 = arith.constant 0 : index
    %c0_15 = arith.constant 0 : index
    %16 = vector.load %arg7[%c0_14, %c0_15] : memref<1x128xf32, #tpu.memory_space<vmem>>, vector<1x128xf32>
    %cst_16 = arith.constant dense<0.000000e+00> : vector<16x128xf32>
    %17 = tpu.matmul %14, %15, %cst_16 {dimension_numbers = #tpu.dot_dimension_numbers<[1], [0], [0], [1], [0, 0, 1, 1], [], []>} : vector<16x128xf32>, vector<128x128xf32>, vector<16x128xf32> -> vector<16x128xf32>
    %18 = vector.broadcast %16 : vector<1x128xf32> to vector<16x128xf32>
    %19 = arith.addf %17, %18 : vector<16x128xf32>
    %20 = arith.negf %19 : vector<16x128xf32>
    %21 = math.exp %20 : vector<16x128xf32>
    %cst_17 = arith.constant 1.000000e+00 : f32
    %22 = vector.broadcast %cst_17 : f32 to vector<16x128xf32>
    %23 = arith.addf %22, %21 : vector<16x128xf32>
    %24 = arith.divf %22, %23 : vector<16x128xf32>
    %25 = vector.extract_strided_slice %24 {offsets = [0, 0], sizes = [8, 128], strides = [1, 1]} : vector<16x128xf32> to vector<8x128xf32>
    %26 = vector.shape_cast %25 : vector<8x128xf32> to vector<8x1x128xf32>
    %c0_18 = arith.constant 0 : index
    %c0_19 = arith.constant 0 : index
    %27 = vector.load %arg8[%c0_18, %c0_19] : memref<128x128xi8, #tpu.memory_space<vmem>>, vector<128x128xi8>
    %28 = arith.sitofp %27 : vector<128x128xi8> to vector<128x128xf32>
    %29 = vector.shape_cast %28 : vector<128x128xf32> to vector<1x128x128xf32>
    %30 = vector.broadcast %29 : vector<1x128x128xf32> to vector<8x128x128xf32>
    %31 = vector.broadcast %26 : vector<8x1x128xf32> to vector<8x128x128xf32>
    %32 = arith.addf %30, %31 : vector<8x128x128xf32>
    %cst_20 = arith.constant dense<0xFF800000> : vector<8x128xf32>
    %33 = vector.multi_reduction <maximumf>, %32, %cst_20 [2] : vector<8x128x128xf32> to vector<8x128xf32>
    %cst_21 = arith.constant 1.000000e+00 : f32
    %34 = vector.broadcast %cst_21 : f32 to vector<8x128xf32>
    %35 = arith.subf %33, %34 : vector<8x128xf32>
    %cst_22 = arith.constant 0.000000e+00 : f32
    %36 = vector.broadcast %cst_22 : f32 to vector<8x128xf32>
    %37 = arith.maximumf %35, %36 : vector<8x128xf32>
    %c0_23 = arith.constant 0 : index
    %c0_24 = arith.constant 0 : index
    %38 = vector.load %arg9[%c0_23, %c0_24] : memref<16x128xf32, #tpu.memory_space<vmem>>, vector<8x128xf32>
    tpu.vector_store %arg9[%c0_23, %c0_24], %37 {strides = array<i32>} : memref<16x128xf32, #tpu.memory_space<vmem>>, vector<8x128xf32>,
    %39 = vector.extract_strided_slice %24 {offsets = [8, 0], sizes = [8, 128], strides = [1, 1]} : vector<16x128xf32> to vector<8x128xf32>
    %40 = vector.shape_cast %39 : vector<8x128xf32> to vector<8x1x128xf32>
    %c0_25 = arith.constant 0 : index
    %c0_26 = arith.constant 0 : index
    %41 = vector.load %arg8[%c0_25, %c0_26] : memref<128x128xi8, #tpu.memory_space<vmem>>, vector<128x128xi8>
    %42 = arith.sitofp %41 : vector<128x128xi8> to vector<128x128xf32>
    %43 = vector.shape_cast %42 : vector<128x128xf32> to vector<1x128x128xf32>
    %44 = vector.broadcast %43 : vector<1x128x128xf32> to vector<8x128x128xf32>
    %45 = vector.broadcast %40 : vector<8x1x128xf32> to vector<8x128x128xf32>
    %46 = arith.addf %44, %45 : vector<8x128x128xf32>
    %cst_27 = arith.constant dense<0xFF800000> : vector<8x128xf32>
    %47 = vector.multi_reduction <maximumf>, %46, %cst_27 [2] : vector<8x128x128xf32> to vector<8x128xf32>
    %cst_28 = arith.constant 1.000000e+00 : f32
    %48 = vector.broadcast %cst_28 : f32 to vector<8x128xf32>
    %49 = arith.subf %47, %48 : vector<8x128xf32>
    %cst_29 = arith.constant 0.000000e+00 : f32
    %50 = vector.broadcast %cst_29 : f32 to vector<8x128xf32>
    %51 = arith.maximumf %49, %50 : vector<8x128xf32>
    %c8 = arith.constant 8 : index
    %c0_30 = arith.constant 0 : index
    %52 = vector.load %arg9[%c8, %c0_30] : memref<16x128xf32, #tpu.memory_space<vmem>>, vector<8x128xf32>
    tpu.vector_store %arg9[%c8, %c0_30], %51 {strides = array<i32>} : memref<16x128xf32, #tpu.memory_space<vmem>>, vector<8x128xf32>,
    return
  }
  func.func @transform_0(%arg0: i32) -> (i32, i32) {
    %c0_i32 = arith.constant 0 : i32
    %c0_i32_0 = arith.constant 0 : i32
    return %arg0, %c0_i32 : i32, i32
  }
  func.func @transform_1(%arg0: i32) -> (i32, i32) {
    %c0_i32 = arith.constant 0 : i32
    %c0_i32_0 = arith.constant 0 : i32
    %c0_i32_1 = arith.constant 0 : i32
    return %c0_i32, %c0_i32_0 : i32, i32
  }
  func.func @transform_2(%arg0: i32) -> (i32, i32) {
    %c0_i32 = arith.constant 0 : i32
    %c0_i32_0 = arith.constant 0 : i32
    %c0_i32_1 = arith.constant 0 : i32
    return %c0_i32, %c0_i32_0 : i32, i32
  }
  func.func @transform_3(%arg0: i32) -> (i32, i32) {
    %c0_i32 = arith.constant 0 : i32
    %c0_i32_0 = arith.constant 0 : i32
    %c0_i32_1 = arith.constant 0 : i32
    return %c0_i32, %c0_i32_0 : i32, i32
  }
  func.func @transform_4(%arg0: i32) -> (i32, i32) {
    %c0_i32 = arith.constant 0 : i32
    %c0_i32_0 = arith.constant 0 : i32
    %c0_i32_1 = arith.constant 0 : i32
    return %c0_i32, %c0_i32_0 : i32, i32
  }
  func.func @transform_5(%arg0: i32) -> (i32, i32) {
    %c0_i32 = arith.constant 0 : i32
    %c0_i32_0 = arith.constant 0 : i32
    %c0_i32_1 = arith.constant 0 : i32
    return %c0_i32, %c0_i32_0 : i32, i32
  }
  func.func @transform_6(%arg0: i32) -> (i32, i32) {
    %c0_i32 = arith.constant 0 : i32
    %c0_i32_0 = arith.constant 0 : i32
    %c0_i32_1 = arith.constant 0 : i32
    return %c0_i32, %c0_i32_0 : i32, i32
  }
  func.func @transform_7(%arg0: i32) -> (i32, i32) {
    %c0_i32 = arith.constant 0 : i32
    %c0_i32_0 = arith.constant 0 : i32
    %c0_i32_1 = arith.constant 0 : i32
    return %c0_i32, %c0_i32_0 : i32, i32
  }
  func.func @transform_8(%arg0: i32) -> (i32, i32) {
    %c0_i32 = arith.constant 0 : i32
    %c0_i32_0 = arith.constant 0 : i32
    return %arg0, %c0_i32 : i32, i32
  }
}

</mosaic_0001>

<llo_original>
// kernel: tpu_custom_call.1
$region0: #{tpu_custom_call.1}
  #allocation0 [shape = 'u32[]', space=smem, size = 0x4, offset = 0x4, fixed_abs, tag = 'smem constant byte address 0x4 - core index']
  #allocation1 [shape = 'u32[144,128]{1,0:T(1,128)}', space=vmem, size = 0x12000, scoped, tag = 'internal scratch']
  %s0 = inlined_call_operand.hbm [shape: f32[16,128], index: 0, kind: input, shape index: {}]
  %s1 = inlined_call_operand.hbm [shape: f32[128,128], index: 1, kind: input, shape index: {}]
  %s2 = inlined_call_operand.hbm [shape: f32[1,128], index: 2, kind: input, shape index: {}]
  %s3 = inlined_call_operand.hbm [shape: f32[128,128], index: 3, kind: input, shape index: {}]
  %s4 = inlined_call_operand.hbm [shape: f32[1,128], index: 4, kind: input, shape index: {}]
  %s5 = inlined_call_operand.hbm [shape: f32[128,128], index: 5, kind: input, shape index: {}]
  %s6 = inlined_call_operand.hbm [shape: f32[1,128], index: 6, kind: input, shape index: {}]
  %s7 = inlined_call_operand.hbm [shape: s8[128,128], index: 7, kind: input, shape index: {}]
  %s8 = inlined_call_operand.hbm [shape: f32[16,128], index: 8, kind: output, shape index: {}]
  %s9 = sld [smem:[#allocation0]]
  $region74: #{tpu_custom_call.1} parent=0
    _
  %s11 = ssub.s32 1, %s9
  %s12 = scalar_select 0, %s11, %s9
  $region1: #{tpu_custom_call.1} parent=0
    #allocation2 [shape = 'u8[8192]{0}', space=vmem, size = 0x2000, scoped, tag = 'input window, operand 0, single buffered']
    #allocation3 [shape = 's32[1]{0}', space=sflag, size = 0x4, scoped, tag = 'scoped memory for tpu_custom_call.1']
    #allocation4 [shape = 's32[1]{0}', space=sflag, size = 0x4, scoped, tag = 'scoped memory for tpu_custom_call.1']
    #allocation5 [shape = 'u8[65536]{0}', space=vmem, size = 0x10000, scoped, tag = 'input window, operand 1, single buffered']
    #allocation6 [shape = 's32[1]{0}', space=sflag, size = 0x4, scoped, tag = 'scoped memory for tpu_custom_call.1']
    #allocation7 [shape = 'u8[512]{0}', space=vmem, size = 0x400, scoped, tag = 'input window, operand 2, single buffered']
    #allocation8 [shape = 'u8[65536]{0}', space=vmem, size = 0x10000, scoped, tag = 'input window, operand 3, single buffered']
    #allocation9 [shape = 's32[1]{0}', space=sflag, size = 0x4, scoped, tag = 'scoped memory for tpu_custom_call.1']
    #allocation10 [shape = 'u8[512]{0}', space=vmem, size = 0x400, scoped, tag = 'input window, operand 4, single buffered']
    #allocation11 [shape = 'u8[65536]{0}', space=vmem, size = 0x10000, scoped, tag = 'input window, operand 5, single buffered']
    #allocation12 [shape = 's32[1]{0}', space=sflag, size = 0x4, scoped, tag = 'scoped memory for tpu_custom_call.1']
    #allocation13 [shape = 'u8[512]{0}', space=vmem, size = 0x400, scoped, tag = 'input window, operand 6, single buffered']
    #allocation14 [shape = 'u8[16384]{0}', space=vmem, size = 0x4000, scoped, tag = 'input window, operand 7, single buffered']
    #allocation15 [shape = 's32[1]{0}', space=sflag, size = 0x4, scoped, tag = 'scoped memory for tpu_custom_call.1']
    #allocation16 [shape = 'u8[8192]{0}', space=vmem, size = 0x2000, scoped, tag = 'output window, operand 0, single buffered']
    %13 = vsyncpa [#allocation3], 0
    %14 = vsyncpa [#allocation6], 0
    %15 = vsyncpa [#allocation9], 0
    %16 = vsyncpa [#allocation12], 0
    %17 = vsyncpa [#allocation15], 0
    %18 = vsyncpa [#allocation4], 0
    // Predicated region
    $region2: #{tpu_custom_call.1} parent=1 // pred_check
      _
    $region3: #{tpu_custom_call.1} parent=1 // pred_check_branch
      %20 = sbr.rel (0) target = $region5
    $region4: #{tpu_custom_call.1} parent=1 // pred_region
      %s22 = ssub.s32 256, 256
      %23 = vsyncadd [#allocation3], %s22
      %s24 = sshll.u32 [#allocation2], 4
      %s25 = int_to_ptr.vmem [resolvable:$true] %s24
      %30 = dma.hbm_to_vmem [thread:$0]  %s0, 256, %s25, [#allocation3], 128, 128, 8
    $region5: #{tpu_custom_call.1} parent=1 // pred_fallthru
      _
    // Predicated region
    $region6: #{tpu_custom_call.1} parent=1 // pred_check
      _
    $region7: #{tpu_custom_call.1} parent=1 // pred_check_branch
      %32 = sbr.rel (0) target = $region9
    $region8: #{tpu_custom_call.1} parent=1 // pred_region
      %s34 = ssub.s32 2048, 2048
      %35 = vsyncadd [#allocation6], %s34
      %s36 = sshll.u32 [#allocation5], 4
      %s37 = int_to_ptr.vmem [resolvable:$true] %s36
      %42 = dma.hbm_to_vmem [thread:$0]  %s1, 2048, %s37, [#allocation6], 128, 128, 8
    $region9: #{tpu_custom_call.1} parent=1 // pred_fallthru
      _
    // Predicated region
    $region10: #{tpu_custom_call.1} parent=1 // pred_check
      _
    $region11: #{tpu_custom_call.1} parent=1 // pred_check_branch
      %44 = sbr.rel (0) target = $region13
    $region12: #{tpu_custom_call.1} parent=1 // pred_region
      %s46 = ssub.s32 16, 16
      %47 = vsyncadd [#allocation6], %s46
      %s49 = sshll.u32 [#allocation7], 4
      %s50 = int_to_ptr.vmem [resolvable:$true] %s49
      %52 = dma.hbm_to_vmem [thread:$0]  %s2, 16, %s50, [#allocation6]
    $region13: #{tpu_custom_call.1} parent=1 // pred_fallthru
      _
    // Predicated region
    $region14: #{tpu_custom_call.1} parent=1 // pred_check
      _
    $region15: #{tpu_custom_call.1} parent=1 // pred_check_branch
      %54 = sbr.rel (0) target = $region17
    $region16: #{tpu_custom_call.1} parent=1 // pred_region
      %s56 = ssub.s32 2048, 2048
      %57 = vsyncadd [#allocation9], %s56
      %s58 = sshll.u32 [#allocation8], 4
      %s59 = int_to_ptr.vmem [resolvable:$true] %s58
      %64 = dma.hbm_to_vmem [thread:$0]  %s3, 2048, %s59, [#allocation9], 128, 128, 8
    $region17: #{tpu_custom_call.1} parent=1 // pred_fallthru
      _
    // Predicated region
    $region18: #{tpu_custom_call.1} parent=1 // pred_check
      _
    $region19: #{tpu_custom_call.1} parent=1 // pred_check_branch
      %66 = sbr.rel (0) target = $region21
    $region20: #{tpu_custom_call.1} parent=1 // pred_region
      %s68 = ssub.s32 16, 16
      %69 = vsyncadd [#allocation9], %s68
      %s71 = sshll.u32 [#allocation10], 4
      %s72 = int_to_ptr.vmem [resolvable:$true] %s71
      %74 = dma.hbm_to_vmem [thread:$0]  %s4, 16, %s72, [#allocation9]
    $region21: #{tpu_custom_call.1} parent=1 // pred_fallthru
      _
    // Predicated region
    $region22: #{tpu_custom_call.1} parent=1 // pred_check
      _
    $region23: #{tpu_custom_call.1} parent=1 // pred_check_branch
      %76 = sbr.rel (0) target = $region25
    $region24: #{tpu_custom_call.1} parent=1 // pred_region
      %s78 = ssub.s32 2048, 2048
      %79 = vsyncadd [#allocation12], %s78
      %s80 = sshll.u32 [#allocation11], 4
      %s81 = int_to_ptr.vmem [resolvable:$true] %s80
      %86 = dma.hbm_to_vmem [thread:$0]  %s5, 2048, %s81, [#allocation12], 128, 128, 8
    $region25: #{tpu_custom_call.1} parent=1 // pred_fallthru
      _
    // Predicated region
    $region26: #{tpu_custom_call.1} parent=1 // pred_check
      _
    $region27: #{tpu_custom_call.1} parent=1 // pred_check_branch
      %88 = sbr.rel (0) target = $region29
    $region28: #{tpu_custom_call.1} parent=1 // pred_region
      %s90 = ssub.s32 16, 16
      %91 = vsyncadd [#allocation12], %s90
      %s93 = sshll.u32 [#allocation13], 4
      %s94 = int_to_ptr.vmem [resolvable:$true] %s93
      %96 = dma.hbm_to_vmem [thread:$0]  %s6, 16, %s94, [#allocation12]
    $region29: #{tpu_custom_call.1} parent=1 // pred_fallthru
      _
    // Predicated region
    $region30: #{tpu_custom_call.1} parent=1 // pred_check
      _
    $region31: #{tpu_custom_call.1} parent=1 // pred_check_branch
      %98 = sbr.rel (0) target = $region33
    $region32: #{tpu_custom_call.1} parent=1 // pred_region
      %s100 = ssub.s32 512, 512
      %101 = vsyncadd [#allocation15], %s100
      %s102 = sshll.u32 [#allocation14], 4
      %s103 = int_to_ptr.vmem [resolvable:$true] %s102
      %108 = dma.hbm_to_vmem [thread:$0]  %s7, 512, %s103, [#allocation15], 128, 128, 8
    $region33: #{tpu_custom_call.1} parent=1 // pred_fallthru
      _
    // Predicated region
    $region34: #{tpu_custom_call.1} parent=1 // pred_check
      _
    $region35: #{tpu_custom_call.1} parent=1 // pred_check_branch
      %110 = sbr.rel (0) target = $region37
    $region36: #{tpu_custom_call.1} parent=1 // pred_region
      %111 = dma.done [#allocation3], 256
    $region37: #{tpu_custom_call.1} parent=1 // pred_fallthru
      _
    // Predicated region
    $region38: #{tpu_custom_call.1} parent=1 // pred_check
      _
    $region39: #{tpu_custom_call.1} parent=1 // pred_check_branch
      %113 = sbr.rel (0) target = $region41
    $region40: #{tpu_custom_call.1} parent=1 // pred_region
      %114 = dma.done [#allocation6], 2048
    $region41: #{tpu_custom_call.1} parent=1 // pred_fallthru
      _
    // Predicated region
    $region42: #{tpu_custom_call.1} parent=1 // pred_check
      _
    $region43: #{tpu_custom_call.1} parent=1 // pred_check_branch
      %116 = sbr.rel (0) target = $region45
    $region44: #{tpu_custom_call.1} parent=1 // pred_region
      %117 = dma.done [#allocation6], 16
    $region45: #{tpu_custom_call.1} parent=1 // pred_fallthru
      _
    // Predicated region
    $region46: #{tpu_custom_call.1} parent=1 // pred_check
      _
    $region47: #{tpu_custom_call.1} parent=1 // pred_check_branch
      %119 = sbr.rel (0) target = $region49
    $region48: #{tpu_custom_call.1} parent=1 // pred_region
      %120 = dma.done [#allocation9], 2048
    $region49: #{tpu_custom_call.1} parent=1 // pred_fallthru
      _
    // Predicated region
    $region50: #{tpu_custom_call.1} parent=1 // pred_check
      _
    $region51: #{tpu_custom_call.1} parent=1 // pred_check_branch
      %122 = sbr.rel (0) target = $region53
    $region52: #{tpu_custom_call.1} parent=1 // pred_region
      %123 = dma.done [#allocation9], 16
    $region53: #{tpu_custom_call.1} parent=1 // pred_fallthru
      _
    // Predicated region
    $region54: #{tpu_custom_call.1} parent=1 // pred_check
      _
    $region55: #{tpu_custom_call.1} parent=1 // pred_check_branch
      %125 = sbr.rel (0) target = $region57
    $region56: #{tpu_custom_call.1} parent=1 // pred_region
      %126 = dma.done [#allocation12], 2048
    $region57: #{tpu_custom_call.1} parent=1 // pred_fallthru
      _
    // Predicated region
    $region58: #{tpu_custom_call.1} parent=1 // pred_check
      _
    $region59: #{tpu_custom_call.1} parent=1 // pred_check_branch
      %128 = sbr.rel (0) target = $region61
    $region60: #{tpu_custom_call.1} parent=1 // pred_region
      %129 = dma.done [#allocation12], 16
    $region61: #{tpu_custom_call.1} parent=1 // pred_fallthru
      _
    // Predicated region
    $region62: #{tpu_custom_call.1} parent=1 // pred_check
      _
    $region63: #{tpu_custom_call.1} parent=1 // pred_check_branch
      %131 = sbr.rel (0) target = $region65
    $region64: #{tpu_custom_call.1} parent=1 // pred_region
      %132 = dma.done [#allocation15], 512
    $region65: #{tpu_custom_call.1} parent=1 // pred_fallthru
      _
    %v133 = vld [vmem:[#allocation2] sm:$0xff]
    %v134 = vld [vmem:[#allocation2 + $0x8] sm:$0xff]
    %v135 = vld [vmem:[#allocation5] sm:$0xff]
    %v136 = vld [vmem:[#allocation5 + $0x8] sm:$0xff]
    %v137 = vld [vmem:[#allocation5 + $0x10] sm:$0xff]
    %v138 = vld [vmem:[#allocation5 + $0x18] sm:$0xff]
    %v139 = vld [vmem:[#allocation5 + $0x20] sm:$0xff]
    %v140 = vld [vmem:[#allocation5 + $0x28] sm:$0xff]
    %v141 = vld [vmem:[#allocation5 + $0x30] sm:$0xff]
    %v142 = vld [vmem:[#allocation5 + $0x38] sm:$0xff]
    %v143 = vld [vmem:[#allocation5 + $0x40] sm:$0xff]
    %v144 = vld [vmem:[#allocation5 + $0x48] sm:$0xff]
    %v145 = vld [vmem:[#allocation5 + $0x50] sm:$0xff]
    %v146 = vld [vmem:[#allocation5 + $0x58] sm:$0xff]
    %v147 = vld [vmem:[#allocation5 + $0x60] sm:$0xff]
    %v148 = vld [vmem:[#allocation5 + $0x68] sm:$0xff]
    %v149 = vld [vmem:[#allocation5 + $0x70] sm:$0xff]
    %v150 = vld [vmem:[#allocation5 + $0x78] sm:$0xff]
    %v151 = vld [vmem:[#allocation7] sm:$0x1]
    %v153 = vlaneseq
    %v154 = vshrl.u32 %v153, 7
    %v155 = vsub.s32 0, %v154
    %v156 = vrot.slane %v151, %v155
    %158 = vmatprep.subr.mxu0 0.0
    %159 = vmatpush1.msra.mxu0 %v135
    %160 = vmatprep.subr.mxu0 0.0
    %161 = vmatpush1.msra.mxu0 %v136
    %162 = vmatprep.subr.mxu0 0.0
    %163 = vmatpush1.msra.mxu0 %v137
    %164 = vmatprep.subr.mxu0 0.0
    %165 = vmatpush1.msra.mxu0 %v138
    %166 = vmatprep.subr.mxu0 0.0
    %167 = vmatpush1.msra.mxu0 %v139
    %168 = vmatprep.subr.mxu0 0.0
    %169 = vmatpush1.msra.mxu0 %v140
    %170 = vmatprep.subr.mxu0 0.0
    %171 = vmatpush1.msra.mxu0 %v141
    %172 = vmatprep.subr.mxu0 0.0
    %173 = vmatpush1.msra.mxu0 %v142
    %174 = vmatprep.subr.mxu0 0.0
    %175 = vmatpush1.msra.mxu0 %v143
    %176 = vmatprep.subr.mxu0 0.0
    %177 = vmatpush1.msra.mxu0 %v144
    %178 = vmatprep.subr.mxu0 0.0
    %179 = vmatpush1.msra.mxu0 %v145
    %180 = vmatprep.subr.mxu0 0.0
    %181 = vmatpush1.msra.mxu0 %v146
    %182 = vmatprep.subr.mxu0 0.0
    %183 = vmatpush1.msra.mxu0 %v147
    %184 = vmatprep.subr.mxu0 0.0
    %185 = vmatpush1.msra.mxu0 %v148
    %186 = vmatprep.subr.mxu0 0.0
    %187 = vmatpush1.msra.mxu0 %v149
    %188 = vmatprep.subr.mxu0 0.0
    %189 = vmatpush1.msra.mxu0 %v150
    %190 = vmatprep.subr.mxu0 0.0
    %191 = vmatpush1.msra.mxu0 0.0
    %192 = vmatprep.subr.mxu0 0.0
    %193 = vmatpush1.msra.mxu0 0.0
    %194 = vmatprep.subr.mxu0 0.0
    %195 = vmatpush1.msra.mxu0 0.0
    %196 = vmatprep.subr.mxu0 0.0
    %197 = vmatpush1.msra.mxu0 0.0
    %198 = vmatprep.subr.mxu0 0.0
    %199 = vmatpush1.msra.mxu0 0.0
    %200 = vmatprep.subr.mxu0 0.0
    %201 = vmatpush1.msra.mxu0 0.0
    %202 = vmatprep.subr.mxu0 0.0
    %203 = vmatpush1.msra.mxu0 0.0
    %204 = vmatprep.subr.mxu0 0.0
    %205 = vmatpush1.msra.mxu0 0.0
    %206 = vmatprep.subr.mxu0 0.0
    %207 = vmatpush1.msra.mxu0 0.0
    %208 = vmatprep.subr.mxu0 0.0
    %209 = vmatpush1.msra.mxu0 0.0
    %210 = vmatprep.subr.mxu0 0.0
    %211 = vmatpush1.msra.mxu0 0.0
    %212 = vmatprep.subr.mxu0 0.0
    %213 = vmatpush1.msra.mxu0 0.0
    %214 = vmatprep.subr.mxu0 0.0
    %215 = vmatpush1.msra.mxu0 0.0
    %216 = vmatprep.subr.mxu0 0.0
    %217 = vmatpush1.msra.mxu0 0.0
    %218 = vmatprep.subr.mxu0 0.0
    %219 = vmatpush1.msra.mxu0 0.0
    %220 = vmatprep.subr.mxu0 0.0
    %221 = vmatpush1.msra.mxu0 0.0
    %222 = vmatprep.mubr.f32.mxu0 0.0
    %223 = vmatmul.mubr.f32.gmra.mrb[0].mxu0 %v133
    %v224 = vpop.f32.mrb[0].mxu0
    %v225 = vadd.f32 %v156, %v224
    %v226 = vpop.f32.mrb[0].mxu0
    %227 = vmatprep.mubr.f32.mxu0 0.0
    %228 = vmatmul.mubr.f32.gmra.mrb[0].mxu0 %v134
    %v229 = vpop.f32.mrb[0].mxu0
    %v230 = vadd.f32 %v156, %v229
    %v231 = vpop.f32.mrb[0].mxu0
    %232 = vdwg.mxu0
    %v233 = vmax.f32 %v225, 0.0
    %v234 = vmax.f32 %v230, 0.0
    %v235 = vld [vmem:[#allocation8] sm:$0xff]
    %v236 = vld [vmem:[#allocation8 + $0x8] sm:$0xff]
    %v237 = vld [vmem:[#allocation8 + $0x10] sm:$0xff]
    %v238 = vld [vmem:[#allocation8 + $0x18] sm:$0xff]
    %v239 = vld [vmem:[#allocation8 + $0x20] sm:$0xff]
    %v240 = vld [vmem:[#allocation8 + $0x28] sm:$0xff]
    %v241 = vld [vmem:[#allocation8 + $0x30] sm:$0xff]
    %v242 = vld [vmem:[#allocation8 + $0x38] sm:$0xff]
    %v243 = vld [vmem:[#allocation8 + $0x40] sm:$0xff]
    %v244 = vld [vmem:[#allocation8 + $0x48] sm:$0xff]
    %v245 = vld [vmem:[#allocation8 + $0x50] sm:$0xff]
    %v246 = vld [vmem:[#allocation8 + $0x58] sm:$0xff]
    %v247 = vld [vmem:[#allocation8 + $0x60] sm:$0xff]
    %v248 = vld [vmem:[#allocation8 + $0x68] sm:$0xff]
    %v249 = vld [vmem:[#allocation8 + $0x70] sm:$0xff]
    %v250 = vld [vmem:[#allocation8 + $0x78] sm:$0xff]
    %v251 = vld [vmem:[#allocation10] sm:$0x1]
    %v253 = vlaneseq
    %v254 = vshrl.u32 %v253, 7
    %v255 = vsub.s32 0, %v254
    %v256 = vrot.slane %v251, %v255
    %258 = vmatprep.subr.mxu0 0.0
    %259 = vmatpush1.msra.mxu0 %v235
    %260 = vmatprep.subr.mxu0 0.0
    %261 = vmatpush1.msra.mxu0 %v236
    %262 = vmatprep.subr.mxu0 0.0
    %263 = vmatpush1.msra.mxu0 %v237
    %264 = vmatprep.subr.mxu0 0.0
    %265 = vmatpush1.msra.mxu0 %v238
    %266 = vmatprep.subr.mxu0 0.0
    %267 = vmatpush1.msra.mxu0 %v239
    %268 = vmatprep.subr.mxu0 0.0
    %269 = vmatpush1.msra.mxu0 %v240
    %270 = vmatprep.subr.mxu0 0.0
    %271 = vmatpush1.msra.mxu0 %v241
    %272 = vmatprep.subr.mxu0 0.0
    %273 = vmatpush1.msra.mxu0 %v242
    %274 = vmatprep.subr.mxu0 0.0
    %275 = vmatpush1.msra.mxu0 %v243
    %276 = vmatprep.subr.mxu0 0.0
    %277 = vmatpush1.msra.mxu0 %v244
    %278 = vmatprep.subr.mxu0 0.0
    %279 = vmatpush1.msra.mxu0 %v245
    %280 = vmatprep.subr.mxu0 0.0
    %281 = vmatpush1.msra.mxu0 %v246
    %282 = vmatprep.subr.mxu0 0.0
    %283 = vmatpush1.msra.mxu0 %v247
    %284 = vmatprep.subr.mxu0 0.0
    %285 = vmatpush1.msra.mxu0 %v248
    %286 = vmatprep.subr.mxu0 0.0
    %287 = vmatpush1.msra.mxu0 %v249
    %288 = vmatprep.subr.mxu0 0.0
    %289 = vmatpush1.msra.mxu0 %v250
    %290 = vmatprep.subr.mxu0 0.0
    %291 = vmatpush1.msra.mxu0 0.0
    %292 = vmatprep.subr.mxu0 0.0
    %293 = vmatpush1.msra.mxu0 0.0
    %294 = vmatprep.subr.mxu0 0.0
    %295 = vmatpush1.msra.mxu0 0.0
    %296 = vmatprep.subr.mxu0 0.0
    %297 = vmatpush1.msra.mxu0 0.0
    %298 = vmatprep.subr.mxu0 0.0
    %299 = vmatpush1.msra.mxu0 0.0
    %300 = vmatprep.subr.mxu0 0.0
    %301 = vmatpush1.msra.mxu0 0.0
    %302 = vmatprep.subr.mxu0 0.0
    %303 = vmatpush1.msra.mxu0 0.0
    %304 = vmatprep.subr.mxu0 0.0
    %305 = vmatpush1.msra.mxu0 0.0
    %306 = vmatprep.subr.mxu0 0.0
    %307 = vmatpush1.msra.mxu0 0.0
    %308 = vmatprep.subr.mxu0 0.0
    %309 = vmatpush1.msra.mxu0 0.0
    %310 = vmatprep.subr.mxu0 0.0
    %311 = vmatpush1.msra.mxu0 0.0
    %312 = vmatprep.subr.mxu0 0.0
    %313 = vmatpush1.msra.mxu0 0.0
    %314 = vmatprep.subr.mxu0 0.0
    %315 = vmatpush1.msra.mxu0 0.0
    %316 = vmatprep.subr.mxu0 0.0
    %317 = vmatpush1.msra.mxu0 0.0
    %318 = vmatprep.subr.mxu0 0.0
    %319 = vmatpush1.msra.mxu0 0.0
    %320 = vmatprep.subr.mxu0 0.0
    %321 = vmatpush1.msra.mxu0 0.0
    %322 = vmatprep.mubr.f32.mxu0 0.0
    %323 = vmatmul.mubr.f32.gmra.mrb[0].mxu0 %v233
    %v324 = vpop.f32.mrb[0].mxu0
    %v325 = vadd.f32 %v256, %v324
    %v326 = vpop.f32.mrb[0].mxu0
    %327 = vmatprep.mubr.f32.mxu0 0.0
    %328 = vmatmul.mubr.f32.gmra.mrb[0].mxu0 %v234
    %v329 = vpop.f32.mrb[0].mxu0
    %v330 = vadd.f32 %v256, %v329
    %v331 = vpop.f32.mrb[0].mxu0
    %332 = vdwg.mxu0
    %v333 = vmax.f32 %v325, 0.0
    %v334 = vmax.f32 %v330, 0.0
    %v335 = vld [vmem:[#allocation11] sm:$0xff]
    %v336 = vld [vmem:[#allocation11 + $0x8] sm:$0xff]
    %v337 = vld [vmem:[#allocation11 + $0x10] sm:$0xff]
    %v338 = vld [vmem:[#allocation11 + $0x18] sm:$0xff]
    %v339 = vld [vmem:[#allocation11 + $0x20] sm:$0xff]
    %v340 = vld [vmem:[#allocation11 + $0x28] sm:$0xff]
    %v341 = vld [vmem:[#allocation11 + $0x30] sm:$0xff]
    %v342 = vld [vmem:[#allocation11 + $0x38] sm:$0xff]
    %v343 = vld [vmem:[#allocation11 + $0x40] sm:$0xff]
    %v344 = vld [vmem:[#allocation11 + $0x48] sm:$0xff]
    %v345 = vld [vmem:[#allocation11 + $0x50] sm:$0xff]
    %v346 = vld [vmem:[#allocation11 + $0x58] sm:$0xff]
    %v347 = vld [vmem:[#allocation11 + $0x60] sm:$0xff]
    %v348 = vld [vmem:[#allocation11 + $0x68] sm:$0xff]
    %v349 = vld [vmem:[#allocation11 + $0x70] sm:$0xff]
    %v350 = vld [vmem:[#allocation11 + $0x78] sm:$0xff]
    %v351 = vld [vmem:[#allocation13] sm:$0x1]
    %v353 = vlaneseq
    %v354 = vshrl.u32 %v353, 7
    %v355 = vsub.s32 0, %v354
    %v356 = vrot.slane %v351, %v355
    %358 = vmatprep.subr.mxu0 0.0
    %359 = vmatpush1.msra.mxu0 %v335
    %360 = vmatprep.subr.mxu0 0.0
    %361 = vmatpush1.msra.mxu0 %v336
    %362 = vmatprep.subr.mxu0 0.0
    %363 = vmatpush1.msra.mxu0 %v337
    %364 = vmatprep.subr.mxu0 0.0
    %365 = vmatpush1.msra.mxu0 %v338
    %366 = vmatprep.subr.mxu0 0.0
    %367 = vmatpush1.msra.mxu0 %v339
    %368 = vmatprep.subr.mxu0 0.0
    %369 = vmatpush1.msra.mxu0 %v340
    %370 = vmatprep.subr.mxu0 0.0
    %371 = vmatpush1.msra.mxu0 %v341
    %372 = vmatprep.subr.mxu0 0.0
    %373 = vmatpush1.msra.mxu0 %v342
    %374 = vmatprep.subr.mxu0 0.0
    %375 = vmatpush1.msra.mxu0 %v343
    %376 = vmatprep.subr.mxu0 0.0
    %377 = vmatpush1.msra.mxu0 %v344
    %378 = vmatprep.subr.mxu0 0.0
    %379 = vmatpush1.msra.mxu0 %v345
    %380 = vmatprep.subr.mxu0 0.0
    %381 = vmatpush1.msra.mxu0 %v346
    %382 = vmatprep.subr.mxu0 0.0
    %383 = vmatpush1.msra.mxu0 %v347
    %384 = vmatprep.subr.mxu0 0.0
    %385 = vmatpush1.msra.mxu0 %v348
    %386 = vmatprep.subr.mxu0 0.0
    %387 = vmatpush1.msra.mxu0 %v349
    %388 = vmatprep.subr.mxu0 0.0
    %389 = vmatpush1.msra.mxu0 %v350
    %390 = vmatprep.subr.mxu0 0.0
    %391 = vmatpush1.msra.mxu0 0.0
    %392 = vmatprep.subr.mxu0 0.0
    %393 = vmatpush1.msra.mxu0 0.0
    %394 = vmatprep.subr.mxu0 0.0
    %395 = vmatpush1.msra.mxu0 0.0
    %396 = vmatprep.subr.mxu0 0.0
    %397 = vmatpush1.msra.mxu0 0.0
    %398 = vmatprep.subr.mxu0 0.0
    %399 = vmatpush1.msra.mxu0 0.0
    %400 = vmatprep.subr.mxu0 0.0
    %401 = vmatpush1.msra.mxu0 0.0
    %402 = vmatprep.subr.mxu0 0.0
    %403 = vmatpush1.msra.mxu0 0.0
    %404 = vmatprep.subr.mxu0 0.0
    %405 = vmatpush1.msra.mxu0 0.0
    %406 = vmatprep.subr.mxu0 0.0
    %407 = vmatpush1.msra.mxu0 0.0
    %408 = vmatprep.subr.mxu0 0.0
    %409 = vmatpush1.msra.mxu0 0.0
    %410 = vmatprep.subr.mxu0 0.0
    %411 = vmatpush1.msra.mxu0 0.0
    %412 = vmatprep.subr.mxu0 0.0
    %413 = vmatpush1.msra.mxu0 0.0
    %414 = vmatprep.subr.mxu0 0.0
    %415 = vmatpush1.msra.mxu0 0.0
    %416 = vmatprep.subr.mxu0 0.0
    %417 = vmatpush1.msra.mxu0 0.0
    %418 = vmatprep.subr.mxu0 0.0
    %419 = vmatpush1.msra.mxu0 0.0
    %420 = vmatprep.subr.mxu0 0.0
    %421 = vmatpush1.msra.mxu0 0.0
    %422 = vmatprep.mubr.f32.mxu0 0.0
    %423 = vmatmul.mubr.f32.gmra.mrb[0].mxu0 %v333
    %v424 = vpop.f32.mrb[0].mxu0
    %v425 = vadd.f32 %v356, %v424
    %v426 = vpop.f32.mrb[0].mxu0
    %427 = vmatprep.mubr.f32.mxu0 0.0
    %428 = vmatmul.mubr.f32.gmra.mrb[0].mxu0 %v334
    %v429 = vpop.f32.mrb[0].mxu0
    %v430 = vadd.f32 %v356, %v429
    %v431 = vpop.f32.mrb[0].mxu0
    %432 = vdwg.mxu0
    %v433 = vxor.u32 %v425, 2147483648
    %v434 = vxor.u32 %v430, 2147483648
    %v435 = vmul.f32 %v433, 1.442695
    %v436 = vpow.pop %v435
    %v437 = vmul.f32 %v434, 1.442695
    %v438 = vpow.pop %v437
    %v439 = vadd.f32 %v436, 1.0
    %v440 = vadd.f32 %v438, 1.0
    %v441 = vrcp.pop %v439
    %v442 = vmul.f32 1.0, %v441
    %v443 = vrcp.pop %v440
    %v444 = vmul.f32 1.0, %v443
    %v446 = vcombine.high %v442, %v442
    %v448 = vunpack.c.l.s4 1966171168
    %v449 = vunpack.c.0.s8 %v448
    %v450 = vlaneseq
    %v451 = vshrl.u32 %v450, 7
    %v452 = vsub.s32 %v449, %v451
    %v453 = vrot.slane %v442, %v452
    %v455 = vunpack.c.l.s4 1966171168
    %v456 = vunpack.c.0.s8 %v455
    %v457 = vlaneseq
    %v458 = vshrl.u32 %v457, 7
    %v459 = vsub.s32 %v456, %v458
    %v460 = vrot.slane %v446, %v459
    %v461 = vcombine.high %v453, %v453
    %v462 = vcombine.high %v460, %v460
    %v464 = vunpack.c.l.s4 1966171168
    %v465 = vunpack.c.0.s8 %v464
    %v466 = vlaneseq
    %v467 = vshrl.u32 %v466, 7
    %v468 = vsub.s32 %v465, %v467
    %v469 = vrot.slane %v453, %v468
    %v471 = vunpack.c.l.s4 1966171168
    %v472 = vunpack.c.0.s8 %v471
    %v473 = vlaneseq
    %v474 = vshrl.u32 %v473, 7
    %v475 = vsub.s32 %v472, %v474
    %v476 = vrot.slane %v460, %v475
    %v478 = vunpack.c.l.s4 1966171168
    %v479 = vunpack.c.0.s8 %v478
    %v480 = vlaneseq
    %v481 = vshrl.u32 %v480, 7
    %v482 = vsub.s32 %v479, %v481
    %v483 = vrot.slane %v461, %v482
    %v485 = vunpack.c.l.s4 1966171168
    %v486 = vunpack.c.0.s8 %v485
    %v487 = vlaneseq
    %v488 = vshrl.u32 %v487, 7
    %v489 = vsub.s32 %v486, %v488
    %v490 = vrot.slane %v462, %v489
    %v491 = vcombine.high %v469, %v469
    %v492 = vcombine.high %v476, %v476
    %v493 = vcombine.high %v483, %v483
    %v494 = vcombine.high %v490, %v490
    %v495 = vld [vmem:[#allocation14] sm:$0xff]
    %v496 = vld [vmem:[#allocation14 + $0x8] sm:$0xff]
    %v497 = vld [vmem:[#allocation14 + $0x10] sm:$0xff]
    %v498 = vld [vmem:[#allocation14 + $0x18] sm:$0xff]
    %v499 = vunpack.c.0.s8 %v495
    %v500 = vunpack.c.1.s8 %v495
    %v501 = vunpack.c.2.s8 %v495
    %v502 = vunpack.c.3.s8 %v495
    %v503 = vunpack.c.0.s8 %v496
    %v504 = vunpack.c.1.s8 %v496
    %v505 = vunpack.c.2.s8 %v496
    %v506 = vunpack.c.3.s8 %v496
    %v507 = vunpack.c.0.s8 %v497
    %v508 = vunpack.c.1.s8 %v497
    %v509 = vunpack.c.2.s8 %v497
    %v510 = vunpack.c.3.s8 %v497
    %v511 = vunpack.c.0.s8 %v498
    %v512 = vunpack.c.1.s8 %v498
    %v513 = vunpack.c.2.s8 %v498
    %v514 = vunpack.c.3.s8 %v498
    %v515 = vcvt.s32.f32 %v499
    %v516 = vcvt.s32.f32 %v500
    %v517 = vcvt.s32.f32 %v501
    %v518 = vcvt.s32.f32 %v502
    %v519 = vcvt.s32.f32 %v503
    %v520 = vcvt.s32.f32 %v504
    %v521 = vcvt.s32.f32 %v505
    %v522 = vcvt.s32.f32 %v506
    %v523 = vcvt.s32.f32 %v507
    %v524 = vcvt.s32.f32 %v508
    %v525 = vcvt.s32.f32 %v509
    %v526 = vcvt.s32.f32 %v510
    %v527 = vcvt.s32.f32 %v511
    %v528 = vcvt.s32.f32 %v512
    %v529 = vcvt.s32.f32 %v513
    %v530 = vcvt.s32.f32 %v514
    %v531 = vlaneseq
    %v532 = vshrl.u32 %v531, 7
    %v533 = vsub.s32 0, %v532
    %v534 = vrot.slane %v469, %v533
    %v535 = vlaneseq
    %v536 = vshrl.u32 %v535, 7
    %v537 = vsub.s32 0, %v536
    %v538 = vrot.slane %v483, %v537
    %v539 = vlaneseq
    %v540 = vshrl.u32 %v539, 7
    %v541 = vsub.s32 0, %v540
    %v542 = vrot.slane %v491, %v541
    %v543 = vlaneseq
    %v544 = vshrl.u32 %v543, 7
    %v545 = vsub.s32 0, %v544
    %v546 = vrot.slane %v493, %v545
    %v547 = vlaneseq
    %v548 = vshrl.u32 %v547, 7
    %v549 = vsub.s32 0, %v548
    %v550 = vrot.slane %v476, %v549
    %v551 = vlaneseq
    %v552 = vshrl.u32 %v551, 7
    %v553 = vsub.s32 0, %v552
    %v554 = vrot.slane %v490, %v553
    %v555 = vlaneseq
    %v556 = vshrl.u32 %v555, 7
    %v557 = vsub.s32 0, %v556
    %v558 = vrot.slane %v492, %v557
    %v559 = vlaneseq
    %v560 = vshrl.u32 %v559, 7
    %v561 = vsub.s32 0, %v560
    %v562 = vrot.slane %v494, %v561
    %v571 = vadd.f32 %v515, %v534
    %v572 = vadd.f32 %v516, %v534
    %v573 = vadd.f32 %v517, %v534
    %v574 = vadd.f32 %v518, %v534
    %v575 = vadd.f32 %v519, %v534
    %v576 = vadd.f32 %v520, %v534
    %v577 = vadd.f32 %v521, %v534
    %v578 = vadd.f32 %v522, %v534
    %v579 = vadd.f32 %v523, %v534
    %v580 = vadd.f32 %v524, %v534
    %v581 = vadd.f32 %v525, %v534
    %v582 = vadd.f32 %v526, %v534
    %v583 = vadd.f32 %v527, %v534
    %v584 = vadd.f32 %v528, %v534
    %v585 = vadd.f32 %v529, %v534
    %v586 = vadd.f32 %v530, %v534
    %v587 = vadd.f32 %v515, %v538
    %v588 = vadd.f32 %v516, %v538
    %v589 = vadd.f32 %v517, %v538
    %v590 = vadd.f32 %v518, %v538
    %v591 = vadd.f32 %v519, %v538
    %v592 = vadd.f32 %v520, %v538
    %v593 = vadd.f32 %v521, %v538
    %v594 = vadd.f32 %v522, %v538
    %v595 = vadd.f32 %v523, %v538
    %v596 = vadd.f32 %v524, %v538
    %v597 = vadd.f32 %v525, %v538
    %v598 = vadd.f32 %v526, %v538
    %v599 = vadd.f32 %v527, %v538
    %v600 = vadd.f32 %v528, %v538
    %v601 = vadd.f32 %v529, %v538
    %v602 = vadd.f32 %v530, %v538
    %v603 = vadd.f32 %v515, %v542
    %v604 = vadd.f32 %v516, %v542
    %v605 = vadd.f32 %v517, %v542
    %v606 = vadd.f32 %v518, %v542
    %v607 = vadd.f32 %v519, %v542
    %v608 = vadd.f32 %v520, %v542
    %v609 = vadd.f32 %v521, %v542
    %v610 = vadd.f32 %v522, %v542
    %v611 = vadd.f32 %v523, %v542
    %v612 = vadd.f32 %v524, %v542
    %v613 = vadd.f32 %v525, %v542
    %v614 = vadd.f32 %v526, %v542
    %v615 = vadd.f32 %v527, %v542
    %v616 = vadd.f32 %v528, %v542
    %v617 = vadd.f32 %v529, %v542
    %v618 = vadd.f32 %v530, %v542
    %v619 = vadd.f32 %v515, %v546
    %v620 = vadd.f32 %v516, %v546
    %v621 = vadd.f32 %v517, %v546
    %v622 = vadd.f32 %v518, %v546
    %v623 = vadd.f32 %v519, %v546
    %v624 = vadd.f32 %v520, %v546
    %v625 = vadd.f32 %v521, %v546
    %v626 = vadd.f32 %v522, %v546
    %v627 = vadd.f32 %v523, %v546
    %v628 = vadd.f32 %v524, %v546
    %v629 = vadd.f32 %v525, %v546
    %v630 = vadd.f32 %v526, %v546
    %v631 = vadd.f32 %v527, %v546
    %v632 = vadd.f32 %v528, %v546
    %v633 = vadd.f32 %v529, %v546
    %v634 = vadd.f32 %v530, %v546
    %v635 = vadd.f32 %v515, %v550
    %v636 = vadd.f32 %v516, %v550
    %v637 = vadd.f32 %v517, %v550
    %v638 = vadd.f32 %v518, %v550
    %v639 = vadd.f32 %v519, %v550
    %v640 = vadd.f32 %v520, %v550
    %v641 = vadd.f32 %v521, %v550
    %v642 = vadd.f32 %v522, %v550
    %v643 = vadd.f32 %v523, %v550
    %v644 = vadd.f32 %v524, %v550
    %v645 = vadd.f32 %v525, %v550
    %v646 = vadd.f32 %v526, %v550
    %v647 = vadd.f32 %v527, %v550
    %v648 = vadd.f32 %v528, %v550
    %v649 = vadd.f32 %v529, %v550
    %v650 = vadd.f32 %v530, %v550
    %v651 = vadd.f32 %v515, %v554
    %v652 = vadd.f32 %v516, %v554
    %v653 = vadd.f32 %v517, %v554
    %v654 = vadd.f32 %v518, %v554
    %v655 = vadd.f32 %v519, %v554
    %v656 = vadd.f32 %v520, %v554
    %v657 = vadd.f32 %v521, %v554
    %v658 = vadd.f32 %v522, %v554
    %v659 = vadd.f32 %v523, %v554
    %v660 = vadd.f32 %v524, %v554
    %v661 = vadd.f32 %v525, %v554
    %v662 = vadd.f32 %v526, %v554
    %v663 = vadd.f32 %v527, %v554
    %v664 = vadd.f32 %v528, %v554
    %v665 = vadd.f32 %v529, %v554
    %v666 = vadd.f32 %v530, %v554
    %v667 = vadd.f32 %v515, %v558
    %v668 = vadd.f32 %v516, %v558
    %v669 = vadd.f32 %v517, %v558
    %v670 = vadd.f32 %v518, %v558
    %v671 = vadd.f32 %v519, %v558
    %v672 = vadd.f32 %v520, %v558
    %v673 = vadd.f32 %v521, %v558
    %v674 = vadd.f32 %v522, %v558
    %v675 = vadd.f32 %v523, %v558
    %v676 = vadd.f32 %v524, %v558
    %v677 = vadd.f32 %v525, %v558
    %v678 = vadd.f32 %v526, %v558
    %v679 = vadd.f32 %v527, %v558
    %v680 = vadd.f32 %v528, %v558
    %v681 = vadd.f32 %v529, %v558
    %v682 = vadd.f32 %v530, %v558
    %v683 = vadd.f32 %v515, %v562
    %v684 = vadd.f32 %v516, %v562
    %v685 = vadd.f32 %v517, %v562
    %v686 = vadd.f32 %v518, %v562
    %v687 = vadd.f32 %v519, %v562
    %v688 = vadd.f32 %v520, %v562
    %v689 = vadd.f32 %v521, %v562
    %v690 = vadd.f32 %v522, %v562
    %v691 = vadd.f32 %v523, %v562
    %v692 = vadd.f32 %v524, %v562
    %v693 = vadd.f32 %v525, %v562
    %v694 = vadd.f32 %v526, %v562
    %v695 = vadd.f32 %v527, %v562
    %v696 = vadd.f32 %v528, %v562
    %v697 = vadd.f32 %v529, %v562
    %v698 = vadd.f32 %v530, %v562
    %699 = vmax.xlane.f32.xlu0 %v571
    %v700 = vpop.xlane.xlu0 %699
    %701 = vmax.xlane.f32.xlu0 %v572
    %v702 = vpop.xlane.xlu0 %701
    %703 = vmax.xlane.f32.xlu0 %v573
    %v704 = vpop.xlane.xlu0 %703
    %705 = vmax.xlane.f32.xlu0 %v574
    %v706 = vpop.xlane.xlu0 %705
    %707 = vmax.xlane.f32.xlu0 %v575
    %v708 = vpop.xlane.xlu0 %707
    %709 = vmax.xlane.f32.xlu0 %v576
    %v710 = vpop.xlane.xlu0 %709
    %711 = vmax.xlane.f32.xlu0 %v577
    %v712 = vpop.xlane.xlu0 %711
    %713 = vmax.xlane.f32.xlu0 %v578
    %v714 = vpop.xlane.xlu0 %713
    %715 = vmax.xlane.f32.xlu0 %v579
    %v716 = vpop.xlane.xlu0 %715
    %717 = vmax.xlane.f32.xlu0 %v580
    %v718 = vpop.xlane.xlu0 %717
    %719 = vmax.xlane.f32.xlu0 %v581
    %v720 = vpop.xlane.xlu0 %719
    %721 = vmax.xlane.f32.xlu0 %v582
    %v722 = vpop.xlane.xlu0 %721
    %723 = vmax.xlane.f32.xlu0 %v583
    %v724 = vpop.xlane.xlu0 %723
    %725 = vmax.xlane.f32.xlu0 %v584
    %v726 = vpop.xlane.xlu0 %725
    %727 = vmax.xlane.f32.xlu0 %v585
    %v728 = vpop.xlane.xlu0 %727
    %729 = vmax.xlane.f32.xlu0 %v586
    %v730 = vpop.xlane.xlu0 %729
    %731 = vmax.xlane.f32.xlu0 %v587
    %v732 = vpop.xlane.xlu0 %731
    %733 = vmax.xlane.f32.xlu0 %v588
    %v734 = vpop.xlane.xlu0 %733
    %735 = vmax.xlane.f32.xlu0 %v589
    %v736 = vpop.xlane.xlu0 %735
    %737 = vmax.xlane.f32.xlu0 %v590
    %v738 = vpop.xlane.xlu0 %737
    %739 = vmax.xlane.f32.xlu0 %v591
    %v740 = vpop.xlane.xlu0 %739
    %741 = vmax.xlane.f32.xlu0 %v592
    %v742 = vpop.xlane.xlu0 %741
    %743 = vmax.xlane.f32.xlu0 %v593
    %v744 = vpop.xlane.xlu0 %743
    %745 = vmax.xlane.f32.xlu0 %v594
    %v746 = vpop.xlane.xlu0 %745
    %747 = vmax.xlane.f32.xlu0 %v595
    %v748 = vpop.xlane.xlu0 %747
    %749 = vmax.xlane.f32.xlu0 %v596
    %v750 = vpop.xlane.xlu0 %749
    %751 = vmax.xlane.f32.xlu0 %v597
    %v752 = vpop.xlane.xlu0 %751
    %753 = vmax.xlane.f32.xlu0 %v598
    %v754 = vpop.xlane.xlu0 %753
    %755 = vmax.xlane.f32.xlu0 %v599
    %v756 = vpop.xlane.xlu0 %755
    %757 = vmax.xlane.f32.xlu0 %v600
    %v758 = vpop.xlane.xlu0 %757
    %759 = vmax.xlane.f32.xlu0 %v601
    %v760 = vpop.xlane.xlu0 %759
    %761 = vmax.xlane.f32.xlu0 %v602
    %v762 = vpop.xlane.xlu0 %761
    %763 = vmax.xlane.f32.xlu0 %v603
    %v764 = vpop.xlane.xlu0 %763
    %765 = vmax.xlane.f32.xlu0 %v604
    %v766 = vpop.xlane.xlu0 %765
    %767 = vmax.xlane.f32.xlu0 %v605
    %v768 = vpop.xlane.xlu0 %767
    %769 = vmax.xlane.f32.xlu0 %v606
    %v770 = vpop.xlane.xlu0 %769
    %771 = vmax.xlane.f32.xlu0 %v607
    %v772 = vpop.xlane.xlu0 %771
    %773 = vmax.xlane.f32.xlu0 %v608
    %v774 = vpop.xlane.xlu0 %773
    %775 = vmax.xlane.f32.xlu0 %v609
    %v776 = vpop.xlane.xlu0 %775
    %777 = vmax.xlane.f32.xlu0 %v610
    %v778 = vpop.xlane.xlu0 %777
    %779 = vmax.xlane.f32.xlu0 %v611
    %v780 = vpop.xlane.xlu0 %779
    %781 = vmax.xlane.f32.xlu0 %v612
    %v782 = vpop.xlane.xlu0 %781
    %783 = vmax.xlane.f32.xlu0 %v613
    %v784 = vpop.xlane.xlu0 %783
    %785 = vmax.xlane.f32.xlu0 %v614
    %v786 = vpop.xlane.xlu0 %785
    %787 = vmax.xlane.f32.xlu0 %v615
    %v788 = vpop.xlane.xlu0 %787
    %789 = vmax.xlane.f32.xlu0 %v616
    %v790 = vpop.xlane.xlu0 %789
    %791 = vmax.xlane.f32.xlu0 %v617
    %v792 = vpop.xlane.xlu0 %791
    %793 = vmax.xlane.f32.xlu0 %v618
    %v794 = vpop.xlane.xlu0 %793
    %795 = vmax.xlane.f32.xlu0 %v619
    %v796 = vpop.xlane.xlu0 %795
    %797 = vmax.xlane.f32.xlu0 %v620
    %v798 = vpop.xlane.xlu0 %797
    %799 = vmax.xlane.f32.xlu0 %v621
    %v800 = vpop.xlane.xlu0 %799
    %801 = vmax.xlane.f32.xlu0 %v622
    %v802 = vpop.xlane.xlu0 %801
    %803 = vmax.xlane.f32.xlu0 %v623
    %v804 = vpop.xlane.xlu0 %803
    %805 = vmax.xlane.f32.xlu0 %v624
    %v806 = vpop.xlane.xlu0 %805
    %807 = vmax.xlane.f32.xlu0 %v625
    %v808 = vpop.xlane.xlu0 %807
    %809 = vmax.xlane.f32.xlu0 %v626
    %v810 = vpop.xlane.xlu0 %809
    %811 = vmax.xlane.f32.xlu0 %v627
    %v812 = vpop.xlane.xlu0 %811
    %813 = vmax.xlane.f32.xlu0 %v628
    %v814 = vpop.xlane.xlu0 %813
    %815 = vmax.xlane.f32.xlu0 %v629
    %v816 = vpop.xlane.xlu0 %815
    %817 = vmax.xlane.f32.xlu0 %v630
    %v818 = vpop.xlane.xlu0 %817
    %819 = vmax.xlane.f32.xlu0 %v631
    %v820 = vpop.xlane.xlu0 %819
    %821 = vmax.xlane.f32.xlu0 %v632
    %v822 = vpop.xlane.xlu0 %821
    %823 = vmax.xlane.f32.xlu0 %v633
    %v824 = vpop.xlane.xlu0 %823
    %825 = vmax.xlane.f32.xlu0 %v634
    %v826 = vpop.xlane.xlu0 %825
    %827 = vmax.xlane.f32.xlu0 %v635
    %v828 = vpop.xlane.xlu0 %827
    %829 = vmax.xlane.f32.xlu0 %v636
    %v830 = vpop.xlane.xlu0 %829
    %831 = vmax.xlane.f32.xlu0 %v637
    %v832 = vpop.xlane.xlu0 %831
    %833 = vmax.xlane.f32.xlu0 %v638
    %v834 = vpop.xlane.xlu0 %833
    %835 = vmax.xlane.f32.xlu0 %v639
    %v836 = vpop.xlane.xlu0 %835
    %837 = vmax.xlane.f32.xlu0 %v640
    %v838 = vpop.xlane.xlu0 %837
    %839 = vmax.xlane.f32.xlu0 %v641
    %v840 = vpop.xlane.xlu0 %839
    %841 = vmax.xlane.f32.xlu0 %v642
    %v842 = vpop.xlane.xlu0 %841
    %843 = vmax.xlane.f32.xlu0 %v643
    %v844 = vpop.xlane.xlu0 %843
    %845 = vmax.xlane.f32.xlu0 %v644
    %v846 = vpop.xlane.xlu0 %845
    %847 = vmax.xlane.f32.xlu0 %v645
    %v848 = vpop.xlane.xlu0 %847
    %849 = vmax.xlane.f32.xlu0 %v646
    %v850 = vpop.xlane.xlu0 %849
    %851 = vmax.xlane.f32.xlu0 %v647
    %v852 = vpop.xlane.xlu0 %851
    %853 = vmax.xlane.f32.xlu0 %v648
    %v854 = vpop.xlane.xlu0 %853
    %855 = vmax.xlane.f32.xlu0 %v649
    %v856 = vpop.xlane.xlu0 %855
    %857 = vmax.xlane.f32.xlu0 %v650
    %v858 = vpop.xlane.xlu0 %857
    %859 = vmax.xlane.f32.xlu0 %v651
    %v860 = vpop.xlane.xlu0 %859
    %861 = vmax.xlane.f32.xlu0 %v652
    %v862 = vpop.xlane.xlu0 %861
    %863 = vmax.xlane.f32.xlu0 %v653
    %v864 = vpop.xlane.xlu0 %863
    %865 = vmax.xlane.f32.xlu0 %v654
    %v866 = vpop.xlane.xlu0 %865
    %867 = vmax.xlane.f32.xlu0 %v655
    %v868 = vpop.xlane.xlu0 %867
    %869 = vmax.xlane.f32.xlu0 %v656
    %v870 = vpop.xlane.xlu0 %869
    %871 = vmax.xlane.f32.xlu0 %v657
    %v872 = vpop.xlane.xlu0 %871
    %873 = vmax.xlane.f32.xlu0 %v658
    %v874 = vpop.xlane.xlu0 %873
    %875 = vmax.xlane.f32.xlu0 %v659
    %v876 = vpop.xlane.xlu0 %875
    %877 = vmax.xlane.f32.xlu0 %v660
    %v878 = vpop.xlane.xlu0 %877
    %879 = vmax.xlane.f32.xlu0 %v661
    %v880 = vpop.xlane.xlu0 %879
    %881 = vmax.xlane.f32.xlu0 %v662
    %v882 = vpop.xlane.xlu0 %881
    %883 = vmax.xlane.f32.xlu0 %v663
    %v884 = vpop.xlane.xlu0 %883
    %885 = vmax.xlane.f32.xlu0 %v664
    %v886 = vpop.xlane.xlu0 %885
    %887 = vmax.xlane.f32.xlu0 %v665
    %v888 = vpop.xlane.xlu0 %887
    %889 = vmax.xlane.f32.xlu0 %v666
    %v890 = vpop.xlane.xlu0 %889
    %891 = vmax.xlane.f32.xlu0 %v667
    %v892 = vpop.xlane.xlu0 %891
    %893 = vmax.xlane.f32.xlu0 %v668
    %v894 = vpop.xlane.xlu0 %893
    %895 = vmax.xlane.f32.xlu0 %v669
    %v896 = vpop.xlane.xlu0 %895
    %897 = vmax.xlane.f32.xlu0 %v670
    %v898 = vpop.xlane.xlu0 %897
    %899 = vmax.xlane.f32.xlu0 %v671
    %v900 = vpop.xlane.xlu0 %899
    %901 = vmax.xlane.f32.xlu0 %v672
    %v902 = vpop.xlane.xlu0 %901
    %903 = vmax.xlane.f32.xlu0 %v673
    %v904 = vpop.xlane.xlu0 %903
    %905 = vmax.xlane.f32.xlu0 %v674
    %v906 = vpop.xlane.xlu0 %905
    %907 = vmax.xlane.f32.xlu0 %v675
    %v908 = vpop.xlane.xlu0 %907
    %909 = vmax.xlane.f32.xlu0 %v676
    %v910 = vpop.xlane.xlu0 %909
    %911 = vmax.xlane.f32.xlu0 %v677
    %v912 = vpop.xlane.xlu0 %911
    %913 = vmax.xlane.f32.xlu0 %v678
    %v914 = vpop.xlane.xlu0 %913
    %915 = vmax.xlane.f32.xlu0 %v679
    %v916 = vpop.xlane.xlu0 %915
    %917 = vmax.xlane.f32.xlu0 %v680
    %v918 = vpop.xlane.xlu0 %917
    %919 = vmax.xlane.f32.xlu0 %v681
    %v920 = vpop.xlane.xlu0 %919
    %921 = vmax.xlane.f32.xlu0 %v682
    %v922 = vpop.xlane.xlu0 %921
    %923 = vmax.xlane.f32.xlu0 %v683
    %v924 = vpop.xlane.xlu0 %923
    %925 = vmax.xlane.f32.xlu0 %v684
    %v926 = vpop.xlane.xlu0 %925
    %927 = vmax.xlane.f32.xlu0 %v685
    %v928 = vpop.xlane.xlu0 %927
    %929 = vmax.xlane.f32.xlu0 %v686
    %v930 = vpop.xlane.xlu0 %929
    %931 = vmax.xlane.f32.xlu0 %v687
    %v932 = vpop.xlane.xlu0 %931
    %933 = vmax.xlane.f32.xlu0 %v688
    %v934 = vpop.xlane.xlu0 %933
    %935 = vmax.xlane.f32.xlu0 %v689
    %v936 = vpop.xlane.xlu0 %935
    %937 = vmax.xlane.f32.xlu0 %v690
    %v938 = vpop.xlane.xlu0 %937
    %939 = vmax.xlane.f32.xlu0 %v691
    %v940 = vpop.xlane.xlu0 %939
    %941 = vmax.xlane.f32.xlu0 %v692
    %v942 = vpop.xlane.xlu0 %941
    %943 = vmax.xlane.f32.xlu0 %v693
    %v944 = vpop.xlane.xlu0 %943
    %945 = vmax.xlane.f32.xlu0 %v694
    %v946 = vpop.xlane.xlu0 %945
    %947 = vmax.xlane.f32.xlu0 %v695
    %v948 = vpop.xlane.xlu0 %947
    %949 = vmax.xlane.f32.xlu0 %v696
    %v950 = vpop.xlane.xlu0 %949
    %951 = vmax.xlane.f32.xlu0 %v697
    %v952 = vpop.xlane.xlu0 %951
    %953 = vmax.xlane.f32.xlu0 %v698
    %v954 = vpop.xlane.xlu0 %953
    %v955 = vsub.f32 %v700, 1.0
    %v956 = vsub.f32 %v702, 1.0
    %v957 = vsub.f32 %v704, 1.0
    %v958 = vsub.f32 %v706, 1.0
    %v959 = vsub.f32 %v708, 1.0
    %v960 = vsub.f32 %v710, 1.0
    %v961 = vsub.f32 %v712, 1.0
    %v962 = vsub.f32 %v714, 1.0
    %v963 = vsub.f32 %v716, 1.0
    %v964 = vsub.f32 %v718, 1.0
    %v965 = vsub.f32 %v720, 1.0
    %v966 = vsub.f32 %v722, 1.0
    %v967 = vsub.f32 %v724, 1.0
    %v968 = vsub.f32 %v726, 1.0
    %v969 = vsub.f32 %v728, 1.0
    %v970 = vsub.f32 %v730, 1.0
    %v971 = vsub.f32 %v732, 1.0
    %v972 = vsub.f32 %v734, 1.0
    %v973 = vsub.f32 %v736, 1.0
    %v974 = vsub.f32 %v738, 1.0
    %v975 = vsub.f32 %v740, 1.0
    %v976 = vsub.f32 %v742, 1.0
    %v977 = vsub.f32 %v744, 1.0
    %v978 = vsub.f32 %v746, 1.0
    %v979 = vsub.f32 %v748, 1.0
    %v980 = vsub.f32 %v750, 1.0
    %v981 = vsub.f32 %v752, 1.0
    %v982 = vsub.f32 %v754, 1.0
    %v983 = vsub.f32 %v756, 1.0
    %v984 = vsub.f32 %v758, 1.0
    %v985 = vsub.f32 %v760, 1.0
    %v986 = vsub.f32 %v762, 1.0
    %v987 = vsub.f32 %v764, 1.0
    %v988 = vsub.f32 %v766, 1.0
    %v989 = vsub.f32 %v768, 1.0
    %v990 = vsub.f32 %v770, 1.0
    %v991 = vsub.f32 %v772, 1.0
    %v992 = vsub.f32 %v774, 1.0
    %v993 = vsub.f32 %v776, 1.0
    %v994 = vsub.f32 %v778, 1.0
    %v995 = vsub.f32 %v780, 1.0
    %v996 = vsub.f32 %v782, 1.0
    %v997 = vsub.f32 %v784, 1.0
    %v998 = vsub.f32 %v786, 1.0
    %v999 = vsub.f32 %v788, 1.0
    %v1000 = vsub.f32 %v790, 1.0
    %v1001 = vsub.f32 %v792, 1.0
    %v1002 = vsub.f32 %v794, 1.0
    %v1003 = vsub.f32 %v796, 1.0
    %v1004 = vsub.f32 %v798, 1.0
    %v1005 = vsub.f32 %v800, 1.0
    %v1006 = vsub.f32 %v802, 1.0
    %v1007 = vsub.f32 %v804, 1.0
    %v1008 = vsub.f32 %v806, 1.0
    %v1009 = vsub.f32 %v808, 1.0
    %v1010 = vsub.f32 %v810, 1.0
    %v1011 = vsub.f32 %v812, 1.0
    %v1012 = vsub.f32 %v814, 1.0
    %v1013 = vsub.f32 %v816, 1.0
    %v1014 = vsub.f32 %v818, 1.0
    %v1015 = vsub.f32 %v820, 1.0
    %v1016 = vsub.f32 %v822, 1.0
    %v1017 = vsub.f32 %v824, 1.0
    %v1018 = vsub.f32 %v826, 1.0
    %v1019 = vsub.f32 %v828, 1.0
    %v1020 = vsub.f32 %v830, 1.0
    %v1021 = vsub.f32 %v832, 1.0
    %v1022 = vsub.f32 %v834, 1.0
    %v1023 = vsub.f32 %v836, 1.0
    %v1024 = vsub.f32 %v838, 1.0
    %v1025 = vsub.f32 %v840, 1.0
    %v1026 = vsub.f32 %v842, 1.0
    %v1027 = vsub.f32 %v844, 1.0
    %v1028 = vsub.f32 %v846, 1.0
    %v1029 = vsub.f32 %v848, 1.0
    %v1030 = vsub.f32 %v850, 1.0
    %v1031 = vsub.f32 %v852, 1.0
    %v1032 = vsub.f32 %v854, 1.0
    %v1033 = vsub.f32 %v856, 1.0
    %v1034 = vsub.f32 %v858, 1.0
    %v1035 = vsub.f32 %v860, 1.0
    %v1036 = vsub.f32 %v862, 1.0
    %v1037 = vsub.f32 %v864, 1.0
    %v1038 = vsub.f32 %v866, 1.0
    %v1039 = vsub.f32 %v868, 1.0
    %v1040 = vsub.f32 %v870, 1.0
    %v1041 = vsub.f32 %v872, 1.0
    %v1042 = vsub.f32 %v874, 1.0
    %v1043 = vsub.f32 %v876, 1.0
    %v1044 = vsub.f32 %v878, 1.0
    %v1045 = vsub.f32 %v880, 1.0
    %v1046 = vsub.f32 %v882, 1.0
    %v1047 = vsub.f32 %v884, 1.0
    %v1048 = vsub.f32 %v886, 1.0
    %v1049 = vsub.f32 %v888, 1.0
    %v1050 = vsub.f32 %v890, 1.0
    %v1051 = vsub.f32 %v892, 1.0
    %v1052 = vsub.f32 %v894, 1.0
    %v1053 = vsub.f32 %v896, 1.0
    %v1054 = vsub.f32 %v898, 1.0
    %v1055 = vsub.f32 %v900, 1.0
    %v1056 = vsub.f32 %v902, 1.0
    %v1057 = vsub.f32 %v904, 1.0
    %v1058 = vsub.f32 %v906, 1.0
    %v1059 = vsub.f32 %v908, 1.0
    %v1060 = vsub.f32 %v910, 1.0
    %v1061 = vsub.f32 %v912, 1.0
    %v1062 = vsub.f32 %v914, 1.0
    %v1063 = vsub.f32 %v916, 1.0
    %v1064 = vsub.f32 %v918, 1.0
    %v1065 = vsub.f32 %v920, 1.0
    %v1066 = vsub.f32 %v922, 1.0
    %v1067 = vsub.f32 %v924, 1.0
    %v1068 = vsub.f32 %v926, 1.0
    %v1069 = vsub.f32 %v928, 1.0
    %v1070 = vsub.f32 %v930, 1.0
    %v1071 = vsub.f32 %v932, 1.0
    %v1072 = vsub.f32 %v934, 1.0
    %v1073 = vsub.f32 %v936, 1.0
    %v1074 = vsub.f32 %v938, 1.0
    %v1075 = vsub.f32 %v940, 1.0
    %v1076 = vsub.f32 %v942, 1.0
    %v1077 = vsub.f32 %v944, 1.0
    %v1078 = vsub.f32 %v946, 1.0
    %v1079 = vsub.f32 %v948, 1.0
    %v1080 = vsub.f32 %v950, 1.0
    %v1081 = vsub.f32 %v952, 1.0
    %v1082 = vsub.f32 %v954, 1.0
    %v1083 = vmax.f32 %v955, 0.0
    %v1084 = vmax.f32 %v956, 0.0
    %v1085 = vmax.f32 %v957, 0.0
    %v1086 = vmax.f32 %v958, 0.0
    %v1087 = vmax.f32 %v959, 0.0
    %v1088 = vmax.f32 %v960, 0.0
    %v1089 = vmax.f32 %v961, 0.0
    %v1090 = vmax.f32 %v962, 0.0
    %v1091 = vmax.f32 %v963, 0.0
    %v1092 = vmax.f32 %v964, 0.0
    %v1093 = vmax.f32 %v965, 0.0
    %v1094 = vmax.f32 %v966, 0.0
    %v1095 = vmax.f32 %v967, 0.0
    %v1096 = vmax.f32 %v968, 0.0
    %v1097 = vmax.f32 %v969, 0.0
    %v1098 = vmax.f32 %v970, 0.0
    %v1099 = vmax.f32 %v971, 0.0
    %v1100 = vmax.f32 %v972, 0.0
    %v1101 = vmax.f32 %v973, 0.0
    %v1102 = vmax.f32 %v974, 0.0
    %v1103 = vmax.f32 %v975, 0.0
    %v1104 = vmax.f32 %v976, 0.0
    %v1105 = vmax.f32 %v977, 0.0
    %v1106 = vmax.f32 %v978, 0.0
    %v1107 = vmax.f32 %v979, 0.0
    %v1108 = vmax.f32 %v980, 0.0
    %v1109 = vmax.f32 %v981, 0.0
    %v1110 = vmax.f32 %v982, 0.0
    %v1111 = vmax.f32 %v983, 0.0
    %v1112 = vmax.f32 %v984, 0.0
    %v1113 = vmax.f32 %v985, 0.0
    %v1114 = vmax.f32 %v986, 0.0
    %v1115 = vmax.f32 %v987, 0.0
    %v1116 = vmax.f32 %v988, 0.0
    %v1117 = vmax.f32 %v989, 0.0
    %v1118 = vmax.f32 %v990, 0.0
    %v1119 = vmax.f32 %v991, 0.0
    %v1120 = vmax.f32 %v992, 0.0
    %v1121 = vmax.f32 %v993, 0.0
    %v1122 = vmax.f32 %v994, 0.0
    %v1123 = vmax.f32 %v995, 0.0
    %v1124 = vmax.f32 %v996, 0.0
    %v1125 = vmax.f32 %v997, 0.0
    %v1126 = vmax.f32 %v998, 0.0
    %v1127 = vmax.f32 %v999, 0.0
    %v1128 = vmax.f32 %v1000, 0.0
    %v1129 = vmax.f32 %v1001, 0.0
    %v1130 = vmax.f32 %v1002, 0.0
    %v1131 = vmax.f32 %v1003, 0.0
    %v1132 = vmax.f32 %v1004, 0.0
    %v1133 = vmax.f32 %v1005, 0.0
    %v1134 = vmax.f32 %v1006, 0.0
    %v1135 = vmax.f32 %v1007, 0.0
    %v1136 = vmax.f32 %v1008, 0.0
    %v1137 = vmax.f32 %v1009, 0.0
    %v1138 = vmax.f32 %v1010, 0.0
    %v1139 = vmax.f32 %v1011, 0.0
    %v1140 = vmax.f32 %v1012, 0.0
    %v1141 = vmax.f32 %v1013, 0.0
    %v1142 = vmax.f32 %v1014, 0.0
    %v1143 = vmax.f32 %v1015, 0.0
    %v1144 = vmax.f32 %v1016, 0.0
    %v1145 = vmax.f32 %v1017, 0.0
    %v1146 = vmax.f32 %v1018, 0.0
    %v1147 = vmax.f32 %v1019, 0.0
    %v1148 = vmax.f32 %v1020, 0.0
    %v1149 = vmax.f32 %v1021, 0.0
    %v1150 = vmax.f32 %v1022, 0.0
    %v1151 = vmax.f32 %v1023, 0.0
    %v1152 = vmax.f32 %v1024, 0.0
    %v1153 = vmax.f32 %v1025, 0.0
    %v1154 = vmax.f32 %v1026, 0.0
    %v1155 = vmax.f32 %v1027, 0.0
    %v1156 = vmax.f32 %v1028, 0.0
    %v1157 = vmax.f32 %v1029, 0.0
    %v1158 = vmax.f32 %v1030, 0.0
    %v1159 = vmax.f32 %v1031, 0.0
    %v1160 = vmax.f32 %v1032, 0.0
    %v1161 = vmax.f32 %v1033, 0.0
    %v1162 = vmax.f32 %v1034, 0.0
    %v1163 = vmax.f32 %v1035, 0.0
    %v1164 = vmax.f32 %v1036, 0.0
    %v1165 = vmax.f32 %v1037, 0.0
    %v1166 = vmax.f32 %v1038, 0.0
    %v1167 = vmax.f32 %v1039, 0.0
    %v1168 = vmax.f32 %v1040, 0.0
    %v1169 = vmax.f32 %v1041, 0.0
    %v1170 = vmax.f32 %v1042, 0.0
    %v1171 = vmax.f32 %v1043, 0.0
    %v1172 = vmax.f32 %v1044, 0.0
    %v1173 = vmax.f32 %v1045, 0.0
    %v1174 = vmax.f32 %v1046, 0.0
    %v1175 = vmax.f32 %v1047, 0.0
    %v1176 = vmax.f32 %v1048, 0.0
    %v1177 = vmax.f32 %v1049, 0.0
    %v1178 = vmax.f32 %v1050, 0.0
    %v1179 = vmax.f32 %v1051, 0.0
    %v1180 = vmax.f32 %v1052, 0.0
    %v1181 = vmax.f32 %v1053, 0.0
    %v1182 = vmax.f32 %v1054, 0.0
    %v1183 = vmax.f32 %v1055, 0.0
    %v1184 = vmax.f32 %v1056, 0.0
    %v1185 = vmax.f32 %v1057, 0.0
    %v1186 = vmax.f32 %v1058, 0.0
    %v1187 = vmax.f32 %v1059, 0.0
    %v1188 = vmax.f32 %v1060, 0.0
    %v1189 = vmax.f32 %v1061, 0.0
    %v1190 = vmax.f32 %v1062, 0.0
    %v1191 = vmax.f32 %v1063, 0.0
    %v1192 = vmax.f32 %v1064, 0.0
    %v1193 = vmax.f32 %v1065, 0.0
    %v1194 = vmax.f32 %v1066, 0.0
    %v1195 = vmax.f32 %v1067, 0.0
    %v1196 = vmax.f32 %v1068, 0.0
    %v1197 = vmax.f32 %v1069, 0.0
    %v1198 = vmax.f32 %v1070, 0.0
    %v1199 = vmax.f32 %v1071, 0.0
    %v1200 = vmax.f32 %v1072, 0.0
    %v1201 = vmax.f32 %v1073, 0.0
    %v1202 = vmax.f32 %v1074, 0.0
    %v1203 = vmax.f32 %v1075, 0.0
    %v1204 = vmax.f32 %v1076, 0.0
    %v1205 = vmax.f32 %v1077, 0.0
    %v1206 = vmax.f32 %v1078, 0.0
    %v1207 = vmax.f32 %v1079, 0.0
    %v1208 = vmax.f32 %v1080, 0.0
    %v1209 = vmax.f32 %v1081, 0.0
    %v1210 = vmax.f32 %v1082, 0.0
    %v1339 = vlaneseq
    %v1340 = vand.u32 %v1339, 127
    %v1341 = vlaneseq
    %v1342 = vshrl.u32 %v1341, 7
    %v1343 = vsub.s32 %v1340, %v1342
    %v1344 = vrot.slane %v1083, %v1343
    %v1345 = vadd.s32 %v1340, 4294967288
    %v1346 = vlaneseq
    %v1347 = vshrl.u32 %v1346, 7
    %v1348 = vsub.s32 %v1345, %v1347
    %v1349 = vrot.slane %v1084, %v1348
    %vm1350 = vcmask 130112
    %v1351 = vsel %vm1350, %v1349, %v1344
    %v1352 = vadd.s32 %v1340, 4294967280
    %v1353 = vlaneseq
    %v1354 = vshrl.u32 %v1353, 7
    %v1355 = vsub.s32 %v1352, %v1354
    %v1356 = vrot.slane %v1085, %v1355
    %vm1357 = vcmask 195712
    %v1358 = vsel %vm1357, %v1356, %v1351
    %v1359 = vadd.s32 %v1340, 4294967272
    %v1360 = vlaneseq
    %v1361 = vshrl.u32 %v1360, 7
    %v1362 = vsub.s32 %v1359, %v1361
    %v1363 = vrot.slane %v1086, %v1362
    %vm1364 = vcmask 261312
    %v1365 = vsel %vm1364, %v1363, %v1358
    %v1366 = vadd.s32 %v1340, 4294967264
    %v1367 = vlaneseq
    %v1368 = vshrl.u32 %v1367, 7
    %v1369 = vsub.s32 %v1366, %v1368
    %v1370 = vrot.slane %v1087, %v1369
    %vm1371 = vcmask 326912
    %v1372 = vsel %vm1371, %v1370, %v1365
    %v1373 = vadd.s32 %v1340, 4294967256
    %v1374 = vlaneseq
    %v1375 = vshrl.u32 %v1374, 7
    %v1376 = vsub.s32 %v1373, %v1375
    %v1377 = vrot.slane %v1088, %v1376
    %vm1378 = vcmask 392512
    %v1379 = vsel %vm1378, %v1377, %v1372
    %v1380 = vadd.s32 %v1340, 4294967248
    %v1381 = vlaneseq
    %v1382 = vshrl.u32 %v1381, 7
    %v1383 = vsub.s32 %v1380, %v1382
    %v1384 = vrot.slane %v1089, %v1383
    %vm1385 = vcmask 458112
    %v1386 = vsel %vm1385, %v1384, %v1379
    %v1387 = vadd.s32 %v1340, 4294967240
    %v1388 = vlaneseq
    %v1389 = vshrl.u32 %v1388, 7
    %v1390 = vsub.s32 %v1387, %v1389
    %v1391 = vrot.slane %v1090, %v1390
    %vm1392 = vcmask 523712
    %v1393 = vsel %vm1392, %v1391, %v1386
    %v1394 = vadd.s32 %v1340, 4294967232
    %v1395 = vlaneseq
    %v1396 = vshrl.u32 %v1395, 7
    %v1397 = vsub.s32 %v1394, %v1396
    %v1398 = vrot.slane %v1091, %v1397
    %vm1399 = vcmask 589312
    %v1400 = vsel %vm1399, %v1398, %v1393
    %v1401 = vadd.s32 %v1340, 4294967224
    %v1402 = vlaneseq
    %v1403 = vshrl.u32 %v1402, 7
    %v1404 = vsub.s32 %v1401, %v1403
    %v1405 = vrot.slane %v1092, %v1404
    %vm1406 = vcmask 654912
    %v1407 = vsel %vm1406, %v1405, %v1400
    %v1408 = vadd.s32 %v1340, 4294967216
    %v1409 = vlaneseq
    %v1410 = vshrl.u32 %v1409, 7
    %v1411 = vsub.s32 %v1408, %v1410
    %v1412 = vrot.slane %v1093, %v1411
    %vm1413 = vcmask 720512
    %v1414 = vsel %vm1413, %v1412, %v1407
    %v1415 = vadd.s32 %v1340, 4294967208
    %v1416 = vlaneseq
    %v1417 = vshrl.u32 %v1416, 7
    %v1418 = vsub.s32 %v1415, %v1417
    %v1419 = vrot.slane %v1094, %v1418
    %vm1420 = vcmask 786112
    %v1421 = vsel %vm1420, %v1419, %v1414
    %v1422 = vadd.s32 %v1340, 4294967200
    %v1423 = vlaneseq
    %v1424 = vshrl.u32 %v1423, 7
    %v1425 = vsub.s32 %v1422, %v1424
    %v1426 = vrot.slane %v1095, %v1425
    %vm1427 = vcmask 851712
    %v1428 = vsel %vm1427, %v1426, %v1421
    %v1429 = vadd.s32 %v1340, 4294967192
    %v1430 = vlaneseq
    %v1431 = vshrl.u32 %v1430, 7
    %v1432 = vsub.s32 %v1429, %v1431
    %v1433 = vrot.slane %v1096, %v1432
    %vm1434 = vcmask 917312
    %v1435 = vsel %vm1434, %v1433, %v1428
    %v1436 = vadd.s32 %v1340, 4294967184
    %v1437 = vlaneseq
    %v1438 = vshrl.u32 %v1437, 7
    %v1439 = vsub.s32 %v1436, %v1438
    %v1440 = vrot.slane %v1097, %v1439
    %vm1441 = vcmask 982912
    %v1442 = vsel %vm1441, %v1440, %v1435
    %v1443 = vadd.s32 %v1340, 4294967176
    %v1444 = vlaneseq
    %v1445 = vshrl.u32 %v1444, 7
    %v1446 = vsub.s32 %v1443, %v1445
    %v1447 = vrot.slane %v1098, %v1446
    %vm1448 = vcmask 1048512
    %v1449 = vsel %vm1448, %v1447, %v1442
    %v1450 = vlaneseq
    %v1451 = vshrl.u32 %v1450, 7
    %v1452 = vsub.s32 %v1340, %v1451
    %v1453 = vrot.slane %v1099, %v1452
    %v1454 = vlaneseq
    %v1455 = vshrl.u32 %v1454, 7
    %v1456 = vsub.s32 %v1345, %v1455
    %v1457 = vrot.slane %v1100, %v1456
    %v1458 = vsel %vm1350, %v1457, %v1453
    %v1459 = vlaneseq
    %v1460 = vshrl.u32 %v1459, 7
    %v1461 = vsub.s32 %v1352, %v1460
    %v1462 = vrot.slane %v1101, %v1461
    %v1463 = vsel %vm1357, %v1462, %v1458
    %v1464 = vlaneseq
    %v1465 = vshrl.u32 %v1464, 7
    %v1466 = vsub.s32 %v1359, %v1465
    %v1467 = vrot.slane %v1102, %v1466
    %v1468 = vsel %vm1364, %v1467, %v1463
    %v1469 = vlaneseq
    %v1470 = vshrl.u32 %v1469, 7
    %v1471 = vsub.s32 %v1366, %v1470
    %v1472 = vrot.slane %v1103, %v1471
    %v1473 = vsel %vm1371, %v1472, %v1468
    %v1474 = vlaneseq
    %v1475 = vshrl.u32 %v1474, 7
    %v1476 = vsub.s32 %v1373, %v1475
    %v1477 = vrot.slane %v1104, %v1476
    %v1478 = vsel %vm1378, %v1477, %v1473
    %v1479 = vlaneseq
    %v1480 = vshrl.u32 %v1479, 7
    %v1481 = vsub.s32 %v1380, %v1480
    %v1482 = vrot.slane %v1105, %v1481
    %v1483 = vsel %vm1385, %v1482, %v1478
    %v1484 = vlaneseq
    %v1485 = vshrl.u32 %v1484, 7
    %v1486 = vsub.s32 %v1387, %v1485
    %v1487 = vrot.slane %v1106, %v1486
    %v1488 = vsel %vm1392, %v1487, %v1483
    %v1489 = vlaneseq
    %v1490 = vshrl.u32 %v1489, 7
    %v1491 = vsub.s32 %v1394, %v1490
    %v1492 = vrot.slane %v1107, %v1491
    %v1493 = vsel %vm1399, %v1492, %v1488
    %v1494 = vlaneseq
    %v1495 = vshrl.u32 %v1494, 7
    %v1496 = vsub.s32 %v1401, %v1495
    %v1497 = vrot.slane %v1108, %v1496
    %v1498 = vsel %vm1406, %v1497, %v1493
    %v1499 = vlaneseq
    %v1500 = vshrl.u32 %v1499, 7
    %v1501 = vsub.s32 %v1408, %v1500
    %v1502 = vrot.slane %v1109, %v1501
    %v1503 = vsel %vm1413, %v1502, %v1498
    %v1504 = vlaneseq
    %v1505 = vshrl.u32 %v1504, 7
    %v1506 = vsub.s32 %v1415, %v1505
    %v1507 = vrot.slane %v1110, %v1506
    %v1508 = vsel %vm1420, %v1507, %v1503
    %v1509 = vlaneseq
    %v1510 = vshrl.u32 %v1509, 7
    %v1511 = vsub.s32 %v1422, %v1510
    %v1512 = vrot.slane %v1111, %v1511
    %v1513 = vsel %vm1427, %v1512, %v1508
    %v1514 = vlaneseq
    %v1515 = vshrl.u32 %v1514, 7
    %v1516 = vsub.s32 %v1429, %v1515
    %v1517 = vrot.slane %v1112, %v1516
    %v1518 = vsel %vm1434, %v1517, %v1513
    %v1519 = vlaneseq
    %v1520 = vshrl.u32 %v1519, 7
    %v1521 = vsub.s32 %v1436, %v1520
    %v1522 = vrot.slane %v1113, %v1521
    %v1523 = vsel %vm1441, %v1522, %v1518
    %v1524 = vlaneseq
    %v1525 = vshrl.u32 %v1524, 7
    %v1526 = vsub.s32 %v1443, %v1525
    %v1527 = vrot.slane %v1114, %v1526
    %v1528 = vsel %vm1448, %v1527, %v1523
    %v1529 = vlaneseq
    %v1530 = vshrl.u32 %v1529, 7
    %v1531 = vsub.s32 %v1340, %v1530
    %v1532 = vrot.slane %v1115, %v1531
    %v1533 = vlaneseq
    %v1534 = vshrl.u32 %v1533, 7
    %v1535 = vsub.s32 %v1345, %v1534
    %v1536 = vrot.slane %v1116, %v1535
    %v1537 = vsel %vm1350, %v1536, %v1532
    %v1538 = vlaneseq
    %v1539 = vshrl.u32 %v1538, 7
    %v1540 = vsub.s32 %v1352, %v1539
    %v1541 = vrot.slane %v1117, %v1540
    %v1542 = vsel %vm1357, %v1541, %v1537
    %v1543 = vlaneseq
    %v1544 = vshrl.u32 %v1543, 7
    %v1545 = vsub.s32 %v1359, %v1544
    %v1546 = vrot.slane %v1118, %v1545
    %v1547 = vsel %vm1364, %v1546, %v1542
    %v1548 = vlaneseq
    %v1549 = vshrl.u32 %v1548, 7
    %v1550 = vsub.s32 %v1366, %v1549
    %v1551 = vrot.slane %v1119, %v1550
    %v1552 = vsel %vm1371, %v1551, %v1547
    %v1553 = vlaneseq
    %v1554 = vshrl.u32 %v1553, 7
    %v1555 = vsub.s32 %v1373, %v1554
    %v1556 = vrot.slane %v1120, %v1555
    %v1557 = vsel %vm1378, %v1556, %v1552
    %v1558 = vlaneseq
    %v1559 = vshrl.u32 %v1558, 7
    %v1560 = vsub.s32 %v1380, %v1559
    %v1561 = vrot.slane %v1121, %v1560
    %v1562 = vsel %vm1385, %v1561, %v1557
    %v1563 = vlaneseq
    %v1564 = vshrl.u32 %v1563, 7
    %v1565 = vsub.s32 %v1387, %v1564
    %v1566 = vrot.slane %v1122, %v1565
    %v1567 = vsel %vm1392, %v1566, %v1562
    %v1568 = vlaneseq
    %v1569 = vshrl.u32 %v1568, 7
    %v1570 = vsub.s32 %v1394, %v1569
    %v1571 = vrot.slane %v1123, %v1570
    %v1572 = vsel %vm1399, %v1571, %v1567
    %v1573 = vlaneseq
    %v1574 = vshrl.u32 %v1573, 7
    %v1575 = vsub.s32 %v1401, %v1574
    %v1576 = vrot.slane %v1124, %v1575
    %v1577 = vsel %vm1406, %v1576, %v1572
    %v1578 = vlaneseq
    %v1579 = vshrl.u32 %v1578, 7
    %v1580 = vsub.s32 %v1408, %v1579
    %v1581 = vrot.slane %v1125, %v1580
    %v1582 = vsel %vm1413, %v1581, %v1577
    %v1583 = vlaneseq
    %v1584 = vshrl.u32 %v1583, 7
    %v1585 = vsub.s32 %v1415, %v1584
    %v1586 = vrot.slane %v1126, %v1585
    %v1587 = vsel %vm1420, %v1586, %v1582
    %v1588 = vlaneseq
    %v1589 = vshrl.u32 %v1588, 7
    %v1590 = vsub.s32 %v1422, %v1589
    %v1591 = vrot.slane %v1127, %v1590
    %v1592 = vsel %vm1427, %v1591, %v1587
    %v1593 = vlaneseq
    %v1594 = vshrl.u32 %v1593, 7
    %v1595 = vsub.s32 %v1429, %v1594
    %v1596 = vrot.slane %v1128, %v1595
    %v1597 = vsel %vm1434, %v1596, %v1592
    %v1598 = vlaneseq
    %v1599 = vshrl.u32 %v1598, 7
    %v1600 = vsub.s32 %v1436, %v1599
    %v1601 = vrot.slane %v1129, %v1600
    %v1602 = vsel %vm1441, %v1601, %v1597
    %v1603 = vlaneseq
    %v1604 = vshrl.u32 %v1603, 7
    %v1605 = vsub.s32 %v1443, %v1604
    %v1606 = vrot.slane %v1130, %v1605
    %v1607 = vsel %vm1448, %v1606, %v1602
    %v1608 = vlaneseq
    %v1609 = vshrl.u32 %v1608, 7
    %v1610 = vsub.s32 %v1340, %v1609
    %v1611 = vrot.slane %v1131, %v1610
    %v1612 = vlaneseq
    %v1613 = vshrl.u32 %v1612, 7
    %v1614 = vsub.s32 %v1345, %v1613
    %v1615 = vrot.slane %v1132, %v1614
    %v1616 = vsel %vm1350, %v1615, %v1611
    %v1617 = vlaneseq
    %v1618 = vshrl.u32 %v1617, 7
    %v1619 = vsub.s32 %v1352, %v1618
    %v1620 = vrot.slane %v1133, %v1619
    %v1621 = vsel %vm1357, %v1620, %v1616
    %v1622 = vlaneseq
    %v1623 = vshrl.u32 %v1622, 7
    %v1624 = vsub.s32 %v1359, %v1623
    %v1625 = vrot.slane %v1134, %v1624
    %v1626 = vsel %vm1364, %v1625, %v1621
    %v1627 = vlaneseq
    %v1628 = vshrl.u32 %v1627, 7
    %v1629 = vsub.s32 %v1366, %v1628
    %v1630 = vrot.slane %v1135, %v1629
    %v1631 = vsel %vm1371, %v1630, %v1626
    %v1632 = vlaneseq
    %v1633 = vshrl.u32 %v1632, 7
    %v1634 = vsub.s32 %v1373, %v1633
    %v1635 = vrot.slane %v1136, %v1634
    %v1636 = vsel %vm1378, %v1635, %v1631
    %v1637 = vlaneseq
    %v1638 = vshrl.u32 %v1637, 7
    %v1639 = vsub.s32 %v1380, %v1638
    %v1640 = vrot.slane %v1137, %v1639
    %v1641 = vsel %vm1385, %v1640, %v1636
    %v1642 = vlaneseq
    %v1643 = vshrl.u32 %v1642, 7
    %v1644 = vsub.s32 %v1387, %v1643
    %v1645 = vrot.slane %v1138, %v1644
    %v1646 = vsel %vm1392, %v1645, %v1641
    %v1647 = vlaneseq
    %v1648 = vshrl.u32 %v1647, 7
    %v1649 = vsub.s32 %v1394, %v1648
    %v1650 = vrot.slane %v1139, %v1649
    %v1651 = vsel %vm1399, %v1650, %v1646
    %v1652 = vlaneseq
    %v1653 = vshrl.u32 %v1652, 7
    %v1654 = vsub.s32 %v1401, %v1653
    %v1655 = vrot.slane %v1140, %v1654
    %v1656 = vsel %vm1406, %v1655, %v1651
    %v1657 = vlaneseq
    %v1658 = vshrl.u32 %v1657, 7
    %v1659 = vsub.s32 %v1408, %v1658
    %v1660 = vrot.slane %v1141, %v1659
    %v1661 = vsel %vm1413, %v1660, %v1656
    %v1662 = vlaneseq
    %v1663 = vshrl.u32 %v1662, 7
    %v1664 = vsub.s32 %v1415, %v1663
    %v1665 = vrot.slane %v1142, %v1664
    %v1666 = vsel %vm1420, %v1665, %v1661
    %v1667 = vlaneseq
    %v1668 = vshrl.u32 %v1667, 7
    %v1669 = vsub.s32 %v1422, %v1668
    %v1670 = vrot.slane %v1143, %v1669
    %v1671 = vsel %vm1427, %v1670, %v1666
    %v1672 = vlaneseq
    %v1673 = vshrl.u32 %v1672, 7
    %v1674 = vsub.s32 %v1429, %v1673
    %v1675 = vrot.slane %v1144, %v1674
    %v1676 = vsel %vm1434, %v1675, %v1671
    %v1677 = vlaneseq
    %v1678 = vshrl.u32 %v1677, 7
    %v1679 = vsub.s32 %v1436, %v1678
    %v1680 = vrot.slane %v1145, %v1679
    %v1681 = vsel %vm1441, %v1680, %v1676
    %v1682 = vlaneseq
    %v1683 = vshrl.u32 %v1682, 7
    %v1684 = vsub.s32 %v1443, %v1683
    %v1685 = vrot.slane %v1146, %v1684
    %v1686 = vsel %vm1448, %v1685, %v1681
    %v1687 = vlaneseq
    %v1688 = vshrl.u32 %v1687, 7
    %v1689 = vsub.s32 %v1340, %v1688
    %v1690 = vrot.slane %v1147, %v1689
    %v1691 = vlaneseq
    %v1692 = vshrl.u32 %v1691, 7
    %v1693 = vsub.s32 %v1345, %v1692
    %v1694 = vrot.slane %v1148, %v1693
    %v1695 = vsel %vm1350, %v1694, %v1690
    %v1696 = vlaneseq
    %v1697 = vshrl.u32 %v1696, 7
    %v1698 = vsub.s32 %v1352, %v1697
    %v1699 = vrot.slane %v1149, %v1698
    %v1700 = vsel %vm1357, %v1699, %v1695
    %v1701 = vlaneseq
    %v1702 = vshrl.u32 %v1701, 7
    %v1703 = vsub.s32 %v1359, %v1702
    %v1704 = vrot.slane %v1150, %v1703
    %v1705 = vsel %vm1364, %v1704, %v1700
    %v1706 = vlaneseq
    %v1707 = vshrl.u32 %v1706, 7
    %v1708 = vsub.s32 %v1366, %v1707
    %v1709 = vrot.slane %v1151, %v1708
    %v1710 = vsel %vm1371, %v1709, %v1705
    %v1711 = vlaneseq
    %v1712 = vshrl.u32 %v1711, 7
    %v1713 = vsub.s32 %v1373, %v1712
    %v1714 = vrot.slane %v1152, %v1713
    %v1715 = vsel %vm1378, %v1714, %v1710
    %v1716 = vlaneseq
    %v1717 = vshrl.u32 %v1716, 7
    %v1718 = vsub.s32 %v1380, %v1717
    %v1719 = vrot.slane %v1153, %v1718
    %v1720 = vsel %vm1385, %v1719, %v1715
    %v1721 = vlaneseq
    %v1722 = vshrl.u32 %v1721, 7
    %v1723 = vsub.s32 %v1387, %v1722
    %v1724 = vrot.slane %v1154, %v1723
    %v1725 = vsel %vm1392, %v1724, %v1720
    %v1726 = vlaneseq
    %v1727 = vshrl.u32 %v1726, 7
    %v1728 = vsub.s32 %v1394, %v1727
    %v1729 = vrot.slane %v1155, %v1728
    %v1730 = vsel %vm1399, %v1729, %v1725
    %v1731 = vlaneseq
    %v1732 = vshrl.u32 %v1731, 7
    %v1733 = vsub.s32 %v1401, %v1732
    %v1734 = vrot.slane %v1156, %v1733
    %v1735 = vsel %vm1406, %v1734, %v1730
    %v1736 = vlaneseq
    %v1737 = vshrl.u32 %v1736, 7
    %v1738 = vsub.s32 %v1408, %v1737
    %v1739 = vrot.slane %v1157, %v1738
    %v1740 = vsel %vm1413, %v1739, %v1735
    %v1741 = vlaneseq
    %v1742 = vshrl.u32 %v1741, 7
    %v1743 = vsub.s32 %v1415, %v1742
    %v1744 = vrot.slane %v1158, %v1743
    %v1745 = vsel %vm1420, %v1744, %v1740
    %v1746 = vlaneseq
    %v1747 = vshrl.u32 %v1746, 7
    %v1748 = vsub.s32 %v1422, %v1747
    %v1749 = vrot.slane %v1159, %v1748
    %v1750 = vsel %vm1427, %v1749, %v1745
    %v1751 = vlaneseq
    %v1752 = vshrl.u32 %v1751, 7
    %v1753 = vsub.s32 %v1429, %v1752
    %v1754 = vrot.slane %v1160, %v1753
    %v1755 = vsel %vm1434, %v1754, %v1750
    %v1756 = vlaneseq
    %v1757 = vshrl.u32 %v1756, 7
    %v1758 = vsub.s32 %v1436, %v1757
    %v1759 = vrot.slane %v1161, %v1758
    %v1760 = vsel %vm1441, %v1759, %v1755
    %v1761 = vlaneseq
    %v1762 = vshrl.u32 %v1761, 7
    %v1763 = vsub.s32 %v1443, %v1762
    %v1764 = vrot.slane %v1162, %v1763
    %v1765 = vsel %vm1448, %v1764, %v1760
    %v1766 = vlaneseq
    %v1767 = vshrl.u32 %v1766, 7
    %v1768 = vsub.s32 %v1340, %v1767
    %v1769 = vrot.slane %v1163, %v1768
    %v1770 = vlaneseq
    %v1771 = vshrl.u32 %v1770, 7
    %v1772 = vsub.s32 %v1345, %v1771
    %v1773 = vrot.slane %v1164, %v1772
    %v1774 = vsel %vm1350, %v1773, %v1769
    %v1775 = vlaneseq
    %v1776 = vshrl.u32 %v1775, 7
    %v1777 = vsub.s32 %v1352, %v1776
    %v1778 = vrot.slane %v1165, %v1777
    %v1779 = vsel %vm1357, %v1778, %v1774
    %v1780 = vlaneseq
    %v1781 = vshrl.u32 %v1780, 7
    %v1782 = vsub.s32 %v1359, %v1781
    %v1783 = vrot.slane %v1166, %v1782
    %v1784 = vsel %vm1364, %v1783, %v1779
    %v1785 = vlaneseq
    %v1786 = vshrl.u32 %v1785, 7
    %v1787 = vsub.s32 %v1366, %v1786
    %v1788 = vrot.slane %v1167, %v1787
    %v1789 = vsel %vm1371, %v1788, %v1784
    %v1790 = vlaneseq
    %v1791 = vshrl.u32 %v1790, 7
    %v1792 = vsub.s32 %v1373, %v1791
    %v1793 = vrot.slane %v1168, %v1792
    %v1794 = vsel %vm1378, %v1793, %v1789
    %v1795 = vlaneseq
    %v1796 = vshrl.u32 %v1795, 7
    %v1797 = vsub.s32 %v1380, %v1796
    %v1798 = vrot.slane %v1169, %v1797
    %v1799 = vsel %vm1385, %v1798, %v1794
    %v1800 = vlaneseq
    %v1801 = vshrl.u32 %v1800, 7
    %v1802 = vsub.s32 %v1387, %v1801
    %v1803 = vrot.slane %v1170, %v1802
    %v1804 = vsel %vm1392, %v1803, %v1799
    %v1805 = vlaneseq
    %v1806 = vshrl.u32 %v1805, 7
    %v1807 = vsub.s32 %v1394, %v1806
    %v1808 = vrot.slane %v1171, %v1807
    %v1809 = vsel %vm1399, %v1808, %v1804
    %v1810 = vlaneseq
    %v1811 = vshrl.u32 %v1810, 7
    %v1812 = vsub.s32 %v1401, %v1811
    %v1813 = vrot.slane %v1172, %v1812
    %v1814 = vsel %vm1406, %v1813, %v1809
    %v1815 = vlaneseq
    %v1816 = vshrl.u32 %v1815, 7
    %v1817 = vsub.s32 %v1408, %v1816
    %v1818 = vrot.slane %v1173, %v1817
    %v1819 = vsel %vm1413, %v1818, %v1814
    %v1820 = vlaneseq
    %v1821 = vshrl.u32 %v1820, 7
    %v1822 = vsub.s32 %v1415, %v1821
    %v1823 = vrot.slane %v1174, %v1822
    %v1824 = vsel %vm1420, %v1823, %v1819
    %v1825 = vlaneseq
    %v1826 = vshrl.u32 %v1825, 7
    %v1827 = vsub.s32 %v1422, %v1826
    %v1828 = vrot.slane %v1175, %v1827
    %v1829 = vsel %vm1427, %v1828, %v1824
    %v1830 = vlaneseq
    %v1831 = vshrl.u32 %v1830, 7
    %v1832 = vsub.s32 %v1429, %v1831
    %v1833 = vrot.slane %v1176, %v1832
    %v1834 = vsel %vm1434, %v1833, %v1829
    %v1835 = vlaneseq
    %v1836 = vshrl.u32 %v1835, 7
    %v1837 = vsub.s32 %v1436, %v1836
    %v1838 = vrot.slane %v1177, %v1837
    %v1839 = vsel %vm1441, %v1838, %v1834
    %v1840 = vlaneseq
    %v1841 = vshrl.u32 %v1840, 7
    %v1842 = vsub.s32 %v1443, %v1841
    %v1843 = vrot.slane %v1178, %v1842
    %v1844 = vsel %vm1448, %v1843, %v1839
    %v1845 = vlaneseq
    %v1846 = vshrl.u32 %v1845, 7
    %v1847 = vsub.s32 %v1340, %v1846
    %v1848 = vrot.slane %v1179, %v1847
    %v1849 = vlaneseq
    %v1850 = vshrl.u32 %v1849, 7
    %v1851 = vsub.s32 %v1345, %v1850
    %v1852 = vrot.slane %v1180, %v1851
    %v1853 = vsel %vm1350, %v1852, %v1848
    %v1854 = vlaneseq
    %v1855 = vshrl.u32 %v1854, 7
    %v1856 = vsub.s32 %v1352, %v1855
    %v1857 = vrot.slane %v1181, %v1856
    %v1858 = vsel %vm1357, %v1857, %v1853
    %v1859 = vlaneseq
    %v1860 = vshrl.u32 %v1859, 7
    %v1861 = vsub.s32 %v1359, %v1860
    %v1862 = vrot.slane %v1182, %v1861
    %v1863 = vsel %vm1364, %v1862, %v1858
    %v1864 = vlaneseq
    %v1865 = vshrl.u32 %v1864, 7
    %v1866 = vsub.s32 %v1366, %v1865
    %v1867 = vrot.slane %v1183, %v1866
    %v1868 = vsel %vm1371, %v1867, %v1863
    %v1869 = vlaneseq
    %v1870 = vshrl.u32 %v1869, 7
    %v1871 = vsub.s32 %v1373, %v1870
    %v1872 = vrot.slane %v1184, %v1871
    %v1873 = vsel %vm1378, %v1872, %v1868
    %v1874 = vlaneseq
    %v1875 = vshrl.u32 %v1874, 7
    %v1876 = vsub.s32 %v1380, %v1875
    %v1877 = vrot.slane %v1185, %v1876
    %v1878 = vsel %vm1385, %v1877, %v1873
    %v1879 = vlaneseq
    %v1880 = vshrl.u32 %v1879, 7
    %v1881 = vsub.s32 %v1387, %v1880
    %v1882 = vrot.slane %v1186, %v1881
    %v1883 = vsel %vm1392, %v1882, %v1878
    %v1884 = vlaneseq
    %v1885 = vshrl.u32 %v1884, 7
    %v1886 = vsub.s32 %v1394, %v1885
    %v1887 = vrot.slane %v1187, %v1886
    %v1888 = vsel %vm1399, %v1887, %v1883
    %v1889 = vlaneseq
    %v1890 = vshrl.u32 %v1889, 7
    %v1891 = vsub.s32 %v1401, %v1890
    %v1892 = vrot.slane %v1188, %v1891
    %v1893 = vsel %vm1406, %v1892, %v1888
    %v1894 = vlaneseq
    %v1895 = vshrl.u32 %v1894, 7
    %v1896 = vsub.s32 %v1408, %v1895
    %v1897 = vrot.slane %v1189, %v1896
    %v1898 = vsel %vm1413, %v1897, %v1893
    %v1899 = vlaneseq
    %v1900 = vshrl.u32 %v1899, 7
    %v1901 = vsub.s32 %v1415, %v1900
    %v1902 = vrot.slane %v1190, %v1901
    %v1903 = vsel %vm1420, %v1902, %v1898
    %v1904 = vlaneseq
    %v1905 = vshrl.u32 %v1904, 7
    %v1906 = vsub.s32 %v1422, %v1905
    %v1907 = vrot.slane %v1191, %v1906
    %v1908 = vsel %vm1427, %v1907, %v1903
    %v1909 = vlaneseq
    %v1910 = vshrl.u32 %v1909, 7
    %v1911 = vsub.s32 %v1429, %v1910
    %v1912 = vrot.slane %v1192, %v1911
    %v1913 = vsel %vm1434, %v1912, %v1908
    %v1914 = vlaneseq
    %v1915 = vshrl.u32 %v1914, 7
    %v1916 = vsub.s32 %v1436, %v1915
    %v1917 = vrot.slane %v1193, %v1916
    %v1918 = vsel %vm1441, %v1917, %v1913
    %v1919 = vlaneseq
    %v1920 = vshrl.u32 %v1919, 7
    %v1921 = vsub.s32 %v1443, %v1920
    %v1922 = vrot.slane %v1194, %v1921
    %v1923 = vsel %vm1448, %v1922, %v1918
    %v1924 = vlaneseq
    %v1925 = vshrl.u32 %v1924, 7
    %v1926 = vsub.s32 %v1340, %v1925
    %v1927 = vrot.slane %v1195, %v1926
    %v1928 = vlaneseq
    %v1929 = vshrl.u32 %v1928, 7
    %v1930 = vsub.s32 %v1345, %v1929
    %v1931 = vrot.slane %v1196, %v1930
    %v1932 = vsel %vm1350, %v1931, %v1927
    %v1933 = vlaneseq
    %v1934 = vshrl.u32 %v1933, 7
    %v1935 = vsub.s32 %v1352, %v1934
    %v1936 = vrot.slane %v1197, %v1935
    %v1937 = vsel %vm1357, %v1936, %v1932
    %v1938 = vlaneseq
    %v1939 = vshrl.u32 %v1938, 7
    %v1940 = vsub.s32 %v1359, %v1939
    %v1941 = vrot.slane %v1198, %v1940
    %v1942 = vsel %vm1364, %v1941, %v1937
    %v1943 = vlaneseq
    %v1944 = vshrl.u32 %v1943, 7
    %v1945 = vsub.s32 %v1366, %v1944
    %v1946 = vrot.slane %v1199, %v1945
    %v1947 = vsel %vm1371, %v1946, %v1942
    %v1948 = vlaneseq
    %v1949 = vshrl.u32 %v1948, 7
    %v1950 = vsub.s32 %v1373, %v1949
    %v1951 = vrot.slane %v1200, %v1950
    %v1952 = vsel %vm1378, %v1951, %v1947
    %v1953 = vlaneseq
    %v1954 = vshrl.u32 %v1953, 7
    %v1955 = vsub.s32 %v1380, %v1954
    %v1956 = vrot.slane %v1201, %v1955
    %v1957 = vsel %vm1385, %v1956, %v1952
    %v1958 = vlaneseq
    %v1959 = vshrl.u32 %v1958, 7
    %v1960 = vsub.s32 %v1387, %v1959
    %v1961 = vrot.slane %v1202, %v1960
    %v1962 = vsel %vm1392, %v1961, %v1957
    %v1963 = vlaneseq
    %v1964 = vshrl.u32 %v1963, 7
    %v1965 = vsub.s32 %v1394, %v1964
    %v1966 = vrot.slane %v1203, %v1965
    %v1967 = vsel %vm1399, %v1966, %v1962
    %v1968 = vlaneseq
    %v1969 = vshrl.u32 %v1968, 7
    %v1970 = vsub.s32 %v1401, %v1969
    %v1971 = vrot.slane %v1204, %v1970
    %v1972 = vsel %vm1406, %v1971, %v1967
    %v1973 = vlaneseq
    %v1974 = vshrl.u32 %v1973, 7
    %v1975 = vsub.s32 %v1408, %v1974
    %v1976 = vrot.slane %v1205, %v1975
    %v1977 = vsel %vm1413, %v1976, %v1972
    %v1978 = vlaneseq
    %v1979 = vshrl.u32 %v1978, 7
    %v1980 = vsub.s32 %v1415, %v1979
    %v1981 = vrot.slane %v1206, %v1980
    %v1982 = vsel %vm1420, %v1981, %v1977
    %v1983 = vlaneseq
    %v1984 = vshrl.u32 %v1983, 7
    %v1985 = vsub.s32 %v1422, %v1984
    %v1986 = vrot.slane %v1207, %v1985
    %v1987 = vsel %vm1427, %v1986, %v1982
    %v1988 = vlaneseq
    %v1989 = vshrl.u32 %v1988, 7
    %v1990 = vsub.s32 %v1429, %v1989
    %v1991 = vrot.slane %v1208, %v1990
    %v1992 = vsel %vm1434, %v1991, %v1987
    %v1993 = vlaneseq
    %v1994 = vshrl.u32 %v1993, 7
    %v1995 = vsub.s32 %v1436, %v1994
    %v1996 = vrot.slane %v1209, %v1995
    %v1997 = vsel %vm1441, %v1996, %v1992
    %v1998 = vlaneseq
    %v1999 = vshrl.u32 %v1998, 7
    %v2000 = vsub.s32 %v1443, %v1999
    %v2001 = vrot.slane %v1210, %v2000
    %v2002 = vsel %vm1448, %v2001, %v1997
    %vm2003 = vcmask 1041409
    %v2004 = vsel %vm2003, %v1528, %v1449
    %vm2005 = vcmask 1042434
    %v2006 = vsel %vm2005, %v1607, %v2004
    %vm2007 = vcmask 1043459
    %v2008 = vsel %vm2007, %v1686, %v2006
    %vm2009 = vcmask 1044484
    %v2010 = vsel %vm2009, %v1765, %v2008
    %vm2011 = vcmask 1045509
    %v2012 = vsel %vm2011, %v1844, %v2010
    %vm2013 = vcmask 1046534
    %v2014 = vsel %vm2013, %v1923, %v2012
    %vm2015 = vcmask 1047559
    %v2016 = vsel %vm2015, %v2002, %v2014
    %2018 = vst [vmem:[#allocation16] sm:$0xff] %v2016
    %v2020 = vcombine.high %v444, %v444
    %v2022 = vunpack.c.l.s4 1966171168
    %v2023 = vunpack.c.0.s8 %v2022
    %v2024 = vlaneseq
    %v2025 = vshrl.u32 %v2024, 7
    %v2026 = vsub.s32 %v2023, %v2025
    %v2027 = vrot.slane %v444, %v2026
    %v2029 = vunpack.c.l.s4 1966171168
    %v2030 = vunpack.c.0.s8 %v2029
    %v2031 = vlaneseq
    %v2032 = vshrl.u32 %v2031, 7
    %v2033 = vsub.s32 %v2030, %v2032
    %v2034 = vrot.slane %v2020, %v2033
    %v2035 = vcombine.high %v2027, %v2027
    %v2036 = vcombine.high %v2034, %v2034
    %v2038 = vunpack.c.l.s4 1966171168
    %v2039 = vunpack.c.0.s8 %v2038
    %v2040 = vlaneseq
    %v2041 = vshrl.u32 %v2040, 7
    %v2042 = vsub.s32 %v2039, %v2041
    %v2043 = vrot.slane %v2027, %v2042
    %v2045 = vunpack.c.l.s4 1966171168
    %v2046 = vunpack.c.0.s8 %v2045
    %v2047 = vlaneseq
    %v2048 = vshrl.u32 %v2047, 7
    %v2049 = vsub.s32 %v2046, %v2048
    %v2050 = vrot.slane %v2034, %v2049
    %v2052 = vunpack.c.l.s4 1966171168
    %v2053 = vunpack.c.0.s8 %v2052
    %v2054 = vlaneseq
    %v2055 = vshrl.u32 %v2054, 7
    %v2056 = vsub.s32 %v2053, %v2055
    %v2057 = vrot.slane %v2035, %v2056
    %v2059 = vunpack.c.l.s4 1966171168
    %v2060 = vunpack.c.0.s8 %v2059
    %v2061 = vlaneseq
    %v2062 = vshrl.u32 %v2061, 7
    %v2063 = vsub.s32 %v2060, %v2062
    %v2064 = vrot.slane %v2036, %v2063
    %v2065 = vcombine.high %v2043, %v2043
    %v2066 = vcombine.high %v2050, %v2050
    %v2067 = vcombine.high %v2057, %v2057
    %v2068 = vcombine.high %v2064, %v2064
    %v2069 = vld [vmem:[#allocation14] sm:$0xff]
    %v2070 = vld [vmem:[#allocation14 + $0x8] sm:$0xff]
    %v2071 = vld [vmem:[#allocation14 + $0x10] sm:$0xff]
    %v2072 = vld [vmem:[#allocation14 + $0x18] sm:$0xff]
    %v2073 = vunpack.c.0.s8 %v2069
    %v2074 = vunpack.c.1.s8 %v2069
    %v2075 = vunpack.c.2.s8 %v2069
    %v2076 = vunpack.c.3.s8 %v2069
    %v2077 = vunpack.c.0.s8 %v2070
    %v2078 = vunpack.c.1.s8 %v2070
    %v2079 = vunpack.c.2.s8 %v2070
    %v2080 = vunpack.c.3.s8 %v2070
    %v2081 = vunpack.c.0.s8 %v2071
    %v2082 = vunpack.c.1.s8 %v2071
    %v2083 = vunpack.c.2.s8 %v2071
    %v2084 = vunpack.c.3.s8 %v2071
    %v2085 = vunpack.c.0.s8 %v2072
    %v2086 = vunpack.c.1.s8 %v2072
    %v2087 = vunpack.c.2.s8 %v2072
    %v2088 = vunpack.c.3.s8 %v2072
    %v2089 = vcvt.s32.f32 %v2073
    %v2090 = vcvt.s32.f32 %v2074
    %v2091 = vcvt.s32.f32 %v2075
    %v2092 = vcvt.s32.f32 %v2076
    %v2093 = vcvt.s32.f32 %v2077
    %v2094 = vcvt.s32.f32 %v2078
    %v2095 = vcvt.s32.f32 %v2079
    %v2096 = vcvt.s32.f32 %v2080
    %v2097 = vcvt.s32.f32 %v2081
    %v2098 = vcvt.s32.f32 %v2082
    %v2099 = vcvt.s32.f32 %v2083
    %v2100 = vcvt.s32.f32 %v2084
    %v2101 = vcvt.s32.f32 %v2085
    %v2102 = vcvt.s32.f32 %v2086
    %v2103 = vcvt.s32.f32 %v2087
    %v2104 = vcvt.s32.f32 %v2088
    %v2105 = vlaneseq
    %v2106 = vshrl.u32 %v2105, 7
    %v2107 = vsub.s32 0, %v2106
    %v2108 = vrot.slane %v2043, %v2107
    %v2109 = vlaneseq
    %v2110 = vshrl.u32 %v2109, 7
    %v2111 = vsub.s32 0, %v2110
    %v2112 = vrot.slane %v2057, %v2111
    %v2113 = vlaneseq
    %v2114 = vshrl.u32 %v2113, 7
    %v2115 = vsub.s32 0, %v2114
    %v2116 = vrot.slane %v2065, %v2115
    %v2117 = vlaneseq
    %v2118 = vshrl.u32 %v2117, 7
    %v2119 = vsub.s32 0, %v2118
    %v2120 = vrot.slane %v2067, %v2119
    %v2121 = vlaneseq
    %v2122 = vshrl.u32 %v2121, 7
    %v2123 = vsub.s32 0, %v2122
    %v2124 = vrot.slane %v2050, %v2123
    %v2125 = vlaneseq
    %v2126 = vshrl.u32 %v2125, 7
    %v2127 = vsub.s32 0, %v2126
    %v2128 = vrot.slane %v2064, %v2127
    %v2129 = vlaneseq
    %v2130 = vshrl.u32 %v2129, 7
    %v2131 = vsub.s32 0, %v2130
    %v2132 = vrot.slane %v2066, %v2131
    %v2133 = vlaneseq
    %v2134 = vshrl.u32 %v2133, 7
    %v2135 = vsub.s32 0, %v2134
    %v2136 = vrot.slane %v2068, %v2135
    %v2145 = vadd.f32 %v2089, %v2108
    %v2146 = vadd.f32 %v2090, %v2108
    %v2147 = vadd.f32 %v2091, %v2108
    %v2148 = vadd.f32 %v2092, %v2108
    %v2149 = vadd.f32 %v2093, %v2108
    %v2150 = vadd.f32 %v2094, %v2108
    %v2151 = vadd.f32 %v2095, %v2108
    %v2152 = vadd.f32 %v2096, %v2108
    %v2153 = vadd.f32 %v2097, %v2108
    %v2154 = vadd.f32 %v2098, %v2108
    %v2155 = vadd.f32 %v2099, %v2108
    %v2156 = vadd.f32 %v2100, %v2108
    %v2157 = vadd.f32 %v2101, %v2108
    %v2158 = vadd.f32 %v2102, %v2108
    %v2159 = vadd.f32 %v2103, %v2108
    %v2160 = vadd.f32 %v2104, %v2108
    %v2161 = vadd.f32 %v2089, %v2112
    %v2162 = vadd.f32 %v2090, %v2112
    %v2163 = vadd.f32 %v2091, %v2112
    %v2164 = vadd.f32 %v2092, %v2112
    %v2165 = vadd.f32 %v2093, %v2112
    %v2166 = vadd.f32 %v2094, %v2112
    %v2167 = vadd.f32 %v2095, %v2112
    %v2168 = vadd.f32 %v2096, %v2112
    %v2169 = vadd.f32 %v2097, %v2112
    %v2170 = vadd.f32 %v2098, %v2112
    %v2171 = vadd.f32 %v2099, %v2112
    %v2172 = vadd.f32 %v2100, %v2112
    %v2173 = vadd.f32 %v2101, %v2112
    %v2174 = vadd.f32 %v2102, %v2112
    %v2175 = vadd.f32 %v2103, %v2112
    %v2176 = vadd.f32 %v2104, %v2112
    %v2177 = vadd.f32 %v2089, %v2116
    %v2178 = vadd.f32 %v2090, %v2116
    %v2179 = vadd.f32 %v2091, %v2116
    %v2180 = vadd.f32 %v2092, %v2116
    %v2181 = vadd.f32 %v2093, %v2116
    %v2182 = vadd.f32 %v2094, %v2116
    %v2183 = vadd.f32 %v2095, %v2116
    %v2184 = vadd.f32 %v2096, %v2116
    %v2185 = vadd.f32 %v2097, %v2116
    %v2186 = vadd.f32 %v2098, %v2116
    %v2187 = vadd.f32 %v2099, %v2116
    %v2188 = vadd.f32 %v2100, %v2116
    %v2189 = vadd.f32 %v2101, %v2116
    %v2190 = vadd.f32 %v2102, %v2116
    %v2191 = vadd.f32 %v2103, %v2116
    %v2192 = vadd.f32 %v2104, %v2116
    %v2193 = vadd.f32 %v2089, %v2120
    %v2194 = vadd.f32 %v2090, %v2120
    %v2195 = vadd.f32 %v2091, %v2120
    %v2196 = vadd.f32 %v2092, %v2120
    %v2197 = vadd.f32 %v2093, %v2120
    %v2198 = vadd.f32 %v2094, %v2120
    %v2199 = vadd.f32 %v2095, %v2120
    %v2200 = vadd.f32 %v2096, %v2120
    %v2201 = vadd.f32 %v2097, %v2120
    %v2202 = vadd.f32 %v2098, %v2120
    %v2203 = vadd.f32 %v2099, %v2120
    %v2204 = vadd.f32 %v2100, %v2120
    %v2205 = vadd.f32 %v2101, %v2120
    %v2206 = vadd.f32 %v2102, %v2120
    %v2207 = vadd.f32 %v2103, %v2120
    %v2208 = vadd.f32 %v2104, %v2120
    %v2209 = vadd.f32 %v2089, %v2124
    %v2210 = vadd.f32 %v2090, %v2124
    %v2211 = vadd.f32 %v2091, %v2124
    %v2212 = vadd.f32 %v2092, %v2124
    %v2213 = vadd.f32 %v2093, %v2124
    %v2214 = vadd.f32 %v2094, %v2124
    %v2215 = vadd.f32 %v2095, %v2124
    %v2216 = vadd.f32 %v2096, %v2124
    %v2217 = vadd.f32 %v2097, %v2124
    %v2218 = vadd.f32 %v2098, %v2124
    %v2219 = vadd.f32 %v2099, %v2124
    %v2220 = vadd.f32 %v2100, %v2124
    %v2221 = vadd.f32 %v2101, %v2124
    %v2222 = vadd.f32 %v2102, %v2124
    %v2223 = vadd.f32 %v2103, %v2124
    %v2224 = vadd.f32 %v2104, %v2124
    %v2225 = vadd.f32 %v2089, %v2128
    %v2226 = vadd.f32 %v2090, %v2128
    %v2227 = vadd.f32 %v2091, %v2128
    %v2228 = vadd.f32 %v2092, %v2128
    %v2229 = vadd.f32 %v2093, %v2128
    %v2230 = vadd.f32 %v2094, %v2128
    %v2231 = vadd.f32 %v2095, %v2128
    %v2232 = vadd.f32 %v2096, %v2128
    %v2233 = vadd.f32 %v2097, %v2128
    %v2234 = vadd.f32 %v2098, %v2128
    %v2235 = vadd.f32 %v2099, %v2128
    %v2236 = vadd.f32 %v2100, %v2128
    %v2237 = vadd.f32 %v2101, %v2128
    %v2238 = vadd.f32 %v2102, %v2128
    %v2239 = vadd.f32 %v2103, %v2128
    %v2240 = vadd.f32 %v2104, %v2128
    %v2241 = vadd.f32 %v2089, %v2132
    %v2242 = vadd.f32 %v2090, %v2132
    %v2243 = vadd.f32 %v2091, %v2132
    %v2244 = vadd.f32 %v2092, %v2132
    %v2245 = vadd.f32 %v2093, %v2132
    %v2246 = vadd.f32 %v2094, %v2132
    %v2247 = vadd.f32 %v2095, %v2132
    %v2248 = vadd.f32 %v2096, %v2132
    %v2249 = vadd.f32 %v2097, %v2132
    %v2250 = vadd.f32 %v2098, %v2132
    %v2251 = vadd.f32 %v2099, %v2132
    %v2252 = vadd.f32 %v2100, %v2132
    %v2253 = vadd.f32 %v2101, %v2132
    %v2254 = vadd.f32 %v2102, %v2132
    %v2255 = vadd.f32 %v2103, %v2132
    %v2256 = vadd.f32 %v2104, %v2132
    %v2257 = vadd.f32 %v2089, %v2136
    %v2258 = vadd.f32 %v2090, %v2136
    %v2259 = vadd.f32 %v2091, %v2136
    %v2260 = vadd.f32 %v2092, %v2136
    %v2261 = vadd.f32 %v2093, %v2136
    %v2262 = vadd.f32 %v2094, %v2136
    %v2263 = vadd.f32 %v2095, %v2136
    %v2264 = vadd.f32 %v2096, %v2136
    %v2265 = vadd.f32 %v2097, %v2136
    %v2266 = vadd.f32 %v2098, %v2136
    %v2267 = vadd.f32 %v2099, %v2136
    %v2268 = vadd.f32 %v2100, %v2136
    %v2269 = vadd.f32 %v2101, %v2136
    %v2270 = vadd.f32 %v2102, %v2136
    %v2271 = vadd.f32 %v2103, %v2136
    %v2272 = vadd.f32 %v2104, %v2136
    %2273 = vmax.xlane.f32.xlu0 %v2145
    %v2274 = vpop.xlane.xlu0 %2273
    %2275 = vmax.xlane.f32.xlu0 %v2146
    %v2276 = vpop.xlane.xlu0 %2275
    %2277 = vmax.xlane.f32.xlu0 %v2147
    %v2278 = vpop.xlane.xlu0 %2277
    %2279 = vmax.xlane.f32.xlu0 %v2148
    %v2280 = vpop.xlane.xlu0 %2279
    %2281 = vmax.xlane.f32.xlu0 %v2149
    %v2282 = vpop.xlane.xlu0 %2281
    %2283 = vmax.xlane.f32.xlu0 %v2150
    %v2284 = vpop.xlane.xlu0 %2283
    %2285 = vmax.xlane.f32.xlu0 %v2151
    %v2286 = vpop.xlane.xlu0 %2285
    %2287 = vmax.xlane.f32.xlu0 %v2152
    %v2288 = vpop.xlane.xlu0 %2287
    %2289 = vmax.xlane.f32.xlu0 %v2153
    %v2290 = vpop.xlane.xlu0 %2289
    %2291 = vmax.xlane.f32.xlu0 %v2154
    %v2292 = vpop.xlane.xlu0 %2291
    %2293 = vmax.xlane.f32.xlu0 %v2155
    %v2294 = vpop.xlane.xlu0 %2293
    %2295 = vmax.xlane.f32.xlu0 %v2156
    %v2296 = vpop.xlane.xlu0 %2295
    %2297 = vmax.xlane.f32.xlu0 %v2157
    %v2298 = vpop.xlane.xlu0 %2297
    %2299 = vmax.xlane.f32.xlu0 %v2158
    %v2300 = vpop.xlane.xlu0 %2299
    %2301 = vmax.xlane.f32.xlu0 %v2159
    %v2302 = vpop.xlane.xlu0 %2301
    %2303 = vmax.xlane.f32.xlu0 %v2160
    %v2304 = vpop.xlane.xlu0 %2303
    %2305 = vmax.xlane.f32.xlu0 %v2161
    %v2306 = vpop.xlane.xlu0 %2305
    %2307 = vmax.xlane.f32.xlu0 %v2162
    %v2308 = vpop.xlane.xlu0 %2307
    %2309 = vmax.xlane.f32.xlu0 %v2163
    %v2310 = vpop.xlane.xlu0 %2309
    %2311 = vmax.xlane.f32.xlu0 %v2164
    %v2312 = vpop.xlane.xlu0 %2311
    %2313 = vmax.xlane.f32.xlu0 %v2165
    %v2314 = vpop.xlane.xlu0 %2313
    %2315 = vmax.xlane.f32.xlu0 %v2166
    %v2316 = vpop.xlane.xlu0 %2315
    %2317 = vmax.xlane.f32.xlu0 %v2167
    %v2318 = vpop.xlane.xlu0 %2317
    %2319 = vmax.xlane.f32.xlu0 %v2168
    %v2320 = vpop.xlane.xlu0 %2319
    %2321 = vmax.xlane.f32.xlu0 %v2169
    %v2322 = vpop.xlane.xlu0 %2321
    %2323 = vmax.xlane.f32.xlu0 %v2170
    %v2324 = vpop.xlane.xlu0 %2323
    %2325 = vmax.xlane.f32.xlu0 %v2171
    %v2326 = vpop.xlane.xlu0 %2325
    %2327 = vmax.xlane.f32.xlu0 %v2172
    %v2328 = vpop.xlane.xlu0 %2327
    %2329 = vmax.xlane.f32.xlu0 %v2173
    %v2330 = vpop.xlane.xlu0 %2329
    %2331 = vmax.xlane.f32.xlu0 %v2174
    %v2332 = vpop.xlane.xlu0 %2331
    %2333 = vmax.xlane.f32.xlu0 %v2175
    %v2334 = vpop.xlane.xlu0 %2333
    %2335 = vmax.xlane.f32.xlu0 %v2176
    %v2336 = vpop.xlane.xlu0 %2335
    %2337 = vmax.xlane.f32.xlu0 %v2177
    %v2338 = vpop.xlane.xlu0 %2337
    %2339 = vmax.xlane.f32.xlu0 %v2178
    %v2340 = vpop.xlane.xlu0 %2339
    %2341 = vmax.xlane.f32.xlu0 %v2179
    %v2342 = vpop.xlane.xlu0 %2341
    %2343 = vmax.xlane.f32.xlu0 %v2180
    %v2344 = vpop.xlane.xlu0 %2343
    %2345 = vmax.xlane.f32.xlu0 %v2181
    %v2346 = vpop.xlane.xlu0 %2345
    %2347 = vmax.xlane.f32.xlu0 %v2182
    %v2348 = vpop.xlane.xlu0 %2347
    %2349 = vmax.xlane.f32.xlu0 %v2183
    %v2350 = vpop.xlane.xlu0 %2349
    %2351 = vmax.xlane.f32.xlu0 %v2184
    %v2352 = vpop.xlane.xlu0 %2351
    %2353 = vmax.xlane.f32.xlu0 %v2185
    %v2354 = vpop.xlane.xlu0 %2353
    %2355 = vmax.xlane.f32.xlu0 %v2186
    %v2356 = vpop.xlane.xlu0 %2355
    %2357 = vmax.xlane.f32.xlu0 %v2187
    %v2358 = vpop.xlane.xlu0 %2357
    %2359 = vmax.xlane.f32.xlu0 %v2188
    %v2360 = vpop.xlane.xlu0 %2359
    %2361 = vmax.xlane.f32.xlu0 %v2189
    %v2362 = vpop.xlane.xlu0 %2361
    %2363 = vmax.xlane.f32.xlu0 %v2190
    %v2364 = vpop.xlane.xlu0 %2363
    %2365 = vmax.xlane.f32.xlu0 %v2191
    %v2366 = vpop.xlane.xlu0 %2365
    %2367 = vmax.xlane.f32.xlu0 %v2192
    %v2368 = vpop.xlane.xlu0 %2367
    %2369 = vmax.xlane.f32.xlu0 %v2193
    %v2370 = vpop.xlane.xlu0 %2369
    %2371 = vmax.xlane.f32.xlu0 %v2194
    %v2372 = vpop.xlane.xlu0 %2371
    %2373 = vmax.xlane.f32.xlu0 %v2195
    %v2374 = vpop.xlane.xlu0 %2373
    %2375 = vmax.xlane.f32.xlu0 %v2196
    %v2376 = vpop.xlane.xlu0 %2375
    %2377 = vmax.xlane.f32.xlu0 %v2197
    %v2378 = vpop.xlane.xlu0 %2377
    %2379 = vmax.xlane.f32.xlu0 %v2198
    %v2380 = vpop.xlane.xlu0 %2379
    %2381 = vmax.xlane.f32.xlu0 %v2199
    %v2382 = vpop.xlane.xlu0 %2381
    %2383 = vmax.xlane.f32.xlu0 %v2200
    %v2384 = vpop.xlane.xlu0 %2383
    %2385 = vmax.xlane.f32.xlu0 %v2201
    %v2386 = vpop.xlane.xlu0 %2385
    %2387 = vmax.xlane.f32.xlu0 %v2202
    %v2388 = vpop.xlane.xlu0 %2387
    %2389 = vmax.xlane.f32.xlu0 %v2203
    %v2390 = vpop.xlane.xlu0 %2389
    %2391 = vmax.xlane.f32.xlu0 %v2204
    %v2392 = vpop.xlane.xlu0 %2391
    %2393 = vmax.xlane.f32.xlu0 %v2205
    %v2394 = vpop.xlane.xlu0 %2393
    %2395 = vmax.xlane.f32.xlu0 %v2206
    %v2396 = vpop.xlane.xlu0 %2395
    %2397 = vmax.xlane.f32.xlu0 %v2207
    %v2398 = vpop.xlane.xlu0 %2397
    %2399 = vmax.xlane.f32.xlu0 %v2208
    %v2400 = vpop.xlane.xlu0 %2399
    %2401 = vmax.xlane.f32.xlu0 %v2209
    %v2402 = vpop.xlane.xlu0 %2401
    %2403 = vmax.xlane.f32.xlu0 %v2210
    %v2404 = vpop.xlane.xlu0 %2403
    %2405 = vmax.xlane.f32.xlu0 %v2211
    %v2406 = vpop.xlane.xlu0 %2405
    %2407 = vmax.xlane.f32.xlu0 %v2212
    %v2408 = vpop.xlane.xlu0 %2407
    %2409 = vmax.xlane.f32.xlu0 %v2213
    %v2410 = vpop.xlane.xlu0 %2409
    %2411 = vmax.xlane.f32.xlu0 %v2214
    %v2412 = vpop.xlane.xlu0 %2411
    %2413 = vmax.xlane.f32.xlu0 %v2215
    %v2414 = vpop.xlane.xlu0 %2413
    %2415 = vmax.xlane.f32.xlu0 %v2216
    %v2416 = vpop.xlane.xlu0 %2415
    %2417 = vmax.xlane.f32.xlu0 %v2217
    %v2418 = vpop.xlane.xlu0 %2417
    %2419 = vmax.xlane.f32.xlu0 %v2218
    %v2420 = vpop.xlane.xlu0 %2419
    %2421 = vmax.xlane.f32.xlu0 %v2219
    %v2422 = vpop.xlane.xlu0 %2421
    %2423 = vmax.xlane.f32.xlu0 %v2220
    %v2424 = vpop.xlane.xlu0 %2423
    %2425 = vmax.xlane.f32.xlu0 %v2221
    %v2426 = vpop.xlane.xlu0 %2425
    %2427 = vmax.xlane.f32.xlu0 %v2222
    %v2428 = vpop.xlane.xlu0 %2427
    %2429 = vmax.xlane.f32.xlu0 %v2223
    %v2430 = vpop.xlane.xlu0 %2429
    %2431 = vmax.xlane.f32.xlu0 %v2224
    %v2432 = vpop.xlane.xlu0 %2431
    %2433 = vmax.xlane.f32.xlu0 %v2225
    %v2434 = vpop.xlane.xlu0 %2433
    %2435 = vmax.xlane.f32.xlu0 %v2226
    %v2436 = vpop.xlane.xlu0 %2435
    %2437 = vmax.xlane.f32.xlu0 %v2227
    %v2438 = vpop.xlane.xlu0 %2437
    %2439 = vmax.xlane.f32.xlu0 %v2228
    %v2440 = vpop.xlane.xlu0 %2439
    %2441 = vmax.xlane.f32.xlu0 %v2229
    %v2442 = vpop.xlane.xlu0 %2441
    %2443 = vmax.xlane.f32.xlu0 %v2230
    %v2444 = vpop.xlane.xlu0 %2443
    %2445 = vmax.xlane.f32.xlu0 %v2231
    %v2446 = vpop.xlane.xlu0 %2445
    %2447 = vmax.xlane.f32.xlu0 %v2232
    %v2448 = vpop.xlane.xlu0 %2447
    %2449 = vmax.xlane.f32.xlu0 %v2233
    %v2450 = vpop.xlane.xlu0 %2449
    %2451 = vmax.xlane.f32.xlu0 %v2234
    %v2452 = vpop.xlane.xlu0 %2451
    %2453 = vmax.xlane.f32.xlu0 %v2235
    %v2454 = vpop.xlane.xlu0 %2453
    %2455 = vmax.xlane.f32.xlu0 %v2236
    %v2456 = vpop.xlane.xlu0 %2455
    %2457 = vmax.xlane.f32.xlu0 %v2237
    %v2458 = vpop.xlane.xlu0 %2457
    %2459 = vmax.xlane.f32.xlu0 %v2238
    %v2460 = vpop.xlane.xlu0 %2459
    %2461 = vmax.xlane.f32.xlu0 %v2239
    %v2462 = vpop.xlane.xlu0 %2461
    %2463 = vmax.xlane.f32.xlu0 %v2240
    %v2464 = vpop.xlane.xlu0 %2463
    %2465 = vmax.xlane.f32.xlu0 %v2241
    %v2466 = vpop.xlane.xlu0 %2465
    %2467 = vmax.xlane.f32.xlu0 %v2242
    %v2468 = vpop.xlane.xlu0 %2467
    %2469 = vmax.xlane.f32.xlu0 %v2243
    %v2470 = vpop.xlane.xlu0 %2469
    %2471 = vmax.xlane.f32.xlu0 %v2244
    %v2472 = vpop.xlane.xlu0 %2471
    %2473 = vmax.xlane.f32.xlu0 %v2245
    %v2474 = vpop.xlane.xlu0 %2473
    %2475 = vmax.xlane.f32.xlu0 %v2246
    %v2476 = vpop.xlane.xlu0 %2475
    %2477 = vmax.xlane.f32.xlu0 %v2247
    %v2478 = vpop.xlane.xlu0 %2477
    %2479 = vmax.xlane.f32.xlu0 %v2248
    %v2480 = vpop.xlane.xlu0 %2479
    %2481 = vmax.xlane.f32.xlu0 %v2249
    %v2482 = vpop.xlane.xlu0 %2481
    %2483 = vmax.xlane.f32.xlu0 %v2250
    %v2484 = vpop.xlane.xlu0 %2483
    %2485 = vmax.xlane.f32.xlu0 %v2251
    %v2486 = vpop.xlane.xlu0 %2485
    %2487 = vmax.xlane.f32.xlu0 %v2252
    %v2488 = vpop.xlane.xlu0 %2487
    %2489 = vmax.xlane.f32.xlu0 %v2253
    %v2490 = vpop.xlane.xlu0 %2489
    %2491 = vmax.xlane.f32.xlu0 %v2254
    %v2492 = vpop.xlane.xlu0 %2491
    %2493 = vmax.xlane.f32.xlu0 %v2255
    %v2494 = vpop.xlane.xlu0 %2493
    %2495 = vmax.xlane.f32.xlu0 %v2256
    %v2496 = vpop.xlane.xlu0 %2495
    %2497 = vmax.xlane.f32.xlu0 %v2257
    %v2498 = vpop.xlane.xlu0 %2497
    %2499 = vmax.xlane.f32.xlu0 %v2258
    %v2500 = vpop.xlane.xlu0 %2499
    %2501 = vmax.xlane.f32.xlu0 %v2259
    %v2502 = vpop.xlane.xlu0 %2501
    %2503 = vmax.xlane.f32.xlu0 %v2260
    %v2504 = vpop.xlane.xlu0 %2503
    %2505 = vmax.xlane.f32.xlu0 %v2261
    %v2506 = vpop.xlane.xlu0 %2505
    %2507 = vmax.xlane.f32.xlu0 %v2262
    %v2508 = vpop.xlane.xlu0 %2507
    %2509 = vmax.xlane.f32.xlu0 %v2263
    %v2510 = vpop.xlane.xlu0 %2509
    %2511 = vmax.xlane.f32.xlu0 %v2264
    %v2512 = vpop.xlane.xlu0 %2511
    %2513 = vmax.xlane.f32.xlu0 %v2265
    %v2514 = vpop.xlane.xlu0 %2513
    %2515 = vmax.xlane.f32.xlu0 %v2266
    %v2516 = vpop.xlane.xlu0 %2515
    %2517 = vmax.xlane.f32.xlu0 %v2267
    %v2518 = vpop.xlane.xlu0 %2517
    %2519 = vmax.xlane.f32.xlu0 %v2268
    %v2520 = vpop.xlane.xlu0 %2519
    %2521 = vmax.xlane.f32.xlu0 %v2269
    %v2522 = vpop.xlane.xlu0 %2521
    %2523 = vmax.xlane.f32.xlu0 %v2270
    %v2524 = vpop.xlane.xlu0 %2523
    %2525 = vmax.xlane.f32.xlu0 %v2271
    %v2526 = vpop.xlane.xlu0 %2525
    %2527 = vmax.xlane.f32.xlu0 %v2272
    %v2528 = vpop.xlane.xlu0 %2527
    %v2529 = vsub.f32 %v2274, 1.0
    %v2530 = vsub.f32 %v2276, 1.0
    %v2531 = vsub.f32 %v2278, 1.0
    %v2532 = vsub.f32 %v2280, 1.0
    %v2533 = vsub.f32 %v2282, 1.0
    %v2534 = vsub.f32 %v2284, 1.0
    %v2535 = vsub.f32 %v2286, 1.0
    %v2536 = vsub.f32 %v2288, 1.0
    %v2537 = vsub.f32 %v2290, 1.0
    %v2538 = vsub.f32 %v2292, 1.0
    %v2539 = vsub.f32 %v2294, 1.0
    %v2540 = vsub.f32 %v2296, 1.0
    %v2541 = vsub.f32 %v2298, 1.0
    %v2542 = vsub.f32 %v2300, 1.0
    %v2543 = vsub.f32 %v2302, 1.0
    %v2544 = vsub.f32 %v2304, 1.0
    %v2545 = vsub.f32 %v2306, 1.0
    %v2546 = vsub.f32 %v2308, 1.0
    %v2547 = vsub.f32 %v2310, 1.0
    %v2548 = vsub.f32 %v2312, 1.0
    %v2549 = vsub.f32 %v2314, 1.0
    %v2550 = vsub.f32 %v2316, 1.0
    %v2551 = vsub.f32 %v2318, 1.0
    %v2552 = vsub.f32 %v2320, 1.0
    %v2553 = vsub.f32 %v2322, 1.0
    %v2554 = vsub.f32 %v2324, 1.0
    %v2555 = vsub.f32 %v2326, 1.0
    %v2556 = vsub.f32 %v2328, 1.0
    %v2557 = vsub.f32 %v2330, 1.0
    %v2558 = vsub.f32 %v2332, 1.0
    %v2559 = vsub.f32 %v2334, 1.0
    %v2560 = vsub.f32 %v2336, 1.0
    %v2561 = vsub.f32 %v2338, 1.0
    %v2562 = vsub.f32 %v2340, 1.0
    %v2563 = vsub.f32 %v2342, 1.0
    %v2564 = vsub.f32 %v2344, 1.0
    %v2565 = vsub.f32 %v2346, 1.0
    %v2566 = vsub.f32 %v2348, 1.0
    %v2567 = vsub.f32 %v2350, 1.0
    %v2568 = vsub.f32 %v2352, 1.0
    %v2569 = vsub.f32 %v2354, 1.0
    %v2570 = vsub.f32 %v2356, 1.0
    %v2571 = vsub.f32 %v2358, 1.0
    %v2572 = vsub.f32 %v2360, 1.0
    %v2573 = vsub.f32 %v2362, 1.0
    %v2574 = vsub.f32 %v2364, 1.0
    %v2575 = vsub.f32 %v2366, 1.0
    %v2576 = vsub.f32 %v2368, 1.0
    %v2577 = vsub.f32 %v2370, 1.0
    %v2578 = vsub.f32 %v2372, 1.0
    %v2579 = vsub.f32 %v2374, 1.0
    %v2580 = vsub.f32 %v2376, 1.0
    %v2581 = vsub.f32 %v2378, 1.0
    %v2582 = vsub.f32 %v2380, 1.0
    %v2583 = vsub.f32 %v2382, 1.0
    %v2584 = vsub.f32 %v2384, 1.0
    %v2585 = vsub.f32 %v2386, 1.0
    %v2586 = vsub.f32 %v2388, 1.0
    %v2587 = vsub.f32 %v2390, 1.0
    %v2588 = vsub.f32 %v2392, 1.0
    %v2589 = vsub.f32 %v2394, 1.0
    %v2590 = vsub.f32 %v2396, 1.0
    %v2591 = vsub.f32 %v2398, 1.0
    %v2592 = vsub.f32 %v2400, 1.0
    %v2593 = vsub.f32 %v2402, 1.0
    %v2594 = vsub.f32 %v2404, 1.0
    %v2595 = vsub.f32 %v2406, 1.0
    %v2596 = vsub.f32 %v2408, 1.0
    %v2597 = vsub.f32 %v2410, 1.0
    %v2598 = vsub.f32 %v2412, 1.0
    %v2599 = vsub.f32 %v2414, 1.0
    %v2600 = vsub.f32 %v2416, 1.0
    %v2601 = vsub.f32 %v2418, 1.0
    %v2602 = vsub.f32 %v2420, 1.0
    %v2603 = vsub.f32 %v2422, 1.0
    %v2604 = vsub.f32 %v2424, 1.0
    %v2605 = vsub.f32 %v2426, 1.0
    %v2606 = vsub.f32 %v2428, 1.0
    %v2607 = vsub.f32 %v2430, 1.0
    %v2608 = vsub.f32 %v2432, 1.0
    %v2609 = vsub.f32 %v2434, 1.0
    %v2610 = vsub.f32 %v2436, 1.0
    %v2611 = vsub.f32 %v2438, 1.0
    %v2612 = vsub.f32 %v2440, 1.0
    %v2613 = vsub.f32 %v2442, 1.0
    %v2614 = vsub.f32 %v2444, 1.0
    %v2615 = vsub.f32 %v2446, 1.0
    %v2616 = vsub.f32 %v2448, 1.0
    %v2617 = vsub.f32 %v2450, 1.0
    %v2618 = vsub.f32 %v2452, 1.0
    %v2619 = vsub.f32 %v2454, 1.0
    %v2620 = vsub.f32 %v2456, 1.0
    %v2621 = vsub.f32 %v2458, 1.0
    %v2622 = vsub.f32 %v2460, 1.0
    %v2623 = vsub.f32 %v2462, 1.0
    %v2624 = vsub.f32 %v2464, 1.0
    %v2625 = vsub.f32 %v2466, 1.0
    %v2626 = vsub.f32 %v2468, 1.0
    %v2627 = vsub.f32 %v2470, 1.0
    %v2628 = vsub.f32 %v2472, 1.0
    %v2629 = vsub.f32 %v2474, 1.0
    %v2630 = vsub.f32 %v2476, 1.0
    %v2631 = vsub.f32 %v2478, 1.0
    %v2632 = vsub.f32 %v2480, 1.0
    %v2633 = vsub.f32 %v2482, 1.0
    %v2634 = vsub.f32 %v2484, 1.0
    %v2635 = vsub.f32 %v2486, 1.0
    %v2636 = vsub.f32 %v2488, 1.0
    %v2637 = vsub.f32 %v2490, 1.0
    %v2638 = vsub.f32 %v2492, 1.0
    %v2639 = vsub.f32 %v2494, 1.0
    %v2640 = vsub.f32 %v2496, 1.0
    %v2641 = vsub.f32 %v2498, 1.0
    %v2642 = vsub.f32 %v2500, 1.0
    %v2643 = vsub.f32 %v2502, 1.0
    %v2644 = vsub.f32 %v2504, 1.0
    %v2645 = vsub.f32 %v2506, 1.0
    %v2646 = vsub.f32 %v2508, 1.0
    %v2647 = vsub.f32 %v2510, 1.0
    %v2648 = vsub.f32 %v2512, 1.0
    %v2649 = vsub.f32 %v2514, 1.0
    %v2650 = vsub.f32 %v2516, 1.0
    %v2651 = vsub.f32 %v2518, 1.0
    %v2652 = vsub.f32 %v2520, 1.0
    %v2653 = vsub.f32 %v2522, 1.0
    %v2654 = vsub.f32 %v2524, 1.0
    %v2655 = vsub.f32 %v2526, 1.0
    %v2656 = vsub.f32 %v2528, 1.0
    %v2657 = vmax.f32 %v2529, 0.0
    %v2658 = vmax.f32 %v2530, 0.0
    %v2659 = vmax.f32 %v2531, 0.0
    %v2660 = vmax.f32 %v2532, 0.0
    %v2661 = vmax.f32 %v2533, 0.0
    %v2662 = vmax.f32 %v2534, 0.0
    %v2663 = vmax.f32 %v2535, 0.0
    %v2664 = vmax.f32 %v2536, 0.0
    %v2665 = vmax.f32 %v2537, 0.0
    %v2666 = vmax.f32 %v2538, 0.0
    %v2667 = vmax.f32 %v2539, 0.0
    %v2668 = vmax.f32 %v2540, 0.0
    %v2669 = vmax.f32 %v2541, 0.0
    %v2670 = vmax.f32 %v2542, 0.0
    %v2671 = vmax.f32 %v2543, 0.0
    %v2672 = vmax.f32 %v2544, 0.0
    %v2673 = vmax.f32 %v2545, 0.0
    %v2674 = vmax.f32 %v2546, 0.0
    %v2675 = vmax.f32 %v2547, 0.0
    %v2676 = vmax.f32 %v2548, 0.0
    %v2677 = vmax.f32 %v2549, 0.0
    %v2678 = vmax.f32 %v2550, 0.0
    %v2679 = vmax.f32 %v2551, 0.0
    %v2680 = vmax.f32 %v2552, 0.0
    %v2681 = vmax.f32 %v2553, 0.0
    %v2682 = vmax.f32 %v2554, 0.0
    %v2683 = vmax.f32 %v2555, 0.0
    %v2684 = vmax.f32 %v2556, 0.0
    %v2685 = vmax.f32 %v2557, 0.0
    %v2686 = vmax.f32 %v2558, 0.0
    %v2687 = vmax.f32 %v2559, 0.0
    %v2688 = vmax.f32 %v2560, 0.0
    %v2689 = vmax.f32 %v2561, 0.0
    %v2690 = vmax.f32 %v2562, 0.0
    %v2691 = vmax.f32 %v2563, 0.0
    %v2692 = vmax.f32 %v2564, 0.0
    %v2693 = vmax.f32 %v2565, 0.0
    %v2694 = vmax.f32 %v2566, 0.0
    %v2695 = vmax.f32 %v2567, 0.0
    %v2696 = vmax.f32 %v2568, 0.0
    %v2697 = vmax.f32 %v2569, 0.0
    %v2698 = vmax.f32 %v2570, 0.0
    %v2699 = vmax.f32 %v2571, 0.0
    %v2700 = vmax.f32 %v2572, 0.0
    %v2701 = vmax.f32 %v2573, 0.0
    %v2702 = vmax.f32 %v2574, 0.0
    %v2703 = vmax.f32 %v2575, 0.0
    %v2704 = vmax.f32 %v2576, 0.0
    %v2705 = vmax.f32 %v2577, 0.0
    %v2706 = vmax.f32 %v2578, 0.0
    %v2707 = vmax.f32 %v2579, 0.0
    %v2708 = vmax.f32 %v2580, 0.0
    %v2709 = vmax.f32 %v2581, 0.0
    %v2710 = vmax.f32 %v2582, 0.0
    %v2711 = vmax.f32 %v2583, 0.0
    %v2712 = vmax.f32 %v2584, 0.0
    %v2713 = vmax.f32 %v2585, 0.0
    %v2714 = vmax.f32 %v2586, 0.0
    %v2715 = vmax.f32 %v2587, 0.0
    %v2716 = vmax.f32 %v2588, 0.0
    %v2717 = vmax.f32 %v2589, 0.0
    %v2718 = vmax.f32 %v2590, 0.0
    %v2719 = vmax.f32 %v2591, 0.0
    %v2720 = vmax.f32 %v2592, 0.0
    %v2721 = vmax.f32 %v2593, 0.0
    %v2722 = vmax.f32 %v2594, 0.0
    %v2723 = vmax.f32 %v2595, 0.0
    %v2724 = vmax.f32 %v2596, 0.0
    %v2725 = vmax.f32 %v2597, 0.0
    %v2726 = vmax.f32 %v2598, 0.0
    %v2727 = vmax.f32 %v2599, 0.0
    %v2728 = vmax.f32 %v2600, 0.0
    %v2729 = vmax.f32 %v2601, 0.0
    %v2730 = vmax.f32 %v2602, 0.0
    %v2731 = vmax.f32 %v2603, 0.0
    %v2732 = vmax.f32 %v2604, 0.0
    %v2733 = vmax.f32 %v2605, 0.0
    %v2734 = vmax.f32 %v2606, 0.0
    %v2735 = vmax.f32 %v2607, 0.0
    %v2736 = vmax.f32 %v2608, 0.0
    %v2737 = vmax.f32 %v2609, 0.0
    %v2738 = vmax.f32 %v2610, 0.0
    %v2739 = vmax.f32 %v2611, 0.0
    %v2740 = vmax.f32 %v2612, 0.0
    %v2741 = vmax.f32 %v2613, 0.0
    %v2742 = vmax.f32 %v2614, 0.0
    %v2743 = vmax.f32 %v2615, 0.0
    %v2744 = vmax.f32 %v2616, 0.0
    %v2745 = vmax.f32 %v2617, 0.0
    %v2746 = vmax.f32 %v2618, 0.0
    %v2747 = vmax.f32 %v2619, 0.0
    %v2748 = vmax.f32 %v2620, 0.0
    %v2749 = vmax.f32 %v2621, 0.0
    %v2750 = vmax.f32 %v2622, 0.0
    %v2751 = vmax.f32 %v2623, 0.0
    %v2752 = vmax.f32 %v2624, 0.0
    %v2753 = vmax.f32 %v2625, 0.0
    %v2754 = vmax.f32 %v2626, 0.0
    %v2755 = vmax.f32 %v2627, 0.0
    %v2756 = vmax.f32 %v2628, 0.0
    %v2757 = vmax.f32 %v2629, 0.0
    %v2758 = vmax.f32 %v2630, 0.0
    %v2759 = vmax.f32 %v2631, 0.0
    %v2760 = vmax.f32 %v2632, 0.0
    %v2761 = vmax.f32 %v2633, 0.0
    %v2762 = vmax.f32 %v2634, 0.0
    %v2763 = vmax.f32 %v2635, 0.0
    %v2764 = vmax.f32 %v2636, 0.0
    %v2765 = vmax.f32 %v2637, 0.0
    %v2766 = vmax.f32 %v2638, 0.0
    %v2767 = vmax.f32 %v2639, 0.0
    %v2768 = vmax.f32 %v2640, 0.0
    %v2769 = vmax.f32 %v2641, 0.0
    %v2770 = vmax.f32 %v2642, 0.0
    %v2771 = vmax.f32 %v2643, 0.0
    %v2772 = vmax.f32 %v2644, 0.0
    %v2773 = vmax.f32 %v2645, 0.0
    %v2774 = vmax.f32 %v2646, 0.0
    %v2775 = vmax.f32 %v2647, 0.0
    %v2776 = vmax.f32 %v2648, 0.0
    %v2777 = vmax.f32 %v2649, 0.0
    %v2778 = vmax.f32 %v2650, 0.0
    %v2779 = vmax.f32 %v2651, 0.0
    %v2780 = vmax.f32 %v2652, 0.0
    %v2781 = vmax.f32 %v2653, 0.0
    %v2782 = vmax.f32 %v2654, 0.0
    %v2783 = vmax.f32 %v2655, 0.0
    %v2784 = vmax.f32 %v2656, 0.0
    %v2913 = vlaneseq
    %v2914 = vshrl.u32 %v2913, 7
    %v2915 = vsub.s32 %v1340, %v2914
    %v2916 = vrot.slane %v2657, %v2915
    %v2917 = vlaneseq
    %v2918 = vshrl.u32 %v2917, 7
    %v2919 = vsub.s32 %v1345, %v2918
    %v2920 = vrot.slane %v2658, %v2919
    %v2921 = vsel %vm1350, %v2920, %v2916
    %v2922 = vlaneseq
    %v2923 = vshrl.u32 %v2922, 7
    %v2924 = vsub.s32 %v1352, %v2923
    %v2925 = vrot.slane %v2659, %v2924
    %v2926 = vsel %vm1357, %v2925, %v2921
    %v2927 = vlaneseq
    %v2928 = vshrl.u32 %v2927, 7
    %v2929 = vsub.s32 %v1359, %v2928
    %v2930 = vrot.slane %v2660, %v2929
    %v2931 = vsel %vm1364, %v2930, %v2926
    %v2932 = vlaneseq
    %v2933 = vshrl.u32 %v2932, 7
    %v2934 = vsub.s32 %v1366, %v2933
    %v2935 = vrot.slane %v2661, %v2934
    %v2936 = vsel %vm1371, %v2935, %v2931
    %v2937 = vlaneseq
    %v2938 = vshrl.u32 %v2937, 7
    %v2939 = vsub.s32 %v1373, %v2938
    %v2940 = vrot.slane %v2662, %v2939
    %v2941 = vsel %vm1378, %v2940, %v2936
    %v2942 = vlaneseq
    %v2943 = vshrl.u32 %v2942, 7
    %v2944 = vsub.s32 %v1380, %v2943
    %v2945 = vrot.slane %v2663, %v2944
    %v2946 = vsel %vm1385, %v2945, %v2941
    %v2947 = vlaneseq
    %v2948 = vshrl.u32 %v2947, 7
    %v2949 = vsub.s32 %v1387, %v2948
    %v2950 = vrot.slane %v2664, %v2949
    %v2951 = vsel %vm1392, %v2950, %v2946
    %v2952 = vlaneseq
    %v2953 = vshrl.u32 %v2952, 7
    %v2954 = vsub.s32 %v1394, %v2953
    %v2955 = vrot.slane %v2665, %v2954
    %v2956 = vsel %vm1399, %v2955, %v2951
    %v2957 = vlaneseq
    %v2958 = vshrl.u32 %v2957, 7
    %v2959 = vsub.s32 %v1401, %v2958
    %v2960 = vrot.slane %v2666, %v2959
    %v2961 = vsel %vm1406, %v2960, %v2956
    %v2962 = vlaneseq
    %v2963 = vshrl.u32 %v2962, 7
    %v2964 = vsub.s32 %v1408, %v2963
    %v2965 = vrot.slane %v2667, %v2964
    %v2966 = vsel %vm1413, %v2965, %v2961
    %v2967 = vlaneseq
    %v2968 = vshrl.u32 %v2967, 7
    %v2969 = vsub.s32 %v1415, %v2968
    %v2970 = vrot.slane %v2668, %v2969
    %v2971 = vsel %vm1420, %v2970, %v2966
    %v2972 = vlaneseq
    %v2973 = vshrl.u32 %v2972, 7
    %v2974 = vsub.s32 %v1422, %v2973
    %v2975 = vrot.slane %v2669, %v2974
    %v2976 = vsel %vm1427, %v2975, %v2971
    %v2977 = vlaneseq
    %v2978 = vshrl.u32 %v2977, 7
    %v2979 = vsub.s32 %v1429, %v2978
    %v2980 = vrot.slane %v2670, %v2979
    %v2981 = vsel %vm1434, %v2980, %v2976
    %v2982 = vlaneseq
    %v2983 = vshrl.u32 %v2982, 7
    %v2984 = vsub.s32 %v1436, %v2983
    %v2985 = vrot.slane %v2671, %v2984
    %v2986 = vsel %vm1441, %v2985, %v2981
    %v2987 = vlaneseq
    %v2988 = vshrl.u32 %v2987, 7
    %v2989 = vsub.s32 %v1443, %v2988
    %v2990 = vrot.slane %v2672, %v2989
    %v2991 = vsel %vm1448, %v2990, %v2986
    %v2992 = vlaneseq
    %v2993 = vshrl.u32 %v2992, 7
    %v2994 = vsub.s32 %v1340, %v2993
    %v2995 = vrot.slane %v2673, %v2994
    %v2996 = vlaneseq
    %v2997 = vshrl.u32 %v2996, 7
    %v2998 = vsub.s32 %v1345, %v2997
    %v2999 = vrot.slane %v2674, %v2998
    %v3000 = vsel %vm1350, %v2999, %v2995
    %v3001 = vlaneseq
    %v3002 = vshrl.u32 %v3001, 7
    %v3003 = vsub.s32 %v1352, %v3002
    %v3004 = vrot.slane %v2675, %v3003
    %v3005 = vsel %vm1357, %v3004, %v3000
    %v3006 = vlaneseq
    %v3007 = vshrl.u32 %v3006, 7
    %v3008 = vsub.s32 %v1359, %v3007
    %v3009 = vrot.slane %v2676, %v3008
    %v3010 = vsel %vm1364, %v3009, %v3005
    %v3011 = vlaneseq
    %v3012 = vshrl.u32 %v3011, 7
    %v3013 = vsub.s32 %v1366, %v3012
    %v3014 = vrot.slane %v2677, %v3013
    %v3015 = vsel %vm1371, %v3014, %v3010
    %v3016 = vlaneseq
    %v3017 = vshrl.u32 %v3016, 7
    %v3018 = vsub.s32 %v1373, %v3017
    %v3019 = vrot.slane %v2678, %v3018
    %v3020 = vsel %vm1378, %v3019, %v3015
    %v3021 = vlaneseq
    %v3022 = vshrl.u32 %v3021, 7
    %v3023 = vsub.s32 %v1380, %v3022
    %v3024 = vrot.slane %v2679, %v3023
    %v3025 = vsel %vm1385, %v3024, %v3020
    %v3026 = vlaneseq
    %v3027 = vshrl.u32 %v3026, 7
    %v3028 = vsub.s32 %v1387, %v3027
    %v3029 = vrot.slane %v2680, %v3028
    %v3030 = vsel %vm1392, %v3029, %v3025
    %v3031 = vlaneseq
    %v3032 = vshrl.u32 %v3031, 7
    %v3033 = vsub.s32 %v1394, %v3032
    %v3034 = vrot.slane %v2681, %v3033
    %v3035 = vsel %vm1399, %v3034, %v3030
    %v3036 = vlaneseq
    %v3037 = vshrl.u32 %v3036, 7
    %v3038 = vsub.s32 %v1401, %v3037
    %v3039 = vrot.slane %v2682, %v3038
    %v3040 = vsel %vm1406, %v3039, %v3035
    %v3041 = vlaneseq
    %v3042 = vshrl.u32 %v3041, 7
    %v3043 = vsub.s32 %v1408, %v3042
    %v3044 = vrot.slane %v2683, %v3043
    %v3045 = vsel %vm1413, %v3044, %v3040
    %v3046 = vlaneseq
    %v3047 = vshrl.u32 %v3046, 7
    %v3048 = vsub.s32 %v1415, %v3047
    %v3049 = vrot.slane %v2684, %v3048
    %v3050 = vsel %vm1420, %v3049, %v3045
    %v3051 = vlaneseq
    %v3052 = vshrl.u32 %v3051, 7
    %v3053 = vsub.s32 %v1422, %v3052
    %v3054 = vrot.slane %v2685, %v3053
    %v3055 = vsel %vm1427, %v3054, %v3050
    %v3056 = vlaneseq
    %v3057 = vshrl.u32 %v3056, 7
    %v3058 = vsub.s32 %v1429, %v3057
    %v3059 = vrot.slane %v2686, %v3058
    %v3060 = vsel %vm1434, %v3059, %v3055
    %v3061 = vlaneseq
    %v3062 = vshrl.u32 %v3061, 7
    %v3063 = vsub.s32 %v1436, %v3062
    %v3064 = vrot.slane %v2687, %v3063
    %v3065 = vsel %vm1441, %v3064, %v3060
    %v3066 = vlaneseq
    %v3067 = vshrl.u32 %v3066, 7
    %v3068 = vsub.s32 %v1443, %v3067
    %v3069 = vrot.slane %v2688, %v3068
    %v3070 = vsel %vm1448, %v3069, %v3065
    %v3071 = vlaneseq
    %v3072 = vshrl.u32 %v3071, 7
    %v3073 = vsub.s32 %v1340, %v3072
    %v3074 = vrot.slane %v2689, %v3073
    %v3075 = vlaneseq
    %v3076 = vshrl.u32 %v3075, 7
    %v3077 = vsub.s32 %v1345, %v3076
    %v3078 = vrot.slane %v2690, %v3077
    %v3079 = vsel %vm1350, %v3078, %v3074
    %v3080 = vlaneseq
    %v3081 = vshrl.u32 %v3080, 7
    %v3082 = vsub.s32 %v1352, %v3081
    %v3083 = vrot.slane %v2691, %v3082
    %v3084 = vsel %vm1357, %v3083, %v3079
    %v3085 = vlaneseq
    %v3086 = vshrl.u32 %v3085, 7
    %v3087 = vsub.s32 %v1359, %v3086
    %v3088 = vrot.slane %v2692, %v3087
    %v3089 = vsel %vm1364, %v3088, %v3084
    %v3090 = vlaneseq
    %v3091 = vshrl.u32 %v3090, 7
    %v3092 = vsub.s32 %v1366, %v3091
    %v3093 = vrot.slane %v2693, %v3092
    %v3094 = vsel %vm1371, %v3093, %v3089
    %v3095 = vlaneseq
    %v3096 = vshrl.u32 %v3095, 7
    %v3097 = vsub.s32 %v1373, %v3096
    %v3098 = vrot.slane %v2694, %v3097
    %v3099 = vsel %vm1378, %v3098, %v3094
    %v3100 = vlaneseq
    %v3101 = vshrl.u32 %v3100, 7
    %v3102 = vsub.s32 %v1380, %v3101
    %v3103 = vrot.slane %v2695, %v3102
    %v3104 = vsel %vm1385, %v3103, %v3099
    %v3105 = vlaneseq
    %v3106 = vshrl.u32 %v3105, 7
    %v3107 = vsub.s32 %v1387, %v3106
    %v3108 = vrot.slane %v2696, %v3107
    %v3109 = vsel %vm1392, %v3108, %v3104
    %v3110 = vlaneseq
    %v3111 = vshrl.u32 %v3110, 7
    %v3112 = vsub.s32 %v1394, %v3111
    %v3113 = vrot.slane %v2697, %v3112
    %v3114 = vsel %vm1399, %v3113, %v3109
    %v3115 = vlaneseq
    %v3116 = vshrl.u32 %v3115, 7
    %v3117 = vsub.s32 %v1401, %v3116
    %v3118 = vrot.slane %v2698, %v3117
    %v3119 = vsel %vm1406, %v3118, %v3114
    %v3120 = vlaneseq
    %v3121 = vshrl.u32 %v3120, 7
    %v3122 = vsub.s32 %v1408, %v3121
    %v3123 = vrot.slane %v2699, %v3122
    %v3124 = vsel %vm1413, %v3123, %v3119
    %v3125 = vlaneseq
    %v3126 = vshrl.u32 %v3125, 7
    %v3127 = vsub.s32 %v1415, %v3126
    %v3128 = vrot.slane %v2700, %v3127
    %v3129 = vsel %vm1420, %v3128, %v3124
    %v3130 = vlaneseq
    %v3131 = vshrl.u32 %v3130, 7
    %v3132 = vsub.s32 %v1422, %v3131
    %v3133 = vrot.slane %v2701, %v3132
    %v3134 = vsel %vm1427, %v3133, %v3129
    %v3135 = vlaneseq
    %v3136 = vshrl.u32 %v3135, 7
    %v3137 = vsub.s32 %v1429, %v3136
    %v3138 = vrot.slane %v2702, %v3137
    %v3139 = vsel %vm1434, %v3138, %v3134
    %v3140 = vlaneseq
    %v3141 = vshrl.u32 %v3140, 7
    %v3142 = vsub.s32 %v1436, %v3141
    %v3143 = vrot.slane %v2703, %v3142
    %v3144 = vsel %vm1441, %v3143, %v3139
    %v3145 = vlaneseq
    %v3146 = vshrl.u32 %v3145, 7
    %v3147 = vsub.s32 %v1443, %v3146
    %v3148 = vrot.slane %v2704, %v3147
    %v3149 = vsel %vm1448, %v3148, %v3144
    %v3150 = vlaneseq
    %v3151 = vshrl.u32 %v3150, 7
    %v3152 = vsub.s32 %v1340, %v3151
    %v3153 = vrot.slane %v2705, %v3152
    %v3154 = vlaneseq
    %v3155 = vshrl.u32 %v3154, 7
    %v3156 = vsub.s32 %v1345, %v3155
    %v3157 = vrot.slane %v2706, %v3156
    %v3158 = vsel %vm1350, %v3157, %v3153
    %v3159 = vlaneseq
    %v3160 = vshrl.u32 %v3159, 7
    %v3161 = vsub.s32 %v1352, %v3160
    %v3162 = vrot.slane %v2707, %v3161
    %v3163 = vsel %vm1357, %v3162, %v3158
    %v3164 = vlaneseq
    %v3165 = vshrl.u32 %v3164, 7
    %v3166 = vsub.s32 %v1359, %v3165
    %v3167 = vrot.slane %v2708, %v3166
    %v3168 = vsel %vm1364, %v3167, %v3163
    %v3169 = vlaneseq
    %v3170 = vshrl.u32 %v3169, 7
    %v3171 = vsub.s32 %v1366, %v3170
    %v3172 = vrot.slane %v2709, %v3171
    %v3173 = vsel %vm1371, %v3172, %v3168
    %v3174 = vlaneseq
    %v3175 = vshrl.u32 %v3174, 7
    %v3176 = vsub.s32 %v1373, %v3175
    %v3177 = vrot.slane %v2710, %v3176
    %v3178 = vsel %vm1378, %v3177, %v3173
    %v3179 = vlaneseq
    %v3180 = vshrl.u32 %v3179, 7
    %v3181 = vsub.s32 %v1380, %v3180
    %v3182 = vrot.slane %v2711, %v3181
    %v3183 = vsel %vm1385, %v3182, %v3178
    %v3184 = vlaneseq
    %v3185 = vshrl.u32 %v3184, 7
    %v3186 = vsub.s32 %v1387, %v3185
    %v3187 = vrot.slane %v2712, %v3186
    %v3188 = vsel %vm1392, %v3187, %v3183
    %v3189 = vlaneseq
    %v3190 = vshrl.u32 %v3189, 7
    %v3191 = vsub.s32 %v1394, %v3190
    %v3192 = vrot.slane %v2713, %v3191
    %v3193 = vsel %vm1399, %v3192, %v3188
    %v3194 = vlaneseq
    %v3195 = vshrl.u32 %v3194, 7
    %v3196 = vsub.s32 %v1401, %v3195
    %v3197 = vrot.slane %v2714, %v3196
    %v3198 = vsel %vm1406, %v3197, %v3193
    %v3199 = vlaneseq
    %v3200 = vshrl.u32 %v3199, 7
    %v3201 = vsub.s32 %v1408, %v3200
    %v3202 = vrot.slane %v2715, %v3201
    %v3203 = vsel %vm1413, %v3202, %v3198
    %v3204 = vlaneseq
    %v3205 = vshrl.u32 %v3204, 7
    %v3206 = vsub.s32 %v1415, %v3205
    %v3207 = vrot.slane %v2716, %v3206
    %v3208 = vsel %vm1420, %v3207, %v3203
    %v3209 = vlaneseq
    %v3210 = vshrl.u32 %v3209, 7
    %v3211 = vsub.s32 %v1422, %v3210
    %v3212 = vrot.slane %v2717, %v3211
    %v3213 = vsel %vm1427, %v3212, %v3208
    %v3214 = vlaneseq
    %v3215 = vshrl.u32 %v3214, 7
    %v3216 = vsub.s32 %v1429, %v3215
    %v3217 = vrot.slane %v2718, %v3216
    %v3218 = vsel %vm1434, %v3217, %v3213
    %v3219 = vlaneseq
    %v3220 = vshrl.u32 %v3219, 7
    %v3221 = vsub.s32 %v1436, %v3220
    %v3222 = vrot.slane %v2719, %v3221
    %v3223 = vsel %vm1441, %v3222, %v3218
    %v3224 = vlaneseq
    %v3225 = vshrl.u32 %v3224, 7
    %v3226 = vsub.s32 %v1443, %v3225
    %v3227 = vrot.slane %v2720, %v3226
    %v3228 = vsel %vm1448, %v3227, %v3223
    %v3229 = vlaneseq
    %v3230 = vshrl.u32 %v3229, 7
    %v3231 = vsub.s32 %v1340, %v3230
    %v3232 = vrot.slane %v2721, %v3231
    %v3233 = vlaneseq
    %v3234 = vshrl.u32 %v3233, 7
    %v3235 = vsub.s32 %v1345, %v3234
    %v3236 = vrot.slane %v2722, %v3235
    %v3237 = vsel %vm1350, %v3236, %v3232
    %v3238 = vlaneseq
    %v3239 = vshrl.u32 %v3238, 7
    %v3240 = vsub.s32 %v1352, %v3239
    %v3241 = vrot.slane %v2723, %v3240
    %v3242 = vsel %vm1357, %v3241, %v3237
    %v3243 = vlaneseq
    %v3244 = vshrl.u32 %v3243, 7
    %v3245 = vsub.s32 %v1359, %v3244
    %v3246 = vrot.slane %v2724, %v3245
    %v3247 = vsel %vm1364, %v3246, %v3242
    %v3248 = vlaneseq
    %v3249 = vshrl.u32 %v3248, 7
    %v3250 = vsub.s32 %v1366, %v3249
    %v3251 = vrot.slane %v2725, %v3250
    %v3252 = vsel %vm1371, %v3251, %v3247
    %v3253 = vlaneseq
    %v3254 = vshrl.u32 %v3253, 7
    %v3255 = vsub.s32 %v1373, %v3254
    %v3256 = vrot.slane %v2726, %v3255
    %v3257 = vsel %vm1378, %v3256, %v3252
    %v3258 = vlaneseq
    %v3259 = vshrl.u32 %v3258, 7
    %v3260 = vsub.s32 %v1380, %v3259
    %v3261 = vrot.slane %v2727, %v3260
    %v3262 = vsel %vm1385, %v3261, %v3257
    %v3263 = vlaneseq
    %v3264 = vshrl.u32 %v3263, 7
    %v3265 = vsub.s32 %v1387, %v3264
    %v3266 = vrot.slane %v2728, %v3265
    %v3267 = vsel %vm1392, %v3266, %v3262
    %v3268 = vlaneseq
    %v3269 = vshrl.u32 %v3268, 7
    %v3270 = vsub.s32 %v1394, %v3269
    %v3271 = vrot.slane %v2729, %v3270
    %v3272 = vsel %vm1399, %v3271, %v3267
    %v3273 = vlaneseq
    %v3274 = vshrl.u32 %v3273, 7
    %v3275 = vsub.s32 %v1401, %v3274
    %v3276 = vrot.slane %v2730, %v3275
    %v3277 = vsel %vm1406, %v3276, %v3272
    %v3278 = vlaneseq
    %v3279 = vshrl.u32 %v3278, 7
    %v3280 = vsub.s32 %v1408, %v3279
    %v3281 = vrot.slane %v2731, %v3280
    %v3282 = vsel %vm1413, %v3281, %v3277
    %v3283 = vlaneseq
    %v3284 = vshrl.u32 %v3283, 7
    %v3285 = vsub.s32 %v1415, %v3284
    %v3286 = vrot.slane %v2732, %v3285
    %v3287 = vsel %vm1420, %v3286, %v3282
    %v3288 = vlaneseq
    %v3289 = vshrl.u32 %v3288, 7
    %v3290 = vsub.s32 %v1422, %v3289
    %v3291 = vrot.slane %v2733, %v3290
    %v3292 = vsel %vm1427, %v3291, %v3287
    %v3293 = vlaneseq
    %v3294 = vshrl.u32 %v3293, 7
    %v3295 = vsub.s32 %v1429, %v3294
    %v3296 = vrot.slane %v2734, %v3295
    %v3297 = vsel %vm1434, %v3296, %v3292
    %v3298 = vlaneseq
    %v3299 = vshrl.u32 %v3298, 7
    %v3300 = vsub.s32 %v1436, %v3299
    %v3301 = vrot.slane %v2735, %v3300
    %v3302 = vsel %vm1441, %v3301, %v3297
    %v3303 = vlaneseq
    %v3304 = vshrl.u32 %v3303, 7
    %v3305 = vsub.s32 %v1443, %v3304
    %v3306 = vrot.slane %v2736, %v3305
    %v3307 = vsel %vm1448, %v3306, %v3302
    %v3308 = vlaneseq
    %v3309 = vshrl.u32 %v3308, 7
    %v3310 = vsub.s32 %v1340, %v3309
    %v3311 = vrot.slane %v2737, %v3310
    %v3312 = vlaneseq
    %v3313 = vshrl.u32 %v3312, 7
    %v3314 = vsub.s32 %v1345, %v3313
    %v3315 = vrot.slane %v2738, %v3314
    %v3316 = vsel %vm1350, %v3315, %v3311
    %v3317 = vlaneseq
    %v3318 = vshrl.u32 %v3317, 7
    %v3319 = vsub.s32 %v1352, %v3318
    %v3320 = vrot.slane %v2739, %v3319
    %v3321 = vsel %vm1357, %v3320, %v3316
    %v3322 = vlaneseq
    %v3323 = vshrl.u32 %v3322, 7
    %v3324 = vsub.s32 %v1359, %v3323
    %v3325 = vrot.slane %v2740, %v3324
    %v3326 = vsel %vm1364, %v3325, %v3321
    %v3327 = vlaneseq
    %v3328 = vshrl.u32 %v3327, 7
    %v3329 = vsub.s32 %v1366, %v3328
    %v3330 = vrot.slane %v2741, %v3329
    %v3331 = vsel %vm1371, %v3330, %v3326
    %v3332 = vlaneseq
    %v3333 = vshrl.u32 %v3332, 7
    %v3334 = vsub.s32 %v1373, %v3333
    %v3335 = vrot.slane %v2742, %v3334
    %v3336 = vsel %vm1378, %v3335, %v3331
    %v3337 = vlaneseq
    %v3338 = vshrl.u32 %v3337, 7
    %v3339 = vsub.s32 %v1380, %v3338
    %v3340 = vrot.slane %v2743, %v3339
    %v3341 = vsel %vm1385, %v3340, %v3336
    %v3342 = vlaneseq
    %v3343 = vshrl.u32 %v3342, 7
    %v3344 = vsub.s32 %v1387, %v3343
    %v3345 = vrot.slane %v2744, %v3344
    %v3346 = vsel %vm1392, %v3345, %v3341
    %v3347 = vlaneseq
    %v3348 = vshrl.u32 %v3347, 7
    %v3349 = vsub.s32 %v1394, %v3348
    %v3350 = vrot.slane %v2745, %v3349
    %v3351 = vsel %vm1399, %v3350, %v3346
    %v3352 = vlaneseq
    %v3353 = vshrl.u32 %v3352, 7
    %v3354 = vsub.s32 %v1401, %v3353
    %v3355 = vrot.slane %v2746, %v3354
    %v3356 = vsel %vm1406, %v3355, %v3351
    %v3357 = vlaneseq
    %v3358 = vshrl.u32 %v3357, 7
    %v3359 = vsub.s32 %v1408, %v3358
    %v3360 = vrot.slane %v2747, %v3359
    %v3361 = vsel %vm1413, %v3360, %v3356
    %v3362 = vlaneseq
    %v3363 = vshrl.u32 %v3362, 7
    %v3364 = vsub.s32 %v1415, %v3363
    %v3365 = vrot.slane %v2748, %v3364
    %v3366 = vsel %vm1420, %v3365, %v3361
    %v3367 = vlaneseq
    %v3368 = vshrl.u32 %v3367, 7
    %v3369 = vsub.s32 %v1422, %v3368
    %v3370 = vrot.slane %v2749, %v3369
    %v3371 = vsel %vm1427, %v3370, %v3366
    %v3372 = vlaneseq
    %v3373 = vshrl.u32 %v3372, 7
    %v3374 = vsub.s32 %v1429, %v3373
    %v3375 = vrot.slane %v2750, %v3374
    %v3376 = vsel %vm1434, %v3375, %v3371
    %v3377 = vlaneseq
    %v3378 = vshrl.u32 %v3377, 7
    %v3379 = vsub.s32 %v1436, %v3378
    %v3380 = vrot.slane %v2751, %v3379
    %v3381 = vsel %vm1441, %v3380, %v3376
    %v3382 = vlaneseq
    %v3383 = vshrl.u32 %v3382, 7
    %v3384 = vsub.s32 %v1443, %v3383
    %v3385 = vrot.slane %v2752, %v3384
    %v3386 = vsel %vm1448, %v3385, %v3381
    %v3387 = vlaneseq
    %v3388 = vshrl.u32 %v3387, 7
    %v3389 = vsub.s32 %v1340, %v3388
    %v3390 = vrot.slane %v2753, %v3389
    %v3391 = vlaneseq
    %v3392 = vshrl.u32 %v3391, 7
    %v3393 = vsub.s32 %v1345, %v3392
    %v3394 = vrot.slane %v2754, %v3393
    %v3395 = vsel %vm1350, %v3394, %v3390
    %v3396 = vlaneseq
    %v3397 = vshrl.u32 %v3396, 7
    %v3398 = vsub.s32 %v1352, %v3397
    %v3399 = vrot.slane %v2755, %v3398
    %v3400 = vsel %vm1357, %v3399, %v3395
    %v3401 = vlaneseq
    %v3402 = vshrl.u32 %v3401, 7
    %v3403 = vsub.s32 %v1359, %v3402
    %v3404 = vrot.slane %v2756, %v3403
    %v3405 = vsel %vm1364, %v3404, %v3400
    %v3406 = vlaneseq
    %v3407 = vshrl.u32 %v3406, 7
    %v3408 = vsub.s32 %v1366, %v3407
    %v3409 = vrot.slane %v2757, %v3408
    %v3410 = vsel %vm1371, %v3409, %v3405
    %v3411 = vlaneseq
    %v3412 = vshrl.u32 %v3411, 7
    %v3413 = vsub.s32 %v1373, %v3412
    %v3414 = vrot.slane %v2758, %v3413
    %v3415 = vsel %vm1378, %v3414, %v3410
    %v3416 = vlaneseq
    %v3417 = vshrl.u32 %v3416, 7
    %v3418 = vsub.s32 %v1380, %v3417
    %v3419 = vrot.slane %v2759, %v3418
    %v3420 = vsel %vm1385, %v3419, %v3415
    %v3421 = vlaneseq
    %v3422 = vshrl.u32 %v3421, 7
    %v3423 = vsub.s32 %v1387, %v3422
    %v3424 = vrot.slane %v2760, %v3423
    %v3425 = vsel %vm1392, %v3424, %v3420
    %v3426 = vlaneseq
    %v3427 = vshrl.u32 %v3426, 7
    %v3428 = vsub.s32 %v1394, %v3427
    %v3429 = vrot.slane %v2761, %v3428
    %v3430 = vsel %vm1399, %v3429, %v3425
    %v3431 = vlaneseq
    %v3432 = vshrl.u32 %v3431, 7
    %v3433 = vsub.s32 %v1401, %v3432
    %v3434 = vrot.slane %v2762, %v3433
    %v3435 = vsel %vm1406, %v3434, %v3430
    %v3436 = vlaneseq
    %v3437 = vshrl.u32 %v3436, 7
    %v3438 = vsub.s32 %v1408, %v3437
    %v3439 = vrot.slane %v2763, %v3438
    %v3440 = vsel %vm1413, %v3439, %v3435
    %v3441 = vlaneseq
    %v3442 = vshrl.u32 %v3441, 7
    %v3443 = vsub.s32 %v1415, %v3442
    %v3444 = vrot.slane %v2764, %v3443
    %v3445 = vsel %vm1420, %v3444, %v3440
    %v3446 = vlaneseq
    %v3447 = vshrl.u32 %v3446, 7
    %v3448 = vsub.s32 %v1422, %v3447
    %v3449 = vrot.slane %v2765, %v3448
    %v3450 = vsel %vm1427, %v3449, %v3445
    %v3451 = vlaneseq
    %v3452 = vshrl.u32 %v3451, 7
    %v3453 = vsub.s32 %v1429, %v3452
    %v3454 = vrot.slane %v2766, %v3453
    %v3455 = vsel %vm1434, %v3454, %v3450
    %v3456 = vlaneseq
    %v3457 = vshrl.u32 %v3456, 7
    %v3458 = vsub.s32 %v1436, %v3457
    %v3459 = vrot.slane %v2767, %v3458
    %v3460 = vsel %vm1441, %v3459, %v3455
    %v3461 = vlaneseq
    %v3462 = vshrl.u32 %v3461, 7
    %v3463 = vsub.s32 %v1443, %v3462
    %v3464 = vrot.slane %v2768, %v3463
    %v3465 = vsel %vm1448, %v3464, %v3460
    %v3466 = vlaneseq
    %v3467 = vshrl.u32 %v3466, 7
    %v3468 = vsub.s32 %v1340, %v3467
    %v3469 = vrot.slane %v2769, %v3468
    %v3470 = vlaneseq
    %v3471 = vshrl.u32 %v3470, 7
    %v3472 = vsub.s32 %v1345, %v3471
    %v3473 = vrot.slane %v2770, %v3472
    %v3474 = vsel %vm1350, %v3473, %v3469
    %v3475 = vlaneseq
    %v3476 = vshrl.u32 %v3475, 7
    %v3477 = vsub.s32 %v1352, %v3476
    %v3478 = vrot.slane %v2771, %v3477
    %v3479 = vsel %vm1357, %v3478, %v3474
    %v3480 = vlaneseq
    %v3481 = vshrl.u32 %v3480, 7
    %v3482 = vsub.s32 %v1359, %v3481
    %v3483 = vrot.slane %v2772, %v3482
    %v3484 = vsel %vm1364, %v3483, %v3479
    %v3485 = vlaneseq
    %v3486 = vshrl.u32 %v3485, 7
    %v3487 = vsub.s32 %v1366, %v3486
    %v3488 = vrot.slane %v2773, %v3487
    %v3489 = vsel %vm1371, %v3488, %v3484
    %v3490 = vlaneseq
    %v3491 = vshrl.u32 %v3490, 7
    %v3492 = vsub.s32 %v1373, %v3491
    %v3493 = vrot.slane %v2774, %v3492
    %v3494 = vsel %vm1378, %v3493, %v3489
    %v3495 = vlaneseq
    %v3496 = vshrl.u32 %v3495, 7
    %v3497 = vsub.s32 %v1380, %v3496
    %v3498 = vrot.slane %v2775, %v3497
    %v3499 = vsel %vm1385, %v3498, %v3494
    %v3500 = vlaneseq
    %v3501 = vshrl.u32 %v3500, 7
    %v3502 = vsub.s32 %v1387, %v3501
    %v3503 = vrot.slane %v2776, %v3502
    %v3504 = vsel %vm1392, %v3503, %v3499
    %v3505 = vlaneseq
    %v3506 = vshrl.u32 %v3505, 7
    %v3507 = vsub.s32 %v1394, %v3506
    %v3508 = vrot.slane %v2777, %v3507
    %v3509 = vsel %vm1399, %v3508, %v3504
    %v3510 = vlaneseq
    %v3511 = vshrl.u32 %v3510, 7
    %v3512 = vsub.s32 %v1401, %v3511
    %v3513 = vrot.slane %v2778, %v3512
    %v3514 = vsel %vm1406, %v3513, %v3509
    %v3515 = vlaneseq
    %v3516 = vshrl.u32 %v3515, 7
    %v3517 = vsub.s32 %v1408, %v3516
    %v3518 = vrot.slane %v2779, %v3517
    %v3519 = vsel %vm1413, %v3518, %v3514
    %v3520 = vlaneseq
    %v3521 = vshrl.u32 %v3520, 7
    %v3522 = vsub.s32 %v1415, %v3521
    %v3523 = vrot.slane %v2780, %v3522
    %v3524 = vsel %vm1420, %v3523, %v3519
    %v3525 = vlaneseq
    %v3526 = vshrl.u32 %v3525, 7
    %v3527 = vsub.s32 %v1422, %v3526
    %v3528 = vrot.slane %v2781, %v3527
    %v3529 = vsel %vm1427, %v3528, %v3524
    %v3530 = vlaneseq
    %v3531 = vshrl.u32 %v3530, 7
    %v3532 = vsub.s32 %v1429, %v3531
    %v3533 = vrot.slane %v2782, %v3532
    %v3534 = vsel %vm1434, %v3533, %v3529
    %v3535 = vlaneseq
    %v3536 = vshrl.u32 %v3535, 7
    %v3537 = vsub.s32 %v1436, %v3536
    %v3538 = vrot.slane %v2783, %v3537
    %v3539 = vsel %vm1441, %v3538, %v3534
    %v3540 = vlaneseq
    %v3541 = vshrl.u32 %v3540, 7
    %v3542 = vsub.s32 %v1443, %v3541
    %v3543 = vrot.slane %v2784, %v3542
    %v3544 = vsel %vm1448, %v3543, %v3539
    %v3545 = vsel %vm2003, %v3070, %v2991
    %v3546 = vsel %vm2005, %v3149, %v3545
    %v3547 = vsel %vm2007, %v3228, %v3546
    %v3548 = vsel %vm2009, %v3307, %v3547
    %v3549 = vsel %vm2011, %v3386, %v3548
    %v3550 = vsel %vm2013, %v3465, %v3549
    %v3551 = vsel %vm2015, %v3544, %v3550
    %3553 = vst [vmem:[#allocation16 + $0x8] sm:$0xff] %v3551
    // Predicated region
    $region66: #{tpu_custom_call.1} parent=1 // pred_check
      _
    $region67: #{tpu_custom_call.1} parent=1 // pred_check_branch
      %3555 = sbr.rel (0) target = $region69
    $region68: #{tpu_custom_call.1} parent=1 // pred_region
      %s3557 = ssub.s32 256, 256
      %3558 = vsyncadd [#allocation4], %s3557
      %s3559 = sshll.u32 [#allocation16], 4
      %s3560 = int_to_ptr.vmem [resolvable:$true] %s3559
      %3565 = dma.vmem_to_hbm [thread:$0]  %s3560, 256, %s8, [#allocation4], 128, 128, 8
    $region69: #{tpu_custom_call.1} parent=1 // pred_fallthru
      _
    // Predicated region
    $region70: #{tpu_custom_call.1} parent=1 // pred_check
      _
    $region71: #{tpu_custom_call.1} parent=1 // pred_check_branch
      %3567 = sbr.rel (0) target = $region73
    $region72: #{tpu_custom_call.1} parent=1 // pred_region
      %3568 = dma.done [#allocation4], 256
    $region73: #{tpu_custom_call.1} parent=1 // pred_fallthru
      _
    %3569 = vsyncpa [#allocation3], 1
    %3570 = vsyncpa [#allocation6], 1
    %3571 = vsyncpa [#allocation9], 1
    %3572 = vsyncpa [#allocation12], 1
    %3573 = vsyncpa [#allocation15], 1
    %3574 = vsyncpa [#allocation4], 1

// kernel: tpu_custom_call.1
$region0: #{tpu_custom_call.1}
  #allocation0 [shape = 'u32[]', space=smem, size = 0x4, offset = 0x4, fixed_abs, tag = 'smem constant byte address 0x4 - core index']
  #allocation1 [shape = 'u32[144,128]{1,0:T(1,128)}', space=vmem, size = 0x12000, scoped, tag = 'internal scratch']
  %s0 = inlined_call_operand.hbm [shape: f32[16,128], index: 0, kind: input, shape index: {}]
  %s1 = inlined_call_operand.hbm [shape: f32[128,128], index: 1, kind: input, shape index: {}]
  %s2 = inlined_call_operand.hbm [shape: f32[1,128], index: 2, kind: input, shape index: {}]
  %s3 = inlined_call_operand.hbm [shape: f32[128,128], index: 3, kind: input, shape index: {}]
  %s4 = inlined_call_operand.hbm [shape: f32[1,128], index: 4, kind: input, shape index: {}]
  %s5 = inlined_call_operand.hbm [shape: f32[128,128], index: 5, kind: input, shape index: {}]
  %s6 = inlined_call_operand.hbm [shape: f32[1,128], index: 6, kind: input, shape index: {}]
  %s7 = inlined_call_operand.hbm [shape: s8[128,128], index: 7, kind: input, shape index: {}]
  %s8 = inlined_call_operand.hbm [shape: f32[16,128], index: 8, kind: output, shape index: {}]
  %s9 = sld [smem:[#allocation0]]
  $region74: #{tpu_custom_call.1} parent=0
    _
  %s11 = ssub.s32 1, %s9
  %s12 = scalar_select 0, %s11, %s9
  $region1: #{tpu_custom_call.1} parent=0
    #allocation2 [shape = 'u8[8192]{0}', space=vmem, size = 0x2000, scoped, tag = 'input window, operand 0, single buffered']
    #allocation3 [shape = 's32[1]{0}', space=sflag, size = 0x4, scoped, tag = 'scoped memory for tpu_custom_call.1']
    #allocation4 [shape = 's32[1]{0}', space=sflag, size = 0x4, scoped, tag = 'scoped memory for tpu_custom_call.1']
    #allocation5 [shape = 'u8[65536]{0}', space=vmem, size = 0x10000, scoped, tag = 'input window, operand 1, single buffered']
    #allocation6 [shape = 's32[1]{0}', space=sflag, size = 0x4, scoped, tag = 'scoped memory for tpu_custom_call.1']
    #allocation7 [shape = 'u8[512]{0}', space=vmem, size = 0x400, scoped, tag = 'input window, operand 2, single buffered']
    #allocation8 [shape = 'u8[65536]{0}', space=vmem, size = 0x10000, scoped, tag = 'input window, operand 3, single buffered']
    #allocation9 [shape = 's32[1]{0}', space=sflag, size = 0x4, scoped, tag = 'scoped memory for tpu_custom_call.1']
    #allocation10 [shape = 'u8[512]{0}', space=vmem, size = 0x400, scoped, tag = 'input window, operand 4, single buffered']
    #allocation11 [shape = 'u8[65536]{0}', space=vmem, size = 0x10000, scoped, tag = 'input window, operand 5, single buffered']
    #allocation12 [shape = 's32[1]{0}', space=sflag, size = 0x4, scoped, tag = 'scoped memory for tpu_custom_call.1']
    #allocation13 [shape = 'u8[512]{0}', space=vmem, size = 0x400, scoped, tag = 'input window, operand 6, single buffered']
    #allocation14 [shape = 'u8[16384]{0}', space=vmem, size = 0x4000, scoped, tag = 'input window, operand 7, single buffered']
    #allocation15 [shape = 's32[1]{0}', space=sflag, size = 0x4, scoped, tag = 'scoped memory for tpu_custom_call.1']
    #allocation16 [shape = 'u8[8192]{0}', space=vmem, size = 0x2000, scoped, tag = 'output window, operand 0, single buffered']
    %13 = vsyncpa [#allocation3], 0
    %14 = vsyncpa [#allocation6], 0
    %15 = vsyncpa [#allocation9], 0
    %16 = vsyncpa [#allocation12], 0
    %17 = vsyncpa [#allocation15], 0
    %18 = vsyncpa [#allocation4], 0
    // Predicated region
    $region2: #{tpu_custom_call.1} parent=1 // pred_check
      _
    $region3: #{tpu_custom_call.1} parent=1 // pred_check_branch
      %20 = sbr.rel (0) target = $region5
    $region4: #{tpu_custom_call.1} parent=1 // pred_region
      %s22 = ssub.s32 256, 256
      %23 = vsyncadd [#allocation3], %s22
      %s24 = sshll.u32 [#allocation2], 4
      %s25 = int_to_ptr.vmem [resolvable:$true] %s24
      %30 = dma.hbm_to_vmem [thread:$0]  %s0, 256, %s25, [#allocation3], 128, 128, 8
    $region5: #{tpu_custom_call.1} parent=1 // pred_fallthru
      _
    // Predicated region
    $region6: #{tpu_custom_call.1} parent=1 // pred_check
      _
    $region7: #{tpu_custom_call.1} parent=1 // pred_check_branch
      %32 = sbr.rel (0) target = $region9
    $region8: #{tpu_custom_call.1} parent=1 // pred_region
      %s34 = ssub.s32 2048, 2048
      %35 = vsyncadd [#allocation6], %s34
      %s36 = sshll.u32 [#allocation5], 4
      %s37 = int_to_ptr.vmem [resolvable:$true] %s36
      %42 = dma.hbm_to_vmem [thread:$0]  %s1, 2048, %s37, [#allocation6], 128, 128, 8
    $region9: #{tpu_custom_call.1} parent=1 // pred_fallthru
      _
    // Predicated region
    $region10: #{tpu_custom_call.1} parent=1 // pred_check
      _
    $region11: #{tpu_custom_call.1} parent=1 // pred_check_branch
      %44 = sbr.rel (0) target = $region13
    $region12: #{tpu_custom_call.1} parent=1 // pred_region
      %s46 = ssub.s32 16, 16
      %47 = vsyncadd [#allocation6], %s46
      %s49 = sshll.u32 [#allocation7], 4
      %s50 = int_to_ptr.vmem [resolvable:$true] %s49
      %52 = dma.hbm_to_vmem [thread:$0]  %s2, 16, %s50, [#allocation6]
    $region13: #{tpu_custom_call.1} parent=1 // pred_fallthru
      _
    // Predicated region
    $region14: #{tpu_custom_call.1} parent=1 // pred_check
      _
    $region15: #{tpu_custom_call.1} parent=1 // pred_check_branch
      %54 = sbr.rel (0) target = $region17
    $region16: #{tpu_custom_call.1} parent=1 // pred_region
      %s56 = ssub.s32 2048, 2048
      %57 = vsyncadd [#allocation9], %s56
      %s58 = sshll.u32 [#allocation8], 4
      %s59 = int_to_ptr.vmem [resolvable:$true] %s58
      %64 = dma.hbm_to_vmem [thread:$0]  %s3, 2048, %s59, [#allocation9], 128, 128, 8
    $region17: #{tpu_custom_call.1} parent=1 // pred_fallthru
      _
    // Predicated region
    $region18: #{tpu_custom_call.1} parent=1 // pred_check
      _
    $region19: #{tpu_custom_call.1} parent=1 // pred_check_branch
      %66 = sbr.rel (0) target = $region21
    $region20: #{tpu_custom_call.1} parent=1 // pred_region
      %s68 = ssub.s32 16, 16
      %69 = vsyncadd [#allocation9], %s68
      %s71 = sshll.u32 [#allocation10], 4
      %s72 = int_to_ptr.vmem [resolvable:$true] %s71
      %74 = dma.hbm_to_vmem [thread:$0]  %s4, 16, %s72, [#allocation9]
    $region21: #{tpu_custom_call.1} parent=1 // pred_fallthru
      _
    // Predicated region
    $region22: #{tpu_custom_call.1} parent=1 // pred_check
      _
    $region23: #{tpu_custom_call.1} parent=1 // pred_check_branch
      %76 = sbr.rel (0) target = $region25
    $region24: #{tpu_custom_call.1} parent=1 // pred_region
      %s78 = ssub.s32 2048, 2048
      %79 = vsyncadd [#allocation12], %s78
      %s80 = sshll.u32 [#allocation11], 4
      %s81 = int_to_ptr.vmem [resolvable:$true] %s80
      %86 = dma.hbm_to_vmem [thread:$0]  %s5, 2048, %s81, [#allocation12], 128, 128, 8
    $region25: #{tpu_custom_call.1} parent=1 // pred_fallthru
      _
    // Predicated region
    $region26: #{tpu_custom_call.1} parent=1 // pred_check
      _
    $region27: #{tpu_custom_call.1} parent=1 // pred_check_branch
      %88 = sbr.rel (0) target = $region29
    $region28: #{tpu_custom_call.1} parent=1 // pred_region
      %s90 = ssub.s32 16, 16
      %91 = vsyncadd [#allocation12], %s90
      %s93 = sshll.u32 [#allocation13], 4
      %s94 = int_to_ptr.vmem [resolvable:$true] %s93
      %96 = dma.hbm_to_vmem [thread:$0]  %s6, 16, %s94, [#allocation12]
    $region29: #{tpu_custom_call.1} parent=1 // pred_fallthru
      _
    // Predicated region
    $region30: #{tpu_custom_call.1} parent=1 // pred_check
      _
    $region31: #{tpu_custom_call.1} parent=1 // pred_check_branch
      %98 = sbr.rel (0) target = $region33
    $region32: #{tpu_custom_call.1} parent=1 // pred_region
      %s100 = ssub.s32 512, 512
      %101 = vsyncadd [#allocation15], %s100
      %s102 = sshll.u32 [#allocation14], 4
      %s103 = int_to_ptr.vmem [resolvable:$true] %s102
      %108 = dma.hbm_to_vmem [thread:$0]  %s7, 512, %s103, [#allocation15], 128, 128, 8
    $region33: #{tpu_custom_call.1} parent=1 // pred_fallthru
      _
    // Predicated region
    $region34: #{tpu_custom_call.1} parent=1 // pred_check
      _
    $region35: #{tpu_custom_call.1} parent=1 // pred_check_branch
      %110 = sbr.rel (0) target = $region37
    $region36: #{tpu_custom_call.1} parent=1 // pred_region
      %111 = dma.done [#allocation3], 256
    $region37: #{tpu_custom_call.1} parent=1 // pred_fallthru
      _
    // Predicated region
    $region38: #{tpu_custom_call.1} parent=1 // pred_check
      _
    $region39: #{tpu_custom_call.1} parent=1 // pred_check_branch
      %113 = sbr.rel (0) target = $region41
    $region40: #{tpu_custom_call.1} parent=1 // pred_region
      %114 = dma.done [#allocation6], 2048
    $region41: #{tpu_custom_call.1} parent=1 // pred_fallthru
      _
    // Predicated region
    $region42: #{tpu_custom_call.1} parent=1 // pred_check
      _
    $region43: #{tpu_custom_call.1} parent=1 // pred_check_branch
      %116 = sbr.rel (0) target = $region45
    $region44: #{tpu_custom_call.1} parent=1 // pred_region
      %117 = dma.done [#allocation6], 16
    $region45: #{tpu_custom_call.1} parent=1 // pred_fallthru
      _
    // Predicated region
    $region46: #{tpu_custom_call.1} parent=1 // pred_check
      _
    $region47: #{tpu_custom_call.1} parent=1 // pred_check_branch
      %119 = sbr.rel (0) target = $region49
    $region48: #{tpu_custom_call.1} parent=1 // pred_region
      %120 = dma.done [#allocation9], 2048
    $region49: #{tpu_custom_call.1} parent=1 // pred_fallthru
      _
    // Predicated region
    $region50: #{tpu_custom_call.1} parent=1 // pred_check
      _
    $region51: #{tpu_custom_call.1} parent=1 // pred_check_branch
      %122 = sbr.rel (0) target = $region53
    $region52: #{tpu_custom_call.1} parent=1 // pred_region
      %123 = dma.done [#allocation9], 16
    $region53: #{tpu_custom_call.1} parent=1 // pred_fallthru
      _
    // Predicated region
    $region54: #{tpu_custom_call.1} parent=1 // pred_check
      _
    $region55: #{tpu_custom_call.1} parent=1 // pred_check_branch
      %125 = sbr.rel (0) target = $region57
    $region56: #{tpu_custom_call.1} parent=1 // pred_region
      %126 = dma.done [#allocation12], 2048
    $region57: #{tpu_custom_call.1} parent=1 // pred_fallthru
      _
    // Predicated region
    $region58: #{tpu_custom_call.1} parent=1 // pred_check
      _
    $region59: #{tpu_custom_call.1} parent=1 // pred_check_branch
      %128 = sbr.rel (0) target = $region61
    $region60: #{tpu_custom_call.1} parent=1 // pred_region
      %129 = dma.done [#allocation12], 16
    $region61: #{tpu_custom_call.1} parent=1 // pred_fallthru
      _
    // Predicated region
    $region62: #{tpu_custom_call.1} parent=1 // pred_check
      _
    $region63: #{tpu_custom_call.1} parent=1 // pred_check_branch
      %131 = sbr.rel (0) target = $region65
    $region64: #{tpu_custom_call.1} parent=1 // pred_region
      %132 = dma.done [#allocation15], 512
    $region65: #{tpu_custom_call.1} parent=1 // pred_fallthru
      _
    %v133 = vld [vmem:[#allocation2] sm:$0xff]
    %v134 = vld [vmem:[#allocation2 + $0x8] sm:$0xff]
    %v135 = vld [vmem:[#allocation5] sm:$0xff]
    %v136 = vld [vmem:[#allocation5 + $0x8] sm:$0xff]
    %v137 = vld [vmem:[#allocation5 + $0x10] sm:$0xff]
    %v138 = vld [vmem:[#allocation5 + $0x18] sm:$0xff]
    %v139 = vld [vmem:[#allocation5 + $0x20] sm:$0xff]
    %v140 = vld [vmem:[#allocation5 + $0x28] sm:$0xff]
    %v141 = vld [vmem:[#allocation5 + $0x30] sm:$0xff]
    %v142 = vld [vmem:[#allocation5 + $0x38] sm:$0xff]
    %v143 = vld [vmem:[#allocation5 + $0x40] sm:$0xff]
    %v144 = vld [vmem:[#allocation5 + $0x48] sm:$0xff]
    %v145 = vld [vmem:[#allocation5 + $0x50] sm:$0xff]
    %v146 = vld [vmem:[#allocation5 + $0x58] sm:$0xff]
    %v147 = vld [vmem:[#allocation5 + $0x60] sm:$0xff]
    %v148 = vld [vmem:[#allocation5 + $0x68] sm:$0xff]
    %v149 = vld [vmem:[#allocation5 + $0x70] sm:$0xff]
    %v150 = vld [vmem:[#allocation5 + $0x78] sm:$0xff]
    %v151 = vld [vmem:[#allocation7] sm:$0x1]
    %v153 = vlaneseq
    %v154 = vshrl.u32 %v153, 7
    %v155 = vsub.s32 0, %v154
    %v156 = vrot.slane %v151, %v155
    %158 = vmatprep.subr.mxu0 0.0
    %159 = vmatpush1.msra.mxu0 %v135
    %160 = vmatprep.subr.mxu0 0.0
    %161 = vmatpush1.msra.mxu0 %v136
    %162 = vmatprep.subr.mxu0 0.0
    %163 = vmatpush1.msra.mxu0 %v137
    %164 = vmatprep.subr.mxu0 0.0
    %165 = vmatpush1.msra.mxu0 %v138
    %166 = vmatprep.subr.mxu0 0.0
    %167 = vmatpush1.msra.mxu0 %v139
    %168 = vmatprep.subr.mxu0 0.0
    %169 = vmatpush1.msra.mxu0 %v140
    %170 = vmatprep.subr.mxu0 0.0
    %171 = vmatpush1.msra.mxu0 %v141
    %172 = vmatprep.subr.mxu0 0.0
    %173 = vmatpush1.msra.mxu0 %v142
    %174 = vmatprep.subr.mxu0 0.0
    %175 = vmatpush1.msra.mxu0 %v143
    %176 = vmatprep.subr.mxu0 0.0
    %177 = vmatpush1.msra.mxu0 %v144
    %178 = vmatprep.subr.mxu0 0.0
    %179 = vmatpush1.msra.mxu0 %v145
    %180 = vmatprep.subr.mxu0 0.0
    %181 = vmatpush1.msra.mxu0 %v146
    %182 = vmatprep.subr.mxu0 0.0
    %183 = vmatpush1.msra.mxu0 %v147
    %184 = vmatprep.subr.mxu0 0.0
    %185 = vmatpush1.msra.mxu0 %v148
    %186 = vmatprep.subr.mxu0 0.0
    %187 = vmatpush1.msra.mxu0 %v149
    %188 = vmatprep.subr.mxu0 0.0
    %189 = vmatpush1.msra.mxu0 %v150
    %190 = vmatprep.subr.mxu0 0.0
    %191 = vmatpush1.msra.mxu0 0.0
    %192 = vmatprep.subr.mxu0 0.0
    %193 = vmatpush1.msra.mxu0 0.0
    %194 = vmatprep.subr.mxu0 0.0
    %195 = vmatpush1.msra.mxu0 0.0
    %196 = vmatprep.subr.mxu0 0.0
    %197 = vmatpush1.msra.mxu0 0.0
    %198 = vmatprep.subr.mxu0 0.0
    %199 = vmatpush1.msra.mxu0 0.0
    %200 = vmatprep.subr.mxu0 0.0
    %201 = vmatpush1.msra.mxu0 0.0
    %202 = vmatprep.subr.mxu0 0.0
    %203 = vmatpush1.msra.mxu0 0.0
    %204 = vmatprep.subr.mxu0 0.0
    %205 = vmatpush1.msra.mxu0 0.0
    %206 = vmatprep.subr.mxu0 0.0
    %207 = vmatpush1.msra.mxu0 0.0
    %208 = vmatprep.subr.mxu0 0.0
    %209 = vmatpush1.msra.mxu0 0.0
    %210 = vmatprep.subr.mxu0 0.0
    %211 = vmatpush1.msra.mxu0 0.0
    %212 = vmatprep.subr.mxu0 0.0
    %213 = vmatpush1.msra.mxu0 0.0
    %214 = vmatprep.subr.mxu0 0.0
    %215 = vmatpush1.msra.mxu0 0.0
    %216 = vmatprep.subr.mxu0 0.0
    %217 = vmatpush1.msra.mxu0 0.0
    %218 = vmatprep.subr.mxu0 0.0
    %219 = vmatpush1.msra.mxu0 0.0
    %220 = vmatprep.subr.mxu0 0.0
    %221 = vmatpush1.msra.mxu0 0.0
    %222 = vmatprep.mubr.f32.mxu0 0.0
    %223 = vmatmul.mubr.f32.gmra.mrb[0].mxu0 %v133
    %v224 = vpop.f32.mrb[0].mxu0
    %v225 = vadd.f32 %v156, %v224
    %v226 = vpop.f32.mrb[0].mxu0
    %227 = vmatprep.mubr.f32.mxu0 0.0
    %228 = vmatmul.mubr.f32.gmra.mrb[0].mxu0 %v134
    %v229 = vpop.f32.mrb[0].mxu0
    %v230 = vadd.f32 %v156, %v229
    %v231 = vpop.f32.mrb[0].mxu0
    %232 = vdwg.mxu0
    %v233 = vmax.f32 %v225, 0.0
    %v234 = vmax.f32 %v230, 0.0
    %v235 = vld [vmem:[#allocation8] sm:$0xff]
    %v236 = vld [vmem:[#allocation8 + $0x8] sm:$0xff]
    %v237 = vld [vmem:[#allocation8 + $0x10] sm:$0xff]
    %v238 = vld [vmem:[#allocation8 + $0x18] sm:$0xff]
    %v239 = vld [vmem:[#allocation8 + $0x20] sm:$0xff]
    %v240 = vld [vmem:[#allocation8 + $0x28] sm:$0xff]
    %v241 = vld [vmem:[#allocation8 + $0x30] sm:$0xff]
    %v242 = vld [vmem:[#allocation8 + $0x38] sm:$0xff]
    %v243 = vld [vmem:[#allocation8 + $0x40] sm:$0xff]
    %v244 = vld [vmem:[#allocation8 + $0x48] sm:$0xff]
    %v245 = vld [vmem:[#allocation8 + $0x50] sm:$0xff]
    %v246 = vld [vmem:[#allocation8 + $0x58] sm:$0xff]
    %v247 = vld [vmem:[#allocation8 + $0x60] sm:$0xff]
    %v248 = vld [vmem:[#allocation8 + $0x68] sm:$0xff]
    %v249 = vld [vmem:[#allocation8 + $0x70] sm:$0xff]
    %v250 = vld [vmem:[#allocation8 + $0x78] sm:$0xff]
    %v251 = vld [vmem:[#allocation10] sm:$0x1]
    %v253 = vlaneseq
    %v254 = vshrl.u32 %v253, 7
    %v255 = vsub.s32 0, %v254
    %v256 = vrot.slane %v251, %v255
    %258 = vmatprep.subr.mxu0 0.0
    %259 = vmatpush1.msra.mxu0 %v235
    %260 = vmatprep.subr.mxu0 0.0
    %261 = vmatpush1.msra.mxu0 %v236
    %262 = vmatprep.subr.mxu0 0.0
    %263 = vmatpush1.msra.mxu0 %v237
    %264 = vmatprep.subr.mxu0 0.0
    %265 = vmatpush1.msra.mxu0 %v238
    %266 = vmatprep.subr.mxu0 0.0
    %267 = vmatpush1.msra.mxu0 %v239
    %268 = vmatprep.subr.mxu0 0.0
    %269 = vmatpush1.msra.mxu0 %v240
    %270 = vmatprep.subr.mxu0 0.0
    %271 = vmatpush1.msra.mxu0 %v241
    %272 = vmatprep.subr.mxu0 0.0
    %273 = vmatpush1.msra.mxu0 %v242
    %274 = vmatprep.subr.mxu0 0.0
    %275 = vmatpush1.msra.mxu0 %v243
    %276 = vmatprep.subr.mxu0 0.0
    %277 = vmatpush1.msra.mxu0 %v244
    %278 = vmatprep.subr.mxu0 0.0
    %279 = vmatpush1.msra.mxu0 %v245
    %280 = vmatprep.subr.mxu0 0.0
    %281 = vmatpush1.msra.mxu0 %v246
    %282 = vmatprep.subr.mxu0 0.0
    %283 = vmatpush1.msra.mxu0 %v247
    %284 = vmatprep.subr.mxu0 0.0
    %285 = vmatpush1.msra.mxu0 %v248
    %286 = vmatprep.subr.mxu0 0.0
    %287 = vmatpush1.msra.mxu0 %v249
    %288 = vmatprep.subr.mxu0 0.0
    %289 = vmatpush1.msra.mxu0 %v250
    %290 = vmatprep.subr.mxu0 0.0
    %291 = vmatpush1.msra.mxu0 0.0
    %292 = vmatprep.subr.mxu0 0.0
    %293 = vmatpush1.msra.mxu0 0.0
    %294 = vmatprep.subr.mxu0 0.0
    %295 = vmatpush1.msra.mxu0 0.0
    %296 = vmatprep.subr.mxu0 0.0
    %297 = vmatpush1.msra.mxu0 0.0
    %298 = vmatprep.subr.mxu0 0.0
    %299 = vmatpush1.msra.mxu0 0.0
    %300 = vmatprep.subr.mxu0 0.0
    %301 = vmatpush1.msra.mxu0 0.0
    %302 = vmatprep.subr.mxu0 0.0
    %303 = vmatpush1.msra.mxu0 0.0
    %304 = vmatprep.subr.mxu0 0.0
    %305 = vmatpush1.msra.mxu0 0.0
    %306 = vmatprep.subr.mxu0 0.0
    %307 = vmatpush1.msra.mxu0 0.0
    %308 = vmatprep.subr.mxu0 0.0
    %309 = vmatpush1.msra.mxu0 0.0
    %310 = vmatprep.subr.mxu0 0.0
    %311 = vmatpush1.msra.mxu0 0.0
    %312 = vmatprep.subr.mxu0 0.0
    %313 = vmatpush1.msra.mxu0 0.0
    %314 = vmatprep.subr.mxu0 0.0
    %315 = vmatpush1.msra.mxu0 0.0
    %316 = vmatprep.subr.mxu0 0.0
    %317 = vmatpush1.msra.mxu0 0.0
    %318 = vmatprep.subr.mxu0 0.0
    %319 = vmatpush1.msra.mxu0 0.0
    %320 = vmatprep.subr.mxu0 0.0
    %321 = vmatpush1.msra.mxu0 0.0
    %322 = vmatprep.mubr.f32.mxu0 0.0
    %323 = vmatmul.mubr.f32.gmra.mrb[0].mxu0 %v233
    %v324 = vpop.f32.mrb[0].mxu0
    %v325 = vadd.f32 %v256, %v324
    %v326 = vpop.f32.mrb[0].mxu0
    %327 = vmatprep.mubr.f32.mxu0 0.0
    %328 = vmatmul.mubr.f32.gmra.mrb[0].mxu0 %v234
    %v329 = vpop.f32.mrb[0].mxu0
    %v330 = vadd.f32 %v256, %v329
    %v331 = vpop.f32.mrb[0].mxu0
    %332 = vdwg.mxu0
    %v333 = vmax.f32 %v325, 0.0
    %v334 = vmax.f32 %v330, 0.0
    %v335 = vld [vmem:[#allocation11] sm:$0xff]
    %v336 = vld [vmem:[#allocation11 + $0x8] sm:$0xff]
    %v337 = vld [vmem:[#allocation11 + $0x10] sm:$0xff]
    %v338 = vld [vmem:[#allocation11 + $0x18] sm:$0xff]
    %v339 = vld [vmem:[#allocation11 + $0x20] sm:$0xff]
    %v340 = vld [vmem:[#allocation11 + $0x28] sm:$0xff]
    %v341 = vld [vmem:[#allocation11 + $0x30] sm:$0xff]
    %v342 = vld [vmem:[#allocation11 + $0x38] sm:$0xff]
    %v343 = vld [vmem:[#allocation11 + $0x40] sm:$0xff]
    %v344 = vld [vmem:[#allocation11 + $0x48] sm:$0xff]
    %v345 = vld [vmem:[#allocation11 + $0x50] sm:$0xff]
    %v346 = vld [vmem:[#allocation11 + $0x58] sm:$0xff]
    %v347 = vld [vmem:[#allocation11 + $0x60] sm:$0xff]
    %v348 = vld [vmem:[#allocation11 + $0x68] sm:$0xff]
    %v349 = vld [vmem:[#allocation11 + $0x70] sm:$0xff]
    %v350 = vld [vmem:[#allocation11 + $0x78] sm:$0xff]
    %v351 = vld [vmem:[#allocation13] sm:$0x1]
    %v353 = vlaneseq
    %v354 = vshrl.u32 %v353, 7
    %v355 = vsub.s32 0, %v354
    %v356 = vrot.slane %v351, %v355
    %358 = vmatprep.subr.mxu0 0.0
    %359 = vmatpush1.msra.mxu0 %v335
    %360 = vmatprep.subr.mxu0 0.0
    %361 = vmatpush1.msra.mxu0 %v336
    %362 = vmatprep.subr.mxu0 0.0
    %363 = vmatpush1.msra.mxu0 %v337
    %364 = vmatprep.subr.mxu0 0.0
    %365 = vmatpush1.msra.mxu0 %v338
    %366 = vmatprep.subr.mxu0 0.0
    %367 = vmatpush1.msra.mxu0 %v339
    %368 = vmatprep.subr.mxu0 0.0
    %369 = vmatpush1.msra.mxu0 %v340
    %370 = vmatprep.subr.mxu0 0.0
    %371 = vmatpush1.msra.mxu0 %v341
    %372 = vmatprep.subr.mxu0 0.0
    %373 = vmatpush1.msra.mxu0 %v342
    %374 = vmatprep.subr.mxu0 0.0
    %375 = vmatpush1.msra.mxu0 %v343
    %376 = vmatprep.subr.mxu0 0.0
    %377 = vmatpush1.msra.mxu0 %v344
    %378 = vmatprep.subr.mxu0 0.0
    %379 = vmatpush1.msra.mxu0 %v345
    %380 = vmatprep.subr.mxu0 0.0
    %381 = vmatpush1.msra.mxu0 %v346
    %382 = vmatprep.subr.mxu0 0.0
    %383 = vmatpush1.msra.mxu0 %v347
    %384 = vmatprep.subr.mxu0 0.0
    %385 = vmatpush1.msra.mxu0 %v348
    %386 = vmatprep.subr.mxu0 0.0
    %387 = vmatpush1.msra.mxu0 %v349
    %388 = vmatprep.subr.mxu0 0.0
    %389 = vmatpush1.msra.mxu0 %v350
    %390 = vmatprep.subr.mxu0 0.0
    %391 = vmatpush1.msra.mxu0 0.0
    %392 = vmatprep.subr.mxu0 0.0
    %393 = vmatpush1.msra.mxu0 0.0
    %394 = vmatprep.subr.mxu0 0.0
    %395 = vmatpush1.msra.mxu0 0.0
    %396 = vmatprep.subr.mxu0 0.0
    %397 = vmatpush1.msra.mxu0 0.0
    %398 = vmatprep.subr.mxu0 0.0
    %399 = vmatpush1.msra.mxu0 0.0
    %400 = vmatprep.subr.mxu0 0.0
    %401 = vmatpush1.msra.mxu0 0.0
    %402 = vmatprep.subr.mxu0 0.0
    %403 = vmatpush1.msra.mxu0 0.0
    %404 = vmatprep.subr.mxu0 0.0
    %405 = vmatpush1.msra.mxu0 0.0
    %406 = vmatprep.subr.mxu0 0.0
    %407 = vmatpush1.msra.mxu0 0.0
    %408 = vmatprep.subr.mxu0 0.0
    %409 = vmatpush1.msra.mxu0 0.0
    %410 = vmatprep.subr.mxu0 0.0
    %411 = vmatpush1.msra.mxu0 0.0
    %412 = vmatprep.subr.mxu0 0.0
    %413 = vmatpush1.msra.mxu0 0.0
    %414 = vmatprep.subr.mxu0 0.0
    %415 = vmatpush1.msra.mxu0 0.0
    %416 = vmatprep.subr.mxu0 0.0
    %417 = vmatpush1.msra.mxu0 0.0
    %418 = vmatprep.subr.mxu0 0.0
    %419 = vmatpush1.msra.mxu0 0.0
    %420 = vmatprep.subr.mxu0 0.0
    %421 = vmatpush1.msra.mxu0 0.0
    %422 = vmatprep.mubr.f32.mxu0 0.0
    %423 = vmatmul.mubr.f32.gmra.mrb[0].mxu0 %v333
    %v424 = vpop.f32.mrb[0].mxu0
    %v425 = vadd.f32 %v356, %v424
    %v426 = vpop.f32.mrb[0].mxu0
    %427 = vmatprep.mubr.f32.mxu0 0.0
    %428 = vmatmul.mubr.f32.gmra.mrb[0].mxu0 %v334
    %v429 = vpop.f32.mrb[0].mxu0
    %v430 = vadd.f32 %v356, %v429
    %v431 = vpop.f32.mrb[0].mxu0
    %432 = vdwg.mxu0
    %v433 = vxor.u32 %v425, 2147483648
    %v434 = vxor.u32 %v430, 2147483648
    %v435 = vmul.f32 %v433, 1.442695
    %v436 = vpow.pop %v435
    %v437 = vmul.f32 %v434, 1.442695
    %v438 = vpow.pop %v437
    %v439 = vadd.f32 %v436, 1.0
    %v440 = vadd.f32 %v438, 1.0
    %v441 = vrcp.pop %v439
    %v442 = vmul.f32 1.0, %v441
    %v443 = vrcp.pop %v440
    %v444 = vmul.f32 1.0, %v443
    %v446 = vcombine.high %v442, %v442
    %v448 = vunpack.c.l.s4 1966171168
    %v449 = vunpack.c.0.s8 %v448
    %v450 = vlaneseq
    %v451 = vshrl.u32 %v450, 7
    %v452 = vsub.s32 %v449, %v451
    %v453 = vrot.slane %v442, %v452
    %v455 = vunpack.c.l.s4 1966171168
    %v456 = vunpack.c.0.s8 %v455
    %v457 = vlaneseq
    %v458 = vshrl.u32 %v457, 7
    %v459 = vsub.s32 %v456, %v458
    %v460 = vrot.slane %v446, %v459
    %v461 = vcombine.high %v453, %v453
    %v462 = vcombine.high %v460, %v460
    %v464 = vunpack.c.l.s4 1966171168
    %v465 = vunpack.c.0.s8 %v464
    %v466 = vlaneseq
    %v467 = vshrl.u32 %v466, 7
    %v468 = vsub.s32 %v465, %v467
    %v469 = vrot.slane %v453, %v468
    %v471 = vunpack.c.l.s4 1966171168
    %v472 = vunpack.c.0.s8 %v471
    %v473 = vlaneseq
    %v474 = vshrl.u32 %v473, 7
    %v475 = vsub.s32 %v472, %v474
    %v476 = vrot.slane %v460, %v475
    %v478 = vunpack.c.l.s4 1966171168
    %v479 = vunpack.c.0.s8 %v478
    %v480 = vlaneseq
    %v481 = vshrl.u32 %v480, 7
    %v482 = vsub.s32 %v479, %v481
    %v483 = vrot.slane %v461, %v482
    %v485 = vunpack.c.l.s4 1966171168
    %v486 = vunpack.c.0.s8 %v485
    %v487 = vlaneseq
    %v488 = vshrl.u32 %v487, 7
    %v489 = vsub.s32 %v486, %v488
    %v490 = vrot.slane %v462, %v489
    %v491 = vcombine.high %v469, %v469
    %v492 = vcombine.high %v476, %v476
    %v493 = vcombine.high %v483, %v483
    %v494 = vcombine.high %v490, %v490
    %v495 = vld [vmem:[#allocation14] sm:$0xff]
    %v496 = vld [vmem:[#allocation14 + $0x8] sm:$0xff]
    %v497 = vld [vmem:[#allocation14 + $0x10] sm:$0xff]
    %v498 = vld [vmem:[#allocation14 + $0x18] sm:$0xff]
    %v499 = vunpack.c.0.s8 %v495
    %v500 = vunpack.c.1.s8 %v495
    %v501 = vunpack.c.2.s8 %v495
    %v502 = vunpack.c.3.s8 %v495
    %v503 = vunpack.c.0.s8 %v496
    %v504 = vunpack.c.1.s8 %v496
    %v505 = vunpack.c.2.s8 %v496
    %v506 = vunpack.c.3.s8 %v496
    %v507 = vunpack.c.0.s8 %v497
    %v508 = vunpack.c.1.s8 %v497
    %v509 = vunpack.c.2.s8 %v497
    %v510 = vunpack.c.3.s8 %v497
    %v511 = vunpack.c.0.s8 %v498
    %v512 = vunpack.c.1.s8 %v498
    %v513 = vunpack.c.2.s8 %v498
    %v514 = vunpack.c.3.s8 %v498
    %v515 = vcvt.s32.f32 %v499
    %v516 = vcvt.s32.f32 %v500
    %v517 = vcvt.s32.f32 %v501
    %v518 = vcvt.s32.f32 %v502
    %v519 = vcvt.s32.f32 %v503
    %v520 = vcvt.s32.f32 %v504
    %v521 = vcvt.s32.f32 %v505
    %v522 = vcvt.s32.f32 %v506
    %v523 = vcvt.s32.f32 %v507
    %v524 = vcvt.s32.f32 %v508
    %v525 = vcvt.s32.f32 %v509
    %v526 = vcvt.s32.f32 %v510
    %v527 = vcvt.s32.f32 %v511
    %v528 = vcvt.s32.f32 %v512
    %v529 = vcvt.s32.f32 %v513
    %v530 = vcvt.s32.f32 %v514
    %v531 = vlaneseq
    %v532 = vshrl.u32 %v531, 7
    %v533 = vsub.s32 0, %v532
    %v534 = vrot.slane %v469, %v533
    %v535 = vlaneseq
    %v536 = vshrl.u32 %v535, 7
    %v537 = vsub.s32 0, %v536
    %v538 = vrot.slane %v483, %v537
    %v539 = vlaneseq
    %v540 = vshrl.u32 %v539, 7
    %v541 = vsub.s32 0, %v540
    %v542 = vrot.slane %v491, %v541
    %v543 = vlaneseq
    %v544 = vshrl.u32 %v543, 7
    %v545 = vsub.s32 0, %v544
    %v546 = vrot.slane %v493, %v545
    %v547 = vlaneseq
    %v548 = vshrl.u32 %v547, 7
    %v549 = vsub.s32 0, %v548
    %v550 = vrot.slane %v476, %v549
    %v551 = vlaneseq
    %v552 = vshrl.u32 %v551, 7
    %v553 = vsub.s32 0, %v552
    %v554 = vrot.slane %v490, %v553
    %v555 = vlaneseq
    %v556 = vshrl.u32 %v555, 7
    %v557 = vsub.s32 0, %v556
    %v558 = vrot.slane %v492, %v557
    %v559 = vlaneseq
    %v560 = vshrl.u32 %v559, 7
    %v561 = vsub.s32 0, %v560
    %v562 = vrot.slane %v494, %v561
    %v571 = vadd.f32 %v515, %v534
    %v572 = vadd.f32 %v516, %v534
    %v573 = vadd.f32 %v517, %v534
    %v574 = vadd.f32 %v518, %v534
    %v575 = vadd.f32 %v519, %v534
    %v576 = vadd.f32 %v520, %v534
    %v577 = vadd.f32 %v521, %v534
    %v578 = vadd.f32 %v522, %v534
    %v579 = vadd.f32 %v523, %v534
    %v580 = vadd.f32 %v524, %v534
    %v581 = vadd.f32 %v525, %v534
    %v582 = vadd.f32 %v526, %v534
    %v583 = vadd.f32 %v527, %v534
    %v584 = vadd.f32 %v528, %v534
    %v585 = vadd.f32 %v529, %v534
    %v586 = vadd.f32 %v530, %v534
    %v587 = vadd.f32 %v515, %v538
    %v588 = vadd.f32 %v516, %v538
    %v589 = vadd.f32 %v517, %v538
    %v590 = vadd.f32 %v518, %v538
    %v591 = vadd.f32 %v519, %v538
    %v592 = vadd.f32 %v520, %v538
    %v593 = vadd.f32 %v521, %v538
    %v594 = vadd.f32 %v522, %v538
    %v595 = vadd.f32 %v523, %v538
    %v596 = vadd.f32 %v524, %v538
    %v597 = vadd.f32 %v525, %v538
    %v598 = vadd.f32 %v526, %v538
    %v599 = vadd.f32 %v527, %v538
    %v600 = vadd.f32 %v528, %v538
    %v601 = vadd.f32 %v529, %v538
    %v602 = vadd.f32 %v530, %v538
    %v603 = vadd.f32 %v515, %v542
    %v604 = vadd.f32 %v516, %v542
    %v605 = vadd.f32 %v517, %v542
    %v606 = vadd.f32 %v518, %v542
    %v607 = vadd.f32 %v519, %v542
    %v608 = vadd.f32 %v520, %v542
    %v609 = vadd.f32 %v521, %v542
    %v610 = vadd.f32 %v522, %v542
    %v611 = vadd.f32 %v523, %v542
    %v612 = vadd.f32 %v524, %v542
    %v613 = vadd.f32 %v525, %v542
    %v614 = vadd.f32 %v526, %v542
    %v615 = vadd.f32 %v527, %v542
    %v616 = vadd.f32 %v528, %v542
    %v617 = vadd.f32 %v529, %v542
    %v618 = vadd.f32 %v530, %v542
    %v619 = vadd.f32 %v515, %v546
    %v620 = vadd.f32 %v516, %v546
    %v621 = vadd.f32 %v517, %v546
    %v622 = vadd.f32 %v518, %v546
    %v623 = vadd.f32 %v519, %v546
    %v624 = vadd.f32 %v520, %v546
    %v625 = vadd.f32 %v521, %v546
    %v626 = vadd.f32 %v522, %v546
    %v627 = vadd.f32 %v523, %v546
    %v628 = vadd.f32 %v524, %v546
    %v629 = vadd.f32 %v525, %v546
    %v630 = vadd.f32 %v526, %v546
    %v631 = vadd.f32 %v527, %v546
    %v632 = vadd.f32 %v528, %v546
    %v633 = vadd.f32 %v529, %v546
    %v634 = vadd.f32 %v530, %v546
    %v635 = vadd.f32 %v515, %v550
    %v636 = vadd.f32 %v516, %v550
    %v637 = vadd.f32 %v517, %v550
    %v638 = vadd.f32 %v518, %v550
    %v639 = vadd.f32 %v519, %v550
    %v640 = vadd.f32 %v520, %v550
    %v641 = vadd.f32 %v521, %v550
    %v642 = vadd.f32 %v522, %v550
    %v643 = vadd.f32 %v523, %v550
    %v644 = vadd.f32 %v524, %v550
    %v645 = vadd.f32 %v525, %v550
    %v646 = vadd.f32 %v526, %v550
    %v647 = vadd.f32 %v527, %v550
    %v648 = vadd.f32 %v528, %v550
    %v649 = vadd.f32 %v529, %v550
    %v650 = vadd.f32 %v530, %v550
    %v651 = vadd.f32 %v515, %v554
    %v652 = vadd.f32 %v516, %v554
    %v653 = vadd.f32 %v517, %v554
    %v654 = vadd.f32 %v518, %v554
    %v655 = vadd.f32 %v519, %v554
    %v656 = vadd.f32 %v520, %v554
    %v657 = vadd.f32 %v521, %v554
    %v658 = vadd.f32 %v522, %v554
    %v659 = vadd.f32 %v523, %v554
    %v660 = vadd.f32 %v524, %v554
    %v661 = vadd.f32 %v525, %v554
    %v662 = vadd.f32 %v526, %v554
    %v663 = vadd.f32 %v527, %v554
    %v664 = vadd.f32 %v528, %v554
    %v665 = vadd.f32 %v529, %v554
    %v666 = vadd.f32 %v530, %v554
    %v667 = vadd.f32 %v515, %v558
    %v668 = vadd.f32 %v516, %v558
    %v669 = vadd.f32 %v517, %v558
    %v670 = vadd.f32 %v518, %v558
    %v671 = vadd.f32 %v519, %v558
    %v672 = vadd.f32 %v520, %v558
    %v673 = vadd.f32 %v521, %v558
    %v674 = vadd.f32 %v522, %v558
    %v675 = vadd.f32 %v523, %v558
    %v676 = vadd.f32 %v524, %v558
    %v677 = vadd.f32 %v525, %v558
    %v678 = vadd.f32 %v526, %v558
    %v679 = vadd.f32 %v527, %v558
    %v680 = vadd.f32 %v528, %v558
    %v681 = vadd.f32 %v529, %v558
    %v682 = vadd.f32 %v530, %v558
    %v683 = vadd.f32 %v515, %v562
    %v684 = vadd.f32 %v516, %v562
    %v685 = vadd.f32 %v517, %v562
    %v686 = vadd.f32 %v518, %v562
    %v687 = vadd.f32 %v519, %v562
    %v688 = vadd.f32 %v520, %v562
    %v689 = vadd.f32 %v521, %v562
    %v690 = vadd.f32 %v522, %v562
    %v691 = vadd.f32 %v523, %v562
    %v692 = vadd.f32 %v524, %v562
    %v693 = vadd.f32 %v525, %v562
    %v694 = vadd.f32 %v526, %v562
    %v695 = vadd.f32 %v527, %v562
    %v696 = vadd.f32 %v528, %v562
    %v697 = vadd.f32 %v529, %v562
    %v698 = vadd.f32 %v530, %v562
    %699 = vmax.xlane.f32.xlu0 %v571
    %v700 = vpop.xlane.xlu0 %699
    %701 = vmax.xlane.f32.xlu0 %v572
    %v702 = vpop.xlane.xlu0 %701
    %703 = vmax.xlane.f32.xlu0 %v573
    %v704 = vpop.xlane.xlu0 %703
    %705 = vmax.xlane.f32.xlu0 %v574
    %v706 = vpop.xlane.xlu0 %705
    %707 = vmax.xlane.f32.xlu0 %v575
    %v708 = vpop.xlane.xlu0 %707
    %709 = vmax.xlane.f32.xlu0 %v576
    %v710 = vpop.xlane.xlu0 %709
    %711 = vmax.xlane.f32.xlu0 %v577
    %v712 = vpop.xlane.xlu0 %711
    %713 = vmax.xlane.f32.xlu0 %v578
    %v714 = vpop.xlane.xlu0 %713
    %715 = vmax.xlane.f32.xlu0 %v579
    %v716 = vpop.xlane.xlu0 %715
    %717 = vmax.xlane.f32.xlu0 %v580
    %v718 = vpop.xlane.xlu0 %717
    %719 = vmax.xlane.f32.xlu0 %v581
    %v720 = vpop.xlane.xlu0 %719
    %721 = vmax.xlane.f32.xlu0 %v582
    %v722 = vpop.xlane.xlu0 %721
    %723 = vmax.xlane.f32.xlu0 %v583
    %v724 = vpop.xlane.xlu0 %723
    %725 = vmax.xlane.f32.xlu0 %v584
    %v726 = vpop.xlane.xlu0 %725
    %727 = vmax.xlane.f32.xlu0 %v585
    %v728 = vpop.xlane.xlu0 %727
    %729 = vmax.xlane.f32.xlu0 %v586
    %v730 = vpop.xlane.xlu0 %729
    %731 = vmax.xlane.f32.xlu0 %v587
    %v732 = vpop.xlane.xlu0 %731
    %733 = vmax.xlane.f32.xlu0 %v588
    %v734 = vpop.xlane.xlu0 %733
    %735 = vmax.xlane.f32.xlu0 %v589
    %v736 = vpop.xlane.xlu0 %735
    %737 = vmax.xlane.f32.xlu0 %v590
    %v738 = vpop.xlane.xlu0 %737
    %739 = vmax.xlane.f32.xlu0 %v591
    %v740 = vpop.xlane.xlu0 %739
    %741 = vmax.xlane.f32.xlu0 %v592
    %v742 = vpop.xlane.xlu0 %741
    %743 = vmax.xlane.f32.xlu0 %v593
    %v744 = vpop.xlane.xlu0 %743
    %745 = vmax.xlane.f32.xlu0 %v594
    %v746 = vpop.xlane.xlu0 %745
    %747 = vmax.xlane.f32.xlu0 %v595
    %v748 = vpop.xlane.xlu0 %747
    %749 = vmax.xlane.f32.xlu0 %v596
    %v750 = vpop.xlane.xlu0 %749
    %751 = vmax.xlane.f32.xlu0 %v597
    %v752 = vpop.xlane.xlu0 %751
    %753 = vmax.xlane.f32.xlu0 %v598
    %v754 = vpop.xlane.xlu0 %753
    %755 = vmax.xlane.f32.xlu0 %v599
    %v756 = vpop.xlane.xlu0 %755
    %757 = vmax.xlane.f32.xlu0 %v600
    %v758 = vpop.xlane.xlu0 %757
    %759 = vmax.xlane.f32.xlu0 %v601
    %v760 = vpop.xlane.xlu0 %759
    %761 = vmax.xlane.f32.xlu0 %v602
    %v762 = vpop.xlane.xlu0 %761
    %763 = vmax.xlane.f32.xlu0 %v603
    %v764 = vpop.xlane.xlu0 %763
    %765 = vmax.xlane.f32.xlu0 %v604
    %v766 = vpop.xlane.xlu0 %765
    %767 = vmax.xlane.f32.xlu0 %v605
    %v768 = vpop.xlane.xlu0 %767
    %769 = vmax.xlane.f32.xlu0 %v606
    %v770 = vpop.xlane.xlu0 %769
    %771 = vmax.xlane.f32.xlu0 %v607
    %v772 = vpop.xlane.xlu0 %771
    %773 = vmax.xlane.f32.xlu0 %v608
    %v774 = vpop.xlane.xlu0 %773
    %775 = vmax.xlane.f32.xlu0 %v609
    %v776 = vpop.xlane.xlu0 %775
    %777 = vmax.xlane.f32.xlu0 %v610
    %v778 = vpop.xlane.xlu0 %777
    %779 = vmax.xlane.f32.xlu0 %v611
    %v780 = vpop.xlane.xlu0 %779
    %781 = vmax.xlane.f32.xlu0 %v612
    %v782 = vpop.xlane.xlu0 %781
    %783 = vmax.xlane.f32.xlu0 %v613
    %v784 = vpop.xlane.xlu0 %783
    %785 = vmax.xlane.f32.xlu0 %v614
    %v786 = vpop.xlane.xlu0 %785
    %787 = vmax.xlane.f32.xlu0 %v615
    %v788 = vpop.xlane.xlu0 %787
    %789 = vmax.xlane.f32.xlu0 %v616
    %v790 = vpop.xlane.xlu0 %789
    %791 = vmax.xlane.f32.xlu0 %v617
    %v792 = vpop.xlane.xlu0 %791
    %793 = vmax.xlane.f32.xlu0 %v618
    %v794 = vpop.xlane.xlu0 %793
    %795 = vmax.xlane.f32.xlu0 %v619
    %v796 = vpop.xlane.xlu0 %795
    %797 = vmax.xlane.f32.xlu0 %v620
    %v798 = vpop.xlane.xlu0 %797
    %799 = vmax.xlane.f32.xlu0 %v621
    %v800 = vpop.xlane.xlu0 %799
    %801 = vmax.xlane.f32.xlu0 %v622
    %v802 = vpop.xlane.xlu0 %801
    %803 = vmax.xlane.f32.xlu0 %v623
    %v804 = vpop.xlane.xlu0 %803
    %805 = vmax.xlane.f32.xlu0 %v624
    %v806 = vpop.xlane.xlu0 %805
    %807 = vmax.xlane.f32.xlu0 %v625
    %v808 = vpop.xlane.xlu0 %807
    %809 = vmax.xlane.f32.xlu0 %v626
    %v810 = vpop.xlane.xlu0 %809
    %811 = vmax.xlane.f32.xlu0 %v627
    %v812 = vpop.xlane.xlu0 %811
    %813 = vmax.xlane.f32.xlu0 %v628
    %v814 = vpop.xlane.xlu0 %813
    %815 = vmax.xlane.f32.xlu0 %v629
    %v816 = vpop.xlane.xlu0 %815
    %817 = vmax.xlane.f32.xlu0 %v630
    %v818 = vpop.xlane.xlu0 %817
    %819 = vmax.xlane.f32.xlu0 %v631
    %v820 = vpop.xlane.xlu0 %819
    %821 = vmax.xlane.f32.xlu0 %v632
    %v822 = vpop.xlane.xlu0 %821
    %823 = vmax.xlane.f32.xlu0 %v633
    %v824 = vpop.xlane.xlu0 %823
    %825 = vmax.xlane.f32.xlu0 %v634
    %v826 = vpop.xlane.xlu0 %825
    %827 = vmax.xlane.f32.xlu0 %v635
    %v828 = vpop.xlane.xlu0 %827
    %829 = vmax.xlane.f32.xlu0 %v636
    %v830 = vpop.xlane.xlu0 %829
    %831 = vmax.xlane.f32.xlu0 %v637
    %v832 = vpop.xlane.xlu0 %831
    %833 = vmax.xlane.f32.xlu0 %v638
    %v834 = vpop.xlane.xlu0 %833
    %835 = vmax.xlane.f32.xlu0 %v639
    %v836 = vpop.xlane.xlu0 %835
    %837 = vmax.xlane.f32.xlu0 %v640
    %v838 = vpop.xlane.xlu0 %837
    %839 = vmax.xlane.f32.xlu0 %v641
    %v840 = vpop.xlane.xlu0 %839
    %841 = vmax.xlane.f32.xlu0 %v642
    %v842 = vpop.xlane.xlu0 %841
    %843 = vmax.xlane.f32.xlu0 %v643
    %v844 = vpop.xlane.xlu0 %843
    %845 = vmax.xlane.f32.xlu0 %v644
    %v846 = vpop.xlane.xlu0 %845
    %847 = vmax.xlane.f32.xlu0 %v645
    %v848 = vpop.xlane.xlu0 %847
    %849 = vmax.xlane.f32.xlu0 %v646
    %v850 = vpop.xlane.xlu0 %849
    %851 = vmax.xlane.f32.xlu0 %v647
    %v852 = vpop.xlane.xlu0 %851
    %853 = vmax.xlane.f32.xlu0 %v648
    %v854 = vpop.xlane.xlu0 %853
    %855 = vmax.xlane.f32.xlu0 %v649
    %v856 = vpop.xlane.xlu0 %855
    %857 = vmax.xlane.f32.xlu0 %v650
    %v858 = vpop.xlane.xlu0 %857
    %859 = vmax.xlane.f32.xlu0 %v651
    %v860 = vpop.xlane.xlu0 %859
    %861 = vmax.xlane.f32.xlu0 %v652
    %v862 = vpop.xlane.xlu0 %861
    %863 = vmax.xlane.f32.xlu0 %v653
    %v864 = vpop.xlane.xlu0 %863
    %865 = vmax.xlane.f32.xlu0 %v654
    %v866 = vpop.xlane.xlu0 %865
    %867 = vmax.xlane.f32.xlu0 %v655
    %v868 = vpop.xlane.xlu0 %867
    %869 = vmax.xlane.f32.xlu0 %v656
    %v870 = vpop.xlane.xlu0 %869
    %871 = vmax.xlane.f32.xlu0 %v657
    %v872 = vpop.xlane.xlu0 %871
    %873 = vmax.xlane.f32.xlu0 %v658
    %v874 = vpop.xlane.xlu0 %873
    %875 = vmax.xlane.f32.xlu0 %v659
    %v876 = vpop.xlane.xlu0 %875
    %877 = vmax.xlane.f32.xlu0 %v660
    %v878 = vpop.xlane.xlu0 %877
    %879 = vmax.xlane.f32.xlu0 %v661
    %v880 = vpop.xlane.xlu0 %879
    %881 = vmax.xlane.f32.xlu0 %v662
    %v882 = vpop.xlane.xlu0 %881
    %883 = vmax.xlane.f32.xlu0 %v663
    %v884 = vpop.xlane.xlu0 %883
    %885 = vmax.xlane.f32.xlu0 %v664
    %v886 = vpop.xlane.xlu0 %885
    %887 = vmax.xlane.f32.xlu0 %v665
    %v888 = vpop.xlane.xlu0 %887
    %889 = vmax.xlane.f32.xlu0 %v666
    %v890 = vpop.xlane.xlu0 %889
    %891 = vmax.xlane.f32.xlu0 %v667
    %v892 = vpop.xlane.xlu0 %891
    %893 = vmax.xlane.f32.xlu0 %v668
    %v894 = vpop.xlane.xlu0 %893
    %895 = vmax.xlane.f32.xlu0 %v669
    %v896 = vpop.xlane.xlu0 %895
    %897 = vmax.xlane.f32.xlu0 %v670
    %v898 = vpop.xlane.xlu0 %897
    %899 = vmax.xlane.f32.xlu0 %v671
    %v900 = vpop.xlane.xlu0 %899
    %901 = vmax.xlane.f32.xlu0 %v672
    %v902 = vpop.xlane.xlu0 %901
    %903 = vmax.xlane.f32.xlu0 %v673
    %v904 = vpop.xlane.xlu0 %903
    %905 = vmax.xlane.f32.xlu0 %v674
    %v906 = vpop.xlane.xlu0 %905
    %907 = vmax.xlane.f32.xlu0 %v675
    %v908 = vpop.xlane.xlu0 %907
    %909 = vmax.xlane.f32.xlu0 %v676
    %v910 = vpop.xlane.xlu0 %909
    %911 = vmax.xlane.f32.xlu0 %v677
    %v912 = vpop.xlane.xlu0 %911
    %913 = vmax.xlane.f32.xlu0 %v678
    %v914 = vpop.xlane.xlu0 %913
    %915 = vmax.xlane.f32.xlu0 %v679
    %v916 = vpop.xlane.xlu0 %915
    %917 = vmax.xlane.f32.xlu0 %v680
    %v918 = vpop.xlane.xlu0 %917
    %919 = vmax.xlane.f32.xlu0 %v681
    %v920 = vpop.xlane.xlu0 %919
    %921 = vmax.xlane.f32.xlu0 %v682
    %v922 = vpop.xlane.xlu0 %921
    %923 = vmax.xlane.f32.xlu0 %v683
    %v924 = vpop.xlane.xlu0 %923
    %925 = vmax.xlane.f32.xlu0 %v684
    %v926 = vpop.xlane.xlu0 %925
    %927 = vmax.xlane.f32.xlu0 %v685
    %v928 = vpop.xlane.xlu0 %927
    %929 = vmax.xlane.f32.xlu0 %v686
    %v930 = vpop.xlane.xlu0 %929
    %931 = vmax.xlane.f32.xlu0 %v687
    %v932 = vpop.xlane.xlu0 %931
    %933 = vmax.xlane.f32.xlu0 %v688
    %v934 = vpop.xlane.xlu0 %933
    %935 = vmax.xlane.f32.xlu0 %v689
    %v936 = vpop.xlane.xlu0 %935
    %937 = vmax.xlane.f32.xlu0 %v690
    %v938 = vpop.xlane.xlu0 %937
    %939 = vmax.xlane.f32.xlu0 %v691
    %v940 = vpop.xlane.xlu0 %939
    %941 = vmax.xlane.f32.xlu0 %v692
    %v942 = vpop.xlane.xlu0 %941
    %943 = vmax.xlane.f32.xlu0 %v693
    %v944 = vpop.xlane.xlu0 %943
    %945 = vmax.xlane.f32.xlu0 %v694
    %v946 = vpop.xlane.xlu0 %945
    %947 = vmax.xlane.f32.xlu0 %v695
    %v948 = vpop.xlane.xlu0 %947
    %949 = vmax.xlane.f32.xlu0 %v696
    %v950 = vpop.xlane.xlu0 %949
    %951 = vmax.xlane.f32.xlu0 %v697
    %v952 = vpop.xlane.xlu0 %951
    %953 = vmax.xlane.f32.xlu0 %v698
    %v954 = vpop.xlane.xlu0 %953
    %v955 = vsub.f32 %v700, 1.0
    %v956 = vsub.f32 %v702, 1.0
    %v957 = vsub.f32 %v704, 1.0
    %v958 = vsub.f32 %v706, 1.0
    %v959 = vsub.f32 %v708, 1.0
    %v960 = vsub.f32 %v710, 1.0
    %v961 = vsub.f32 %v712, 1.0
    %v962 = vsub.f32 %v714, 1.0
    %v963 = vsub.f32 %v716, 1.0
    %v964 = vsub.f32 %v718, 1.0
    %v965 = vsub.f32 %v720, 1.0
    %v966 = vsub.f32 %v722, 1.0
    %v967 = vsub.f32 %v724, 1.0
    %v968 = vsub.f32 %v726, 1.0
    %v969 = vsub.f32 %v728, 1.0
    %v970 = vsub.f32 %v730, 1.0
    %v971 = vsub.f32 %v732, 1.0
    %v972 = vsub.f32 %v734, 1.0
    %v973 = vsub.f32 %v736, 1.0
    %v974 = vsub.f32 %v738, 1.0
    %v975 = vsub.f32 %v740, 1.0
    %v976 = vsub.f32 %v742, 1.0
    %v977 = vsub.f32 %v744, 1.0
    %v978 = vsub.f32 %v746, 1.0
    %v979 = vsub.f32 %v748, 1.0
    %v980 = vsub.f32 %v750, 1.0
    %v981 = vsub.f32 %v752, 1.0
    %v982 = vsub.f32 %v754, 1.0
    %v983 = vsub.f32 %v756, 1.0
    %v984 = vsub.f32 %v758, 1.0
    %v985 = vsub.f32 %v760, 1.0
    %v986 = vsub.f32 %v762, 1.0
    %v987 = vsub.f32 %v764, 1.0
    %v988 = vsub.f32 %v766, 1.0
    %v989 = vsub.f32 %v768, 1.0
    %v990 = vsub.f32 %v770, 1.0
    %v991 = vsub.f32 %v772, 1.0
    %v992 = vsub.f32 %v774, 1.0
    %v993 = vsub.f32 %v776, 1.0
    %v994 = vsub.f32 %v778, 1.0
    %v995 = vsub.f32 %v780, 1.0
    %v996 = vsub.f32 %v782, 1.0
    %v997 = vsub.f32 %v784, 1.0
    %v998 = vsub.f32 %v786, 1.0
    %v999 = vsub.f32 %v788, 1.0
    %v1000 = vsub.f32 %v790, 1.0
    %v1001 = vsub.f32 %v792, 1.0
    %v1002 = vsub.f32 %v794, 1.0
    %v1003 = vsub.f32 %v796, 1.0
    %v1004 = vsub.f32 %v798, 1.0
    %v1005 = vsub.f32 %v800, 1.0
    %v1006 = vsub.f32 %v802, 1.0
    %v1007 = vsub.f32 %v804, 1.0
    %v1008 = vsub.f32 %v806, 1.0
    %v1009 = vsub.f32 %v808, 1.0
    %v1010 = vsub.f32 %v810, 1.0
    %v1011 = vsub.f32 %v812, 1.0
    %v1012 = vsub.f32 %v814, 1.0
    %v1013 = vsub.f32 %v816, 1.0
    %v1014 = vsub.f32 %v818, 1.0
    %v1015 = vsub.f32 %v820, 1.0
    %v1016 = vsub.f32 %v822, 1.0
    %v1017 = vsub.f32 %v824, 1.0
    %v1018 = vsub.f32 %v826, 1.0
    %v1019 = vsub.f32 %v828, 1.0
    %v1020 = vsub.f32 %v830, 1.0
    %v1021 = vsub.f32 %v832, 1.0
    %v1022 = vsub.f32 %v834, 1.0
    %v1023 = vsub.f32 %v836, 1.0
    %v1024 = vsub.f32 %v838, 1.0
    %v1025 = vsub.f32 %v840, 1.0
    %v1026 = vsub.f32 %v842, 1.0
    %v1027 = vsub.f32 %v844, 1.0
    %v1028 = vsub.f32 %v846, 1.0
    %v1029 = vsub.f32 %v848, 1.0
    %v1030 = vsub.f32 %v850, 1.0
    %v1031 = vsub.f32 %v852, 1.0
    %v1032 = vsub.f32 %v854, 1.0
    %v1033 = vsub.f32 %v856, 1.0
    %v1034 = vsub.f32 %v858, 1.0
    %v1035 = vsub.f32 %v860, 1.0
    %v1036 = vsub.f32 %v862, 1.0
    %v1037 = vsub.f32 %v864, 1.0
    %v1038 = vsub.f32 %v866, 1.0
    %v1039 = vsub.f32 %v868, 1.0
    %v1040 = vsub.f32 %v870, 1.0
    %v1041 = vsub.f32 %v872, 1.0
    %v1042 = vsub.f32 %v874, 1.0
    %v1043 = vsub.f32 %v876, 1.0
    %v1044 = vsub.f32 %v878, 1.0
    %v1045 = vsub.f32 %v880, 1.0
    %v1046 = vsub.f32 %v882, 1.0
    %v1047 = vsub.f32 %v884, 1.0
    %v1048 = vsub.f32 %v886, 1.0
    %v1049 = vsub.f32 %v888, 1.0
    %v1050 = vsub.f32 %v890, 1.0
    %v1051 = vsub.f32 %v892, 1.0
    %v1052 = vsub.f32 %v894, 1.0
    %v1053 = vsub.f32 %v896, 1.0
    %v1054 = vsub.f32 %v898, 1.0
    %v1055 = vsub.f32 %v900, 1.0
    %v1056 = vsub.f32 %v902, 1.0
    %v1057 = vsub.f32 %v904, 1.0
    %v1058 = vsub.f32 %v906, 1.0
    %v1059 = vsub.f32 %v908, 1.0
    %v1060 = vsub.f32 %v910, 1.0
    %v1061 = vsub.f32 %v912, 1.0
    %v1062 = vsub.f32 %v914, 1.0
    %v1063 = vsub.f32 %v916, 1.0
    %v1064 = vsub.f32 %v918, 1.0
    %v1065 = vsub.f32 %v920, 1.0
    %v1066 = vsub.f32 %v922, 1.0
    %v1067 = vsub.f32 %v924, 1.0
    %v1068 = vsub.f32 %v926, 1.0
    %v1069 = vsub.f32 %v928, 1.0
    %v1070 = vsub.f32 %v930, 1.0
    %v1071 = vsub.f32 %v932, 1.0
    %v1072 = vsub.f32 %v934, 1.0
    %v1073 = vsub.f32 %v936, 1.0
    %v1074 = vsub.f32 %v938, 1.0
    %v1075 = vsub.f32 %v940, 1.0
    %v1076 = vsub.f32 %v942, 1.0
    %v1077 = vsub.f32 %v944, 1.0
    %v1078 = vsub.f32 %v946, 1.0
    %v1079 = vsub.f32 %v948, 1.0
    %v1080 = vsub.f32 %v950, 1.0
    %v1081 = vsub.f32 %v952, 1.0
    %v1082 = vsub.f32 %v954, 1.0
    %v1083 = vmax.f32 %v955, 0.0
    %v1084 = vmax.f32 %v956, 0.0
    %v1085 = vmax.f32 %v957, 0.0
    %v1086 = vmax.f32 %v958, 0.0
    %v1087 = vmax.f32 %v959, 0.0
    %v1088 = vmax.f32 %v960, 0.0
    %v1089 = vmax.f32 %v961, 0.0
    %v1090 = vmax.f32 %v962, 0.0
    %v1091 = vmax.f32 %v963, 0.0
    %v1092 = vmax.f32 %v964, 0.0
    %v1093 = vmax.f32 %v965, 0.0
    %v1094 = vmax.f32 %v966, 0.0
    %v1095 = vmax.f32 %v967, 0.0
    %v1096 = vmax.f32 %v968, 0.0
    %v1097 = vmax.f32 %v969, 0.0
    %v1098 = vmax.f32 %v970, 0.0
    %v1099 = vmax.f32 %v971, 0.0
    %v1100 = vmax.f32 %v972, 0.0
    %v1101 = vmax.f32 %v973, 0.0
    %v1102 = vmax.f32 %v974, 0.0
    %v1103 = vmax.f32 %v975, 0.0
    %v1104 = vmax.f32 %v976, 0.0
    %v1105 = vmax.f32 %v977, 0.0
    %v1106 = vmax.f32 %v978, 0.0
    %v1107 = vmax.f32 %v979, 0.0
    %v1108 = vmax.f32 %v980, 0.0
    %v1109 = vmax.f32 %v981, 0.0
    %v1110 = vmax.f32 %v982, 0.0
    %v1111 = vmax.f32 %v983, 0.0
    %v1112 = vmax.f32 %v984, 0.0
    %v1113 = vmax.f32 %v985, 0.0
    %v1114 = vmax.f32 %v986, 0.0
    %v1115 = vmax.f32 %v987, 0.0
    %v1116 = vmax.f32 %v988, 0.0
    %v1117 = vmax.f32 %v989, 0.0
    %v1118 = vmax.f32 %v990, 0.0
    %v1119 = vmax.f32 %v991, 0.0
    %v1120 = vmax.f32 %v992, 0.0
    %v1121 = vmax.f32 %v993, 0.0
    %v1122 = vmax.f32 %v994, 0.0
    %v1123 = vmax.f32 %v995, 0.0
    %v1124 = vmax.f32 %v996, 0.0
    %v1125 = vmax.f32 %v997, 0.0
    %v1126 = vmax.f32 %v998, 0.0
    %v1127 = vmax.f32 %v999, 0.0
    %v1128 = vmax.f32 %v1000, 0.0
    %v1129 = vmax.f32 %v1001, 0.0
    %v1130 = vmax.f32 %v1002, 0.0
    %v1131 = vmax.f32 %v1003, 0.0
    %v1132 = vmax.f32 %v1004, 0.0
    %v1133 = vmax.f32 %v1005, 0.0
    %v1134 = vmax.f32 %v1006, 0.0
    %v1135 = vmax.f32 %v1007, 0.0
    %v1136 = vmax.f32 %v1008, 0.0
    %v1137 = vmax.f32 %v1009, 0.0
    %v1138 = vmax.f32 %v1010, 0.0
    %v1139 = vmax.f32 %v1011, 0.0
    %v1140 = vmax.f32 %v1012, 0.0
    %v1141 = vmax.f32 %v1013, 0.0
    %v1142 = vmax.f32 %v1014, 0.0
    %v1143 = vmax.f32 %v1015, 0.0
    %v1144 = vmax.f32 %v1016, 0.0
    %v1145 = vmax.f32 %v1017, 0.0
    %v1146 = vmax.f32 %v1018, 0.0
    %v1147 = vmax.f32 %v1019, 0.0
    %v1148 = vmax.f32 %v1020, 0.0
    %v1149 = vmax.f32 %v1021, 0.0
    %v1150 = vmax.f32 %v1022, 0.0
    %v1151 = vmax.f32 %v1023, 0.0
    %v1152 = vmax.f32 %v1024, 0.0
    %v1153 = vmax.f32 %v1025, 0.0
    %v1154 = vmax.f32 %v1026, 0.0
    %v1155 = vmax.f32 %v1027, 0.0
    %v1156 = vmax.f32 %v1028, 0.0
    %v1157 = vmax.f32 %v1029, 0.0
    %v1158 = vmax.f32 %v1030, 0.0
    %v1159 = vmax.f32 %v1031, 0.0
    %v1160 = vmax.f32 %v1032, 0.0
    %v1161 = vmax.f32 %v1033, 0.0
    %v1162 = vmax.f32 %v1034, 0.0
    %v1163 = vmax.f32 %v1035, 0.0
    %v1164 = vmax.f32 %v1036, 0.0
    %v1165 = vmax.f32 %v1037, 0.0
    %v1166 = vmax.f32 %v1038, 0.0
    %v1167 = vmax.f32 %v1039, 0.0
    %v1168 = vmax.f32 %v1040, 0.0
    %v1169 = vmax.f32 %v1041, 0.0
    %v1170 = vmax.f32 %v1042, 0.0
    %v1171 = vmax.f32 %v1043, 0.0
    %v1172 = vmax.f32 %v1044, 0.0
    %v1173 = vmax.f32 %v1045, 0.0
    %v1174 = vmax.f32 %v1046, 0.0
    %v1175 = vmax.f32 %v1047, 0.0
    %v1176 = vmax.f32 %v1048, 0.0
    %v1177 = vmax.f32 %v1049, 0.0
    %v1178 = vmax.f32 %v1050, 0.0
    %v1179 = vmax.f32 %v1051, 0.0
    %v1180 = vmax.f32 %v1052, 0.0
    %v1181 = vmax.f32 %v1053, 0.0
    %v1182 = vmax.f32 %v1054, 0.0
    %v1183 = vmax.f32 %v1055, 0.0
    %v1184 = vmax.f32 %v1056, 0.0
    %v1185 = vmax.f32 %v1057, 0.0
    %v1186 = vmax.f32 %v1058, 0.0
    %v1187 = vmax.f32 %v1059, 0.0
    %v1188 = vmax.f32 %v1060, 0.0
    %v1189 = vmax.f32 %v1061, 0.0
    %v1190 = vmax.f32 %v1062, 0.0
    %v1191 = vmax.f32 %v1063, 0.0
    %v1192 = vmax.f32 %v1064, 0.0
    %v1193 = vmax.f32 %v1065, 0.0
    %v1194 = vmax.f32 %v1066, 0.0
    %v1195 = vmax.f32 %v1067, 0.0
    %v1196 = vmax.f32 %v1068, 0.0
    %v1197 = vmax.f32 %v1069, 0.0
    %v1198 = vmax.f32 %v1070, 0.0
    %v1199 = vmax.f32 %v1071, 0.0
    %v1200 = vmax.f32 %v1072, 0.0
    %v1201 = vmax.f32 %v1073, 0.0
    %v1202 = vmax.f32 %v1074, 0.0
    %v1203 = vmax.f32 %v1075, 0.0
    %v1204 = vmax.f32 %v1076, 0.0
    %v1205 = vmax.f32 %v1077, 0.0
    %v1206 = vmax.f32 %v1078, 0.0
    %v1207 = vmax.f32 %v1079, 0.0
    %v1208 = vmax.f32 %v1080, 0.0
    %v1209 = vmax.f32 %v1081, 0.0
    %v1210 = vmax.f32 %v1082, 0.0
    %v1339 = vlaneseq
    %v1340 = vand.u32 %v1339, 127
    %v1341 = vlaneseq
    %v1342 = vshrl.u32 %v1341, 7
    %v1343 = vsub.s32 %v1340, %v1342
    %v1344 = vrot.slane %v1083, %v1343
    %v1345 = vadd.s32 %v1340, 4294967288
    %v1346 = vlaneseq
    %v1347 = vshrl.u32 %v1346, 7
    %v1348 = vsub.s32 %v1345, %v1347
    %v1349 = vrot.slane %v1084, %v1348
    %vm1350 = vcmask 130112
    %v1351 = vsel %vm1350, %v1349, %v1344
    %v1352 = vadd.s32 %v1340, 4294967280
    %v1353 = vlaneseq
    %v1354 = vshrl.u32 %v1353, 7
    %v1355 = vsub.s32 %v1352, %v1354
    %v1356 = vrot.slane %v1085, %v1355
    %vm1357 = vcmask 195712
    %v1358 = vsel %vm1357, %v1356, %v1351
    %v1359 = vadd.s32 %v1340, 4294967272
    %v1360 = vlaneseq
    %v1361 = vshrl.u32 %v1360, 7
    %v1362 = vsub.s32 %v1359, %v1361
    %v1363 = vrot.slane %v1086, %v1362
    %vm1364 = vcmask 261312
    %v1365 = vsel %vm1364, %v1363, %v1358
    %v1366 = vadd.s32 %v1340, 4294967264
    %v1367 = vlaneseq
    %v1368 = vshrl.u32 %v1367, 7
    %v1369 = vsub.s32 %v1366, %v1368
    %v1370 = vrot.slane %v1087, %v1369
    %vm1371 = vcmask 326912
    %v1372 = vsel %vm1371, %v1370, %v1365
    %v1373 = vadd.s32 %v1340, 4294967256
    %v1374 = vlaneseq
    %v1375 = vshrl.u32 %v1374, 7
    %v1376 = vsub.s32 %v1373, %v1375
    %v1377 = vrot.slane %v1088, %v1376
    %vm1378 = vcmask 392512
    %v1379 = vsel %vm1378, %v1377, %v1372
    %v1380 = vadd.s32 %v1340, 4294967248
    %v1381 = vlaneseq
    %v1382 = vshrl.u32 %v1381, 7
    %v1383 = vsub.s32 %v1380, %v1382
    %v1384 = vrot.slane %v1089, %v1383
    %vm1385 = vcmask 458112
    %v1386 = vsel %vm1385, %v1384, %v1379
    %v1387 = vadd.s32 %v1340, 4294967240
    %v1388 = vlaneseq
    %v1389 = vshrl.u32 %v1388, 7
    %v1390 = vsub.s32 %v1387, %v1389
    %v1391 = vrot.slane %v1090, %v1390
    %vm1392 = vcmask 523712
    %v1393 = vsel %vm1392, %v1391, %v1386
    %v1394 = vadd.s32 %v1340, 4294967232
    %v1395 = vlaneseq
    %v1396 = vshrl.u32 %v1395, 7
    %v1397 = vsub.s32 %v1394, %v1396
    %v1398 = vrot.slane %v1091, %v1397
    %vm1399 = vcmask 589312
    %v1400 = vsel %vm1399, %v1398, %v1393
    %v1401 = vadd.s32 %v1340, 4294967224
    %v1402 = vlaneseq
    %v1403 = vshrl.u32 %v1402, 7
    %v1404 = vsub.s32 %v1401, %v1403
    %v1405 = vrot.slane %v1092, %v1404
    %vm1406 = vcmask 654912
    %v1407 = vsel %vm1406, %v1405, %v1400
    %v1408 = vadd.s32 %v1340, 4294967216
    %v1409 = vlaneseq
    %v1410 = vshrl.u32 %v1409, 7
    %v1411 = vsub.s32 %v1408, %v1410
    %v1412 = vrot.slane %v1093, %v1411
    %vm1413 = vcmask 720512
    %v1414 = vsel %vm1413, %v1412, %v1407
    %v1415 = vadd.s32 %v1340, 4294967208
    %v1416 = vlaneseq
    %v1417 = vshrl.u32 %v1416, 7
    %v1418 = vsub.s32 %v1415, %v1417
    %v1419 = vrot.slane %v1094, %v1418
    %vm1420 = vcmask 786112
    %v1421 = vsel %vm1420, %v1419, %v1414
    %v1422 = vadd.s32 %v1340, 4294967200
    %v1423 = vlaneseq
    %v1424 = vshrl.u32 %v1423, 7
    %v1425 = vsub.s32 %v1422, %v1424
    %v1426 = vrot.slane %v1095, %v1425
    %vm1427 = vcmask 851712
    %v1428 = vsel %vm1427, %v1426, %v1421
    %v1429 = vadd.s32 %v1340, 4294967192
    %v1430 = vlaneseq
    %v1431 = vshrl.u32 %v1430, 7
    %v1432 = vsub.s32 %v1429, %v1431
    %v1433 = vrot.slane %v1096, %v1432
    %vm1434 = vcmask 917312
    %v1435 = vsel %vm1434, %v1433, %v1428
    %v1436 = vadd.s32 %v1340, 4294967184
    %v1437 = vlaneseq
    %v1438 = vshrl.u32 %v1437, 7
    %v1439 = vsub.s32 %v1436, %v1438
    %v1440 = vrot.slane %v1097, %v1439
    %vm1441 = vcmask 982912
    %v1442 = vsel %vm1441, %v1440, %v1435
    %v1443 = vadd.s32 %v1340, 4294967176
    %v1444 = vlaneseq
    %v1445 = vshrl.u32 %v1444, 7
    %v1446 = vsub.s32 %v1443, %v1445
    %v1447 = vrot.slane %v1098, %v1446
    %vm1448 = vcmask 1048512
    %v1449 = vsel %vm1448, %v1447, %v1442
    %v1450 = vlaneseq
    %v1451 = vshrl.u32 %v1450, 7
    %v1452 = vsub.s32 %v1340, %v1451
    %v1453 = vrot.slane %v1099, %v1452
    %v1454 = vlaneseq
    %v1455 = vshrl.u32 %v1454, 7
    %v1456 = vsub.s32 %v1345, %v1455
    %v1457 = vrot.slane %v1100, %v1456
    %v1458 = vsel %vm1350, %v1457, %v1453
    %v1459 = vlaneseq
    %v1460 = vshrl.u32 %v1459, 7
    %v1461 = vsub.s32 %v1352, %v1460
    %v1462 = vrot.slane %v1101, %v1461
    %v1463 = vsel %vm1357, %v1462, %v1458
    %v1464 = vlaneseq
    %v1465 = vshrl.u32 %v1464, 7
    %v1466 = vsub.s32 %v1359, %v1465
    %v1467 = vrot.slane %v1102, %v1466
    %v1468 = vsel %vm1364, %v1467, %v1463
    %v1469 = vlaneseq
    %v1470 = vshrl.u32 %v1469, 7
    %v1471 = vsub.s32 %v1366, %v1470
    %v1472 = vrot.slane %v1103, %v1471
    %v1473 = vsel %vm1371, %v1472, %v1468
    %v1474 = vlaneseq
    %v1475 = vshrl.u32 %v1474, 7
    %v1476 = vsub.s32 %v1373, %v1475
    %v1477 = vrot.slane %v1104, %v1476
    %v1478 = vsel %vm1378, %v1477, %v1473
    %v1479 = vlaneseq
    %v1480 = vshrl.u32 %v1479, 7
    %v1481 = vsub.s32 %v1380, %v1480
    %v1482 = vrot.slane %v1105, %v1481
    %v1483 = vsel %vm1385, %v1482, %v1478
    %v1484 = vlaneseq
    %v1485 = vshrl.u32 %v1484, 7
    %v1486 = vsub.s32 %v1387, %v1485
    %v1487 = vrot.slane %v1106, %v1486
    %v1488 = vsel %vm1392, %v1487, %v1483
    %v1489 = vlaneseq
    %v1490 = vshrl.u32 %v1489, 7
    %v1491 = vsub.s32 %v1394, %v1490
    %v1492 = vrot.slane %v1107, %v1491
    %v1493 = vsel %vm1399, %v1492, %v1488
    %v1494 = vlaneseq
    %v1495 = vshrl.u32 %v1494, 7
    %v1496 = vsub.s32 %v1401, %v1495
    %v1497 = vrot.slane %v1108, %v1496
    %v1498 = vsel %vm1406, %v1497, %v1493
    %v1499 = vlaneseq
    %v1500 = vshrl.u32 %v1499, 7
    %v1501 = vsub.s32 %v1408, %v1500
    %v1502 = vrot.slane %v1109, %v1501
    %v1503 = vsel %vm1413, %v1502, %v1498
    %v1504 = vlaneseq
    %v1505 = vshrl.u32 %v1504, 7
    %v1506 = vsub.s32 %v1415, %v1505
    %v1507 = vrot.slane %v1110, %v1506
    %v1508 = vsel %vm1420, %v1507, %v1503
    %v1509 = vlaneseq
    %v1510 = vshrl.u32 %v1509, 7
    %v1511 = vsub.s32 %v1422, %v1510
    %v1512 = vrot.slane %v1111, %v1511
    %v1513 = vsel %vm1427, %v1512, %v1508
    %v1514 = vlaneseq
    %v1515 = vshrl.u32 %v1514, 7
    %v1516 = vsub.s32 %v1429, %v1515
    %v1517 = vrot.slane %v1112, %v1516
    %v1518 = vsel %vm1434, %v1517, %v1513
    %v1519 = vlaneseq
    %v1520 = vshrl.u32 %v1519, 7
    %v1521 = vsub.s32 %v1436, %v1520
    %v1522 = vrot.slane %v1113, %v1521
    %v1523 = vsel %vm1441, %v1522, %v1518
    %v1524 = vlaneseq
    %v1525 = vshrl.u32 %v1524, 7
    %v1526 = vsub.s32 %v1443, %v1525
    %v1527 = vrot.slane %v1114, %v1526
    %v1528 = vsel %vm1448, %v1527, %v1523
    %v1529 = vlaneseq
    %v1530 = vshrl.u32 %v1529, 7
    %v1531 = vsub.s32 %v1340, %v1530
    %v1532 = vrot.slane %v1115, %v1531
    %v1533 = vlaneseq
    %v1534 = vshrl.u32 %v1533, 7
    %v1535 = vsub.s32 %v1345, %v1534
    %v1536 = vrot.slane %v1116, %v1535
    %v1537 = vsel %vm1350, %v1536, %v1532
    %v1538 = vlaneseq
    %v1539 = vshrl.u32 %v1538, 7
    %v1540 = vsub.s32 %v1352, %v1539
    %v1541 = vrot.slane %v1117, %v1540
    %v1542 = vsel %vm1357, %v1541, %v1537
    %v1543 = vlaneseq
    %v1544 = vshrl.u32 %v1543, 7
    %v1545 = vsub.s32 %v1359, %v1544
    %v1546 = vrot.slane %v1118, %v1545
    %v1547 = vsel %vm1364, %v1546, %v1542
    %v1548 = vlaneseq
    %v1549 = vshrl.u32 %v1548, 7
    %v1550 = vsub.s32 %v1366, %v1549
    %v1551 = vrot.slane %v1119, %v1550
    %v1552 = vsel %vm1371, %v1551, %v1547
    %v1553 = vlaneseq
    %v1554 = vshrl.u32 %v1553, 7
    %v1555 = vsub.s32 %v1373, %v1554
    %v1556 = vrot.slane %v1120, %v1555
    %v1557 = vsel %vm1378, %v1556, %v1552
    %v1558 = vlaneseq
    %v1559 = vshrl.u32 %v1558, 7
    %v1560 = vsub.s32 %v1380, %v1559
    %v1561 = vrot.slane %v1121, %v1560
    %v1562 = vsel %vm1385, %v1561, %v1557
    %v1563 = vlaneseq
    %v1564 = vshrl.u32 %v1563, 7
    %v1565 = vsub.s32 %v1387, %v1564
    %v1566 = vrot.slane %v1122, %v1565
    %v1567 = vsel %vm1392, %v1566, %v1562
    %v1568 = vlaneseq
    %v1569 = vshrl.u32 %v1568, 7
    %v1570 = vsub.s32 %v1394, %v1569
    %v1571 = vrot.slane %v1123, %v1570
    %v1572 = vsel %vm1399, %v1571, %v1567
    %v1573 = vlaneseq
    %v1574 = vshrl.u32 %v1573, 7
    %v1575 = vsub.s32 %v1401, %v1574
    %v1576 = vrot.slane %v1124, %v1575
    %v1577 = vsel %vm1406, %v1576, %v1572
    %v1578 = vlaneseq
    %v1579 = vshrl.u32 %v1578, 7
    %v1580 = vsub.s32 %v1408, %v1579
    %v1581 = vrot.slane %v1125, %v1580
    %v1582 = vsel %vm1413, %v1581, %v1577
    %v1583 = vlaneseq
    %v1584 = vshrl.u32 %v1583, 7
    %v1585 = vsub.s32 %v1415, %v1584
    %v1586 = vrot.slane %v1126, %v1585
    %v1587 = vsel %vm1420, %v1586, %v1582
    %v1588 = vlaneseq
    %v1589 = vshrl.u32 %v1588, 7
    %v1590 = vsub.s32 %v1422, %v1589
    %v1591 = vrot.slane %v1127, %v1590
    %v1592 = vsel %vm1427, %v1591, %v1587
    %v1593 = vlaneseq
    %v1594 = vshrl.u32 %v1593, 7
    %v1595 = vsub.s32 %v1429, %v1594
    %v1596 = vrot.slane %v1128, %v1595
    %v1597 = vsel %vm1434, %v1596, %v1592
    %v1598 = vlaneseq
    %v1599 = vshrl.u32 %v1598, 7
    %v1600 = vsub.s32 %v1436, %v1599
    %v1601 = vrot.slane %v1129, %v1600
    %v1602 = vsel %vm1441, %v1601, %v1597
    %v1603 = vlaneseq
    %v1604 = vshrl.u32 %v1603, 7
    %v1605 = vsub.s32 %v1443, %v1604
    %v1606 = vrot.slane %v1130, %v1605
    %v1607 = vsel %vm1448, %v1606, %v1602
    %v1608 = vlaneseq
    %v1609 = vshrl.u32 %v1608, 7
    %v1610 = vsub.s32 %v1340, %v1609
    %v1611 = vrot.slane %v1131, %v1610
    %v1612 = vlaneseq
    %v1613 = vshrl.u32 %v1612, 7
    %v1614 = vsub.s32 %v1345, %v1613
    %v1615 = vrot.slane %v1132, %v1614
    %v1616 = vsel %vm1350, %v1615, %v1611
    %v1617 = vlaneseq
    %v1618 = vshrl.u32 %v1617, 7
    %v1619 = vsub.s32 %v1352, %v1618
    %v1620 = vrot.slane %v1133, %v1619
    %v1621 = vsel %vm1357, %v1620, %v1616
    %v1622 = vlaneseq
    %v1623 = vshrl.u32 %v1622, 7
    %v1624 = vsub.s32 %v1359, %v1623
    %v1625 = vrot.slane %v1134, %v1624
    %v1626 = vsel %vm1364, %v1625, %v1621
    %v1627 = vlaneseq
    %v1628 = vshrl.u32 %v1627, 7
    %v1629 = vsub.s32 %v1366, %v1628
    %v1630 = vrot.slane %v1135, %v1629
    %v1631 = vsel %vm1371, %v1630, %v1626
    %v1632 = vlaneseq
    %v1633 = vshrl.u32 %v1632, 7
    %v1634 = vsub.s32 %v1373, %v1633
    %v1635 = vrot.slane %v1136, %v1634
    %v1636 = vsel %vm1378, %v1635, %v1631
    %v1637 = vlaneseq
    %v1638 = vshrl.u32 %v1637, 7
    %v1639 = vsub.s32 %v1380, %v1638
    %v1640 = vrot.slane %v1137, %v1639
    %v1641 = vsel %vm1385, %v1640, %v1636
    %v1642 = vlaneseq
    %v1643 = vshrl.u32 %v1642, 7
    %v1644 = vsub.s32 %v1387, %v1643
    %v1645 = vrot.slane %v1138, %v1644
    %v1646 = vsel %vm1392, %v1645, %v1641
    %v1647 = vlaneseq
    %v1648 = vshrl.u32 %v1647, 7
    %v1649 = vsub.s32 %v1394, %v1648
    %v1650 = vrot.slane %v1139, %v1649
    %v1651 = vsel %vm1399, %v1650, %v1646
    %v1652 = vlaneseq
    %v1653 = vshrl.u32 %v1652, 7
    %v1654 = vsub.s32 %v1401, %v1653
    %v1655 = vrot.slane %v1140, %v1654
    %v1656 = vsel %vm1406, %v1655, %v1651
    %v1657 = vlaneseq
    %v1658 = vshrl.u32 %v1657, 7
    %v1659 = vsub.s32 %v1408, %v1658
    %v1660 = vrot.slane %v1141, %v1659
    %v1661 = vsel %vm1413, %v1660, %v1656
    %v1662 = vlaneseq
    %v1663 = vshrl.u32 %v1662, 7
    %v1664 = vsub.s32 %v1415, %v1663
    %v1665 = vrot.slane %v1142, %v1664
    %v1666 = vsel %vm1420, %v1665, %v1661
    %v1667 = vlaneseq
    %v1668 = vshrl.u32 %v1667, 7
    %v1669 = vsub.s32 %v1422, %v1668
    %v1670 = vrot.slane %v1143, %v1669
    %v1671 = vsel %vm1427, %v1670, %v1666
    %v1672 = vlaneseq
    %v1673 = vshrl.u32 %v1672, 7
    %v1674 = vsub.s32 %v1429, %v1673
    %v1675 = vrot.slane %v1144, %v1674
    %v1676 = vsel %vm1434, %v1675, %v1671
    %v1677 = vlaneseq
    %v1678 = vshrl.u32 %v1677, 7
    %v1679 = vsub.s32 %v1436, %v1678
    %v1680 = vrot.slane %v1145, %v1679
    %v1681 = vsel %vm1441, %v1680, %v1676
    %v1682 = vlaneseq
    %v1683 = vshrl.u32 %v1682, 7
    %v1684 = vsub.s32 %v1443, %v1683
    %v1685 = vrot.slane %v1146, %v1684
    %v1686 = vsel %vm1448, %v1685, %v1681
    %v1687 = vlaneseq
    %v1688 = vshrl.u32 %v1687, 7
    %v1689 = vsub.s32 %v1340, %v1688
    %v1690 = vrot.slane %v1147, %v1689
    %v1691 = vlaneseq
    %v1692 = vshrl.u32 %v1691, 7
    %v1693 = vsub.s32 %v1345, %v1692
    %v1694 = vrot.slane %v1148, %v1693
    %v1695 = vsel %vm1350, %v1694, %v1690
    %v1696 = vlaneseq
    %v1697 = vshrl.u32 %v1696, 7
    %v1698 = vsub.s32 %v1352, %v1697
    %v1699 = vrot.slane %v1149, %v1698
    %v1700 = vsel %vm1357, %v1699, %v1695
    %v1701 = vlaneseq
    %v1702 = vshrl.u32 %v1701, 7
    %v1703 = vsub.s32 %v1359, %v1702
    %v1704 = vrot.slane %v1150, %v1703
    %v1705 = vsel %vm1364, %v1704, %v1700
    %v1706 = vlaneseq
    %v1707 = vshrl.u32 %v1706, 7
    %v1708 = vsub.s32 %v1366, %v1707
    %v1709 = vrot.slane %v1151, %v1708
    %v1710 = vsel %vm1371, %v1709, %v1705
    %v1711 = vlaneseq
    %v1712 = vshrl.u32 %v1711, 7
    %v1713 = vsub.s32 %v1373, %v1712
    %v1714 = vrot.slane %v1152, %v1713
    %v1715 = vsel %vm1378, %v1714, %v1710
    %v1716 = vlaneseq
    %v1717 = vshrl.u32 %v1716, 7
    %v1718 = vsub.s32 %v1380, %v1717
    %v1719 = vrot.slane %v1153, %v1718
    %v1720 = vsel %vm1385, %v1719, %v1715
    %v1721 = vlaneseq
    %v1722 = vshrl.u32 %v1721, 7
    %v1723 = vsub.s32 %v1387, %v1722
    %v1724 = vrot.slane %v1154, %v1723
    %v1725 = vsel %vm1392, %v1724, %v1720
    %v1726 = vlaneseq
    %v1727 = vshrl.u32 %v1726, 7
    %v1728 = vsub.s32 %v1394, %v1727
    %v1729 = vrot.slane %v1155, %v1728
    %v1730 = vsel %vm1399, %v1729, %v1725
    %v1731 = vlaneseq
    %v1732 = vshrl.u32 %v1731, 7
    %v1733 = vsub.s32 %v1401, %v1732
    %v1734 = vrot.slane %v1156, %v1733
    %v1735 = vsel %vm1406, %v1734, %v1730
    %v1736 = vlaneseq
    %v1737 = vshrl.u32 %v1736, 7
    %v1738 = vsub.s32 %v1408, %v1737
    %v1739 = vrot.slane %v1157, %v1738
    %v1740 = vsel %vm1413, %v1739, %v1735
    %v1741 = vlaneseq
    %v1742 = vshrl.u32 %v1741, 7
    %v1743 = vsub.s32 %v1415, %v1742
    %v1744 = vrot.slane %v1158, %v1743
    %v1745 = vsel %vm1420, %v1744, %v1740
    %v1746 = vlaneseq
    %v1747 = vshrl.u32 %v1746, 7
    %v1748 = vsub.s32 %v1422, %v1747
    %v1749 = vrot.slane %v1159, %v1748
    %v1750 = vsel %vm1427, %v1749, %v1745
    %v1751 = vlaneseq
    %v1752 = vshrl.u32 %v1751, 7
    %v1753 = vsub.s32 %v1429, %v1752
    %v1754 = vrot.slane %v1160, %v1753
    %v1755 = vsel %vm1434, %v1754, %v1750
    %v1756 = vlaneseq
    %v1757 = vshrl.u32 %v1756, 7
    %v1758 = vsub.s32 %v1436, %v1757
    %v1759 = vrot.slane %v1161, %v1758
    %v1760 = vsel %vm1441, %v1759, %v1755
    %v1761 = vlaneseq
    %v1762 = vshrl.u32 %v1761, 7
    %v1763 = vsub.s32 %v1443, %v1762
    %v1764 = vrot.slane %v1162, %v1763
    %v1765 = vsel %vm1448, %v1764, %v1760
    %v1766 = vlaneseq
    %v1767 = vshrl.u32 %v1766, 7
    %v1768 = vsub.s32 %v1340, %v1767
    %v1769 = vrot.slane %v1163, %v1768
    %v1770 = vlaneseq
    %v1771 = vshrl.u32 %v1770, 7
    %v1772 = vsub.s32 %v1345, %v1771
    %v1773 = vrot.slane %v1164, %v1772
    %v1774 = vsel %vm1350, %v1773, %v1769
    %v1775 = vlaneseq
    %v1776 = vshrl.u32 %v1775, 7
    %v1777 = vsub.s32 %v1352, %v1776
    %v1778 = vrot.slane %v1165, %v1777
    %v1779 = vsel %vm1357, %v1778, %v1774
    %v1780 = vlaneseq
    %v1781 = vshrl.u32 %v1780, 7
    %v1782 = vsub.s32 %v1359, %v1781
    %v1783 = vrot.slane %v1166, %v1782
    %v1784 = vsel %vm1364, %v1783, %v1779
    %v1785 = vlaneseq
    %v1786 = vshrl.u32 %v1785, 7
    %v1787 = vsub.s32 %v1366, %v1786
    %v1788 = vrot.slane %v1167, %v1787
    %v1789 = vsel %vm1371, %v1788, %v1784
    %v1790 = vlaneseq
    %v1791 = vshrl.u32 %v1790, 7
    %v1792 = vsub.s32 %v1373, %v1791
    %v1793 = vrot.slane %v1168, %v1792
    %v1794 = vsel %vm1378, %v1793, %v1789
    %v1795 = vlaneseq
    %v1796 = vshrl.u32 %v1795, 7
    %v1797 = vsub.s32 %v1380, %v1796
    %v1798 = vrot.slane %v1169, %v1797
    %v1799 = vsel %vm1385, %v1798, %v1794
    %v1800 = vlaneseq
    %v1801 = vshrl.u32 %v1800, 7
    %v1802 = vsub.s32 %v1387, %v1801
    %v1803 = vrot.slane %v1170, %v1802
    %v1804 = vsel %vm1392, %v1803, %v1799
    %v1805 = vlaneseq
    %v1806 = vshrl.u32 %v1805, 7
    %v1807 = vsub.s32 %v1394, %v1806
    %v1808 = vrot.slane %v1171, %v1807
    %v1809 = vsel %vm1399, %v1808, %v1804
    %v1810 = vlaneseq
    %v1811 = vshrl.u32 %v1810, 7
    %v1812 = vsub.s32 %v1401, %v1811
    %v1813 = vrot.slane %v1172, %v1812
    %v1814 = vsel %vm1406, %v1813, %v1809
    %v1815 = vlaneseq
    %v1816 = vshrl.u32 %v1815, 7
    %v1817 = vsub.s32 %v1408, %v1816
    %v1818 = vrot.slane %v1173, %v1817
    %v1819 = vsel %vm1413, %v1818, %v1814
    %v1820 = vlaneseq
    %v1821 = vshrl.u32 %v1820, 7
    %v1822 = vsub.s32 %v1415, %v1821
    %v1823 = vrot.slane %v1174, %v1822
    %v1824 = vsel %vm1420, %v1823, %v1819
    %v1825 = vlaneseq
    %v1826 = vshrl.u32 %v1825, 7
    %v1827 = vsub.s32 %v1422, %v1826
    %v1828 = vrot.slane %v1175, %v1827
    %v1829 = vsel %vm1427, %v1828, %v1824
    %v1830 = vlaneseq
    %v1831 = vshrl.u32 %v1830, 7
    %v1832 = vsub.s32 %v1429, %v1831
    %v1833 = vrot.slane %v1176, %v1832
    %v1834 = vsel %vm1434, %v1833, %v1829
    %v1835 = vlaneseq
    %v1836 = vshrl.u32 %v1835, 7
    %v1837 = vsub.s32 %v1436, %v1836
    %v1838 = vrot.slane %v1177, %v1837
    %v1839 = vsel %vm1441, %v1838, %v1834
    %v1840 = vlaneseq
    %v1841 = vshrl.u32 %v1840, 7
    %v1842 = vsub.s32 %v1443, %v1841
    %v1843 = vrot.slane %v1178, %v1842
    %v1844 = vsel %vm1448, %v1843, %v1839
    %v1845 = vlaneseq
    %v1846 = vshrl.u32 %v1845, 7
    %v1847 = vsub.s32 %v1340, %v1846
    %v1848 = vrot.slane %v1179, %v1847
    %v1849 = vlaneseq
    %v1850 = vshrl.u32 %v1849, 7
    %v1851 = vsub.s32 %v1345, %v1850
    %v1852 = vrot.slane %v1180, %v1851
    %v1853 = vsel %vm1350, %v1852, %v1848
    %v1854 = vlaneseq
    %v1855 = vshrl.u32 %v1854, 7
    %v1856 = vsub.s32 %v1352, %v1855
    %v1857 = vrot.slane %v1181, %v1856
    %v1858 = vsel %vm1357, %v1857, %v1853
    %v1859 = vlaneseq
    %v1860 = vshrl.u32 %v1859, 7
    %v1861 = vsub.s32 %v1359, %v1860
    %v1862 = vrot.slane %v1182, %v1861
    %v1863 = vsel %vm1364, %v1862, %v1858
    %v1864 = vlaneseq
    %v1865 = vshrl.u32 %v1864, 7
    %v1866 = vsub.s32 %v1366, %v1865
    %v1867 = vrot.slane %v1183, %v1866
    %v1868 = vsel %vm1371, %v1867, %v1863
    %v1869 = vlaneseq
    %v1870 = vshrl.u32 %v1869, 7
    %v1871 = vsub.s32 %v1373, %v1870
    %v1872 = vrot.slane %v1184, %v1871
    %v1873 = vsel %vm1378, %v1872, %v1868
    %v1874 = vlaneseq
    %v1875 = vshrl.u32 %v1874, 7
    %v1876 = vsub.s32 %v1380, %v1875
    %v1877 = vrot.slane %v1185, %v1876
    %v1878 = vsel %vm1385, %v1877, %v1873
    %v1879 = vlaneseq
    %v1880 = vshrl.u32 %v1879, 7
    %v1881 = vsub.s32 %v1387, %v1880
    %v1882 = vrot.slane %v1186, %v1881
    %v1883 = vsel %vm1392, %v1882, %v1878
    %v1884 = vlaneseq
    %v1885 = vshrl.u32 %v1884, 7
    %v1886 = vsub.s32 %v1394, %v1885
    %v1887 = vrot.slane %v1187, %v1886
    %v1888 = vsel %vm1399, %v1887, %v1883
    %v1889 = vlaneseq
    %v1890 = vshrl.u32 %v1889, 7
    %v1891 = vsub.s32 %v1401, %v1890
    %v1892 = vrot.slane %v1188, %v1891
    %v1893 = vsel %vm1406, %v1892, %v1888
    %v1894 = vlaneseq
    %v1895 = vshrl.u32 %v1894, 7
    %v1896 = vsub.s32 %v1408, %v1895
    %v1897 = vrot.slane %v1189, %v1896
    %v1898 = vsel %vm1413, %v1897, %v1893
    %v1899 = vlaneseq
    %v1900 = vshrl.u32 %v1899, 7
    %v1901 = vsub.s32 %v1415, %v1900
    %v1902 = vrot.slane %v1190, %v1901
    %v1903 = vsel %vm1420, %v1902, %v1898
    %v1904 = vlaneseq
    %v1905 = vshrl.u32 %v1904, 7
    %v1906 = vsub.s32 %v1422, %v1905
    %v1907 = vrot.slane %v1191, %v1906
    %v1908 = vsel %vm1427, %v1907, %v1903
    %v1909 = vlaneseq
    %v1910 = vshrl.u32 %v1909, 7
    %v1911 = vsub.s32 %v1429, %v1910
    %v1912 = vrot.slane %v1192, %v1911
    %v1913 = vsel %vm1434, %v1912, %v1908
    %v1914 = vlaneseq
    %v1915 = vshrl.u32 %v1914, 7
    %v1916 = vsub.s32 %v1436, %v1915
    %v1917 = vrot.slane %v1193, %v1916
    %v1918 = vsel %vm1441, %v1917, %v1913
    %v1919 = vlaneseq
    %v1920 = vshrl.u32 %v1919, 7
    %v1921 = vsub.s32 %v1443, %v1920
    %v1922 = vrot.slane %v1194, %v1921
    %v1923 = vsel %vm1448, %v1922, %v1918
    %v1924 = vlaneseq
    %v1925 = vshrl.u32 %v1924, 7
    %v1926 = vsub.s32 %v1340, %v1925
    %v1927 = vrot.slane %v1195, %v1926
    %v1928 = vlaneseq
    %v1929 = vshrl.u32 %v1928, 7
    %v1930 = vsub.s32 %v1345, %v1929
    %v1931 = vrot.slane %v1196, %v1930
    %v1932 = vsel %vm1350, %v1931, %v1927
    %v1933 = vlaneseq
    %v1934 = vshrl.u32 %v1933, 7
    %v1935 = vsub.s32 %v1352, %v1934
    %v1936 = vrot.slane %v1197, %v1935
    %v1937 = vsel %vm1357, %v1936, %v1932
    %v1938 = vlaneseq
    %v1939 = vshrl.u32 %v1938, 7
    %v1940 = vsub.s32 %v1359, %v1939
    %v1941 = vrot.slane %v1198, %v1940
    %v1942 = vsel %vm1364, %v1941, %v1937
    %v1943 = vlaneseq
    %v1944 = vshrl.u32 %v1943, 7
    %v1945 = vsub.s32 %v1366, %v1944
    %v1946 = vrot.slane %v1199, %v1945
    %v1947 = vsel %vm1371, %v1946, %v1942
    %v1948 = vlaneseq
    %v1949 = vshrl.u32 %v1948, 7
    %v1950 = vsub.s32 %v1373, %v1949
    %v1951 = vrot.slane %v1200, %v1950
    %v1952 = vsel %vm1378, %v1951, %v1947
    %v1953 = vlaneseq
    %v1954 = vshrl.u32 %v1953, 7
    %v1955 = vsub.s32 %v1380, %v1954
    %v1956 = vrot.slane %v1201, %v1955
    %v1957 = vsel %vm1385, %v1956, %v1952
    %v1958 = vlaneseq
    %v1959 = vshrl.u32 %v1958, 7
    %v1960 = vsub.s32 %v1387, %v1959
    %v1961 = vrot.slane %v1202, %v1960
    %v1962 = vsel %vm1392, %v1961, %v1957
    %v1963 = vlaneseq
    %v1964 = vshrl.u32 %v1963, 7
    %v1965 = vsub.s32 %v1394, %v1964
    %v1966 = vrot.slane %v1203, %v1965
    %v1967 = vsel %vm1399, %v1966, %v1962
    %v1968 = vlaneseq
    %v1969 = vshrl.u32 %v1968, 7
    %v1970 = vsub.s32 %v1401, %v1969
    %v1971 = vrot.slane %v1204, %v1970
    %v1972 = vsel %vm1406, %v1971, %v1967
    %v1973 = vlaneseq
    %v1974 = vshrl.u32 %v1973, 7
    %v1975 = vsub.s32 %v1408, %v1974
    %v1976 = vrot.slane %v1205, %v1975
    %v1977 = vsel %vm1413, %v1976, %v1972
    %v1978 = vlaneseq
    %v1979 = vshrl.u32 %v1978, 7
    %v1980 = vsub.s32 %v1415, %v1979
    %v1981 = vrot.slane %v1206, %v1980
    %v1982 = vsel %vm1420, %v1981, %v1977
    %v1983 = vlaneseq
    %v1984 = vshrl.u32 %v1983, 7
    %v1985 = vsub.s32 %v1422, %v1984
    %v1986 = vrot.slane %v1207, %v1985
    %v1987 = vsel %vm1427, %v1986, %v1982
    %v1988 = vlaneseq
    %v1989 = vshrl.u32 %v1988, 7
    %v1990 = vsub.s32 %v1429, %v1989
    %v1991 = vrot.slane %v1208, %v1990
    %v1992 = vsel %vm1434, %v1991, %v1987
    %v1993 = vlaneseq
    %v1994 = vshrl.u32 %v1993, 7
    %v1995 = vsub.s32 %v1436, %v1994
    %v1996 = vrot.slane %v1209, %v1995
    %v1997 = vsel %vm1441, %v1996, %v1992
    %v1998 = vlaneseq
    %v1999 = vshrl.u32 %v1998, 7
    %v2000 = vsub.s32 %v1443, %v1999
    %v2001 = vrot.slane %v1210, %v2000
    %v2002 = vsel %vm1448, %v2001, %v1997
    %vm2003 = vcmask 1041409
    %v2004 = vsel %vm2003, %v1528, %v1449
    %vm2005 = vcmask 1042434
    %v2006 = vsel %vm2005, %v1607, %v2004
    %vm2007 = vcmask 1043459
    %v2008 = vsel %vm2007, %v1686, %v2006
    %vm2009 = vcmask 1044484
    %v2010 = vsel %vm2009, %v1765, %v2008
    %vm2011 = vcmask 1045509
    %v2012 = vsel %vm2011, %v1844, %v2010
    %vm2013 = vcmask 1046534
    %v2014 = vsel %vm2013, %v1923, %v2012
    %vm2015 = vcmask 1047559
    %v2016 = vsel %vm2015, %v2002, %v2014
    %2018 = vst [vmem:[#allocation16] sm:$0xff] %v2016
    %v2020 = vcombine.high %v444, %v444
    %v2022 = vunpack.c.l.s4 1966171168
    %v2023 = vunpack.c.0.s8 %v2022
    %v2024 = vlaneseq
    %v2025 = vshrl.u32 %v2024, 7
    %v2026 = vsub.s32 %v2023, %v2025
    %v2027 = vrot.slane %v444, %v2026
    %v2029 = vunpack.c.l.s4 1966171168
    %v2030 = vunpack.c.0.s8 %v2029
    %v2031 = vlaneseq
    %v2032 = vshrl.u32 %v2031, 7
    %v2033 = vsub.s32 %v2030, %v2032
    %v2034 = vrot.slane %v2020, %v2033
    %v2035 = vcombine.high %v2027, %v2027
    %v2036 = vcombine.high %v2034, %v2034
    %v2038 = vunpack.c.l.s4 1966171168
    %v2039 = vunpack.c.0.s8 %v2038
    %v2040 = vlaneseq
    %v2041 = vshrl.u32 %v2040, 7
    %v2042 = vsub.s32 %v2039, %v2041
    %v2043 = vrot.slane %v2027, %v2042
    %v2045 = vunpack.c.l.s4 1966171168
    %v2046 = vunpack.c.0.s8 %v2045
    %v2047 = vlaneseq
    %v2048 = vshrl.u32 %v2047, 7
    %v2049 = vsub.s32 %v2046, %v2048
    %v2050 = vrot.slane %v2034, %v2049
    %v2052 = vunpack.c.l.s4 1966171168
    %v2053 = vunpack.c.0.s8 %v2052
    %v2054 = vlaneseq
    %v2055 = vshrl.u32 %v2054, 7
    %v2056 = vsub.s32 %v2053, %v2055
    %v2057 = vrot.slane %v2035, %v2056
    %v2059 = vunpack.c.l.s4 1966171168
    %v2060 = vunpack.c.0.s8 %v2059
    %v2061 = vlaneseq
    %v2062 = vshrl.u32 %v2061, 7
    %v2063 = vsub.s32 %v2060, %v2062
    %v2064 = vrot.slane %v2036, %v2063
    %v2065 = vcombine.high %v2043, %v2043
    %v2066 = vcombine.high %v2050, %v2050
    %v2067 = vcombine.high %v2057, %v2057
    %v2068 = vcombine.high %v2064, %v2064
    %v2069 = vld [vmem:[#allocation14] sm:$0xff]
    %v2070 = vld [vmem:[#allocation14 + $0x8] sm:$0xff]
    %v2071 = vld [vmem:[#allocation14 + $0x10] sm:$0xff]
    %v2072 = vld [vmem:[#allocation14 + $0x18] sm:$0xff]
    %v2073 = vunpack.c.0.s8 %v2069
    %v2074 = vunpack.c.1.s8 %v2069
    %v2075 = vunpack.c.2.s8 %v2069
    %v2076 = vunpack.c.3.s8 %v2069
    %v2077 = vunpack.c.0.s8 %v2070
    %v2078 = vunpack.c.1.s8 %v2070
    %v2079 = vunpack.c.2.s8 %v2070
    %v2080 = vunpack.c.3.s8 %v2070
    %v2081 = vunpack.c.0.s8 %v2071
    %v2082 = vunpack.c.1.s8 %v2071
    %v2083 = vunpack.c.2.s8 %v2071
    %v2084 = vunpack.c.3.s8 %v2071
    %v2085 = vunpack.c.0.s8 %v2072
    %v2086 = vunpack.c.1.s8 %v2072
    %v2087 = vunpack.c.2.s8 %v2072
    %v2088 = vunpack.c.3.s8 %v2072
    %v2089 = vcvt.s32.f32 %v2073
    %v2090 = vcvt.s32.f32 %v2074
    %v2091 = vcvt.s32.f32 %v2075
    %v2092 = vcvt.s32.f32 %v2076
    %v2093 = vcvt.s32.f32 %v2077
    %v2094 = vcvt.s32.f32 %v2078
    %v2095 = vcvt.s32.f32 %v2079
    %v2096 = vcvt.s32.f32 %v2080
    %v2097 = vcvt.s32.f32 %v2081
    %v2098 = vcvt.s32.f32 %v2082
    %v2099 = vcvt.s32.f32 %v2083
    %v2100 = vcvt.s32.f32 %v2084
    %v2101 = vcvt.s32.f32 %v2085
    %v2102 = vcvt.s32.f32 %v2086
    %v2103 = vcvt.s32.f32 %v2087
    %v2104 = vcvt.s32.f32 %v2088
    %v2105 = vlaneseq
    %v2106 = vshrl.u32 %v2105, 7
    %v2107 = vsub.s32 0, %v2106
    %v2108 = vrot.slane %v2043, %v2107
    %v2109 = vlaneseq
    %v2110 = vshrl.u32 %v2109, 7
    %v2111 = vsub.s32 0, %v2110
    %v2112 = vrot.slane %v2057, %v2111
    %v2113 = vlaneseq
    %v2114 = vshrl.u32 %v2113, 7
    %v2115 = vsub.s32 0, %v2114
    %v2116 = vrot.slane %v2065, %v2115
    %v2117 = vlaneseq
    %v2118 = vshrl.u32 %v2117, 7
    %v2119 = vsub.s32 0, %v2118
    %v2120 = vrot.slane %v2067, %v2119
    %v2121 = vlaneseq
    %v2122 = vshrl.u32 %v2121, 7
    %v2123 = vsub.s32 0, %v2122
    %v2124 = vrot.slane %v2050, %v2123
    %v2125 = vlaneseq
    %v2126 = vshrl.u32 %v2125, 7
    %v2127 = vsub.s32 0, %v2126
    %v2128 = vrot.slane %v2064, %v2127
    %v2129 = vlaneseq
    %v2130 = vshrl.u32 %v2129, 7
    %v2131 = vsub.s32 0, %v2130
    %v2132 = vrot.slane %v2066, %v2131
    %v2133 = vlaneseq
    %v2134 = vshrl.u32 %v2133, 7
    %v2135 = vsub.s32 0, %v2134
    %v2136 = vrot.slane %v2068, %v2135
    %v2145 = vadd.f32 %v2089, %v2108
    %v2146 = vadd.f32 %v2090, %v2108
    %v2147 = vadd.f32 %v2091, %v2108
    %v2148 = vadd.f32 %v2092, %v2108
    %v2149 = vadd.f32 %v2093, %v2108
    %v2150 = vadd.f32 %v2094, %v2108
    %v2151 = vadd.f32 %v2095, %v2108
    %v2152 = vadd.f32 %v2096, %v2108
    %v2153 = vadd.f32 %v2097, %v2108
    %v2154 = vadd.f32 %v2098, %v2108
    %v2155 = vadd.f32 %v2099, %v2108
    %v2156 = vadd.f32 %v2100, %v2108
    %v2157 = vadd.f32 %v2101, %v2108
    %v2158 = vadd.f32 %v2102, %v2108
    %v2159 = vadd.f32 %v2103, %v2108
    %v2160 = vadd.f32 %v2104, %v2108
    %v2161 = vadd.f32 %v2089, %v2112
    %v2162 = vadd.f32 %v2090, %v2112
    %v2163 = vadd.f32 %v2091, %v2112
    %v2164 = vadd.f32 %v2092, %v2112
    %v2165 = vadd.f32 %v2093, %v2112
    %v2166 = vadd.f32 %v2094, %v2112
    %v2167 = vadd.f32 %v2095, %v2112
    %v2168 = vadd.f32 %v2096, %v2112
    %v2169 = vadd.f32 %v2097, %v2112
    %v2170 = vadd.f32 %v2098, %v2112
    %v2171 = vadd.f32 %v2099, %v2112
    %v2172 = vadd.f32 %v2100, %v2112
    %v2173 = vadd.f32 %v2101, %v2112
    %v2174 = vadd.f32 %v2102, %v2112
    %v2175 = vadd.f32 %v2103, %v2112
    %v2176 = vadd.f32 %v2104, %v2112
    %v2177 = vadd.f32 %v2089, %v2116
    %v2178 = vadd.f32 %v2090, %v2116
    %v2179 = vadd.f32 %v2091, %v2116
    %v2180 = vadd.f32 %v2092, %v2116
    %v2181 = vadd.f32 %v2093, %v2116
    %v2182 = vadd.f32 %v2094, %v2116
    %v2183 = vadd.f32 %v2095, %v2116
    %v2184 = vadd.f32 %v2096, %v2116
    %v2185 = vadd.f32 %v2097, %v2116
    %v2186 = vadd.f32 %v2098, %v2116
    %v2187 = vadd.f32 %v2099, %v2116
    %v2188 = vadd.f32 %v2100, %v2116
    %v2189 = vadd.f32 %v2101, %v2116
    %v2190 = vadd.f32 %v2102, %v2116
    %v2191 = vadd.f32 %v2103, %v2116
    %v2192 = vadd.f32 %v2104, %v2116
    %v2193 = vadd.f32 %v2089, %v2120
    %v2194 = vadd.f32 %v2090, %v2120
    %v2195 = vadd.f32 %v2091, %v2120
    %v2196 = vadd.f32 %v2092, %v2120
    %v2197 = vadd.f32 %v2093, %v2120
    %v2198 = vadd.f32 %v2094, %v2120
    %v2199 = vadd.f32 %v2095, %v2120
    %v2200 = vadd.f32 %v2096, %v2120
    %v2201 = vadd.f32 %v2097, %v2120
    %v2202 = vadd.f32 %v2098, %v2120
    %v2203 = vadd.f32 %v2099, %v2120
    %v2204 = vadd.f32 %v2100, %v2120
    %v2205 = vadd.f32 %v2101, %v2120
    %v2206 = vadd.f32 %v2102, %v2120
    %v2207 = vadd.f32 %v2103, %v2120
    %v2208 = vadd.f32 %v2104, %v2120
    %v2209 = vadd.f32 %v2089, %v2124
    %v2210 = vadd.f32 %v2090, %v2124
    %v2211 = vadd.f32 %v2091, %v2124
    %v2212 = vadd.f32 %v2092, %v2124
    %v2213 = vadd.f32 %v2093, %v2124
    %v2214 = vadd.f32 %v2094, %v2124
    %v2215 = vadd.f32 %v2095, %v2124
    %v2216 = vadd.f32 %v2096, %v2124
    %v2217 = vadd.f32 %v2097, %v2124
    %v2218 = vadd.f32 %v2098, %v2124
    %v2219 = vadd.f32 %v2099, %v2124
    %v2220 = vadd.f32 %v2100, %v2124
    %v2221 = vadd.f32 %v2101, %v2124
    %v2222 = vadd.f32 %v2102, %v2124
    %v2223 = vadd.f32 %v2103, %v2124
    %v2224 = vadd.f32 %v2104, %v2124
    %v2225 = vadd.f32 %v2089, %v2128
    %v2226 = vadd.f32 %v2090, %v2128
    %v2227 = vadd.f32 %v2091, %v2128
    %v2228 = vadd.f32 %v2092, %v2128
    %v2229 = vadd.f32 %v2093, %v2128
    %v2230 = vadd.f32 %v2094, %v2128
    %v2231 = vadd.f32 %v2095, %v2128
    %v2232 = vadd.f32 %v2096, %v2128
    %v2233 = vadd.f32 %v2097, %v2128
    %v2234 = vadd.f32 %v2098, %v2128
    %v2235 = vadd.f32 %v2099, %v2128
    %v2236 = vadd.f32 %v2100, %v2128
    %v2237 = vadd.f32 %v2101, %v2128
    %v2238 = vadd.f32 %v2102, %v2128
    %v2239 = vadd.f32 %v2103, %v2128
    %v2240 = vadd.f32 %v2104, %v2128
    %v2241 = vadd.f32 %v2089, %v2132
    %v2242 = vadd.f32 %v2090, %v2132
    %v2243 = vadd.f32 %v2091, %v2132
    %v2244 = vadd.f32 %v2092, %v2132
    %v2245 = vadd.f32 %v2093, %v2132
    %v2246 = vadd.f32 %v2094, %v2132
    %v2247 = vadd.f32 %v2095, %v2132
    %v2248 = vadd.f32 %v2096, %v2132
    %v2249 = vadd.f32 %v2097, %v2132
    %v2250 = vadd.f32 %v2098, %v2132
    %v2251 = vadd.f32 %v2099, %v2132
    %v2252 = vadd.f32 %v2100, %v2132
    %v2253 = vadd.f32 %v2101, %v2132
    %v2254 = vadd.f32 %v2102, %v2132
    %v2255 = vadd.f32 %v2103, %v2132
    %v2256 = vadd.f32 %v2104, %v2132
    %v2257 = vadd.f32 %v2089, %v2136
    %v2258 = vadd.f32 %v2090, %v2136
    %v2259 = vadd.f32 %v2091, %v2136
    %v2260 = vadd.f32 %v2092, %v2136
    %v2261 = vadd.f32 %v2093, %v2136
    %v2262 = vadd.f32 %v2094, %v2136
    %v2263 = vadd.f32 %v2095, %v2136
    %v2264 = vadd.f32 %v2096, %v2136
    %v2265 = vadd.f32 %v2097, %v2136
    %v2266 = vadd.f32 %v2098, %v2136
    %v2267 = vadd.f32 %v2099, %v2136
    %v2268 = vadd.f32 %v2100, %v2136
    %v2269 = vadd.f32 %v2101, %v2136
    %v2270 = vadd.f32 %v2102, %v2136
    %v2271 = vadd.f32 %v2103, %v2136
    %v2272 = vadd.f32 %v2104, %v2136
    %2273 = vmax.xlane.f32.xlu0 %v2145
    %v2274 = vpop.xlane.xlu0 %2273
    %2275 = vmax.xlane.f32.xlu0 %v2146
    %v2276 = vpop.xlane.xlu0 %2275
    %2277 = vmax.xlane.f32.xlu0 %v2147
    %v2278 = vpop.xlane.xlu0 %2277
    %2279 = vmax.xlane.f32.xlu0 %v2148
    %v2280 = vpop.xlane.xlu0 %2279
    %2281 = vmax.xlane.f32.xlu0 %v2149
    %v2282 = vpop.xlane.xlu0 %2281
    %2283 = vmax.xlane.f32.xlu0 %v2150
    %v2284 = vpop.xlane.xlu0 %2283
    %2285 = vmax.xlane.f32.xlu0 %v2151
    %v2286 = vpop.xlane.xlu0 %2285
    %2287 = vmax.xlane.f32.xlu0 %v2152
    %v2288 = vpop.xlane.xlu0 %2287
    %2289 = vmax.xlane.f32.xlu0 %v2153
    %v2290 = vpop.xlane.xlu0 %2289
    %2291 = vmax.xlane.f32.xlu0 %v2154
    %v2292 = vpop.xlane.xlu0 %2291
    %2293 = vmax.xlane.f32.xlu0 %v2155
    %v2294 = vpop.xlane.xlu0 %2293
    %2295 = vmax.xlane.f32.xlu0 %v2156
    %v2296 = vpop.xlane.xlu0 %2295
    %2297 = vmax.xlane.f32.xlu0 %v2157
    %v2298 = vpop.xlane.xlu0 %2297
    %2299 = vmax.xlane.f32.xlu0 %v2158
    %v2300 = vpop.xlane.xlu0 %2299
    %2301 = vmax.xlane.f32.xlu0 %v2159
    %v2302 = vpop.xlane.xlu0 %2301
    %2303 = vmax.xlane.f32.xlu0 %v2160
    %v2304 = vpop.xlane.xlu0 %2303
    %2305 = vmax.xlane.f32.xlu0 %v2161
    %v2306 = vpop.xlane.xlu0 %2305
    %2307 = vmax.xlane.f32.xlu0 %v2162
    %v2308 = vpop.xlane.xlu0 %2307
    %2309 = vmax.xlane.f32.xlu0 %v2163
    %v2310 = vpop.xlane.xlu0 %2309
    %2311 = vmax.xlane.f32.xlu0 %v2164
    %v2312 = vpop.xlane.xlu0 %2311
    %2313 = vmax.xlane.f32.xlu0 %v2165
    %v2314 = vpop.xlane.xlu0 %2313
    %2315 = vmax.xlane.f32.xlu0 %v2166
    %v2316 = vpop.xlane.xlu0 %2315
    %2317 = vmax.xlane.f32.xlu0 %v2167
    %v2318 = vpop.xlane.xlu0 %2317
    %2319 = vmax.xlane.f32.xlu0 %v2168
    %v2320 = vpop.xlane.xlu0 %2319
    %2321 = vmax.xlane.f32.xlu0 %v2169
    %v2322 = vpop.xlane.xlu0 %2321
    %2323 = vmax.xlane.f32.xlu0 %v2170
    %v2324 = vpop.xlane.xlu0 %2323
    %2325 = vmax.xlane.f32.xlu0 %v2171
    %v2326 = vpop.xlane.xlu0 %2325
    %2327 = vmax.xlane.f32.xlu0 %v2172
    %v2328 = vpop.xlane.xlu0 %2327
    %2329 = vmax.xlane.f32.xlu0 %v2173
    %v2330 = vpop.xlane.xlu0 %2329
    %2331 = vmax.xlane.f32.xlu0 %v2174
    %v2332 = vpop.xlane.xlu0 %2331
    %2333 = vmax.xlane.f32.xlu0 %v2175
    %v2334 = vpop.xlane.xlu0 %2333
    %2335 = vmax.xlane.f32.xlu0 %v2176
    %v2336 = vpop.xlane.xlu0 %2335
    %2337 = vmax.xlane.f32.xlu0 %v2177
    %v2338 = vpop.xlane.xlu0 %2337
    %2339 = vmax.xlane.f32.xlu0 %v2178
    %v2340 = vpop.xlane.xlu0 %2339
    %2341 = vmax.xlane.f32.xlu0 %v2179
    %v2342 = vpop.xlane.xlu0 %2341
    %2343 = vmax.xlane.f32.xlu0 %v2180
    %v2344 = vpop.xlane.xlu0 %2343
    %2345 = vmax.xlane.f32.xlu0 %v2181
    %v2346 = vpop.xlane.xlu0 %2345
    %2347 = vmax.xlane.f32.xlu0 %v2182
    %v2348 = vpop.xlane.xlu0 %2347
    %2349 = vmax.xlane.f32.xlu0 %v2183
    %v2350 = vpop.xlane.xlu0 %2349
    %2351 = vmax.xlane.f32.xlu0 %v2184
    %v2352 = vpop.xlane.xlu0 %2351
    %2353 = vmax.xlane.f32.xlu0 %v2185
    %v2354 = vpop.xlane.xlu0 %2353
    %2355 = vmax.xlane.f32.xlu0 %v2186
    %v2356 = vpop.xlane.xlu0 %2355
    %2357 = vmax.xlane.f32.xlu0 %v2187
    %v2358 = vpop.xlane.xlu0 %2357
    %2359 = vmax.xlane.f32.xlu0 %v2188
    %v2360 = vpop.xlane.xlu0 %2359
    %2361 = vmax.xlane.f32.xlu0 %v2189
    %v2362 = vpop.xlane.xlu0 %2361
    %2363 = vmax.xlane.f32.xlu0 %v2190
    %v2364 = vpop.xlane.xlu0 %2363
    %2365 = vmax.xlane.f32.xlu0 %v2191
    %v2366 = vpop.xlane.xlu0 %2365
    %2367 = vmax.xlane.f32.xlu0 %v2192
    %v2368 = vpop.xlane.xlu0 %2367
    %2369 = vmax.xlane.f32.xlu0 %v2193
    %v2370 = vpop.xlane.xlu0 %2369
    %2371 = vmax.xlane.f32.xlu0 %v2194
    %v2372 = vpop.xlane.xlu0 %2371
    %2373 = vmax.xlane.f32.xlu0 %v2195
    %v2374 = vpop.xlane.xlu0 %2373
    %2375 = vmax.xlane.f32.xlu0 %v2196
    %v2376 = vpop.xlane.xlu0 %2375
    %2377 = vmax.xlane.f32.xlu0 %v2197
    %v2378 = vpop.xlane.xlu0 %2377
    %2379 = vmax.xlane.f32.xlu0 %v2198
    %v2380 = vpop.xlane.xlu0 %2379
    %2381 = vmax.xlane.f32.xlu0 %v2199
    %v2382 = vpop.xlane.xlu0 %2381
    %2383 = vmax.xlane.f32.xlu0 %v2200
    %v2384 = vpop.xlane.xlu0 %2383
    %2385 = vmax.xlane.f32.xlu0 %v2201
    %v2386 = vpop.xlane.xlu0 %2385
    %2387 = vmax.xlane.f32.xlu0 %v2202
    %v2388 = vpop.xlane.xlu0 %2387
    %2389 = vmax.xlane.f32.xlu0 %v2203
    %v2390 = vpop.xlane.xlu0 %2389
    %2391 = vmax.xlane.f32.xlu0 %v2204
    %v2392 = vpop.xlane.xlu0 %2391
    %2393 = vmax.xlane.f32.xlu0 %v2205
    %v2394 = vpop.xlane.xlu0 %2393
    %2395 = vmax.xlane.f32.xlu0 %v2206
    %v2396 = vpop.xlane.xlu0 %2395
    %2397 = vmax.xlane.f32.xlu0 %v2207
    %v2398 = vpop.xlane.xlu0 %2397
    %2399 = vmax.xlane.f32.xlu0 %v2208
    %v2400 = vpop.xlane.xlu0 %2399
    %2401 = vmax.xlane.f32.xlu0 %v2209
    %v2402 = vpop.xlane.xlu0 %2401
    %2403 = vmax.xlane.f32.xlu0 %v2210
    %v2404 = vpop.xlane.xlu0 %2403
    %2405 = vmax.xlane.f32.xlu0 %v2211
    %v2406 = vpop.xlane.xlu0 %2405
    %2407 = vmax.xlane.f32.xlu0 %v2212
    %v2408 = vpop.xlane.xlu0 %2407
    %2409 = vmax.xlane.f32.xlu0 %v2213
    %v2410 = vpop.xlane.xlu0 %2409
    %2411 = vmax.xlane.f32.xlu0 %v2214
    %v2412 = vpop.xlane.xlu0 %2411
    %2413 = vmax.xlane.f32.xlu0 %v2215
    %v2414 = vpop.xlane.xlu0 %2413
    %2415 = vmax.xlane.f32.xlu0 %v2216
    %v2416 = vpop.xlane.xlu0 %2415
    %2417 = vmax.xlane.f32.xlu0 %v2217
    %v2418 = vpop.xlane.xlu0 %2417
    %2419 = vmax.xlane.f32.xlu0 %v2218
    %v2420 = vpop.xlane.xlu0 %2419
    %2421 = vmax.xlane.f32.xlu0 %v2219
    %v2422 = vpop.xlane.xlu0 %2421
    %2423 = vmax.xlane.f32.xlu0 %v2220
    %v2424 = vpop.xlane.xlu0 %2423
    %2425 = vmax.xlane.f32.xlu0 %v2221
    %v2426 = vpop.xlane.xlu0 %2425
    %2427 = vmax.xlane.f32.xlu0 %v2222
    %v2428 = vpop.xlane.xlu0 %2427
    %2429 = vmax.xlane.f32.xlu0 %v2223
    %v2430 = vpop.xlane.xlu0 %2429
    %2431 = vmax.xlane.f32.xlu0 %v2224
    %v2432 = vpop.xlane.xlu0 %2431
    %2433 = vmax.xlane.f32.xlu0 %v2225
    %v2434 = vpop.xlane.xlu0 %2433
    %2435 = vmax.xlane.f32.xlu0 %v2226
    %v2436 = vpop.xlane.xlu0 %2435
    %2437 = vmax.xlane.f32.xlu0 %v2227
    %v2438 = vpop.xlane.xlu0 %2437
    %2439 = vmax.xlane.f32.xlu0 %v2228
    %v2440 = vpop.xlane.xlu0 %2439
    %2441 = vmax.xlane.f32.xlu0 %v2229
    %v2442 = vpop.xlane.xlu0 %2441
    %2443 = vmax.xlane.f32.xlu0 %v2230
    %v2444 = vpop.xlane.xlu0 %2443
    %2445 = vmax.xlane.f32.xlu0 %v2231
    %v2446 = vpop.xlane.xlu0 %2445
    %2447 = vmax.xlane.f32.xlu0 %v2232
    %v2448 = vpop.xlane.xlu0 %2447
    %2449 = vmax.xlane.f32.xlu0 %v2233
    %v2450 = vpop.xlane.xlu0 %2449
    %2451 = vmax.xlane.f32.xlu0 %v2234
    %v2452 = vpop.xlane.xlu0 %2451
    %2453 = vmax.xlane.f32.xlu0 %v2235
    %v2454 = vpop.xlane.xlu0 %2453
    %2455 = vmax.xlane.f32.xlu0 %v2236
    %v2456 = vpop.xlane.xlu0 %2455
    %2457 = vmax.xlane.f32.xlu0 %v2237
    %v2458 = vpop.xlane.xlu0 %2457
    %2459 = vmax.xlane.f32.xlu0 %v2238
    %v2460 = vpop.xlane.xlu0 %2459
    %2461 = vmax.xlane.f32.xlu0 %v2239
    %v2462 = vpop.xlane.xlu0 %2461
    %2463 = vmax.xlane.f32.xlu0 %v2240
    %v2464 = vpop.xlane.xlu0 %2463
    %2465 = vmax.xlane.f32.xlu0 %v2241
    %v2466 = vpop.xlane.xlu0 %2465
    %2467 = vmax.xlane.f32.xlu0 %v2242
    %v2468 = vpop.xlane.xlu0 %2467
    %2469 = vmax.xlane.f32.xlu0 %v2243
    %v2470 = vpop.xlane.xlu0 %2469
    %2471 = vmax.xlane.f32.xlu0 %v2244
    %v2472 = vpop.xlane.xlu0 %2471
    %2473 = vmax.xlane.f32.xlu0 %v2245
    %v2474 = vpop.xlane.xlu0 %2473
    %2475 = vmax.xlane.f32.xlu0 %v2246
    %v2476 = vpop.xlane.xlu0 %2475
    %2477 = vmax.xlane.f32.xlu0 %v2247
    %v2478 = vpop.xlane.xlu0 %2477
    %2479 = vmax.xlane.f32.xlu0 %v2248
    %v2480 = vpop.xlane.xlu0 %2479
    %2481 = vmax.xlane.f32.xlu0 %v2249
    %v2482 = vpop.xlane.xlu0 %2481
    %2483 = vmax.xlane.f32.xlu0 %v2250
    %v2484 = vpop.xlane.xlu0 %2483
    %2485 = vmax.xlane.f32.xlu0 %v2251
    %v2486 = vpop.xlane.xlu0 %2485
    %2487 = vmax.xlane.f32.xlu0 %v2252
    %v2488 = vpop.xlane.xlu0 %2487
    %2489 = vmax.xlane.f32.xlu0 %v2253
    %v2490 = vpop.xlane.xlu0 %2489
    %2491 = vmax.xlane.f32.xlu0 %v2254
    %v2492 = vpop.xlane.xlu0 %2491
    %2493 = vmax.xlane.f32.xlu0 %v2255
    %v2494 = vpop.xlane.xlu0 %2493
    %2495 = vmax.xlane.f32.xlu0 %v2256
    %v2496 = vpop.xlane.xlu0 %2495
    %2497 = vmax.xlane.f32.xlu0 %v2257
    %v2498 = vpop.xlane.xlu0 %2497
    %2499 = vmax.xlane.f32.xlu0 %v2258
    %v2500 = vpop.xlane.xlu0 %2499
    %2501 = vmax.xlane.f32.xlu0 %v2259
    %v2502 = vpop.xlane.xlu0 %2501
    %2503 = vmax.xlane.f32.xlu0 %v2260
    %v2504 = vpop.xlane.xlu0 %2503
    %2505 = vmax.xlane.f32.xlu0 %v2261
    %v2506 = vpop.xlane.xlu0 %2505
    %2507 = vmax.xlane.f32.xlu0 %v2262
    %v2508 = vpop.xlane.xlu0 %2507
    %2509 = vmax.xlane.f32.xlu0 %v2263
    %v2510 = vpop.xlane.xlu0 %2509
    %2511 = vmax.xlane.f32.xlu0 %v2264
    %v2512 = vpop.xlane.xlu0 %2511
    %2513 = vmax.xlane.f32.xlu0 %v2265
    %v2514 = vpop.xlane.xlu0 %2513
    %2515 = vmax.xlane.f32.xlu0 %v2266
    %v2516 = vpop.xlane.xlu0 %2515
    %2517 = vmax.xlane.f32.xlu0 %v2267
    %v2518 = vpop.xlane.xlu0 %2517
    %2519 = vmax.xlane.f32.xlu0 %v2268
    %v2520 = vpop.xlane.xlu0 %2519
    %2521 = vmax.xlane.f32.xlu0 %v2269
    %v2522 = vpop.xlane.xlu0 %2521
    %2523 = vmax.xlane.f32.xlu0 %v2270
    %v2524 = vpop.xlane.xlu0 %2523
    %2525 = vmax.xlane.f32.xlu0 %v2271
    %v2526 = vpop.xlane.xlu0 %2525
    %2527 = vmax.xlane.f32.xlu0 %v2272
    %v2528 = vpop.xlane.xlu0 %2527
    %v2529 = vsub.f32 %v2274, 1.0
    %v2530 = vsub.f32 %v2276, 1.0
    %v2531 = vsub.f32 %v2278, 1.0
    %v2532 = vsub.f32 %v2280, 1.0
    %v2533 = vsub.f32 %v2282, 1.0
    %v2534 = vsub.f32 %v2284, 1.0
    %v2535 = vsub.f32 %v2286, 1.0
    %v2536 = vsub.f32 %v2288, 1.0
    %v2537 = vsub.f32 %v2290, 1.0
    %v2538 = vsub.f32 %v2292, 1.0
    %v2539 = vsub.f32 %v2294, 1.0
    %v2540 = vsub.f32 %v2296, 1.0
    %v2541 = vsub.f32 %v2298, 1.0
    %v2542 = vsub.f32 %v2300, 1.0
    %v2543 = vsub.f32 %v2302, 1.0
    %v2544 = vsub.f32 %v2304, 1.0
    %v2545 = vsub.f32 %v2306, 1.0
    %v2546 = vsub.f32 %v2308, 1.0
    %v2547 = vsub.f32 %v2310, 1.0
    %v2548 = vsub.f32 %v2312, 1.0
    %v2549 = vsub.f32 %v2314, 1.0
    %v2550 = vsub.f32 %v2316, 1.0
    %v2551 = vsub.f32 %v2318, 1.0
    %v2552 = vsub.f32 %v2320, 1.0
    %v2553 = vsub.f32 %v2322, 1.0
    %v2554 = vsub.f32 %v2324, 1.0
    %v2555 = vsub.f32 %v2326, 1.0
    %v2556 = vsub.f32 %v2328, 1.0
    %v2557 = vsub.f32 %v2330, 1.0
    %v2558 = vsub.f32 %v2332, 1.0
    %v2559 = vsub.f32 %v2334, 1.0
    %v2560 = vsub.f32 %v2336, 1.0
    %v2561 = vsub.f32 %v2338, 1.0
    %v2562 = vsub.f32 %v2340, 1.0
    %v2563 = vsub.f32 %v2342, 1.0
    %v2564 = vsub.f32 %v2344, 1.0
    %v2565 = vsub.f32 %v2346, 1.0
    %v2566 = vsub.f32 %v2348, 1.0
    %v2567 = vsub.f32 %v2350, 1.0
    %v2568 = vsub.f32 %v2352, 1.0
    %v2569 = vsub.f32 %v2354, 1.0
    %v2570 = vsub.f32 %v2356, 1.0
    %v2571 = vsub.f32 %v2358, 1.0
    %v2572 = vsub.f32 %v2360, 1.0
    %v2573 = vsub.f32 %v2362, 1.0
    %v2574 = vsub.f32 %v2364, 1.0
    %v2575 = vsub.f32 %v2366, 1.0
    %v2576 = vsub.f32 %v2368, 1.0
    %v2577 = vsub.f32 %v2370, 1.0
    %v2578 = vsub.f32 %v2372, 1.0
    %v2579 = vsub.f32 %v2374, 1.0
    %v2580 = vsub.f32 %v2376, 1.0
    %v2581 = vsub.f32 %v2378, 1.0
    %v2582 = vsub.f32 %v2380, 1.0
    %v2583 = vsub.f32 %v2382, 1.0
    %v2584 = vsub.f32 %v2384, 1.0
    %v2585 = vsub.f32 %v2386, 1.0
    %v2586 = vsub.f32 %v2388, 1.0
    %v2587 = vsub.f32 %v2390, 1.0
    %v2588 = vsub.f32 %v2392, 1.0
    %v2589 = vsub.f32 %v2394, 1.0
    %v2590 = vsub.f32 %v2396, 1.0
    %v2591 = vsub.f32 %v2398, 1.0
    %v2592 = vsub.f32 %v2400, 1.0
    %v2593 = vsub.f32 %v2402, 1.0
    %v2594 = vsub.f32 %v2404, 1.0
    %v2595 = vsub.f32 %v2406, 1.0
    %v2596 = vsub.f32 %v2408, 1.0
    %v2597 = vsub.f32 %v2410, 1.0
    %v2598 = vsub.f32 %v2412, 1.0
    %v2599 = vsub.f32 %v2414, 1.0
    %v2600 = vsub.f32 %v2416, 1.0
    %v2601 = vsub.f32 %v2418, 1.0
    %v2602 = vsub.f32 %v2420, 1.0
    %v2603 = vsub.f32 %v2422, 1.0
    %v2604 = vsub.f32 %v2424, 1.0
    %v2605 = vsub.f32 %v2426, 1.0
    %v2606 = vsub.f32 %v2428, 1.0
    %v2607 = vsub.f32 %v2430, 1.0
    %v2608 = vsub.f32 %v2432, 1.0
    %v2609 = vsub.f32 %v2434, 1.0
    %v2610 = vsub.f32 %v2436, 1.0
    %v2611 = vsub.f32 %v2438, 1.0
    %v2612 = vsub.f32 %v2440, 1.0
    %v2613 = vsub.f32 %v2442, 1.0
    %v2614 = vsub.f32 %v2444, 1.0
    %v2615 = vsub.f32 %v2446, 1.0
    %v2616 = vsub.f32 %v2448, 1.0
    %v2617 = vsub.f32 %v2450, 1.0
    %v2618 = vsub.f32 %v2452, 1.0
    %v2619 = vsub.f32 %v2454, 1.0
    %v2620 = vsub.f32 %v2456, 1.0
    %v2621 = vsub.f32 %v2458, 1.0
    %v2622 = vsub.f32 %v2460, 1.0
    %v2623 = vsub.f32 %v2462, 1.0
    %v2624 = vsub.f32 %v2464, 1.0
    %v2625 = vsub.f32 %v2466, 1.0
    %v2626 = vsub.f32 %v2468, 1.0
    %v2627 = vsub.f32 %v2470, 1.0
    %v2628 = vsub.f32 %v2472, 1.0
    %v2629 = vsub.f32 %v2474, 1.0
    %v2630 = vsub.f32 %v2476, 1.0
    %v2631 = vsub.f32 %v2478, 1.0
    %v2632 = vsub.f32 %v2480, 1.0
    %v2633 = vsub.f32 %v2482, 1.0
    %v2634 = vsub.f32 %v2484, 1.0
    %v2635 = vsub.f32 %v2486, 1.0
    %v2636 = vsub.f32 %v2488, 1.0
    %v2637 = vsub.f32 %v2490, 1.0
    %v2638 = vsub.f32 %v2492, 1.0
    %v2639 = vsub.f32 %v2494, 1.0
    %v2640 = vsub.f32 %v2496, 1.0
    %v2641 = vsub.f32 %v2498, 1.0
    %v2642 = vsub.f32 %v2500, 1.0
    %v2643 = vsub.f32 %v2502, 1.0
    %v2644 = vsub.f32 %v2504, 1.0
    %v2645 = vsub.f32 %v2506, 1.0
    %v2646 = vsub.f32 %v2508, 1.0
    %v2647 = vsub.f32 %v2510, 1.0
    %v2648 = vsub.f32 %v2512, 1.0
    %v2649 = vsub.f32 %v2514, 1.0
    %v2650 = vsub.f32 %v2516, 1.0
    %v2651 = vsub.f32 %v2518, 1.0
    %v2652 = vsub.f32 %v2520, 1.0
    %v2653 = vsub.f32 %v2522, 1.0
    %v2654 = vsub.f32 %v2524, 1.0
    %v2655 = vsub.f32 %v2526, 1.0
    %v2656 = vsub.f32 %v2528, 1.0
    %v2657 = vmax.f32 %v2529, 0.0
    %v2658 = vmax.f32 %v2530, 0.0
    %v2659 = vmax.f32 %v2531, 0.0
    %v2660 = vmax.f32 %v2532, 0.0
    %v2661 = vmax.f32 %v2533, 0.0
    %v2662 = vmax.f32 %v2534, 0.0
    %v2663 = vmax.f32 %v2535, 0.0
    %v2664 = vmax.f32 %v2536, 0.0
    %v2665 = vmax.f32 %v2537, 0.0
    %v2666 = vmax.f32 %v2538, 0.0
    %v2667 = vmax.f32 %v2539, 0.0
    %v2668 = vmax.f32 %v2540, 0.0
    %v2669 = vmax.f32 %v2541, 0.0
    %v2670 = vmax.f32 %v2542, 0.0
    %v2671 = vmax.f32 %v2543, 0.0
    %v2672 = vmax.f32 %v2544, 0.0
    %v2673 = vmax.f32 %v2545, 0.0
    %v2674 = vmax.f32 %v2546, 0.0
    %v2675 = vmax.f32 %v2547, 0.0
    %v2676 = vmax.f32 %v2548, 0.0
    %v2677 = vmax.f32 %v2549, 0.0
    %v2678 = vmax.f32 %v2550, 0.0
    %v2679 = vmax.f32 %v2551, 0.0
    %v2680 = vmax.f32 %v2552, 0.0
    %v2681 = vmax.f32 %v2553, 0.0
    %v2682 = vmax.f32 %v2554, 0.0
    %v2683 = vmax.f32 %v2555, 0.0
    %v2684 = vmax.f32 %v2556, 0.0
    %v2685 = vmax.f32 %v2557, 0.0
    %v2686 = vmax.f32 %v2558, 0.0
    %v2687 = vmax.f32 %v2559, 0.0
    %v2688 = vmax.f32 %v2560, 0.0
    %v2689 = vmax.f32 %v2561, 0.0
    %v2690 = vmax.f32 %v2562, 0.0
    %v2691 = vmax.f32 %v2563, 0.0
    %v2692 = vmax.f32 %v2564, 0.0
    %v2693 = vmax.f32 %v2565, 0.0
    %v2694 = vmax.f32 %v2566, 0.0
    %v2695 = vmax.f32 %v2567, 0.0
    %v2696 = vmax.f32 %v2568, 0.0
    %v2697 = vmax.f32 %v2569, 0.0
    %v2698 = vmax.f32 %v2570, 0.0
    %v2699 = vmax.f32 %v2571, 0.0
    %v2700 = vmax.f32 %v2572, 0.0
    %v2701 = vmax.f32 %v2573, 0.0
    %v2702 = vmax.f32 %v2574, 0.0
    %v2703 = vmax.f32 %v2575, 0.0
    %v2704 = vmax.f32 %v2576, 0.0
    %v2705 = vmax.f32 %v2577, 0.0
    %v2706 = vmax.f32 %v2578, 0.0
    %v2707 = vmax.f32 %v2579, 0.0
    %v2708 = vmax.f32 %v2580, 0.0
    %v2709 = vmax.f32 %v2581, 0.0
    %v2710 = vmax.f32 %v2582, 0.0
    %v2711 = vmax.f32 %v2583, 0.0
    %v2712 = vmax.f32 %v2584, 0.0
    %v2713 = vmax.f32 %v2585, 0.0
    %v2714 = vmax.f32 %v2586, 0.0
    %v2715 = vmax.f32 %v2587, 0.0
    %v2716 = vmax.f32 %v2588, 0.0
    %v2717 = vmax.f32 %v2589, 0.0
    %v2718 = vmax.f32 %v2590, 0.0
    %v2719 = vmax.f32 %v2591, 0.0
    %v2720 = vmax.f32 %v2592, 0.0
    %v2721 = vmax.f32 %v2593, 0.0
    %v2722 = vmax.f32 %v2594, 0.0
    %v2723 = vmax.f32 %v2595, 0.0
    %v2724 = vmax.f32 %v2596, 0.0
    %v2725 = vmax.f32 %v2597, 0.0
    %v2726 = vmax.f32 %v2598, 0.0
    %v2727 = vmax.f32 %v2599, 0.0
    %v2728 = vmax.f32 %v2600, 0.0
    %v2729 = vmax.f32 %v2601, 0.0
    %v2730 = vmax.f32 %v2602, 0.0
    %v2731 = vmax.f32 %v2603, 0.0
    %v2732 = vmax.f32 %v2604, 0.0
    %v2733 = vmax.f32 %v2605, 0.0
    %v2734 = vmax.f32 %v2606, 0.0
    %v2735 = vmax.f32 %v2607, 0.0
    %v2736 = vmax.f32 %v2608, 0.0
    %v2737 = vmax.f32 %v2609, 0.0
    %v2738 = vmax.f32 %v2610, 0.0
    %v2739 = vmax.f32 %v2611, 0.0
    %v2740 = vmax.f32 %v2612, 0.0
    %v2741 = vmax.f32 %v2613, 0.0
    %v2742 = vmax.f32 %v2614, 0.0
    %v2743 = vmax.f32 %v2615, 0.0
    %v2744 = vmax.f32 %v2616, 0.0
    %v2745 = vmax.f32 %v2617, 0.0
    %v2746 = vmax.f32 %v2618, 0.0
    %v2747 = vmax.f32 %v2619, 0.0
    %v2748 = vmax.f32 %v2620, 0.0
    %v2749 = vmax.f32 %v2621, 0.0
    %v2750 = vmax.f32 %v2622, 0.0
    %v2751 = vmax.f32 %v2623, 0.0
    %v2752 = vmax.f32 %v2624, 0.0
    %v2753 = vmax.f32 %v2625, 0.0
    %v2754 = vmax.f32 %v2626, 0.0
    %v2755 = vmax.f32 %v2627, 0.0
    %v2756 = vmax.f32 %v2628, 0.0
    %v2757 = vmax.f32 %v2629, 0.0
    %v2758 = vmax.f32 %v2630, 0.0
    %v2759 = vmax.f32 %v2631, 0.0
    %v2760 = vmax.f32 %v2632, 0.0
    %v2761 = vmax.f32 %v2633, 0.0
    %v2762 = vmax.f32 %v2634, 0.0
    %v2763 = vmax.f32 %v2635, 0.0
    %v2764 = vmax.f32 %v2636, 0.0
    %v2765 = vmax.f32 %v2637, 0.0
    %v2766 = vmax.f32 %v2638, 0.0
    %v2767 = vmax.f32 %v2639, 0.0
    %v2768 = vmax.f32 %v2640, 0.0
    %v2769 = vmax.f32 %v2641, 0.0
    %v2770 = vmax.f32 %v2642, 0.0
    %v2771 = vmax.f32 %v2643, 0.0
    %v2772 = vmax.f32 %v2644, 0.0
    %v2773 = vmax.f32 %v2645, 0.0
    %v2774 = vmax.f32 %v2646, 0.0
    %v2775 = vmax.f32 %v2647, 0.0
    %v2776 = vmax.f32 %v2648, 0.0
    %v2777 = vmax.f32 %v2649, 0.0
    %v2778 = vmax.f32 %v2650, 0.0
    %v2779 = vmax.f32 %v2651, 0.0
    %v2780 = vmax.f32 %v2652, 0.0
    %v2781 = vmax.f32 %v2653, 0.0
    %v2782 = vmax.f32 %v2654, 0.0
    %v2783 = vmax.f32 %v2655, 0.0
    %v2784 = vmax.f32 %v2656, 0.0
    %v2913 = vlaneseq
    %v2914 = vshrl.u32 %v2913, 7
    %v2915 = vsub.s32 %v1340, %v2914
    %v2916 = vrot.slane %v2657, %v2915
    %v2917 = vlaneseq
    %v2918 = vshrl.u32 %v2917, 7
    %v2919 = vsub.s32 %v1345, %v2918
    %v2920 = vrot.slane %v2658, %v2919
    %v2921 = vsel %vm1350, %v2920, %v2916
    %v2922 = vlaneseq
    %v2923 = vshrl.u32 %v2922, 7
    %v2924 = vsub.s32 %v1352, %v2923
    %v2925 = vrot.slane %v2659, %v2924
    %v2926 = vsel %vm1357, %v2925, %v2921
    %v2927 = vlaneseq
    %v2928 = vshrl.u32 %v2927, 7
    %v2929 = vsub.s32 %v1359, %v2928
    %v2930 = vrot.slane %v2660, %v2929
    %v2931 = vsel %vm1364, %v2930, %v2926
    %v2932 = vlaneseq
    %v2933 = vshrl.u32 %v2932, 7
    %v2934 = vsub.s32 %v1366, %v2933
    %v2935 = vrot.slane %v2661, %v2934
    %v2936 = vsel %vm1371, %v2935, %v2931
    %v2937 = vlaneseq
    %v2938 = vshrl.u32 %v2937, 7
    %v2939 = vsub.s32 %v1373, %v2938
    %v2940 = vrot.slane %v2662, %v2939
    %v2941 = vsel %vm1378, %v2940, %v2936
    %v2942 = vlaneseq
    %v2943 = vshrl.u32 %v2942, 7
    %v2944 = vsub.s32 %v1380, %v2943
    %v2945 = vrot.slane %v2663, %v2944
    %v2946 = vsel %vm1385, %v2945, %v2941
    %v2947 = vlaneseq
    %v2948 = vshrl.u32 %v2947, 7
    %v2949 = vsub.s32 %v1387, %v2948
    %v2950 = vrot.slane %v2664, %v2949
    %v2951 = vsel %vm1392, %v2950, %v2946
    %v2952 = vlaneseq
    %v2953 = vshrl.u32 %v2952, 7
    %v2954 = vsub.s32 %v1394, %v2953
    %v2955 = vrot.slane %v2665, %v2954
    %v2956 = vsel %vm1399, %v2955, %v2951
    %v2957 = vlaneseq
    %v2958 = vshrl.u32 %v2957, 7
    %v2959 = vsub.s32 %v1401, %v2958
    %v2960 = vrot.slane %v2666, %v2959
    %v2961 = vsel %vm1406, %v2960, %v2956
    %v2962 = vlaneseq
    %v2963 = vshrl.u32 %v2962, 7
    %v2964 = vsub.s32 %v1408, %v2963
    %v2965 = vrot.slane %v2667, %v2964
    %v2966 = vsel %vm1413, %v2965, %v2961
    %v2967 = vlaneseq
    %v2968 = vshrl.u32 %v2967, 7
    %v2969 = vsub.s32 %v1415, %v2968
    %v2970 = vrot.slane %v2668, %v2969
    %v2971 = vsel %vm1420, %v2970, %v2966
    %v2972 = vlaneseq
    %v2973 = vshrl.u32 %v2972, 7
    %v2974 = vsub.s32 %v1422, %v2973
    %v2975 = vrot.slane %v2669, %v2974
    %v2976 = vsel %vm1427, %v2975, %v2971
    %v2977 = vlaneseq
    %v2978 = vshrl.u32 %v2977, 7
    %v2979 = vsub.s32 %v1429, %v2978
    %v2980 = vrot.slane %v2670, %v2979
    %v2981 = vsel %vm1434, %v2980, %v2976
    %v2982 = vlaneseq
    %v2983 = vshrl.u32 %v2982, 7
    %v2984 = vsub.s32 %v1436, %v2983
    %v2985 = vrot.slane %v2671, %v2984
    %v2986 = vsel %vm1441, %v2985, %v2981
    %v2987 = vlaneseq
    %v2988 = vshrl.u32 %v2987, 7
    %v2989 = vsub.s32 %v1443, %v2988
    %v2990 = vrot.slane %v2672, %v2989
    %v2991 = vsel %vm1448, %v2990, %v2986
    %v2992 = vlaneseq
    %v2993 = vshrl.u32 %v2992, 7
    %v2994 = vsub.s32 %v1340, %v2993
    %v2995 = vrot.slane %v2673, %v2994
    %v2996 = vlaneseq
    %v2997 = vshrl.u32 %v2996, 7
    %v2998 = vsub.s32 %v1345, %v2997
    %v2999 = vrot.slane %v2674, %v2998
    %v3000 = vsel %vm1350, %v2999, %v2995
    %v3001 = vlaneseq
    %v3002 = vshrl.u32 %v3001, 7
    %v3003 = vsub.s32 %v1352, %v3002
    %v3004 = vrot.slane %v2675, %v3003
    %v3005 = vsel %vm1357, %v3004, %v3000
    %v3006 = vlaneseq
    %v3007 = vshrl.u32 %v3006, 7
    %v3008 = vsub.s32 %v1359, %v3007
    %v3009 = vrot.slane %v2676, %v3008
    %v3010 = vsel %vm1364, %v3009, %v3005
    %v3011 = vlaneseq
    %v3012 = vshrl.u32 %v3011, 7
    %v3013 = vsub.s32 %v1366, %v3012
    %v3014 = vrot.slane %v2677, %v3013
    %v3015 = vsel %vm1371, %v3014, %v3010
    %v3016 = vlaneseq
    %v3017 = vshrl.u32 %v3016, 7
    %v3018 = vsub.s32 %v1373, %v3017
    %v3019 = vrot.slane %v2678, %v3018
    %v3020 = vsel %vm1378, %v3019, %v3015
    %v3021 = vlaneseq
    %v3022 = vshrl.u32 %v3021, 7
    %v3023 = vsub.s32 %v1380, %v3022
    %v3024 = vrot.slane %v2679, %v3023
    %v3025 = vsel %vm1385, %v3024, %v3020
    %v3026 = vlaneseq
    %v3027 = vshrl.u32 %v3026, 7
    %v3028 = vsub.s32 %v1387, %v3027
    %v3029 = vrot.slane %v2680, %v3028
    %v3030 = vsel %vm1392, %v3029, %v3025
    %v3031 = vlaneseq
    %v3032 = vshrl.u32 %v3031, 7
    %v3033 = vsub.s32 %v1394, %v3032
    %v3034 = vrot.slane %v2681, %v3033
    %v3035 = vsel %vm1399, %v3034, %v3030
    %v3036 = vlaneseq
    %v3037 = vshrl.u32 %v3036, 7
    %v3038 = vsub.s32 %v1401, %v3037
    %v3039 = vrot.slane %v2682, %v3038
    %v3040 = vsel %vm1406, %v3039, %v3035
    %v3041 = vlaneseq
    %v3042 = vshrl.u32 %v3041, 7
    %v3043 = vsub.s32 %v1408, %v3042
    %v3044 = vrot.slane %v2683, %v3043
    %v3045 = vsel %vm1413, %v3044, %v3040
    %v3046 = vlaneseq
    %v3047 = vshrl.u32 %v3046, 7
    %v3048 = vsub.s32 %v1415, %v3047
    %v3049 = vrot.slane %v2684, %v3048
    %v3050 = vsel %vm1420, %v3049, %v3045
    %v3051 = vlaneseq
    %v3052 = vshrl.u32 %v3051, 7
    %v3053 = vsub.s32 %v1422, %v3052
    %v3054 = vrot.slane %v2685, %v3053
    %v3055 = vsel %vm1427, %v3054, %v3050
    %v3056 = vlaneseq
    %v3057 = vshrl.u32 %v3056, 7
    %v3058 = vsub.s32 %v1429, %v3057
    %v3059 = vrot.slane %v2686, %v3058
    %v3060 = vsel %vm1434, %v3059, %v3055
    %v3061 = vlaneseq
    %v3062 = vshrl.u32 %v3061, 7
    %v3063 = vsub.s32 %v1436, %v3062
    %v3064 = vrot.slane %v2687, %v3063
    %v3065 = vsel %vm1441, %v3064, %v3060
    %v3066 = vlaneseq
    %v3067 = vshrl.u32 %v3066, 7
    %v3068 = vsub.s32 %v1443, %v3067
    %v3069 = vrot.slane %v2688, %v3068
    %v3070 = vsel %vm1448, %v3069, %v3065
    %v3071 = vlaneseq
    %v3072 = vshrl.u32 %v3071, 7
    %v3073 = vsub.s32 %v1340, %v3072
    %v3074 = vrot.slane %v2689, %v3073
    %v3075 = vlaneseq
    %v3076 = vshrl.u32 %v3075, 7
    %v3077 = vsub.s32 %v1345, %v3076
    %v3078 = vrot.slane %v2690, %v3077
    %v3079 = vsel %vm1350, %v3078, %v3074
    %v3080 = vlaneseq
    %v3081 = vshrl.u32 %v3080, 7
    %v3082 = vsub.s32 %v1352, %v3081
    %v3083 = vrot.slane %v2691, %v3082
    %v3084 = vsel %vm1357, %v3083, %v3079
    %v3085 = vlaneseq
    %v3086 = vshrl.u32 %v3085, 7
    %v3087 = vsub.s32 %v1359, %v3086
    %v3088 = vrot.slane %v2692, %v3087
    %v3089 = vsel %vm1364, %v3088, %v3084
    %v3090 = vlaneseq
    %v3091 = vshrl.u32 %v3090, 7
    %v3092 = vsub.s32 %v1366, %v3091
    %v3093 = vrot.slane %v2693, %v3092
    %v3094 = vsel %vm1371, %v3093, %v3089
    %v3095 = vlaneseq
    %v3096 = vshrl.u32 %v3095, 7
    %v3097 = vsub.s32 %v1373, %v3096
    %v3098 = vrot.slane %v2694, %v3097
    %v3099 = vsel %vm1378, %v3098, %v3094
    %v3100 = vlaneseq
    %v3101 = vshrl.u32 %v3100, 7
    %v3102 = vsub.s32 %v1380, %v3101
    %v3103 = vrot.slane %v2695, %v3102
    %v3104 = vsel %vm1385, %v3103, %v3099
    %v3105 = vlaneseq
    %v3106 = vshrl.u32 %v3105, 7
    %v3107 = vsub.s32 %v1387, %v3106
    %v3108 = vrot.slane %v2696, %v3107
    %v3109 = vsel %vm1392, %v3108, %v3104
    %v3110 = vlaneseq
    %v3111 = vshrl.u32 %v3110, 7
    %v3112 = vsub.s32 %v1394, %v3111
    %v3113 = vrot.slane %v2697, %v3112
    %v3114 = vsel %vm1399, %v3113, %v3109
    %v3115 = vlaneseq
    %v3116 = vshrl.u32 %v3115, 7
    %v3117 = vsub.s32 %v1401, %v3116
    %v3118 = vrot.slane %v2698, %v3117
    %v3119 = vsel %vm1406, %v3118, %v3114
    %v3120 = vlaneseq
    %v3121 = vshrl.u32 %v3120, 7
    %v3122 = vsub.s32 %v1408, %v3121
    %v3123 = vrot.slane %v2699, %v3122
    %v3124 = vsel %vm1413, %v3123, %v3119
    %v3125 = vlaneseq
    %v3126 = vshrl.u32 %v3125, 7
    %v3127 = vsub.s32 %v1415, %v3126
    %v3128 = vrot.slane %v2700, %v3127
    %v3129 = vsel %vm1420, %v3128, %v3124
    %v3130 = vlaneseq
    %v3131 = vshrl.u32 %v3130, 7
    %v3132 = vsub.s32 %v1422, %v3131
    %v3133 = vrot.slane %v2701, %v3132
    %v3134 = vsel %vm1427, %v3133, %v3129
    %v3135 = vlaneseq
    %v3136 = vshrl.u32 %v3135, 7
    %v3137 = vsub.s32 %v1429, %v3136
    %v3138 = vrot.slane %v2702, %v3137
    %v3139 = vsel %vm1434, %v3138, %v3134
    %v3140 = vlaneseq
    %v3141 = vshrl.u32 %v3140, 7
    %v3142 = vsub.s32 %v1436, %v3141
    %v3143 = vrot.slane %v2703, %v3142
    %v3144 = vsel %vm1441, %v3143, %v3139
    %v3145 = vlaneseq
    %v3146 = vshrl.u32 %v3145, 7
    %v3147 = vsub.s32 %v1443, %v3146
    %v3148 = vrot.slane %v2704, %v3147
    %v3149 = vsel %vm1448, %v3148, %v3144
    %v3150 = vlaneseq
    %v3151 = vshrl.u32 %v3150, 7
    %v3152 = vsub.s32 %v1340, %v3151
    %v3153 = vrot.slane %v2705, %v3152
    %v3154 = vlaneseq
    %v3155 = vshrl.u32 %v3154, 7
    %v3156 = vsub.s32 %v1345, %v3155
    %v3157 = vrot.slane %v2706, %v3156
    %v3158 = vsel %vm1350, %v3157, %v3153
    %v3159 = vlaneseq
    %v3160 = vshrl.u32 %v3159, 7
    %v3161 = vsub.s32 %v1352, %v3160
    %v3162 = vrot.slane %v2707, %v3161
    %v3163 = vsel %vm1357, %v3162, %v3158
    %v3164 = vlaneseq
    %v3165 = vshrl.u32 %v3164, 7
    %v3166 = vsub.s32 %v1359, %v3165
    %v3167 = vrot.slane %v2708, %v3166
    %v3168 = vsel %vm1364, %v3167, %v3163
    %v3169 = vlaneseq
    %v3170 = vshrl.u32 %v3169, 7
    %v3171 = vsub.s32 %v1366, %v3170
    %v3172 = vrot.slane %v2709, %v3171
    %v3173 = vsel %vm1371, %v3172, %v3168
    %v3174 = vlaneseq
    %v3175 = vshrl.u32 %v3174, 7
    %v3176 = vsub.s32 %v1373, %v3175
    %v3177 = vrot.slane %v2710, %v3176
    %v3178 = vsel %vm1378, %v3177, %v3173
    %v3179 = vlaneseq
    %v3180 = vshrl.u32 %v3179, 7
    %v3181 = vsub.s32 %v1380, %v3180
    %v3182 = vrot.slane %v2711, %v3181
    %v3183 = vsel %vm1385, %v3182, %v3178
    %v3184 = vlaneseq
    %v3185 = vshrl.u32 %v3184, 7
    %v3186 = vsub.s32 %v1387, %v3185
    %v3187 = vrot.slane %v2712, %v3186
    %v3188 = vsel %vm1392, %v3187, %v3183
    %v3189 = vlaneseq
    %v3190 = vshrl.u32 %v3189, 7
    %v3191 = vsub.s32 %v1394, %v3190
    %v3192 = vrot.slane %v2713, %v3191
    %v3193 = vsel %vm1399, %v3192, %v3188
    %v3194 = vlaneseq
    %v3195 = vshrl.u32 %v3194, 7
    %v3196 = vsub.s32 %v1401, %v3195
    %v3197 = vrot.slane %v2714, %v3196
    %v3198 = vsel %vm1406, %v3197, %v3193
    %v3199 = vlaneseq
    %v3200 = vshrl.u32 %v3199, 7
    %v3201 = vsub.s32 %v1408, %v3200
    %v3202 = vrot.slane %v2715, %v3201
    %v3203 = vsel %vm1413, %v3202, %v3198
    %v3204 = vlaneseq
    %v3205 = vshrl.u32 %v3204, 7
    %v3206 = vsub.s32 %v1415, %v3205
    %v3207 = vrot.slane %v2716, %v3206
    %v3208 = vsel %vm1420, %v3207, %v3203
    %v3209 = vlaneseq
    %v3210 = vshrl.u32 %v3209, 7
    %v3211 = vsub.s32 %v1422, %v3210
    %v3212 = vrot.slane %v2717, %v3211
    %v3213 = vsel %vm1427, %v3212, %v3208
    %v3214 = vlaneseq
    %v3215 = vshrl.u32 %v3214, 7
    %v3216 = vsub.s32 %v1429, %v3215
    %v3217 = vrot.slane %v2718, %v3216
    %v3218 = vsel %vm1434, %v3217, %v3213
    %v3219 = vlaneseq
    %v3220 = vshrl.u32 %v3219, 7
    %v3221 = vsub.s32 %v1436, %v3220
    %v3222 = vrot.slane %v2719, %v3221
    %v3223 = vsel %vm1441, %v3222, %v3218
    %v3224 = vlaneseq
    %v3225 = vshrl.u32 %v3224, 7
    %v3226 = vsub.s32 %v1443, %v3225
    %v3227 = vrot.slane %v2720, %v3226
    %v3228 = vsel %vm1448, %v3227, %v3223
    %v3229 = vlaneseq
    %v3230 = vshrl.u32 %v3229, 7
    %v3231 = vsub.s32 %v1340, %v3230
    %v3232 = vrot.slane %v2721, %v3231
    %v3233 = vlaneseq
    %v3234 = vshrl.u32 %v3233, 7
    %v3235 = vsub.s32 %v1345, %v3234
    %v3236 = vrot.slane %v2722, %v3235
    %v3237 = vsel %vm1350, %v3236, %v3232
    %v3238 = vlaneseq
    %v3239 = vshrl.u32 %v3238, 7
    %v3240 = vsub.s32 %v1352, %v3239
    %v3241 = vrot.slane %v2723, %v3240
    %v3242 = vsel %vm1357, %v3241, %v3237
    %v3243 = vlaneseq
    %v3244 = vshrl.u32 %v3243, 7
    %v3245 = vsub.s32 %v1359, %v3244
    %v3246 = vrot.slane %v2724, %v3245
    %v3247 = vsel %vm1364, %v3246, %v3242
    %v3248 = vlaneseq
    %v3249 = vshrl.u32 %v3248, 7
    %v3250 = vsub.s32 %v1366, %v3249
    %v3251 = vrot.slane %v2725, %v3250
    %v3252 = vsel %vm1371, %v3251, %v3247
    %v3253 = vlaneseq
    %v3254 = vshrl.u32 %v3253, 7
    %v3255 = vsub.s32 %v1373, %v3254
    %v3256 = vrot.slane %v2726, %v3255
    %v3257 = vsel %vm1378, %v3256, %v3252
    %v3258 = vlaneseq
    %v3259 = vshrl.u32 %v3258, 7
    %v3260 = vsub.s32 %v1380, %v3259
    %v3261 = vrot.slane %v2727, %v3260
    %v3262 = vsel %vm1385, %v3261, %v3257
    %v3263 = vlaneseq
    %v3264 = vshrl.u32 %v3263, 7
    %v3265 = vsub.s32 %v1387, %v3264
    %v3266 = vrot.slane %v2728, %v3265
    %v3267 = vsel %vm1392, %v3266, %v3262
    %v3268 = vlaneseq
    %v3269 = vshrl.u32 %v3268, 7
    %v3270 = vsub.s32 %v1394, %v3269
    %v3271 = vrot.slane %v2729, %v3270
    %v3272 = vsel %vm1399, %v3271, %v3267
    %v3273 = vlaneseq
    %v3274 = vshrl.u32 %v3273, 7
    %v3275 = vsub.s32 %v1401, %v3274
    %v3276 = vrot.slane %v2730, %v3275
    %v3277 = vsel %vm1406, %v3276, %v3272
    %v3278 = vlaneseq
    %v3279 = vshrl.u32 %v3278, 7
    %v3280 = vsub.s32 %v1408, %v3279
    %v3281 = vrot.slane %v2731, %v3280
    %v3282 = vsel %vm1413, %v3281, %v3277
    %v3283 = vlaneseq
    %v3284 = vshrl.u32 %v3283, 7
    %v3285 = vsub.s32 %v1415, %v3284
    %v3286 = vrot.slane %v2732, %v3285
    %v3287 = vsel %vm1420, %v3286, %v3282
    %v3288 = vlaneseq
    %v3289 = vshrl.u32 %v3288, 7
    %v3290 = vsub.s32 %v1422, %v3289
    %v3291 = vrot.slane %v2733, %v3290
    %v3292 = vsel %vm1427, %v3291, %v3287
    %v3293 = vlaneseq
    %v3294 = vshrl.u32 %v3293, 7
    %v3295 = vsub.s32 %v1429, %v3294
    %v3296 = vrot.slane %v2734, %v3295
    %v3297 = vsel %vm1434, %v3296, %v3292
    %v3298 = vlaneseq
    %v3299 = vshrl.u32 %v3298, 7
    %v3300 = vsub.s32 %v1436, %v3299
    %v3301 = vrot.slane %v2735, %v3300
    %v3302 = vsel %vm1441, %v3301, %v3297
    %v3303 = vlaneseq
    %v3304 = vshrl.u32 %v3303, 7
    %v3305 = vsub.s32 %v1443, %v3304
    %v3306 = vrot.slane %v2736, %v3305
    %v3307 = vsel %vm1448, %v3306, %v3302
    %v3308 = vlaneseq
    %v3309 = vshrl.u32 %v3308, 7
    %v3310 = vsub.s32 %v1340, %v3309
    %v3311 = vrot.slane %v2737, %v3310
    %v3312 = vlaneseq
    %v3313 = vshrl.u32 %v3312, 7
    %v3314 = vsub.s32 %v1345, %v3313
    %v3315 = vrot.slane %v2738, %v3314
    %v3316 = vsel %vm1350, %v3315, %v3311
    %v3317 = vlaneseq
    %v3318 = vshrl.u32 %v3317, 7
    %v3319 = vsub.s32 %v1352, %v3318
    %v3320 = vrot.slane %v2739, %v3319
    %v3321 = vsel %vm1357, %v3320, %v3316
    %v3322 = vlaneseq
    %v3323 = vshrl.u32 %v3322, 7
    %v3324 = vsub.s32 %v1359, %v3323
    %v3325 = vrot.slane %v2740, %v3324
    %v3326 = vsel %vm1364, %v3325, %v3321
    %v3327 = vlaneseq
    %v3328 = vshrl.u32 %v3327, 7
    %v3329 = vsub.s32 %v1366, %v3328
    %v3330 = vrot.slane %v2741, %v3329
    %v3331 = vsel %vm1371, %v3330, %v3326
    %v3332 = vlaneseq
    %v3333 = vshrl.u32 %v3332, 7
    %v3334 = vsub.s32 %v1373, %v3333
    %v3335 = vrot.slane %v2742, %v3334
    %v3336 = vsel %vm1378, %v3335, %v3331
    %v3337 = vlaneseq
    %v3338 = vshrl.u32 %v3337, 7
    %v3339 = vsub.s32 %v1380, %v3338
    %v3340 = vrot.slane %v2743, %v3339
    %v3341 = vsel %vm1385, %v3340, %v3336
    %v3342 = vlaneseq
    %v3343 = vshrl.u32 %v3342, 7
    %v3344 = vsub.s32 %v1387, %v3343
    %v3345 = vrot.slane %v2744, %v3344
    %v3346 = vsel %vm1392, %v3345, %v3341
    %v3347 = vlaneseq
    %v3348 = vshrl.u32 %v3347, 7
    %v3349 = vsub.s32 %v1394, %v3348
    %v3350 = vrot.slane %v2745, %v3349
    %v3351 = vsel %vm1399, %v3350, %v3346
    %v3352 = vlaneseq
    %v3353 = vshrl.u32 %v3352, 7
    %v3354 = vsub.s32 %v1401, %v3353
    %v3355 = vrot.slane %v2746, %v3354
    %v3356 = vsel %vm1406, %v3355, %v3351
    %v3357 = vlaneseq
    %v3358 = vshrl.u32 %v3357, 7
    %v3359 = vsub.s32 %v1408, %v3358
    %v3360 = vrot.slane %v2747, %v3359
    %v3361 = vsel %vm1413, %v3360, %v3356
    %v3362 = vlaneseq
    %v3363 = vshrl.u32 %v3362, 7
    %v3364 = vsub.s32 %v1415, %v3363
    %v3365 = vrot.slane %v2748, %v3364
    %v3366 = vsel %vm1420, %v3365, %v3361
    %v3367 = vlaneseq
    %v3368 = vshrl.u32 %v3367, 7
    %v3369 = vsub.s32 %v1422, %v3368
    %v3370 = vrot.slane %v2749, %v3369
    %v3371 = vsel %vm1427, %v3370, %v3366
    %v3372 = vlaneseq
    %v3373 = vshrl.u32 %v3372, 7
    %v3374 = vsub.s32 %v1429, %v3373
    %v3375 = vrot.slane %v2750, %v3374
    %v3376 = vsel %vm1434, %v3375, %v3371
    %v3377 = vlaneseq
    %v3378 = vshrl.u32 %v3377, 7
    %v3379 = vsub.s32 %v1436, %v3378
    %v3380 = vrot.slane %v2751, %v3379
    %v3381 = vsel %vm1441, %v3380, %v3376
    %v3382 = vlaneseq
    %v3383 = vshrl.u32 %v3382, 7
    %v3384 = vsub.s32 %v1443, %v3383
    %v3385 = vrot.slane %v2752, %v3384
    %v3386 = vsel %vm1448, %v3385, %v3381
    %v3387 = vlaneseq
    %v3388 = vshrl.u32 %v3387, 7
    %v3389 = vsub.s32 %v1340, %v3388
    %v3390 = vrot.slane %v2753, %v3389
    %v3391 = vlaneseq
    %v3392 = vshrl.u32 %v3391, 7
    %v3393 = vsub.s32 %v1345, %v3392
    %v3394 = vrot.slane %v2754, %v3393
    %v3395 = vsel %vm1350, %v3394, %v3390
    %v3396 = vlaneseq
    %v3397 = vshrl.u32 %v3396, 7
    %v3398 = vsub.s32 %v1352, %v3397
    %v3399 = vrot.slane %v2755, %v3398
    %v3400 = vsel %vm1357, %v3399, %v3395
    %v3401 = vlaneseq
    %v3402 = vshrl.u32 %v3401, 7
    %v3403 = vsub.s32 %v1359, %v3402
    %v3404 = vrot.slane %v2756, %v3403
    %v3405 = vsel %vm1364, %v3404, %v3400
    %v3406 = vlaneseq
    %v3407 = vshrl.u32 %v3406, 7
    %v3408 = vsub.s32 %v1366, %v3407
    %v3409 = vrot.slane %v2757, %v3408
    %v3410 = vsel %vm1371, %v3409, %v3405
    %v3411 = vlaneseq
    %v3412 = vshrl.u32 %v3411, 7
    %v3413 = vsub.s32 %v1373, %v3412
    %v3414 = vrot.slane %v2758, %v3413
    %v3415 = vsel %vm1378, %v3414, %v3410
    %v3416 = vlaneseq
    %v3417 = vshrl.u32 %v3416, 7
    %v3418 = vsub.s32 %v1380, %v3417
    %v3419 = vrot.slane %v2759, %v3418
    %v3420 = vsel %vm1385, %v3419, %v3415
    %v3421 = vlaneseq
    %v3422 = vshrl.u32 %v3421, 7
    %v3423 = vsub.s32 %v1387, %v3422
    %v3424 = vrot.slane %v2760, %v3423
    %v3425 = vsel %vm1392, %v3424, %v3420
    %v3426 = vlaneseq
    %v3427 = vshrl.u32 %v3426, 7
    %v3428 = vsub.s32 %v1394, %v3427
    %v3429 = vrot.slane %v2761, %v3428
    %v3430 = vsel %vm1399, %v3429, %v3425
    %v3431 = vlaneseq
    %v3432 = vshrl.u32 %v3431, 7
    %v3433 = vsub.s32 %v1401, %v3432
    %v3434 = vrot.slane %v2762, %v3433
    %v3435 = vsel %vm1406, %v3434, %v3430
    %v3436 = vlaneseq
    %v3437 = vshrl.u32 %v3436, 7
    %v3438 = vsub.s32 %v1408, %v3437
    %v3439 = vrot.slane %v2763, %v3438
    %v3440 = vsel %vm1413, %v3439, %v3435
    %v3441 = vlaneseq
    %v3442 = vshrl.u32 %v3441, 7
    %v3443 = vsub.s32 %v1415, %v3442
    %v3444 = vrot.slane %v2764, %v3443
    %v3445 = vsel %vm1420, %v3444, %v3440
    %v3446 = vlaneseq
    %v3447 = vshrl.u32 %v3446, 7
    %v3448 = vsub.s32 %v1422, %v3447
    %v3449 = vrot.slane %v2765, %v3448
    %v3450 = vsel %vm1427, %v3449, %v3445
    %v3451 = vlaneseq
    %v3452 = vshrl.u32 %v3451, 7
    %v3453 = vsub.s32 %v1429, %v3452
    %v3454 = vrot.slane %v2766, %v3453
    %v3455 = vsel %vm1434, %v3454, %v3450
    %v3456 = vlaneseq
    %v3457 = vshrl.u32 %v3456, 7
    %v3458 = vsub.s32 %v1436, %v3457
    %v3459 = vrot.slane %v2767, %v3458
    %v3460 = vsel %vm1441, %v3459, %v3455
    %v3461 = vlaneseq
    %v3462 = vshrl.u32 %v3461, 7
    %v3463 = vsub.s32 %v1443, %v3462
    %v3464 = vrot.slane %v2768, %v3463
    %v3465 = vsel %vm1448, %v3464, %v3460
    %v3466 = vlaneseq
    %v3467 = vshrl.u32 %v3466, 7
    %v3468 = vsub.s32 %v1340, %v3467
    %v3469 = vrot.slane %v2769, %v3468
    %v3470 = vlaneseq
    %v3471 = vshrl.u32 %v3470, 7
    %v3472 = vsub.s32 %v1345, %v3471
    %v3473 = vrot.slane %v2770, %v3472
    %v3474 = vsel %vm1350, %v3473, %v3469
    %v3475 = vlaneseq
    %v3476 = vshrl.u32 %v3475, 7
    %v3477 = vsub.s32 %v1352, %v3476
    %v3478 = vrot.slane %v2771, %v3477
    %v3479 = vsel %vm1357, %v3478, %v3474
    %v3480 = vlaneseq
    %v3481 = vshrl.u32 %v3480, 7
    %v3482 = vsub.s32 %v1359, %v3481
    %v3483 = vrot.slane %v2772, %v3482
    %v3484 = vsel %vm1364, %v3483, %v3479
    %v3485 = vlaneseq
    %v3486 = vshrl.u32 %v3485, 7
    %v3487 = vsub.s32 %v1366, %v3486
    %v3488 = vrot.slane %v2773, %v3487
    %v3489 = vsel %vm1371, %v3488, %v3484
    %v3490 = vlaneseq
    %v3491 = vshrl.u32 %v3490, 7
    %v3492 = vsub.s32 %v1373, %v3491
    %v3493 = vrot.slane %v2774, %v3492
    %v3494 = vsel %vm1378, %v3493, %v3489
    %v3495 = vlaneseq
    %v3496 = vshrl.u32 %v3495, 7
    %v3497 = vsub.s32 %v1380, %v3496
    %v3498 = vrot.slane %v2775, %v3497
    %v3499 = vsel %vm1385, %v3498, %v3494
    %v3500 = vlaneseq
    %v3501 = vshrl.u32 %v3500, 7
    %v3502 = vsub.s32 %v1387, %v3501
    %v3503 = vrot.slane %v2776, %v3502
    %v3504 = vsel %vm1392, %v3503, %v3499
    %v3505 = vlaneseq
    %v3506 = vshrl.u32 %v3505, 7
    %v3507 = vsub.s32 %v1394, %v3506
    %v3508 = vrot.slane %v2777, %v3507
    %v3509 = vsel %vm1399, %v3508, %v3504
    %v3510 = vlaneseq
    %v3511 = vshrl.u32 %v3510, 7
    %v3512 = vsub.s32 %v1401, %v3511
    %v3513 = vrot.slane %v2778, %v3512
    %v3514 = vsel %vm1406, %v3513, %v3509
    %v3515 = vlaneseq
    %v3516 = vshrl.u32 %v3515, 7
    %v3517 = vsub.s32 %v1408, %v3516
    %v3518 = vrot.slane %v2779, %v3517
    %v3519 = vsel %vm1413, %v3518, %v3514
    %v3520 = vlaneseq
    %v3521 = vshrl.u32 %v3520, 7
    %v3522 = vsub.s32 %v1415, %v3521
    %v3523 = vrot.slane %v2780, %v3522
    %v3524 = vsel %vm1420, %v3523, %v3519
    %v3525 = vlaneseq
    %v3526 = vshrl.u32 %v3525, 7
    %v3527 = vsub.s32 %v1422, %v3526
    %v3528 = vrot.slane %v2781, %v3527
    %v3529 = vsel %vm1427, %v3528, %v3524
    %v3530 = vlaneseq
    %v3531 = vshrl.u32 %v3530, 7
    %v3532 = vsub.s32 %v1429, %v3531
    %v3533 = vrot.slane %v2782, %v3532
    %v3534 = vsel %vm1434, %v3533, %v3529
    %v3535 = vlaneseq
    %v3536 = vshrl.u32 %v3535, 7
    %v3537 = vsub.s32 %v1436, %v3536
    %v3538 = vrot.slane %v2783, %v3537
    %v3539 = vsel %vm1441, %v3538, %v3534
    %v3540 = vlaneseq
    %v3541 = vshrl.u32 %v3540, 7
    %v3542 = vsub.s32 %v1443, %v3541
    %v3543 = vrot.slane %v2784, %v3542
    %v3544 = vsel %vm1448, %v3543, %v3539
    %v3545 = vsel %vm2003, %v3070, %v2991
    %v3546 = vsel %vm2005, %v3149, %v3545
    %v3547 = vsel %vm2007, %v3228, %v3546
    %v3548 = vsel %vm2009, %v3307, %v3547
    %v3549 = vsel %vm2011, %v3386, %v3548
    %v3550 = vsel %vm2013, %v3465, %v3549
    %v3551 = vsel %vm2015, %v3544, %v3550
    %3553 = vst [vmem:[#allocation16 + $0x8] sm:$0xff] %v3551
    // Predicated region
    $region66: #{tpu_custom_call.1} parent=1 // pred_check
      _
    $region67: #{tpu_custom_call.1} parent=1 // pred_check_branch
      %3555 = sbr.rel (0) target = $region69
    $region68: #{tpu_custom_call.1} parent=1 // pred_region
      %s3557 = ssub.s32 256, 256
      %3558 = vsyncadd [#allocation4], %s3557
      %s3559 = sshll.u32 [#allocation16], 4
      %s3560 = int_to_ptr.vmem [resolvable:$true] %s3559
      %3565 = dma.vmem_to_hbm [thread:$0]  %s3560, 256, %s8, [#allocation4], 128, 128, 8
    $region69: #{tpu_custom_call.1} parent=1 // pred_fallthru
      _
    // Predicated region
    $region70: #{tpu_custom_call.1} parent=1 // pred_check
      _
    $region71: #{tpu_custom_call.1} parent=1 // pred_check_branch
      %3567 = sbr.rel (0) target = $region73
    $region72: #{tpu_custom_call.1} parent=1 // pred_region
      %3568 = dma.done [#allocation4], 256
    $region73: #{tpu_custom_call.1} parent=1 // pred_fallthru
      _
    %3569 = vsyncpa [#allocation3], 1
    %3570 = vsyncpa [#allocation6], 1
    %3571 = vsyncpa [#allocation9], 1
    %3572 = vsyncpa [#allocation12], 1
    %3573 = vsyncpa [#allocation15], 1
    %3574 = vsyncpa [#allocation4], 1

</llo_original>
